<compile_context>
chip_gen: v5e
topology: v5e:2x2
jax: 0.10.0
libtpu: 0.0.40
codegen_flags: <defaults>
</compile_context>

<pallas_src>
import functools

import jax
import jax.numpy as jnp
from jax.experimental import pallas as pl
from jax.experimental.pallas import tpu as pltpu

LANE = 128       # feature dims padded to lane width -> lane-dense (unmasked) stores
ROW_TILE = 512   # output-row tile of the aggregation matmul
K_TILE = 1024    # reduction tile over the neighbor (source-node) axis
NODE_PAD = 1024  # lcm(ROW_TILE, K_TILE): node axis always padded to this multiple


def _round_up(x, m):
    return (x + m - 1) // m * m


# ---------------------------------------------------------------------------
# Kernel 1: per-row-tile projection of neighbor features
#   H = X @ Wl   (bf16 operands, f32 MXU accumulation, bf16 result)
# ---------------------------------------------------------------------------
def _project_kernel(x_ref, wl_ref, h_ref):
    h = jnp.dot(x_ref[...], wl_ref[...], preferred_element_type=jnp.float32)
    h_ref[...] = h.astype(h_ref.dtype)


# ---------------------------------------------------------------------------
# Kernel 2: tiled mean-aggregation matmul with f32 accumulator + fused root term
#   out[i] = act( sum_k A[i, k] @ H[k]  +  X[i] @ Wr + b )
# grid = (row_tiles, k_tiles); reduction axis is the innermost ("arbitrary") one.
# ---------------------------------------------------------------------------
def _aggregate_kernel(a_ref, h_ref, x_ref, wr_ref, b_ref, o_ref, acc_ref,
                      *, apply_relu):
    k = pl.program_id(1)

    @pl.when(k == 0)
    def _():
        acc_ref[...] = jnp.zeros_like(acc_ref)

    acc_ref[...] += jnp.dot(a_ref[...], h_ref[...],
                            preferred_element_type=jnp.float32)

    @pl.when(k == pl.num_programs(1) - 1)
    def _():
        root = jnp.dot(x_ref[...], wr_ref[...], preferred_element_type=jnp.float32)
        out = acc_ref[...] + root + b_ref[...]
        if apply_relu:
            out = jnp.maximum(out, 0.0)
        o_ref[...] = out.astype(o_ref.dtype)


def sage_layer(a_bf16, x, w_l, w_r, b, *, apply_relu, out_dtype, row_tile, k_tile):
    """One SAGEConv layer on padded, lane-dense arrays.

    a_bf16 : (Np, Np) bf16 row-normalized adjacency
    x      : (Np, Fin) bf16 activations
    w_l/w_r: (Fin, Fout) bf16 weights, b: (1, Fout) f32 bias
    """
    np_, fp_in = x.shape
    fp_out = w_l.shape[1]

    # (1) projection of neighbor features: H = X @ Wl  (bf16)
    h = pl.pallas_call(
        _project_kernel,
        out_shape=jax.ShapeDtypeStruct((np_, fp_out), jnp.bfloat16),
        grid=(np_ // row_tile,),
        in_specs=[
            pl.BlockSpec((row_tile, fp_in), lambda i: (i, 0)),
            pl.BlockSpec((fp_in, fp_out), lambda i: (0, 0)),
        ],
        out_specs=pl.BlockSpec((row_tile, fp_out), lambda i: (i, 0)),
        compiler_params=pltpu.CompilerParams(dimension_semantics=("parallel",)),
    )(x, w_l)

    # (2) aggregation + fused root term: out = act(A @ H + X @ Wr + b)
    kernel = functools.partial(_aggregate_kernel, apply_relu=apply_relu)
    out = pl.pallas_call(
        kernel,
        out_shape=jax.ShapeDtypeStruct((np_, fp_out), out_dtype),
        grid=(np_ // row_tile, np_ // k_tile),
        in_specs=[
            pl.BlockSpec((row_tile, k_tile), lambda i, k: (i, k)),   # A tile  (bf16)
            pl.BlockSpec((k_tile, fp_out), lambda i, k: (k, 0)),     # H tile  (bf16)
            pl.BlockSpec((row_tile, fp_in), lambda i, k: (i, 0)),    # X rows  (bf16)
            pl.BlockSpec((fp_in, fp_out), lambda i, k: (0, 0)),      # Wr      (bf16)
            pl.BlockSpec((1, fp_out), lambda i, k: (0, 0)),          # bias    (f32)
        ],
        out_specs=pl.BlockSpec((row_tile, fp_out), lambda i, k: (i, 0)),
        scratch_shapes=[pltpu.VMEM((row_tile, fp_out), jnp.float32)],
        compiler_params=pltpu.CompilerParams(
            dimension_semantics=("parallel", "arbitrary")),
    )(a_bf16, h, x, w_r, b)
    return out


# ---------------------------------------------------------------------------
# Host-side helpers
# ---------------------------------------------------------------------------
def build_mean_adj(edge_index, num_nodes, padded_nodes):
    """Row-normalized dense adjacency at padded size, cast to bf16.
    A[t, s] = 1/deg_in(t) per edge s->t; zero rows for nodes with no in-edges
    (mean over empty set = 0, matching PyG). Padded rows/cols are zero."""
    del num_nodes  # duplicate edges counted as separate messages (matches PyG mean)
    src = edge_index[0]
    dst = edge_index[1]
    a = jnp.zeros((padded_nodes, padded_nodes), jnp.float32).at[dst, src].add(1.0)
    deg = a.sum(axis=1, keepdims=True)
    a = a / jnp.where(deg > 0, deg, 1.0)
    return a.astype(jnp.bfloat16)


def init_sage_params(key, in_channels, hidden_channels, out_channels, num_layers):
    dims = [in_channels] + [hidden_channels] * (num_layers - 1) + [out_channels]
    params = []
    for i in range(num_layers):
        f_in, f_out = dims[i], dims[i + 1]
        key, k1, k2, k3 = jax.random.split(key, 4)
        scale = 1.0 / jnp.sqrt(jnp.float32(f_in))
        w_l = jax.random.uniform(k1, (f_in, f_out), jnp.float32, -scale, scale)
        w_r = jax.random.uniform(k2, (f_in, f_out), jnp.float32, -scale, scale)
        b = jax.random.uniform(k3, (f_out,), jnp.float32, -scale, scale)
        params.append((w_l, w_r, b))
    return params


def _pad_params(params):
    """Zero-pad weights/bias to lane-dense dims; weights go bf16, bias stays f32."""
    padded = []
    for w_l, w_r, b in params:
        f_in, f_out = w_l.shape
        fp_in, fp_out = _round_up(f_in, LANE), _round_up(f_out, LANE)
        wl_p = jnp.zeros((fp_in, fp_out), jnp.float32).at[:f_in, :f_out].set(w_l)
        wr_p = jnp.zeros((fp_in, fp_out), jnp.float32).at[:f_in, :f_out].set(w_r)
        b_p = jnp.zeros((1, fp_out), jnp.float32).at[0, :f_out].set(b)
        padded.append((wl_p.astype(jnp.bfloat16), wr_p.astype(jnp.bfloat16), b_p))
    return padded


def sage_forward(x, edge_index, params):
    n, f_in = x.shape
    # Pad node axis to a multiple of lcm(ROW_TILE, K_TILE); zero padding is exact
    # (padded A rows/cols and padded weight rows/cols are zero).
    np_ = max(_round_up(n, NODE_PAD), NODE_PAD)

    a = build_mean_adj(edge_index, n, np_)
    fp_in = _round_up(f_in, LANE)
    h = jnp.zeros((np_, fp_in), jnp.bfloat16).at[:n, :f_in].set(
        x.astype(jnp.bfloat16))

    padded = _pad_params(params)
    num_layers = len(params)
    for i, (w_l, w_r, b) in enumerate(padded):
        last = i == num_layers - 1
        h = sage_layer(a, h, w_l, w_r, b,
                       apply_relu=not last,
                       out_dtype=jnp.float32 if last else jnp.bfloat16,
                       row_tile=ROW_TILE, k_tile=K_TILE)
        # dropout(p=0.5) is identity in eval/inference mode.

    out_channels = params[-1][0].shape[1]
    return h[:n, :out_channels].astype(jnp.float32)


if __name__ == "__main__":
    key = jax.random.PRNGKey(0)
    num_nodes = 64
    num_edges = 256
    in_channels, hidden_channels, out_channels, num_layers = 16, 32, 8, 3

    key, kx, ke, kp = jax.random.split(key, 4)
    x = jax.random.normal(kx, (num_nodes, in_channels), jnp.float32)
    edge_index = jax.random.randint(ke, (2, num_edges), 0, num_nodes, jnp.int32)
    params = init_sage_params(kp, in_channels, hidden_channels, out_channels,
                              num_layers)

    out = jax.jit(sage_forward)(x, edge_index, params)
    out = jax.block_until_ready(out)
    assert out.shape == (num_nodes, out_channels)
    print("KERNEL_OK")
</pallas_src>

<mosaic_0001>
module attributes {stable_mosaic.version = 11 : i64} {
  func.func @_project_kernel(%arg0: i32, %arg1: memref<512x128xbf16, #tpu.memory_space<vmem>>, %arg2: memref<128x128xbf16, #tpu.memory_space<vmem>>, %arg3: memref<512x128xbf16, #tpu.memory_space<vmem>>) attributes {dimension_semantics = [#tpu.dimension_semantics<parallel>], iteration_bounds = array<i64: 2>, scalar_prefetch = 0 : i64, scratch_operands = 0 : i64, tpu.core_type = #tpu.core_type<tc>, window_params = [{transform_indices = @transform_0, window_bounds = array<i64: 512, 128>}, {pipeline_mode = #tpu.pipeline_mode<synchronous>, transform_indices = @transform_1, window_bounds = array<i64: 128, 128>}, {transform_indices = @transform_2, window_bounds = array<i64: 512, 128>}]} {
    %c0 = arith.constant 0 : index
    %c0_0 = arith.constant 0 : index
    %0 = vector.load %arg1[%c0, %c0_0] : memref<512x128xbf16, #tpu.memory_space<vmem>>, vector<512x128xbf16>
    %c0_1 = arith.constant 0 : index
    %c0_2 = arith.constant 0 : index
    %1 = vector.load %arg2[%c0_1, %c0_2] : memref<128x128xbf16, #tpu.memory_space<vmem>>, vector<128x128xbf16>
    %cst = arith.constant dense<0.000000e+00> : vector<512x128xf32>
    %2 = tpu.matmul %0, %1, %cst {dimension_numbers = #tpu.dot_dimension_numbers<[1], [0], [0], [1], [0, 0, 1, 1], [], []>} : vector<512x128xbf16>, vector<128x128xbf16>, vector<512x128xf32> -> vector<512x128xf32>
    %3 = arith.truncf %2 : vector<512x128xf32> to vector<512x128xbf16>
    %c0_3 = arith.constant 0 : index
    %c0_4 = arith.constant 0 : index
    %4 = vector.load %arg3[%c0_3, %c0_4] : memref<512x128xbf16, #tpu.memory_space<vmem>>, vector<512x128xbf16>
    tpu.vector_store %arg3[%c0_3, %c0_4], %3 {strides = array<i32>} : memref<512x128xbf16, #tpu.memory_space<vmem>>, vector<512x128xbf16>,
    return
  }
  func.func @transform_0(%arg0: i32) -> (i32, i32) {
    %c0_i32 = arith.constant 0 : i32
    %c0_i32_0 = arith.constant 0 : i32
    return %arg0, %c0_i32 : i32, i32
  }
  func.func @transform_1(%arg0: i32) -> (i32, i32) {
    %c0_i32 = arith.constant 0 : i32
    %c0_i32_0 = arith.constant 0 : i32
    %c0_i32_1 = arith.constant 0 : i32
    return %c0_i32, %c0_i32_0 : i32, i32
  }
  func.func @transform_2(%arg0: i32) -> (i32, i32) {
    %c0_i32 = arith.constant 0 : i32
    %c0_i32_0 = arith.constant 0 : i32
    return %arg0, %c0_i32 : i32, i32
  }
}

module attributes {stable_mosaic.version = 11 : i64} {
  func.func @_aggregate_kernel(%arg0: i32, %arg1: i32, %arg2: memref<512x1024xbf16, #tpu.memory_space<vmem>>, %arg3: memref<1024x128xbf16, #tpu.memory_space<vmem>>, %arg4: memref<512x128xbf16, #tpu.memory_space<vmem>>, %arg5: memref<128x128xbf16, #tpu.memory_space<vmem>>, %arg6: memref<1x128xf32, #tpu.memory_space<vmem>>, %arg7: memref<512x128xbf16, #tpu.memory_space<vmem>>, %arg8: memref<512x128xf32, #tpu.memory_space<vmem>>) attributes {dimension_semantics = [#tpu.dimension_semantics<parallel>, #tpu.dimension_semantics<arbitrary>], iteration_bounds = array<i64: 2, 1>, scalar_prefetch = 0 : i64, scratch_operands = 1 : i64, tpu.core_type = #tpu.core_type<tc>, window_params = [{transform_indices = @transform_0, window_bounds = array<i64: 512, 1024>}, {transform_indices = @transform_1, window_bounds = array<i64: 1024, 128>}, {transform_indices = @transform_2, window_bounds = array<i64: 512, 128>}, {pipeline_mode = #tpu.pipeline_mode<synchronous>, transform_indices = @transform_3, window_bounds = array<i64: 128, 128>}, {pipeline_mode = #tpu.pipeline_mode<synchronous>, transform_indices = @transform_4, window_bounds = array<i64: 1, 128>}, {transform_indices = @transform_5, window_bounds = array<i64: 512, 128>}]} {
    %c0_i32 = arith.constant 0 : i32
    %0 = arith.cmpi eq, %arg1, %c0_i32 : i32
    %1 = arith.extui %0 : i1 to i32
    %c0_i32_0 = arith.constant 0 : i32
    %2 = arith.cmpi ne, %1, %c0_i32_0 : i32
    scf.if %2 {
      %cst_10 = arith.constant 0.000000e+00 : f32
      %12 = vector.broadcast %cst_10 : f32 to vector<512x128xf32>
      %c0_11 = arith.constant 0 : index
      %c0_12 = arith.constant 0 : index
      %13 = vector.load %arg8[%c0_11, %c0_12] : memref<512x128xf32, #tpu.memory_space<vmem>>, vector<512x128xf32>
      tpu.vector_store %arg8[%c0_11, %c0_12], %12 {strides = array<i32>} : memref<512x128xf32, #tpu.memory_space<vmem>>, vector<512x128xf32>,
    } else {
    }
    %c0 = arith.constant 0 : index
    %c0_1 = arith.constant 0 : index
    %3 = vector.load %arg8[%c0, %c0_1] : memref<512x128xf32, #tpu.memory_space<vmem>>, vector<512x128xf32>
    %c0_2 = arith.constant 0 : index
    %c0_3 = arith.constant 0 : index
    %4 = vector.load %arg2[%c0_2, %c0_3] : memref<512x1024xbf16, #tpu.memory_space<vmem>>, vector<512x1024xbf16>
    %c0_4 = arith.constant 0 : index
    %c0_5 = arith.constant 0 : index
    %5 = vector.load %arg3[%c0_4, %c0_5] : memref<1024x128xbf16, #tpu.memory_space<vmem>>, vector<1024x128xbf16>
    %cst = arith.constant dense<0.000000e+00> : vector<512x128xf32>
    %6 = tpu.matmul %4, %5, %cst {dimension_numbers = #tpu.dot_dimension_numbers<[1], [0], [0], [1], [0, 0, 1, 1], [], []>} : vector<512x1024xbf16>, vector<1024x128xbf16>, vector<512x128xf32> -> vector<512x128xf32>
    %7 = arith.addf %3, %6 : vector<512x128xf32>
    %c0_6 = arith.constant 0 : index
    %c0_7 = arith.constant 0 : index
    %8 = vector.load %arg8[%c0_6, %c0_7] : memref<512x128xf32, #tpu.memory_space<vmem>>, vector<512x128xf32>
    tpu.vector_store %arg8[%c0_6, %c0_7], %7 {strides = array<i32>} : memref<512x128xf32, #tpu.memory_space<vmem>>, vector<512x128xf32>,
    %c0_i32_8 = arith.constant 0 : i32
    %9 = arith.cmpi eq, %arg1, %c0_i32_8 : i32
    %10 = arith.extui %9 : i1 to i32
    %c0_i32_9 = arith.constant 0 : i32
    %11 = arith.cmpi ne, %10, %c0_i32_9 : i32
    scf.if %11 {
      %c0_10 = arith.constant 0 : index
      %c0_11 = arith.constant 0 : index
      %12 = vector.load %arg4[%c0_10, %c0_11] : memref<512x128xbf16, #tpu.memory_space<vmem>>, vector<512x128xbf16>
      %c0_12 = arith.constant 0 : index
      %c0_13 = arith.constant 0 : index
      %13 = vector.load %arg5[%c0_12, %c0_13] : memref<128x128xbf16, #tpu.memory_space<vmem>>, vector<128x128xbf16>
      %cst_14 = arith.constant dense<0.000000e+00> : vector<512x128xf32>
      %14 = tpu.matmul %12, %13, %cst_14 {dimension_numbers = #tpu.dot_dimension_numbers<[1], [0], [0], [1], [0, 0, 1, 1], [], []>} : vector<512x128xbf16>, vector<128x128xbf16>, vector<512x128xf32> -> vector<512x128xf32>
      %c0_15 = arith.constant 0 : index
      %c0_16 = arith.constant 0 : index
      %15 = vector.load %arg8[%c0_15, %c0_16] : memref<512x128xf32, #tpu.memory_space<vmem>>, vector<512x128xf32>
      %16 = arith.addf %15, %14 : vector<512x128xf32>
      %c0_17 = arith.constant 0 : index
      %c0_18 = arith.constant 0 : index
      %17 = vector.load %arg6[%c0_17, %c0_18] : memref<1x128xf32, #tpu.memory_space<vmem>>, vector<1x128xf32>
      %18 = vector.broadcast %17 : vector<1x128xf32> to vector<512x128xf32>
      %19 = arith.addf %16, %18 : vector<512x128xf32>
      %cst_19 = arith.constant 0.000000e+00 : f32
      %20 = vector.broadcast %cst_19 : f32 to vector<512x128xf32>
      %21 = arith.maximumf %19, %20 : vector<512x128xf32>
      %22 = arith.truncf %21 : vector<512x128xf32> to vector<512x128xbf16>
      %c0_20 = arith.constant 0 : index
      %c0_21 = arith.constant 0 : index
      %23 = vector.load %arg7[%c0_20, %c0_21] : memref<512x128xbf16, #tpu.memory_space<vmem>>, vector<512x128xbf16>
      tpu.vector_store %arg7[%c0_20, %c0_21], %22 {strides = array<i32>} : memref<512x128xbf16, #tpu.memory_space<vmem>>, vector<512x128xbf16>,
    } else {
    }
    return
  }
  func.func @transform_0(%arg0: i32, %arg1: i32) -> (i32, i32) {
    %c0_i32 = arith.constant 0 : i32
    return %arg0, %arg1 : i32, i32
  }
  func.func @transform_1(%arg0: i32, %arg1: i32) -> (i32, i32) {
    %c0_i32 = arith.constant 0 : i32
    %c0_i32_0 = arith.constant 0 : i32
    return %arg1, %c0_i32 : i32, i32
  }
  func.func @transform_2(%arg0: i32, %arg1: i32) -> (i32, i32) {
    %c0_i32 = arith.constant 0 : i32
    %c0_i32_0 = arith.constant 0 : i32
    return %arg0, %c0_i32 : i32, i32
  }
  func.func @transform_3(%arg0: i32, %arg1: i32) -> (i32, i32) {
    %c0_i32 = arith.constant 0 : i32
    %c0_i32_0 = arith.constant 0 : i32
    %c0_i32_1 = arith.constant 0 : i32
    return %c0_i32, %c0_i32_0 : i32, i32
  }
  func.func @transform_4(%arg0: i32, %arg1: i32) -> (i32, i32) {
    %c0_i32 = arith.constant 0 : i32
    %c0_i32_0 = arith.constant 0 : i32
    %c0_i32_1 = arith.constant 0 : i32
    return %c0_i32, %c0_i32_0 : i32, i32
  }
  func.func @transform_5(%arg0: i32, %arg1: i32) -> (i32, i32) {
    %c0_i32 = arith.constant 0 : i32
    %c0_i32_0 = arith.constant 0 : i32
    return %arg0, %c0_i32 : i32, i32
  }
}

module attributes {stable_mosaic.version = 11 : i64} {
  func.func @_aggregate_kernel(%arg0: i32, %arg1: i32, %arg2: memref<512x1024xbf16, #tpu.memory_space<vmem>>, %arg3: memref<1024x128xbf16, #tpu.memory_space<vmem>>, %arg4: memref<512x128xbf16, #tpu.memory_space<vmem>>, %arg5: memref<128x128xbf16, #tpu.memory_space<vmem>>, %arg6: memref<1x128xf32, #tpu.memory_space<vmem>>, %arg7: memref<512x128xf32, #tpu.memory_space<vmem>>, %arg8: memref<512x128xf32, #tpu.memory_space<vmem>>) attributes {dimension_semantics = [#tpu.dimension_semantics<parallel>, #tpu.dimension_semantics<arbitrary>], iteration_bounds = array<i64: 2, 1>, scalar_prefetch = 0 : i64, scratch_operands = 1 : i64, tpu.core_type = #tpu.core_type<tc>, window_params = [{transform_indices = @transform_0, window_bounds = array<i64: 512, 1024>}, {transform_indices = @transform_1, window_bounds = array<i64: 1024, 128>}, {transform_indices = @transform_2, window_bounds = array<i64: 512, 128>}, {pipeline_mode = #tpu.pipeline_mode<synchronous>, transform_indices = @transform_3, window_bounds = array<i64: 128, 128>}, {pipeline_mode = #tpu.pipeline_mode<synchronous>, transform_indices = @transform_4, window_bounds = array<i64: 1, 128>}, {transform_indices = @transform_5, window_bounds = array<i64: 512, 128>}]} {
    %c0_i32 = arith.constant 0 : i32
    %0 = arith.cmpi eq, %arg1, %c0_i32 : i32
    %1 = arith.extui %0 : i1 to i32
    %c0_i32_0 = arith.constant 0 : i32
    %2 = arith.cmpi ne, %1, %c0_i32_0 : i32
    scf.if %2 {
      %cst_10 = arith.constant 0.000000e+00 : f32
      %12 = vector.broadcast %cst_10 : f32 to vector<512x128xf32>
      %c0_11 = arith.constant 0 : index
      %c0_12 = arith.constant 0 : index
      %13 = vector.load %arg8[%c0_11, %c0_12] : memref<512x128xf32, #tpu.memory_space<vmem>>, vector<512x128xf32>
      tpu.vector_store %arg8[%c0_11, %c0_12], %12 {strides = array<i32>} : memref<512x128xf32, #tpu.memory_space<vmem>>, vector<512x128xf32>,
    } else {
    }
    %c0 = arith.constant 0 : index
    %c0_1 = arith.constant 0 : index
    %3 = vector.load %arg8[%c0, %c0_1] : memref<512x128xf32, #tpu.memory_space<vmem>>, vector<512x128xf32>
    %c0_2 = arith.constant 0 : index
    %c0_3 = arith.constant 0 : index
    %4 = vector.load %arg2[%c0_2, %c0_3] : memref<512x1024xbf16, #tpu.memory_space<vmem>>, vector<512x1024xbf16>
    %c0_4 = arith.constant 0 : index
    %c0_5 = arith.constant 0 : index
    %5 = vector.load %arg3[%c0_4, %c0_5] : memref<1024x128xbf16, #tpu.memory_space<vmem>>, vector<1024x128xbf16>
    %cst = arith.constant dense<0.000000e+00> : vector<512x128xf32>
    %6 = tpu.matmul %4, %5, %cst {dimension_numbers = #tpu.dot_dimension_numbers<[1], [0], [0], [1], [0, 0, 1, 1], [], []>} : vector<512x1024xbf16>, vector<1024x128xbf16>, vector<512x128xf32> -> vector<512x128xf32>
    %7 = arith.addf %3, %6 : vector<512x128xf32>
    %c0_6 = arith.constant 0 : index
    %c0_7 = arith.constant 0 : index
    %8 = vector.load %arg8[%c0_6, %c0_7] : memref<512x128xf32, #tpu.memory_space<vmem>>, vector<512x128xf32>
    tpu.vector_store %arg8[%c0_6, %c0_7], %7 {strides = array<i32>} : memref<512x128xf32, #tpu.memory_space<vmem>>, vector<512x128xf32>,
    %c0_i32_8 = arith.constant 0 : i32
    %9 = arith.cmpi eq, %arg1, %c0_i32_8 : i32
    %10 = arith.extui %9 : i1 to i32
    %c0_i32_9 = arith.constant 0 : i32
    %11 = arith.cmpi ne, %10, %c0_i32_9 : i32
    scf.if %11 {
      %c0_10 = arith.constant 0 : index
      %c0_11 = arith.constant 0 : index
      %12 = vector.load %arg4[%c0_10, %c0_11] : memref<512x128xbf16, #tpu.memory_space<vmem>>, vector<512x128xbf16>
      %c0_12 = arith.constant 0 : index
      %c0_13 = arith.constant 0 : index
      %13 = vector.load %arg5[%c0_12, %c0_13] : memref<128x128xbf16, #tpu.memory_space<vmem>>, vector<128x128xbf16>
      %cst_14 = arith.constant dense<0.000000e+00> : vector<512x128xf32>
      %14 = tpu.matmul %12, %13, %cst_14 {dimension_numbers = #tpu.dot_dimension_numbers<[1], [0], [0], [1], [0, 0, 1, 1], [], []>} : vector<512x128xbf16>, vector<128x128xbf16>, vector<512x128xf32> -> vector<512x128xf32>
      %c0_15 = arith.constant 0 : index
      %c0_16 = arith.constant 0 : index
      %15 = vector.load %arg8[%c0_15, %c0_16] : memref<512x128xf32, #tpu.memory_space<vmem>>, vector<512x128xf32>
      %16 = arith.addf %15, %14 : vector<512x128xf32>
      %c0_17 = arith.constant 0 : index
      %c0_18 = arith.constant 0 : index
      %17 = vector.load %arg6[%c0_17, %c0_18] : memref<1x128xf32, #tpu.memory_space<vmem>>, vector<1x128xf32>
      %18 = vector.broadcast %17 : vector<1x128xf32> to vector<512x128xf32>
      %19 = arith.addf %16, %18 : vector<512x128xf32>
      %c0_19 = arith.constant 0 : index
      %c0_20 = arith.constant 0 : index
      %20 = vector.load %arg7[%c0_19, %c0_20] : memref<512x128xf32, #tpu.memory_space<vmem>>, vector<512x128xf32>
      tpu.vector_store %arg7[%c0_19, %c0_20], %19 {strides = array<i32>} : memref<512x128xf32, #tpu.memory_space<vmem>>, vector<512x128xf32>,
    } else {
    }
    return
  }
  func.func @transform_0(%arg0: i32, %arg1: i32) -> (i32, i32) {
    %c0_i32 = arith.constant 0 : i32
    return %arg0, %arg1 : i32, i32
  }
  func.func @transform_1(%arg0: i32, %arg1: i32) -> (i32, i32) {
    %c0_i32 = arith.constant 0 : i32
    %c0_i32_0 = arith.constant 0 : i32
    return %arg1, %c0_i32 : i32, i32
  }
  func.func @transform_2(%arg0: i32, %arg1: i32) -> (i32, i32) {
    %c0_i32 = arith.constant 0 : i32
    %c0_i32_0 = arith.constant 0 : i32
    return %arg0, %c0_i32 : i32, i32
  }
  func.func @transform_3(%arg0: i32, %arg1: i32) -> (i32, i32) {
    %c0_i32 = arith.constant 0 : i32
    %c0_i32_0 = arith.constant 0 : i32
    %c0_i32_1 = arith.constant 0 : i32
    return %c0_i32, %c0_i32_0 : i32, i32
  }
  func.func @transform_4(%arg0: i32, %arg1: i32) -> (i32, i32) {
    %c0_i32 = arith.constant 0 : i32
    %c0_i32_0 = arith.constant 0 : i32
    %c0_i32_1 = arith.constant 0 : i32
    return %c0_i32, %c0_i32_0 : i32, i32
  }
  func.func @transform_5(%arg0: i32, %arg1: i32) -> (i32, i32) {
    %c0_i32 = arith.constant 0 : i32
    %c0_i32_0 = arith.constant 0 : i32
    return %arg0, %c0_i32 : i32, i32
  }
}

</mosaic_0001>

<llo_original>
// kernel: sage_forward.6
$region0: #{sage_forward.6}
  #allocation0 [shape = 'u32[]', space=smem, size = 0x4, offset = 0x4, fixed_abs, tag = 'smem constant byte address 0x4 - core index']
  #allocation1 [shape = 'u32[72,128]{1,0:T(1,128)}', space=vmem, size = 0x9000, scoped, tag = 'internal scratch']
  %s0 = inlined_call_operand.vmem [shape: bf16[1024,128], index: 0, kind: input, shape index: {}]
  %s1 = inlined_call_operand.vmem [shape: bf16[128,128], index: 1, kind: input, shape index: {}]
  %s2 = inlined_call_operand.vmem [shape: bf16[1024,128], index: 2, kind: output, shape index: {}]
  %s3 = sld [smem:[#allocation0]]
  $region41: #{sage_forward.6} parent=0
    _
  %s5 = ssub.s32 1, %s3
  %s6 = scalar_select 0, %s5, %s3
  loop: start=0, step=1, limit=4
  $region2: #{sage_forward.6} parent=0 // loop_pre_header
    _
  $region3: #{sage_forward.6} parent=0 // loop_header
    %s8 = sphi 0, %s12
    %p9 = scmp.ge.s32.totalorder %s8, 4
    %s18 = sphi 0, %s20
    %s21 = sphi 0, %s18
    %s22 = sphi 0, %s21
    %s38 = sphi 0, %s22
    %s42 = sphi 0, %s42
    %s44 = sphi 0, %s42
    %s45 = sphi 0, %s44
    %s59 = sphi 0, %s45
    %s65 = sphi 0, %s67
    %s68 = sphi 0, %s65
    %s69 = sphi 0, %s68
    %s85 = sphi 0, %s69
  $region4: #{sage_forward.6} parent=0 // loop_header_branch
    %11 = sbr.rel (%p9) target = $region8
  $region5: #{sage_forward.6} parent=0 // loop_body
    %s13 = ssub.s32 %s8, 1
    %s14 = ssub.s32 %s8, 2
    %s15 = sadd.s32 %s8, 1
    %s16 = ssub.s32 %s8, %s15
    %p17 = scmp.eq.s32.totalorder %s16, 0
    %s19 = sadd.s32 %s18, 1
    %s20 = scalar_select %p17, %s18, %s19
    %p23 = pneg %p17
    %p24 = scmp.eq.s32.totalorder %s8, 1
    %p25 = por %p23, %p24
    %p26 = scmp.ne.s32.totalorder %s18, %s21
    %p27 = scmp.eq.s32.totalorder %s8, 0
    %p28 = por %p26, %p27
    %p29 = scmp.ne.s32.totalorder %s18, %s21
    %p30 = scmp.eq.s32.totalorder %s13, 1
    %p31 = por %p29, %p30
    %p32 = scmp.ne.s32.totalorder %s21, %s22
    %p33 = scmp.eq.s32.totalorder %s13, 0
    %p34 = por %p32, %p33
    %p35 = scmp.ne.s32.totalorder %s21, %s22
    %p36 = scmp.eq.s32.totalorder %s14, 1
    %p37 = por %p35, %p36
    %p39 = scmp.ne.s32.totalorder %s22, %s38
    %p40 = scmp.eq.s32.totalorder %s14, 0
    %p41 = por %p39, %p40
    %s43 = sadd.s32 %s42, 1
    %p46 = scmp.eq.s32.totalorder %s8, 1
    %p47 = scmp.ne.s32.totalorder %s42, %s44
    %p48 = scmp.eq.s32.totalorder %s8, 0
    %p49 = por %p47, %p48
    %p50 = scmp.ne.s32.totalorder %s42, %s44
    %p51 = scmp.eq.s32.totalorder %s13, 1
    %p52 = por %p50, %p51
    %p53 = scmp.ne.s32.totalorder %s44, %s45
    %p54 = scmp.eq.s32.totalorder %s13, 0
    %p55 = por %p53, %p54
    %p56 = scmp.ne.s32.totalorder %s44, %s45
    %p57 = scmp.eq.s32.totalorder %s14, 1
    %p58 = por %p56, %p57
    %p60 = scmp.ne.s32.totalorder %s45, %s59
    %p61 = scmp.eq.s32.totalorder %s14, 0
    %p62 = por %p60, %p61
    %s63 = ssub.s32 %s8, %s15
    %p64 = scmp.eq.s32.totalorder %s63, 0
    %s66 = sadd.s32 %s65, 1
    %s67 = scalar_select %p64, %s65, %s66
    %p70 = pneg %p64
    %p71 = scmp.eq.s32.totalorder %s8, 1
    %p72 = por %p70, %p71
    %p73 = scmp.ne.s32.totalorder %s65, %s68
    %p74 = scmp.eq.s32.totalorder %s8, 0
    %p75 = por %p73, %p74
    %p76 = scmp.ne.s32.totalorder %s65, %s68
    %p77 = scmp.eq.s32.totalorder %s13, 1
    %p78 = por %p76, %p77
    %p79 = scmp.ne.s32.totalorder %s68, %s69
    %p80 = scmp.eq.s32.totalorder %s13, 0
    %p81 = por %p79, %p80
    %p82 = scmp.ne.s32.totalorder %s68, %s69
    %p83 = scmp.eq.s32.totalorder %s14, 1
    %p84 = por %p82, %p83
    %p86 = scmp.ne.s32.totalorder %s69, %s85
    %p87 = scmp.eq.s32.totalorder %s14, 0
    %p88 = por %p86, %p87
    %p89 = scmp.le.s32.totalorder 1, %s8
    %p90 = scmp.lt.s32.totalorder %s8, 3
    %p91 = pnand %p89, %p90
    %p92 = pneg %p91
    // Predicated region
    $region9: #{sage_forward.6} parent=5 // pred_check
      _
    $region10: #{sage_forward.6} parent=5 // pred_check_branch
      %94 = sbr.rel (%p91) target = $region12
    $region11: #{sage_forward.6} parent=5 // pred_region
      %s95 = ssub.s32 %s8, 1
      // Predicated region
      $region13: #{sage_forward.6} parent=11 // pred_check
        %p96 = pneg %p55
      $region14: #{sage_forward.6} parent=11 // pred_check_branch
        %98 = sbr.rel (%p96) target = $region16
      $region15: #{sage_forward.6} parent=11 // pred_region
        _
      $region16: #{sage_forward.6} parent=11 // pred_fallthru
        _
    $region12: #{sage_forward.6} parent=5 // pred_fallthru
      _
    %p99 = scmp.lt.s32.totalorder %s8, 2
    // Predicated region
    $region17: #{sage_forward.6} parent=5 // pred_check
      %p100 = pneg %p99
    $region18: #{sage_forward.6} parent=5 // pred_check_branch
      %102 = sbr.rel (%p100) target = $region20
    $region19: #{sage_forward.6} parent=5 // pred_region
      // Predicated region
      $region21: #{sage_forward.6} parent=19 // pred_check
        %p103 = pneg %p28
      $region22: #{sage_forward.6} parent=19 // pred_check_branch
        %105 = sbr.rel (%p103) target = $region24
      $region23: #{sage_forward.6} parent=19 // pred_region
        %s106 = smul.u32 64, %s8
        %p107 = scmp.lt.s32.totalorder %s106, 127
        %s108 = scalar_select %p107, %s106, 127
        %s109 = smul.addr %s108, 4
        %s110 = scalar_lea.vmem %s0, %s109
        %s111 = smul.u32 64, %s8
      $region24: #{sage_forward.6} parent=19 // pred_fallthru
        _
    $region20: #{sage_forward.6} parent=5 // pred_fallthru
      _
    %p112 = scmp.le.s32.totalorder 1, %s8
    %p113 = scmp.lt.s32.totalorder %s8, 3
    %p114 = pnand %p112, %p113
    %p115 = pneg %p114
    // Predicated region
    $region25: #{sage_forward.6} parent=5 // pred_check
      _
    $region26: #{sage_forward.6} parent=5 // pred_check_branch
      %117 = sbr.rel (%p114) target = $region28
    $region27: #{sage_forward.6} parent=5 // pred_region
      %s118 = ssub.s32 %s8, 1
      %s119 = smul.u32 64, %s13
      %p120 = scmp.lt.s32.totalorder %s119, 127
      %s121 = scalar_select %p120, %s119, 127
      %s122 = smul.addr %s121, 4
      %s123 = scalar_lea.vmem %s0, %s122
      %p124 = pneg %p34
      %p125 = pneg %p31
      %p126 = pneg %p55
      %p127 = pneg %p52
      %p128 = pneg %p81
      %p129 = pneg %p78
      %s130 = smul.u32 64, %s13
      %p131 = scmp.lt.s32.totalorder %s130, 127
      %s132 = scalar_select %p131, %s130, 127
      %s133 = smul.addr %s132, 4
      %s134 = scalar_lea.vmem %s2, %s133
      %s135 = smul.u32 64, %s13
      %p136 = scmp.lt.s32.totalorder %s135, 127
      %s137 = scalar_select %p136, %s135, 127
      %s138 = smul.addr %s137, 4
      %s139 = scalar_lea.vmem %s0, %s138
      %s140 = smul.u32 64, %s13
      %s141 = smul.u32 64, %s13
      %p142 = scmp.lt.s32.totalorder %s141, 127
      %s143 = scalar_select %p142, %s141, 127
      %s144 = smul.addr %s143, 4
      %s145 = scalar_lea.vmem %s2, %s144
      %s146 = smul.u32 64, %s13
      %v147 = vld [vmem:[%s139] sm:$0xf]
      %v148 = vld [vmem:[%s139 + $0x4] sm:$0xf]
      %v149 = vld [vmem:[%s139 + $0x8] sm:$0xf]
      %v150 = vld [vmem:[%s139 + $0xc] sm:$0xf]
      %v151 = vld [vmem:[%s139 + $0x10] sm:$0xf]
      %v152 = vld [vmem:[%s139 + $0x14] sm:$0xf]
      %v153 = vld [vmem:[%s139 + $0x18] sm:$0xf]
      %v154 = vld [vmem:[%s139 + $0x1c] sm:$0xf]
      %v155 = vld [vmem:[%s139 + $0x20] sm:$0xf]
      %v156 = vld [vmem:[%s139 + $0x24] sm:$0xf]
      %v157 = vld [vmem:[%s139 + $0x28] sm:$0xf]
      %v158 = vld [vmem:[%s139 + $0x2c] sm:$0xf]
      %v159 = vld [vmem:[%s139 + $0x30] sm:$0xf]
      %v160 = vld [vmem:[%s139 + $0x34] sm:$0xf]
      %v161 = vld [vmem:[%s139 + $0x38] sm:$0xf]
      %v162 = vld [vmem:[%s139 + $0x3c] sm:$0xf]
      %v163 = vld [vmem:[%s139 + $0x40] sm:$0xf]
      %v164 = vld [vmem:[%s139 + $0x44] sm:$0xf]
      %v165 = vld [vmem:[%s139 + $0x48] sm:$0xf]
      %v166 = vld [vmem:[%s139 + $0x4c] sm:$0xf]
      %v167 = vld [vmem:[%s139 + $0x50] sm:$0xf]
      %v168 = vld [vmem:[%s139 + $0x54] sm:$0xf]
      %v169 = vld [vmem:[%s139 + $0x58] sm:$0xf]
      %v170 = vld [vmem:[%s139 + $0x5c] sm:$0xf]
      %v171 = vld [vmem:[%s139 + $0x60] sm:$0xf]
      %v172 = vld [vmem:[%s139 + $0x64] sm:$0xf]
      %v173 = vld [vmem:[%s139 + $0x68] sm:$0xf]
      %v174 = vld [vmem:[%s139 + $0x6c] sm:$0xf]
      %v175 = vld [vmem:[%s139 + $0x70] sm:$0xf]
      %v176 = vld [vmem:[%s139 + $0x74] sm:$0xf]
      %v177 = vld [vmem:[%s139 + $0x78] sm:$0xf]
      %v178 = vld [vmem:[%s139 + $0x7c] sm:$0xf]
      %v179 = vld [vmem:[%s139 + $0x80] sm:$0xf]
      %v180 = vld [vmem:[%s139 + $0x84] sm:$0xf]
      %v181 = vld [vmem:[%s139 + $0x88] sm:$0xf]
      %v182 = vld [vmem:[%s139 + $0x8c] sm:$0xf]
      %v183 = vld [vmem:[%s139 + $0x90] sm:$0xf]
      %v184 = vld [vmem:[%s139 + $0x94] sm:$0xf]
      %v185 = vld [vmem:[%s139 + $0x98] sm:$0xf]
      %v186 = vld [vmem:[%s139 + $0x9c] sm:$0xf]
      %v187 = vld [vmem:[%s139 + $0xa0] sm:$0xf]
      %v188 = vld [vmem:[%s139 + $0xa4] sm:$0xf]
      %v189 = vld [vmem:[%s139 + $0xa8] sm:$0xf]
      %v190 = vld [vmem:[%s139 + $0xac] sm:$0xf]
      %v191 = vld [vmem:[%s139 + $0xb0] sm:$0xf]
      %v192 = vld [vmem:[%s139 + $0xb4] sm:$0xf]
      %v193 = vld [vmem:[%s139 + $0xb8] sm:$0xf]
      %v194 = vld [vmem:[%s139 + $0xbc] sm:$0xf]
      %v195 = vld [vmem:[%s139 + $0xc0] sm:$0xf]
      %v196 = vld [vmem:[%s139 + $0xc4] sm:$0xf]
      %v197 = vld [vmem:[%s139 + $0xc8] sm:$0xf]
      %v198 = vld [vmem:[%s139 + $0xcc] sm:$0xf]
      %v199 = vld [vmem:[%s139 + $0xd0] sm:$0xf]
      %v200 = vld [vmem:[%s139 + $0xd4] sm:$0xf]
      %v201 = vld [vmem:[%s139 + $0xd8] sm:$0xf]
      %v202 = vld [vmem:[%s139 + $0xdc] sm:$0xf]
      %v203 = vld [vmem:[%s139 + $0xe0] sm:$0xf]
      %v204 = vld [vmem:[%s139 + $0xe4] sm:$0xf]
      %v205 = vld [vmem:[%s139 + $0xe8] sm:$0xf]
      %v206 = vld [vmem:[%s139 + $0xec] sm:$0xf]
      %v207 = vld [vmem:[%s139 + $0xf0] sm:$0xf]
      %v208 = vld [vmem:[%s139 + $0xf4] sm:$0xf]
      %v209 = vld [vmem:[%s139 + $0xf8] sm:$0xf]
      %v210 = vld [vmem:[%s139 + $0xfc] sm:$0xf]
      %v211 = vld [vmem:[%s1] sm:$0xf]
      %v212 = vld [vmem:[%s1 + $0x4] sm:$0xf]
      %v213 = vld [vmem:[%s1 + $0x8] sm:$0xf]
      %v214 = vld [vmem:[%s1 + $0xc] sm:$0xf]
      %v215 = vld [vmem:[%s1 + $0x10] sm:$0xf]
      %v216 = vld [vmem:[%s1 + $0x14] sm:$0xf]
      %v217 = vld [vmem:[%s1 + $0x18] sm:$0xf]
      %v218 = vld [vmem:[%s1 + $0x1c] sm:$0xf]
      %v219 = vld [vmem:[%s1 + $0x20] sm:$0xf]
      %v220 = vld [vmem:[%s1 + $0x24] sm:$0xf]
      %v221 = vld [vmem:[%s1 + $0x28] sm:$0xf]
      %v222 = vld [vmem:[%s1 + $0x2c] sm:$0xf]
      %v223 = vld [vmem:[%s1 + $0x30] sm:$0xf]
      %v224 = vld [vmem:[%s1 + $0x34] sm:$0xf]
      %v225 = vld [vmem:[%s1 + $0x38] sm:$0xf]
      %v226 = vld [vmem:[%s1 + $0x3c] sm:$0xf]
      %v291 = vunpack.c.l.b16 %v147
      %v292 = vunpack.c.l.b16 %v148
      %v293 = vunpack.c.l.b16 %v149
      %v294 = vunpack.c.l.b16 %v150
      %v295 = vunpack.c.l.b16 %v151
      %v296 = vunpack.c.l.b16 %v152
      %v297 = vunpack.c.l.b16 %v153
      %v298 = vunpack.c.l.b16 %v154
      %v299 = vunpack.c.l.b16 %v155
      %v300 = vunpack.c.l.b16 %v156
      %v301 = vunpack.c.l.b16 %v157
      %v302 = vunpack.c.l.b16 %v158
      %v303 = vunpack.c.l.b16 %v159
      %v304 = vunpack.c.l.b16 %v160
      %v305 = vunpack.c.l.b16 %v161
      %v306 = vunpack.c.l.b16 %v162
      %v307 = vunpack.c.l.b16 %v163
      %v308 = vunpack.c.l.b16 %v164
      %v309 = vunpack.c.l.b16 %v165
      %v310 = vunpack.c.l.b16 %v166
      %v311 = vunpack.c.l.b16 %v167
      %v312 = vunpack.c.l.b16 %v168
      %v313 = vunpack.c.l.b16 %v169
      %v314 = vunpack.c.l.b16 %v170
      %v315 = vunpack.c.l.b16 %v171
      %v316 = vunpack.c.l.b16 %v172
      %v317 = vunpack.c.l.b16 %v173
      %v318 = vunpack.c.l.b16 %v174
      %v319 = vunpack.c.l.b16 %v175
      %v320 = vunpack.c.l.b16 %v176
      %v321 = vunpack.c.l.b16 %v177
      %v322 = vunpack.c.l.b16 %v178
      %v323 = vunpack.c.l.b16 %v179
      %v324 = vunpack.c.l.b16 %v180
      %v325 = vunpack.c.l.b16 %v181
      %v326 = vunpack.c.l.b16 %v182
      %v327 = vunpack.c.l.b16 %v183
      %v328 = vunpack.c.l.b16 %v184
      %v329 = vunpack.c.l.b16 %v185
      %v330 = vunpack.c.l.b16 %v186
      %v331 = vunpack.c.l.b16 %v187
      %v332 = vunpack.c.l.b16 %v188
      %v333 = vunpack.c.l.b16 %v189
      %v334 = vunpack.c.l.b16 %v190
      %v335 = vunpack.c.l.b16 %v191
      %v336 = vunpack.c.l.b16 %v192
      %v337 = vunpack.c.l.b16 %v193
      %v338 = vunpack.c.l.b16 %v194
      %v339 = vunpack.c.l.b16 %v195
      %v340 = vunpack.c.l.b16 %v196
      %v341 = vunpack.c.l.b16 %v197
      %v342 = vunpack.c.l.b16 %v198
      %v343 = vunpack.c.l.b16 %v199
      %v344 = vunpack.c.l.b16 %v200
      %v345 = vunpack.c.l.b16 %v201
      %v346 = vunpack.c.l.b16 %v202
      %v347 = vunpack.c.l.b16 %v203
      %v348 = vunpack.c.l.b16 %v204
      %v349 = vunpack.c.l.b16 %v205
      %v350 = vunpack.c.l.b16 %v206
      %v351 = vunpack.c.l.b16 %v207
      %v352 = vunpack.c.l.b16 %v208
      %v353 = vunpack.c.l.b16 %v209
      %v354 = vunpack.c.l.b16 %v210
      %v355 = vpack.c.b16 %v292, %v291
      %v356 = vpack.c.b16 %v294, %v293
      %v357 = vpack.c.b16 %v296, %v295
      %v358 = vpack.c.b16 %v298, %v297
      %v359 = vpack.c.b16 %v300, %v299
      %v360 = vpack.c.b16 %v302, %v301
      %v361 = vpack.c.b16 %v304, %v303
      %v362 = vpack.c.b16 %v306, %v305
      %v363 = vpack.c.b16 %v308, %v307
      %v364 = vpack.c.b16 %v310, %v309
      %v365 = vpack.c.b16 %v312, %v311
      %v366 = vpack.c.b16 %v314, %v313
      %v367 = vpack.c.b16 %v316, %v315
      %v368 = vpack.c.b16 %v318, %v317
      %v369 = vpack.c.b16 %v320, %v319
      %v370 = vpack.c.b16 %v322, %v321
      %v371 = vpack.c.b16 %v324, %v323
      %v372 = vpack.c.b16 %v326, %v325
      %v373 = vpack.c.b16 %v328, %v327
      %v374 = vpack.c.b16 %v330, %v329
      %v375 = vpack.c.b16 %v332, %v331
      %v376 = vpack.c.b16 %v334, %v333
      %v377 = vpack.c.b16 %v336, %v335
      %v378 = vpack.c.b16 %v338, %v337
      %v379 = vpack.c.b16 %v340, %v339
      %v380 = vpack.c.b16 %v342, %v341
      %v381 = vpack.c.b16 %v344, %v343
      %v382 = vpack.c.b16 %v346, %v345
      %v383 = vpack.c.b16 %v348, %v347
      %v384 = vpack.c.b16 %v350, %v349
      %v385 = vpack.c.b16 %v352, %v351
      %v386 = vpack.c.b16 %v354, %v353
      %v435 = vunpack.c.l.b16 %v211
      %v436 = vunpack.c.l.b16 %v212
      %v437 = vunpack.c.l.b16 %v213
      %v438 = vunpack.c.l.b16 %v214
      %v439 = vunpack.c.l.b16 %v215
      %v440 = vunpack.c.l.b16 %v216
      %v441 = vunpack.c.l.b16 %v217
      %v442 = vunpack.c.l.b16 %v218
      %v443 = vunpack.c.l.b16 %v219
      %v444 = vunpack.c.l.b16 %v220
      %v445 = vunpack.c.l.b16 %v221
      %v446 = vunpack.c.l.b16 %v222
      %v447 = vunpack.c.l.b16 %v223
      %v448 = vunpack.c.l.b16 %v224
      %v449 = vunpack.c.l.b16 %v225
      %v450 = vunpack.c.l.b16 %v226
      %v451 = vpack.c.b16 %v436, %v435
      %v452 = vpack.c.b16 %v438, %v437
      %v453 = vpack.c.b16 %v440, %v439
      %v454 = vpack.c.b16 %v442, %v441
      %v455 = vpack.c.b16 %v444, %v443
      %v456 = vpack.c.b16 %v446, %v445
      %v457 = vpack.c.b16 %v448, %v447
      %v458 = vpack.c.b16 %v450, %v449
      %467 = vmatpush.bf16.msra.mxu0 %v458
      %468 = vmatpush.bf16.msra.mxu0 %v457
      %469 = vmatpush.bf16.msra.mxu0 %v456
      %470 = vmatpush.bf16.msra.mxu0 %v455
      %471 = vmatpush.bf16.msra.mxu0 %v454
      %472 = vmatpush.bf16.msra.mxu0 %v453
      %473 = vmatpush.bf16.msra.mxu0 %v452
      %474 = vmatpush.bf16.msra.mxu0 %v451
      %475 = vmatmul.bf16.gmra.mxu0 %v355
      %v476 = vpop.f32.mrf.mxu0
      %v477 = vadd.f32 0.0, %v476
      %v478 = vpop.f32.mrf.mxu0
      %v479 = vadd.f32 0.0, %v478
      %480 = vmatmul.bf16.gmra.mxu0 %v356
      %v481 = vpop.f32.mrf.mxu0
      %v482 = vadd.f32 0.0, %v481
      %v483 = vpop.f32.mrf.mxu0
      %v484 = vadd.f32 0.0, %v483
      %485 = vmatmul.bf16.gmra.mxu0 %v357
      %v486 = vpop.f32.mrf.mxu0
      %v487 = vadd.f32 0.0, %v486
      %v488 = vpop.f32.mrf.mxu0
      %v489 = vadd.f32 0.0, %v488
      %490 = vmatmul.bf16.gmra.mxu0 %v358
      %v491 = vpop.f32.mrf.mxu0
      %v492 = vadd.f32 0.0, %v491
      %v493 = vpop.f32.mrf.mxu0
      %v494 = vadd.f32 0.0, %v493
      %495 = vmatmul.bf16.gmra.mxu0 %v359
      %v496 = vpop.f32.mrf.mxu0
      %v497 = vadd.f32 0.0, %v496
      %v498 = vpop.f32.mrf.mxu0
      %v499 = vadd.f32 0.0, %v498
      %500 = vmatmul.bf16.gmra.mxu0 %v360
      %v501 = vpop.f32.mrf.mxu0
      %v502 = vadd.f32 0.0, %v501
      %v503 = vpop.f32.mrf.mxu0
      %v504 = vadd.f32 0.0, %v503
      %505 = vmatmul.bf16.gmra.mxu0 %v361
      %v506 = vpop.f32.mrf.mxu0
      %v507 = vadd.f32 0.0, %v506
      %v508 = vpop.f32.mrf.mxu0
      %v509 = vadd.f32 0.0, %v508
      %510 = vmatmul.bf16.gmra.mxu0 %v362
      %v511 = vpop.f32.mrf.mxu0
      %v512 = vadd.f32 0.0, %v511
      %v513 = vpop.f32.mrf.mxu0
      %v514 = vadd.f32 0.0, %v513
      %515 = vmatmul.bf16.gmra.mxu0 %v363
      %v516 = vpop.f32.mrf.mxu0
      %v517 = vadd.f32 0.0, %v516
      %v518 = vpop.f32.mrf.mxu0
      %v519 = vadd.f32 0.0, %v518
      %520 = vmatmul.bf16.gmra.mxu0 %v364
      %v521 = vpop.f32.mrf.mxu0
      %v522 = vadd.f32 0.0, %v521
      %v523 = vpop.f32.mrf.mxu0
      %v524 = vadd.f32 0.0, %v523
      %525 = vmatmul.bf16.gmra.mxu0 %v365
      %v526 = vpop.f32.mrf.mxu0
      %v527 = vadd.f32 0.0, %v526
      %v528 = vpop.f32.mrf.mxu0
      %v529 = vadd.f32 0.0, %v528
      %530 = vmatmul.bf16.gmra.mxu0 %v366
      %v531 = vpop.f32.mrf.mxu0
      %v532 = vadd.f32 0.0, %v531
      %v533 = vpop.f32.mrf.mxu0
      %v534 = vadd.f32 0.0, %v533
      %535 = vmatmul.bf16.gmra.mxu0 %v367
      %v536 = vpop.f32.mrf.mxu0
      %v537 = vadd.f32 0.0, %v536
      %v538 = vpop.f32.mrf.mxu0
      %v539 = vadd.f32 0.0, %v538
      %540 = vmatmul.bf16.gmra.mxu0 %v368
      %v541 = vpop.f32.mrf.mxu0
      %v542 = vadd.f32 0.0, %v541
      %v543 = vpop.f32.mrf.mxu0
      %v544 = vadd.f32 0.0, %v543
      %545 = vmatmul.bf16.gmra.mxu0 %v369
      %v546 = vpop.f32.mrf.mxu0
      %v547 = vadd.f32 0.0, %v546
      %v548 = vpop.f32.mrf.mxu0
      %v549 = vadd.f32 0.0, %v548
      %550 = vmatmul.bf16.gmra.mxu0 %v370
      %v551 = vpop.f32.mrf.mxu0
      %v552 = vadd.f32 0.0, %v551
      %v553 = vpop.f32.mrf.mxu0
      %v554 = vadd.f32 0.0, %v553
      %555 = vmatmul.bf16.gmra.mxu0 %v371
      %v556 = vpop.f32.mrf.mxu0
      %v557 = vadd.f32 0.0, %v556
      %v558 = vpop.f32.mrf.mxu0
      %v559 = vadd.f32 0.0, %v558
      %560 = vmatmul.bf16.gmra.mxu0 %v372
      %v561 = vpop.f32.mrf.mxu0
      %v562 = vadd.f32 0.0, %v561
      %v563 = vpop.f32.mrf.mxu0
      %v564 = vadd.f32 0.0, %v563
      %565 = vmatmul.bf16.gmra.mxu0 %v373
      %v566 = vpop.f32.mrf.mxu0
      %v567 = vadd.f32 0.0, %v566
      %v568 = vpop.f32.mrf.mxu0
      %v569 = vadd.f32 0.0, %v568
      %570 = vmatmul.bf16.gmra.mxu0 %v374
      %v571 = vpop.f32.mrf.mxu0
      %v572 = vadd.f32 0.0, %v571
      %v573 = vpop.f32.mrf.mxu0
      %v574 = vadd.f32 0.0, %v573
      %575 = vmatmul.bf16.gmra.mxu0 %v375
      %v576 = vpop.f32.mrf.mxu0
      %v577 = vadd.f32 0.0, %v576
      %v578 = vpop.f32.mrf.mxu0
      %v579 = vadd.f32 0.0, %v578
      %580 = vmatmul.bf16.gmra.mxu0 %v376
      %v581 = vpop.f32.mrf.mxu0
      %v582 = vadd.f32 0.0, %v581
      %v583 = vpop.f32.mrf.mxu0
      %v584 = vadd.f32 0.0, %v583
      %585 = vmatmul.bf16.gmra.mxu0 %v377
      %v586 = vpop.f32.mrf.mxu0
      %v587 = vadd.f32 0.0, %v586
      %v588 = vpop.f32.mrf.mxu0
      %v589 = vadd.f32 0.0, %v588
      %590 = vmatmul.bf16.gmra.mxu0 %v378
      %v591 = vpop.f32.mrf.mxu0
      %v592 = vadd.f32 0.0, %v591
      %v593 = vpop.f32.mrf.mxu0
      %v594 = vadd.f32 0.0, %v593
      %595 = vmatmul.bf16.gmra.mxu0 %v379
      %v596 = vpop.f32.mrf.mxu0
      %v597 = vadd.f32 0.0, %v596
      %v598 = vpop.f32.mrf.mxu0
      %v599 = vadd.f32 0.0, %v598
      %600 = vmatmul.bf16.gmra.mxu0 %v380
      %v601 = vpop.f32.mrf.mxu0
      %v602 = vadd.f32 0.0, %v601
      %v603 = vpop.f32.mrf.mxu0
      %v604 = vadd.f32 0.0, %v603
      %605 = vmatmul.bf16.gmra.mxu0 %v381
      %v606 = vpop.f32.mrf.mxu0
      %v607 = vadd.f32 0.0, %v606
      %v608 = vpop.f32.mrf.mxu0
      %v609 = vadd.f32 0.0, %v608
      %610 = vmatmul.bf16.gmra.mxu0 %v382
      %v611 = vpop.f32.mrf.mxu0
      %v612 = vadd.f32 0.0, %v611
      %v613 = vpop.f32.mrf.mxu0
      %v614 = vadd.f32 0.0, %v613
      %615 = vmatmul.bf16.gmra.mxu0 %v383
      %v616 = vpop.f32.mrf.mxu0
      %v617 = vadd.f32 0.0, %v616
      %v618 = vpop.f32.mrf.mxu0
      %v619 = vadd.f32 0.0, %v618
      %620 = vmatmul.bf16.gmra.mxu0 %v384
      %v621 = vpop.f32.mrf.mxu0
      %v622 = vadd.f32 0.0, %v621
      %v623 = vpop.f32.mrf.mxu0
      %v624 = vadd.f32 0.0, %v623
      %625 = vmatmul.bf16.gmra.mxu0 %v385
      %v626 = vpop.f32.mrf.mxu0
      %v627 = vadd.f32 0.0, %v626
      %v628 = vpop.f32.mrf.mxu0
      %v629 = vadd.f32 0.0, %v628
      %630 = vmatmul.bf16.gmra.mxu0 %v386
      %v631 = vpop.f32.mrf.mxu0
      %v632 = vadd.f32 0.0, %v631
      %v633 = vpop.f32.mrf.mxu0
      %v634 = vadd.f32 0.0, %v633
      %635 = vdwg.mxu0
      %v636 = vpack.c.bf16 %v477, %v477
      %v637 = vpack.c.bf16 %v479, %v479
      %v638 = vpack.c.bf16 %v482, %v482
      %v639 = vpack.c.bf16 %v484, %v484
      %v640 = vpack.c.bf16 %v487, %v487
      %v641 = vpack.c.bf16 %v489, %v489
      %v642 = vpack.c.bf16 %v492, %v492
      %v643 = vpack.c.bf16 %v494, %v494
      %v644 = vpack.c.bf16 %v497, %v497
      %v645 = vpack.c.bf16 %v499, %v499
      %v646 = vpack.c.bf16 %v502, %v502
      %v647 = vpack.c.bf16 %v504, %v504
      %v648 = vpack.c.bf16 %v507, %v507
      %v649 = vpack.c.bf16 %v509, %v509
      %v650 = vpack.c.bf16 %v512, %v512
      %v651 = vpack.c.bf16 %v514, %v514
      %v652 = vpack.c.bf16 %v517, %v517
      %v653 = vpack.c.bf16 %v519, %v519
      %v654 = vpack.c.bf16 %v522, %v522
      %v655 = vpack.c.bf16 %v524, %v524
      %v656 = vpack.c.bf16 %v527, %v527
      %v657 = vpack.c.bf16 %v529, %v529
      %v658 = vpack.c.bf16 %v532, %v532
      %v659 = vpack.c.bf16 %v534, %v534
      %v660 = vpack.c.bf16 %v537, %v537
      %v661 = vpack.c.bf16 %v539, %v539
      %v662 = vpack.c.bf16 %v542, %v542
      %v663 = vpack.c.bf16 %v544, %v544
      %v664 = vpack.c.bf16 %v547, %v547
      %v665 = vpack.c.bf16 %v549, %v549
      %v666 = vpack.c.bf16 %v552, %v552
      %v667 = vpack.c.bf16 %v554, %v554
      %v668 = vpack.c.bf16 %v557, %v557
      %v669 = vpack.c.bf16 %v559, %v559
      %v670 = vpack.c.bf16 %v562, %v562
      %v671 = vpack.c.bf16 %v564, %v564
      %v672 = vpack.c.bf16 %v567, %v567
      %v673 = vpack.c.bf16 %v569, %v569
      %v674 = vpack.c.bf16 %v572, %v572
      %v675 = vpack.c.bf16 %v574, %v574
      %v676 = vpack.c.bf16 %v577, %v577
      %v677 = vpack.c.bf16 %v579, %v579
      %v678 = vpack.c.bf16 %v582, %v582
      %v679 = vpack.c.bf16 %v584, %v584
      %v680 = vpack.c.bf16 %v587, %v587
      %v681 = vpack.c.bf16 %v589, %v589
      %v682 = vpack.c.bf16 %v592, %v592
      %v683 = vpack.c.bf16 %v594, %v594
      %v684 = vpack.c.bf16 %v597, %v597
      %v685 = vpack.c.bf16 %v599, %v599
      %v686 = vpack.c.bf16 %v602, %v602
      %v687 = vpack.c.bf16 %v604, %v604
      %v688 = vpack.c.bf16 %v607, %v607
      %v689 = vpack.c.bf16 %v609, %v609
      %v690 = vpack.c.bf16 %v612, %v612
      %v691 = vpack.c.bf16 %v614, %v614
      %v692 = vpack.c.bf16 %v617, %v617
      %v693 = vpack.c.bf16 %v619, %v619
      %v694 = vpack.c.bf16 %v622, %v622
      %v695 = vpack.c.bf16 %v624, %v624
      %v696 = vpack.c.bf16 %v627, %v627
      %v697 = vpack.c.bf16 %v629, %v629
      %v698 = vpack.c.bf16 %v632, %v632
      %v699 = vpack.c.bf16 %v634, %v634
      %700 = vst [vmem:[%s145] sm:$0xf] %v636
      %701 = vst [vmem:[%s145 + $0x4] sm:$0xf] %v637
      %702 = vst [vmem:[%s145 + $0x8] sm:$0xf] %v638
      %703 = vst [vmem:[%s145 + $0xc] sm:$0xf] %v639
      %704 = vst [vmem:[%s145 + $0x10] sm:$0xf] %v640
      %705 = vst [vmem:[%s145 + $0x14] sm:$0xf] %v641
      %706 = vst [vmem:[%s145 + $0x18] sm:$0xf] %v642
      %707 = vst [vmem:[%s145 + $0x1c] sm:$0xf] %v643
      %708 = vst [vmem:[%s145 + $0x20] sm:$0xf] %v644
      %709 = vst [vmem:[%s145 + $0x24] sm:$0xf] %v645
      %710 = vst [vmem:[%s145 + $0x28] sm:$0xf] %v646
      %711 = vst [vmem:[%s145 + $0x2c] sm:$0xf] %v647
      %712 = vst [vmem:[%s145 + $0x30] sm:$0xf] %v648
      %713 = vst [vmem:[%s145 + $0x34] sm:$0xf] %v649
      %714 = vst [vmem:[%s145 + $0x38] sm:$0xf] %v650
      %715 = vst [vmem:[%s145 + $0x3c] sm:$0xf] %v651
      %716 = vst [vmem:[%s145 + $0x40] sm:$0xf] %v652
      %717 = vst [vmem:[%s145 + $0x44] sm:$0xf] %v653
      %718 = vst [vmem:[%s145 + $0x48] sm:$0xf] %v654
      %719 = vst [vmem:[%s145 + $0x4c] sm:$0xf] %v655
      %720 = vst [vmem:[%s145 + $0x50] sm:$0xf] %v656
      %721 = vst [vmem:[%s145 + $0x54] sm:$0xf] %v657
      %722 = vst [vmem:[%s145 + $0x58] sm:$0xf] %v658
      %723 = vst [vmem:[%s145 + $0x5c] sm:$0xf] %v659
      %724 = vst [vmem:[%s145 + $0x60] sm:$0xf] %v660
      %725 = vst [vmem:[%s145 + $0x64] sm:$0xf] %v661
      %726 = vst [vmem:[%s145 + $0x68] sm:$0xf] %v662
      %727 = vst [vmem:[%s145 + $0x6c] sm:$0xf] %v663
      %728 = vst [vmem:[%s145 + $0x70] sm:$0xf] %v664
      %729 = vst [vmem:[%s145 + $0x74] sm:$0xf] %v665
      %730 = vst [vmem:[%s145 + $0x78] sm:$0xf] %v666
      %731 = vst [vmem:[%s145 + $0x7c] sm:$0xf] %v667
      %732 = vst [vmem:[%s145 + $0x80] sm:$0xf] %v668
      %733 = vst [vmem:[%s145 + $0x84] sm:$0xf] %v669
      %734 = vst [vmem:[%s145 + $0x88] sm:$0xf] %v670
      %735 = vst [vmem:[%s145 + $0x8c] sm:$0xf] %v671
      %736 = vst [vmem:[%s145 + $0x90] sm:$0xf] %v672
      %737 = vst [vmem:[%s145 + $0x94] sm:$0xf] %v673
      %738 = vst [vmem:[%s145 + $0x98] sm:$0xf] %v674
      %739 = vst [vmem:[%s145 + $0x9c] sm:$0xf] %v675
      %740 = vst [vmem:[%s145 + $0xa0] sm:$0xf] %v676
      %741 = vst [vmem:[%s145 + $0xa4] sm:$0xf] %v677
      %742 = vst [vmem:[%s145 + $0xa8] sm:$0xf] %v678
      %743 = vst [vmem:[%s145 + $0xac] sm:$0xf] %v679
      %744 = vst [vmem:[%s145 + $0xb0] sm:$0xf] %v680
      %745 = vst [vmem:[%s145 + $0xb4] sm:$0xf] %v681
      %746 = vst [vmem:[%s145 + $0xb8] sm:$0xf] %v682
      %747 = vst [vmem:[%s145 + $0xbc] sm:$0xf] %v683
      %748 = vst [vmem:[%s145 + $0xc0] sm:$0xf] %v684
      %749 = vst [vmem:[%s145 + $0xc4] sm:$0xf] %v685
      %750 = vst [vmem:[%s145 + $0xc8] sm:$0xf] %v686
      %751 = vst [vmem:[%s145 + $0xcc] sm:$0xf] %v687
      %752 = vst [vmem:[%s145 + $0xd0] sm:$0xf] %v688
      %753 = vst [vmem:[%s145 + $0xd4] sm:$0xf] %v689
      %754 = vst [vmem:[%s145 + $0xd8] sm:$0xf] %v690
      %755 = vst [vmem:[%s145 + $0xdc] sm:$0xf] %v691
      %756 = vst [vmem:[%s145 + $0xe0] sm:$0xf] %v692
      %757 = vst [vmem:[%s145 + $0xe4] sm:$0xf] %v693
      %758 = vst [vmem:[%s145 + $0xe8] sm:$0xf] %v694
      %759 = vst [vmem:[%s145 + $0xec] sm:$0xf] %v695
      %760 = vst [vmem:[%s145 + $0xf0] sm:$0xf] %v696
      %761 = vst [vmem:[%s145 + $0xf4] sm:$0xf] %v697
      %762 = vst [vmem:[%s145 + $0xf8] sm:$0xf] %v698
      %763 = vst [vmem:[%s145 + $0xfc] sm:$0xf] %v699
      %s764 = smul.u32 64, %s13
      %p765 = scmp.lt.s32.totalorder %s764, 127
      %s766 = scalar_select %p765, %s764, 127
      %s767 = smul.addr %s766, 4
      %s768 = scalar_lea.vmem %s2, %s767
      // Predicated region
      $region29: #{sage_forward.6} parent=27 // pred_check
        %p769 = pneg %p78
      $region30: #{sage_forward.6} parent=27 // pred_check_branch
        %771 = sbr.rel (%p769) target = $region32
      $region31: #{sage_forward.6} parent=27 // pred_region
        %s772 = smul.u32 64, %s13
      $region32: #{sage_forward.6} parent=27 // pred_fallthru
        _
    $region28: #{sage_forward.6} parent=5 // pred_fallthru
      _
    %p773 = scmp.le.s32.totalorder 2, %s8
    // Predicated region
    $region33: #{sage_forward.6} parent=5 // pred_check
      %p774 = pneg %p773
    $region34: #{sage_forward.6} parent=5 // pred_check_branch
      %776 = sbr.rel (%p774) target = $region36
    $region35: #{sage_forward.6} parent=5 // pred_region
      %s777 = ssub.s32 %s8, 2
      // Predicated region
      $region37: #{sage_forward.6} parent=35 // pred_check
        %p778 = pneg %p84
      $region38: #{sage_forward.6} parent=35 // pred_check_branch
        %780 = sbr.rel (%p778) target = $region40
      $region39: #{sage_forward.6} parent=35 // pred_region
        %s781 = smul.u32 64, %s14
        %p782 = scmp.lt.s32.totalorder %s781, 127
        %s783 = scalar_select %p782, %s781, 127
        %s784 = smul.addr %s783, 4
        %s785 = scalar_lea.vmem %s2, %s784
      $region40: #{sage_forward.6} parent=35 // pred_fallthru
        _
    $region36: #{sage_forward.6} parent=5 // pred_fallthru
      _
  $region6: #{sage_forward.6} parent=0 // loop_footer
    %s12 = sadd.s32 1, %s8
  $region7: #{sage_forward.6} parent=0 // loop_footer_branch
    %7 = sbr.rel target = $region3
  $region8: #{sage_forward.6} parent=0 // loop_exit
    _

// kernel: sage_forward.7
$region0: #{sage_forward.7}
  #allocation0 [shape = 'u32[]', space=smem, size = 0x4, offset = 0x4, fixed_abs, tag = 'smem constant byte address 0x4 - core index']
  #allocation1 [shape = 'u32[72,128]{1,0:T(1,128)}', space=vmem, size = 0x9000, scoped, tag = 'internal scratch']
  #allocation2 [shape = 'f32[512,128]{1,0:T(8,128)}', space=vmem, size = 0x40000, scoped, tag = 'scratch operand']
  %s0 = inlined_call_operand.vmem [shape: bf16[1024,1024], index: 0, kind: input, shape index: {}]
  %s1 = inlined_call_operand.vmem [shape: bf16[1024,128], index: 1, kind: input, shape index: {}]
  %s2 = inlined_call_operand.vmem [shape: bf16[1024,128], index: 2, kind: input, shape index: {}]
  %s3 = inlined_call_operand.vmem [shape: bf16[128,128], index: 3, kind: input, shape index: {}]
  %s4 = inlined_call_operand.vmem [shape: f32[1,128], index: 4, kind: input, shape index: {}]
  %s5 = inlined_call_operand.vmem [shape: bf16[1024,128], index: 5, kind: output, shape index: {}]
  %s6 = sld [smem:[#allocation0]]
  $region61: #{sage_forward.7} parent=0
    _
  %s8 = ssub.s32 1, %s6
  %s9 = scalar_select 0, %s8, %s6
  loop: start=0, step=1, limit=4
  $region2: #{sage_forward.7} parent=0 // loop_pre_header
    _
  $region3: #{sage_forward.7} parent=0 // loop_header
    %s11 = sphi 0, %s15
    %p12 = scmp.ge.s32.totalorder %s11, 4
    %s18 = sphi 0, %s30
    %s19 = sphi 0, %s26
    %s20 = sphi 0, %s18
    %s21 = sphi 0, %s19
    %s22 = sphi 0, %s20
    %s23 = sphi 0, %s21
    %s35 = sphi 0, %s37
    %s38 = sphi 0, %s35
    %s39 = sphi 0, %s38
    %s55 = sphi 0, %s39
    %s61 = sphi 0, %s63
    %s64 = sphi 0, %s61
    %s65 = sphi 0, %s64
    %s81 = sphi 0, %s65
    %s87 = sphi 0, %s89
    %s90 = sphi 0, %s87
    %s91 = sphi 0, %s90
    %s107 = sphi 0, %s91
    %s111 = sphi 0, %s111
    %s113 = sphi 0, %s111
    %s114 = sphi 0, %s113
    %s128 = sphi 0, %s114
    %s132 = sphi 0, %s132
    %s134 = sphi 0, %s132
    %s135 = sphi 0, %s134
    %s149 = sphi 0, %s135
    %s155 = sphi 0, %s157
    %s158 = sphi 0, %s155
    %s159 = sphi 0, %s158
    %s175 = sphi 0, %s159
  $region4: #{sage_forward.7} parent=0 // loop_header_branch
    %14 = sbr.rel (%p12) target = $region8
  $region5: #{sage_forward.7} parent=0 // loop_body
    %s16 = ssub.s32 %s11, 1
    %s17 = ssub.s32 %s11, 2
    %s24 = sadd.s32 1, %s19
    %p25 = scmp.ge.s32.totalorder %s24, 1
    %s26 = scalar_select %p25, 0, %s24
    %s27 = sadd.s32 1, %s18
    %s28 = scalar_select %p25, %s27, %s18
    %p29 = scmp.ge.s32.totalorder %s28, 2
    %s30 = scalar_select %p29, 0, %s28
    %s31 = ssub.s32 %s18, %s30
    %s32 = ssub.s32 %s19, %s26
    %s33 = sor.u32 %s31, %s32
    %p34 = scmp.eq.s32.totalorder %s33, 0
    %s36 = sadd.s32 %s35, 1
    %s37 = scalar_select %p34, %s35, %s36
    %p40 = pneg %p34
    %p41 = scmp.eq.s32.totalorder %s11, 1
    %p42 = por %p40, %p41
    %p43 = scmp.ne.s32.totalorder %s35, %s38
    %p44 = scmp.eq.s32.totalorder %s11, 0
    %p45 = por %p43, %p44
    %p46 = scmp.ne.s32.totalorder %s35, %s38
    %p47 = scmp.eq.s32.totalorder %s16, 1
    %p48 = por %p46, %p47
    %p49 = scmp.ne.s32.totalorder %s38, %s39
    %p50 = scmp.eq.s32.totalorder %s16, 0
    %p51 = por %p49, %p50
    %p52 = scmp.ne.s32.totalorder %s38, %s39
    %p53 = scmp.eq.s32.totalorder %s17, 1
    %p54 = por %p52, %p53
    %p56 = scmp.ne.s32.totalorder %s39, %s55
    %p57 = scmp.eq.s32.totalorder %s17, 0
    %p58 = por %p56, %p57
    %s59 = ssub.s32 %s19, %s26
    %p60 = scmp.eq.s32.totalorder %s59, 0
    %s62 = sadd.s32 %s61, 1
    %s63 = scalar_select %p60, %s61, %s62
    %p66 = pneg %p60
    %p67 = scmp.eq.s32.totalorder %s11, 1
    %p68 = por %p66, %p67
    %p69 = scmp.ne.s32.totalorder %s61, %s64
    %p70 = scmp.eq.s32.totalorder %s11, 0
    %p71 = por %p69, %p70
    %p72 = scmp.ne.s32.totalorder %s61, %s64
    %p73 = scmp.eq.s32.totalorder %s16, 1
    %p74 = por %p72, %p73
    %p75 = scmp.ne.s32.totalorder %s64, %s65
    %p76 = scmp.eq.s32.totalorder %s16, 0
    %p77 = por %p75, %p76
    %p78 = scmp.ne.s32.totalorder %s64, %s65
    %p79 = scmp.eq.s32.totalorder %s17, 1
    %p80 = por %p78, %p79
    %p82 = scmp.ne.s32.totalorder %s65, %s81
    %p83 = scmp.eq.s32.totalorder %s17, 0
    %p84 = por %p82, %p83
    %s85 = ssub.s32 %s18, %s30
    %p86 = scmp.eq.s32.totalorder %s85, 0
    %s88 = sadd.s32 %s87, 1
    %s89 = scalar_select %p86, %s87, %s88
    %p92 = pneg %p86
    %p93 = scmp.eq.s32.totalorder %s11, 1
    %p94 = por %p92, %p93
    %p95 = scmp.ne.s32.totalorder %s87, %s90
    %p96 = scmp.eq.s32.totalorder %s11, 0
    %p97 = por %p95, %p96
    %p98 = scmp.ne.s32.totalorder %s87, %s90
    %p99 = scmp.eq.s32.totalorder %s16, 1
    %p100 = por %p98, %p99
    %p101 = scmp.ne.s32.totalorder %s90, %s91
    %p102 = scmp.eq.s32.totalorder %s16, 0
    %p103 = por %p101, %p102
    %p104 = scmp.ne.s32.totalorder %s90, %s91
    %p105 = scmp.eq.s32.totalorder %s17, 1
    %p106 = por %p104, %p105
    %p108 = scmp.ne.s32.totalorder %s91, %s107
    %p109 = scmp.eq.s32.totalorder %s17, 0
    %p110 = por %p108, %p109
    %s112 = sadd.s32 %s111, 1
    %p115 = scmp.eq.s32.totalorder %s11, 1
    %p116 = scmp.ne.s32.totalorder %s111, %s113
    %p117 = scmp.eq.s32.totalorder %s11, 0
    %p118 = por %p116, %p117
    %p119 = scmp.ne.s32.totalorder %s111, %s113
    %p120 = scmp.eq.s32.totalorder %s16, 1
    %p121 = por %p119, %p120
    %p122 = scmp.ne.s32.totalorder %s113, %s114
    %p123 = scmp.eq.s32.totalorder %s16, 0
    %p124 = por %p122, %p123
    %p125 = scmp.ne.s32.totalorder %s113, %s114
    %p126 = scmp.eq.s32.totalorder %s17, 1
    %p127 = por %p125, %p126
    %p129 = scmp.ne.s32.totalorder %s114, %s128
    %p130 = scmp.eq.s32.totalorder %s17, 0
    %p131 = por %p129, %p130
    %s133 = sadd.s32 %s132, 1
    %p136 = scmp.eq.s32.totalorder %s11, 1
    %p137 = scmp.ne.s32.totalorder %s132, %s134
    %p138 = scmp.eq.s32.totalorder %s11, 0
    %p139 = por %p137, %p138
    %p140 = scmp.ne.s32.totalorder %s132, %s134
    %p141 = scmp.eq.s32.totalorder %s16, 1
    %p142 = por %p140, %p141
    %p143 = scmp.ne.s32.totalorder %s134, %s135
    %p144 = scmp.eq.s32.totalorder %s16, 0
    %p145 = por %p143, %p144
    %p146 = scmp.ne.s32.totalorder %s134, %s135
    %p147 = scmp.eq.s32.totalorder %s17, 1
    %p148 = por %p146, %p147
    %p150 = scmp.ne.s32.totalorder %s135, %s149
    %p151 = scmp.eq.s32.totalorder %s17, 0
    %p152 = por %p150, %p151
    %s153 = ssub.s32 %s18, %s30
    %p154 = scmp.eq.s32.totalorder %s153, 0
    %s156 = sadd.s32 %s155, 1
    %s157 = scalar_select %p154, %s155, %s156
    %p160 = pneg %p154
    %p161 = scmp.eq.s32.totalorder %s11, 1
    %p162 = por %p160, %p161
    %p163 = scmp.ne.s32.totalorder %s155, %s158
    %p164 = scmp.eq.s32.totalorder %s11, 0
    %p165 = por %p163, %p164
    %p166 = scmp.ne.s32.totalorder %s155, %s158
    %p167 = scmp.eq.s32.totalorder %s16, 1
    %p168 = por %p166, %p167
    %p169 = scmp.ne.s32.totalorder %s158, %s159
    %p170 = scmp.eq.s32.totalorder %s16, 0
    %p171 = por %p169, %p170
    %p172 = scmp.ne.s32.totalorder %s158, %s159
    %p173 = scmp.eq.s32.totalorder %s17, 1
    %p174 = por %p172, %p173
    %p176 = scmp.ne.s32.totalorder %s159, %s175
    %p177 = scmp.eq.s32.totalorder %s17, 0
    %p178 = por %p176, %p177
    %p179 = scmp.le.s32.totalorder 1, %s11
    %p180 = scmp.lt.s32.totalorder %s11, 3
    %p181 = pnand %p179, %p180
    %p182 = pneg %p181
    // Predicated region
    $region9: #{sage_forward.7} parent=5 // pred_check
      _
    $region10: #{sage_forward.7} parent=5 // pred_check_branch
      %184 = sbr.rel (%p181) target = $region12
    $region11: #{sage_forward.7} parent=5 // pred_region
      %s185 = ssub.s32 %s11, 1
      // Predicated region
      $region13: #{sage_forward.7} parent=11 // pred_check
        %p186 = pneg %p77
      $region14: #{sage_forward.7} parent=11 // pred_check_branch
        %188 = sbr.rel (%p186) target = $region16
      $region15: #{sage_forward.7} parent=11 // pred_region
        %s189 = smul.u32 128, %s21
        %p190 = scmp.lt.s32.totalorder %s189, 127
        %s191 = scalar_select %p190, %s189, 127
        %s192 = smul.addr %s191, 4
        %s193 = scalar_lea.vmem %s1, %s192
        %s194 = smul.u32 128, %s21
      $region16: #{sage_forward.7} parent=11 // pred_fallthru
        _
      // Predicated region
      $region17: #{sage_forward.7} parent=11 // pred_check
        %p195 = pneg %p124
      $region18: #{sage_forward.7} parent=11 // pred_check_branch
        %197 = sbr.rel (%p195) target = $region20
      $region19: #{sage_forward.7} parent=11 // pred_region
        _
      $region20: #{sage_forward.7} parent=11 // pred_fallthru
        _
      // Predicated region
      $region21: #{sage_forward.7} parent=11 // pred_check
        %p198 = pneg %p145
      $region22: #{sage_forward.7} parent=11 // pred_check_branch
        %200 = sbr.rel (%p198) target = $region24
      $region23: #{sage_forward.7} parent=11 // pred_region
        _
      $region24: #{sage_forward.7} parent=11 // pred_fallthru
        _
    $region12: #{sage_forward.7} parent=5 // pred_fallthru
      _
    %p201 = scmp.lt.s32.totalorder %s11, 2
    // Predicated region
    $region25: #{sage_forward.7} parent=5 // pred_check
      %p202 = pneg %p201
    $region26: #{sage_forward.7} parent=5 // pred_check_branch
      %204 = sbr.rel (%p202) target = $region28
    $region27: #{sage_forward.7} parent=5 // pred_region
      // Predicated region
      $region29: #{sage_forward.7} parent=27 // pred_check
        %p205 = pneg %p45
      $region30: #{sage_forward.7} parent=27 // pred_check_branch
        %207 = sbr.rel (%p205) target = $region32
      $region31: #{sage_forward.7} parent=27 // pred_region
        %s208 = smul.u32 64, %s18
        %s209 = smul.u32 8, %s19
        %p210 = scmp.lt.s32.totalorder %s208, 127
        %s211 = scalar_select %p210, %s208, 127
        %p212 = scmp.lt.s32.totalorder %s209, 7
        %s213 = scalar_select %p212, %s209, 7
        %s214 = smul.addr %s211, 8
        %s215 = sadd.s32 %s213, %s214
        %s216 = smul.addr %s215, 4
        %s217 = scalar_lea.vmem %s0, %s216
        %s218 = smul.u32 64, %s18
        %s219 = smul.u32 8, %s19
      $region32: #{sage_forward.7} parent=27 // pred_fallthru
        _
      // Predicated region
      $region33: #{sage_forward.7} parent=27 // pred_check
        %p220 = pneg %p97
      $region34: #{sage_forward.7} parent=27 // pred_check_branch
        %222 = sbr.rel (%p220) target = $region36
      $region35: #{sage_forward.7} parent=27 // pred_region
        %s223 = smul.u32 64, %s18
        %p224 = scmp.lt.s32.totalorder %s223, 127
        %s225 = scalar_select %p224, %s223, 127
        %s226 = smul.addr %s225, 4
        %s227 = scalar_lea.vmem %s2, %s226
        %s228 = smul.u32 64, %s18
      $region36: #{sage_forward.7} parent=27 // pred_fallthru
        _
    $region28: #{sage_forward.7} parent=5 // pred_fallthru
      _
    %p229 = scmp.le.s32.totalorder 1, %s11
    %p230 = scmp.lt.s32.totalorder %s11, 3
    %p231 = pnand %p229, %p230
    %p232 = pneg %p231
    // Predicated region
    $region37: #{sage_forward.7} parent=5 // pred_check
      _
    $region38: #{sage_forward.7} parent=5 // pred_check_branch
      %234 = sbr.rel (%p231) target = $region40
    $region39: #{sage_forward.7} parent=5 // pred_region
      %s235 = ssub.s32 %s11, 1
      %s236 = smul.u32 64, %s20
      %s237 = smul.u32 8, %s21
      %p238 = scmp.lt.s32.totalorder %s236, 127
      %s239 = scalar_select %p238, %s236, 127
      %p240 = scmp.lt.s32.totalorder %s237, 7
      %s241 = scalar_select %p240, %s237, 7
      %s242 = smul.addr %s239, 8
      %s243 = sadd.s32 %s241, %s242
      %s244 = smul.addr %s243, 4
      %s245 = scalar_lea.vmem %s0, %s244
      %p246 = pneg %p51
      %p247 = pneg %p48
      %s248 = smul.u32 128, %s21
      %p249 = scmp.lt.s32.totalorder %s248, 127
      %s250 = scalar_select %p249, %s248, 127
      %s251 = smul.addr %s250, 4
      %s252 = scalar_lea.vmem %s1, %s251
      %p253 = pneg %p77
      %p254 = pneg %p74
      %s255 = smul.u32 64, %s20
      %p256 = scmp.lt.s32.totalorder %s255, 127
      %s257 = scalar_select %p256, %s255, 127
      %s258 = smul.addr %s257, 4
      %s259 = scalar_lea.vmem %s2, %s258
      %p260 = pneg %p103
      %p261 = pneg %p100
      %p262 = pneg %p124
      %p263 = pneg %p121
      %p264 = pneg %p145
      %p265 = pneg %p142
      %p266 = pneg %p171
      %p267 = pneg %p168
      %s268 = smul.u32 64, %s20
      %p269 = scmp.lt.s32.totalorder %s268, 127
      %s270 = scalar_select %p269, %s268, 127
      %s271 = smul.addr %s270, 4
      %s272 = scalar_lea.vmem %s5, %s271
      %s273 = smul.u32 64, %s20
      %s274 = smul.u32 8, %s21
      %p275 = scmp.lt.s32.totalorder %s273, 127
      %s276 = scalar_select %p275, %s273, 127
      %p277 = scmp.lt.s32.totalorder %s274, 7
      %s278 = scalar_select %p277, %s274, 7
      %s279 = smul.addr %s276, 8
      %s280 = sadd.s32 %s278, %s279
      %s281 = smul.addr %s280, 4
      %s282 = scalar_lea.vmem %s0, %s281
      %s283 = smul.u32 64, %s20
      %s284 = smul.u32 8, %s21
      %s285 = smul.u32 128, %s21
      %p286 = scmp.lt.s32.totalorder %s285, 127
      %s287 = scalar_select %p286, %s285, 127
      %s288 = smul.addr %s287, 4
      %s289 = scalar_lea.vmem %s1, %s288
      %s290 = smul.u32 128, %s21
      %s291 = smul.u32 64, %s20
      %p292 = scmp.lt.s32.totalorder %s291, 127
      %s293 = scalar_select %p292, %s291, 127
      %s294 = smul.addr %s293, 4
      %s295 = scalar_lea.vmem %s2, %s294
      %s296 = smul.u32 64, %s20
      %s297 = smul.u32 64, %s20
      %p298 = scmp.lt.s32.totalorder %s297, 127
      %s299 = scalar_select %p298, %s297, 127
      %s300 = smul.addr %s299, 4
      %s301 = scalar_lea.vmem %s5, %s300
      %s302 = smul.u32 64, %s20
      %p303 = scmp.eq.s32.totalorder %s21, 0
      // Predicated region
      $region41: #{sage_forward.7} parent=39 // pred_check
        %p304 = pneg %p303
      $region42: #{sage_forward.7} parent=39 // pred_check_branch
        %306 = sbr.rel (%p304) target = $region44
      $region43: #{sage_forward.7} parent=39 // pred_region
        %307 = vst [vmem:[#allocation2] sm:$0xff] 0.0
        %308 = vst [vmem:[#allocation2 + $0x8] sm:$0xff] 0.0
        %309 = vst [vmem:[#allocation2 + $0x10] sm:$0xff] 0.0
        %310 = vst [vmem:[#allocation2 + $0x18] sm:$0xff] 0.0
        %311 = vst [vmem:[#allocation2 + $0x20] sm:$0xff] 0.0
        %312 = vst [vmem:[#allocation2 + $0x28] sm:$0xff] 0.0
        %313 = vst [vmem:[#allocation2 + $0x30] sm:$0xff] 0.0
        %314 = vst [vmem:[#allocation2 + $0x38] sm:$0xff] 0.0
        %315 = vst [vmem:[#allocation2 + $0x40] sm:$0xff] 0.0
        %316 = vst [vmem:[#allocation2 + $0x48] sm:$0xff] 0.0
        %317 = vst [vmem:[#allocation2 + $0x50] sm:$0xff] 0.0
        %318 = vst [vmem:[#allocation2 + $0x58] sm:$0xff] 0.0
        %319 = vst [vmem:[#allocation2 + $0x60] sm:$0xff] 0.0
        %320 = vst [vmem:[#allocation2 + $0x68] sm:$0xff] 0.0
        %321 = vst [vmem:[#allocation2 + $0x70] sm:$0xff] 0.0
        %322 = vst [vmem:[#allocation2 + $0x78] sm:$0xff] 0.0
        %323 = vst [vmem:[#allocation2 + $0x80] sm:$0xff] 0.0
        %324 = vst [vmem:[#allocation2 + $0x88] sm:$0xff] 0.0
        %325 = vst [vmem:[#allocation2 + $0x90] sm:$0xff] 0.0
        %326 = vst [vmem:[#allocation2 + $0x98] sm:$0xff] 0.0
        %327 = vst [vmem:[#allocation2 + $0xa0] sm:$0xff] 0.0
        %328 = vst [vmem:[#allocation2 + $0xa8] sm:$0xff] 0.0
        %329 = vst [vmem:[#allocation2 + $0xb0] sm:$0xff] 0.0
        %330 = vst [vmem:[#allocation2 + $0xb8] sm:$0xff] 0.0
        %331 = vst [vmem:[#allocation2 + $0xc0] sm:$0xff] 0.0
        %332 = vst [vmem:[#allocation2 + $0xc8] sm:$0xff] 0.0
        %333 = vst [vmem:[#allocation2 + $0xd0] sm:$0xff] 0.0
        %334 = vst [vmem:[#allocation2 + $0xd8] sm:$0xff] 0.0
        %335 = vst [vmem:[#allocation2 + $0xe0] sm:$0xff] 0.0
        %336 = vst [vmem:[#allocation2 + $0xe8] sm:$0xff] 0.0
        %337 = vst [vmem:[#allocation2 + $0xf0] sm:$0xff] 0.0
        %338 = vst [vmem:[#allocation2 + $0xf8] sm:$0xff] 0.0
        %339 = vst [vmem:[#allocation2 + $0x100] sm:$0xff] 0.0
        %340 = vst [vmem:[#allocation2 + $0x108] sm:$0xff] 0.0
        %341 = vst [vmem:[#allocation2 + $0x110] sm:$0xff] 0.0
        %342 = vst [vmem:[#allocation2 + $0x118] sm:$0xff] 0.0
        %343 = vst [vmem:[#allocation2 + $0x120] sm:$0xff] 0.0
        %344 = vst [vmem:[#allocation2 + $0x128] sm:$0xff] 0.0
        %345 = vst [vmem:[#allocation2 + $0x130] sm:$0xff] 0.0
        %346 = vst [vmem:[#allocation2 + $0x138] sm:$0xff] 0.0
        %347 = vst [vmem:[#allocation2 + $0x140] sm:$0xff] 0.0
        %348 = vst [vmem:[#allocation2 + $0x148] sm:$0xff] 0.0
        %349 = vst [vmem:[#allocation2 + $0x150] sm:$0xff] 0.0
        %350 = vst [vmem:[#allocation2 + $0x158] sm:$0xff] 0.0
        %351 = vst [vmem:[#allocation2 + $0x160] sm:$0xff] 0.0
        %352 = vst [vmem:[#allocation2 + $0x168] sm:$0xff] 0.0
        %353 = vst [vmem:[#allocation2 + $0x170] sm:$0xff] 0.0
        %354 = vst [vmem:[#allocation2 + $0x178] sm:$0xff] 0.0
        %355 = vst [vmem:[#allocation2 + $0x180] sm:$0xff] 0.0
        %356 = vst [vmem:[#allocation2 + $0x188] sm:$0xff] 0.0
        %357 = vst [vmem:[#allocation2 + $0x190] sm:$0xff] 0.0
        %358 = vst [vmem:[#allocation2 + $0x198] sm:$0xff] 0.0
        %359 = vst [vmem:[#allocation2 + $0x1a0] sm:$0xff] 0.0
        %360 = vst [vmem:[#allocation2 + $0x1a8] sm:$0xff] 0.0
        %361 = vst [vmem:[#allocation2 + $0x1b0] sm:$0xff] 0.0
        %362 = vst [vmem:[#allocation2 + $0x1b8] sm:$0xff] 0.0
        %363 = vst [vmem:[#allocation2 + $0x1c0] sm:$0xff] 0.0
        %364 = vst [vmem:[#allocation2 + $0x1c8] sm:$0xff] 0.0
        %365 = vst [vmem:[#allocation2 + $0x1d0] sm:$0xff] 0.0
        %366 = vst [vmem:[#allocation2 + $0x1d8] sm:$0xff] 0.0
        %367 = vst [vmem:[#allocation2 + $0x1e0] sm:$0xff] 0.0
        %368 = vst [vmem:[#allocation2 + $0x1e8] sm:$0xff] 0.0
        %369 = vst [vmem:[#allocation2 + $0x1f0] sm:$0xff] 0.0
        %370 = vst [vmem:[#allocation2 + $0x1f8] sm:$0xff] 0.0
      $region44: #{sage_forward.7} parent=39 // pred_fallthru
        _
      %v371 = vld [vmem:[#allocation2] sm:$0xff]
      %v372 = vld [vmem:[#allocation2 + $0x8] sm:$0xff]
      %v373 = vld [vmem:[#allocation2 + $0x10] sm:$0xff]
      %v374 = vld [vmem:[#allocation2 + $0x18] sm:$0xff]
      %v375 = vld [vmem:[#allocation2 + $0x20] sm:$0xff]
      %v376 = vld [vmem:[#allocation2 + $0x28] sm:$0xff]
      %v377 = vld [vmem:[#allocation2 + $0x30] sm:$0xff]
      %v378 = vld [vmem:[#allocation2 + $0x38] sm:$0xff]
      %v379 = vld [vmem:[#allocation2 + $0x40] sm:$0xff]
      %v380 = vld [vmem:[#allocation2 + $0x48] sm:$0xff]
      %v381 = vld [vmem:[#allocation2 + $0x50] sm:$0xff]
      %v382 = vld [vmem:[#allocation2 + $0x58] sm:$0xff]
      %v383 = vld [vmem:[#allocation2 + $0x60] sm:$0xff]
      %v384 = vld [vmem:[#allocation2 + $0x68] sm:$0xff]
      %v385 = vld [vmem:[#allocation2 + $0x70] sm:$0xff]
      %v386 = vld [vmem:[#allocation2 + $0x78] sm:$0xff]
      %v387 = vld [vmem:[#allocation2 + $0x80] sm:$0xff]
      %v388 = vld [vmem:[#allocation2 + $0x88] sm:$0xff]
      %v389 = vld [vmem:[#allocation2 + $0x90] sm:$0xff]
      %v390 = vld [vmem:[#allocation2 + $0x98] sm:$0xff]
      %v391 = vld [vmem:[#allocation2 + $0xa0] sm:$0xff]
      %v392 = vld [vmem:[#allocation2 + $0xa8] sm:$0xff]
      %v393 = vld [vmem:[#allocation2 + $0xb0] sm:$0xff]
      %v394 = vld [vmem:[#allocation2 + $0xb8] sm:$0xff]
      %v395 = vld [vmem:[#allocation2 + $0xc0] sm:$0xff]
      %v396 = vld [vmem:[#allocation2 + $0xc8] sm:$0xff]
      %v397 = vld [vmem:[#allocation2 + $0xd0] sm:$0xff]
      %v398 = vld [vmem:[#allocation2 + $0xd8] sm:$0xff]
      %v399 = vld [vmem:[#allocation2 + $0xe0] sm:$0xff]
      %v400 = vld [vmem:[#allocation2 + $0xe8] sm:$0xff]
      %v401 = vld [vmem:[#allocation2 + $0xf0] sm:$0xff]
      %v402 = vld [vmem:[#allocation2 + $0xf8] sm:$0xff]
      %v403 = vld [vmem:[#allocation2 + $0x100] sm:$0xff]
      %v404 = vld [vmem:[#allocation2 + $0x108] sm:$0xff]
      %v405 = vld [vmem:[#allocation2 + $0x110] sm:$0xff]
      %v406 = vld [vmem:[#allocation2 + $0x118] sm:$0xff]
      %v407 = vld [vmem:[#allocation2 + $0x120] sm:$0xff]
      %v408 = vld [vmem:[#allocation2 + $0x128] sm:$0xff]
      %v409 = vld [vmem:[#allocation2 + $0x130] sm:$0xff]
      %v410 = vld [vmem:[#allocation2 + $0x138] sm:$0xff]
      %v411 = vld [vmem:[#allocation2 + $0x140] sm:$0xff]
      %v412 = vld [vmem:[#allocation2 + $0x148] sm:$0xff]
      %v413 = vld [vmem:[#allocation2 + $0x150] sm:$0xff]
      %v414 = vld [vmem:[#allocation2 + $0x158] sm:$0xff]
      %v415 = vld [vmem:[#allocation2 + $0x160] sm:$0xff]
      %v416 = vld [vmem:[#allocation2 + $0x168] sm:$0xff]
      %v417 = vld [vmem:[#allocation2 + $0x170] sm:$0xff]
      %v418 = vld [vmem:[#allocation2 + $0x178] sm:$0xff]
      %v419 = vld [vmem:[#allocation2 + $0x180] sm:$0xff]
      %v420 = vld [vmem:[#allocation2 + $0x188] sm:$0xff]
      %v421 = vld [vmem:[#allocation2 + $0x190] sm:$0xff]
      %v422 = vld [vmem:[#allocation2 + $0x198] sm:$0xff]
      %v423 = vld [vmem:[#allocation2 + $0x1a0] sm:$0xff]
      %v424 = vld [vmem:[#allocation2 + $0x1a8] sm:$0xff]
      %v425 = vld [vmem:[#allocation2 + $0x1b0] sm:$0xff]
      %v426 = vld [vmem:[#allocation2 + $0x1b8] sm:$0xff]
      %v427 = vld [vmem:[#allocation2 + $0x1c0] sm:$0xff]
      %v428 = vld [vmem:[#allocation2 + $0x1c8] sm:$0xff]
      %v429 = vld [vmem:[#allocation2 + $0x1d0] sm:$0xff]
      %v430 = vld [vmem:[#allocation2 + $0x1d8] sm:$0xff]
      %v431 = vld [vmem:[#allocation2 + $0x1e0] sm:$0xff]
      %v432 = vld [vmem:[#allocation2 + $0x1e8] sm:$0xff]
      %v433 = vld [vmem:[#allocation2 + $0x1f0] sm:$0xff]
      %v434 = vld [vmem:[#allocation2 + $0x1f8] sm:$0xff]
      %v435 = vld [vmem:[%s282] sm:$0xff]
      %v436 = vld [vmem:[%s282 + $0x8] sm:$0xff]
      %v437 = vld [vmem:[%s282 + $0x10] sm:$0xff]
      %v438 = vld [vmem:[%s282 + $0x18] sm:$0xff]
      %v439 = vld [vmem:[%s282 + $0x20] sm:$0xff]
      %v440 = vld [vmem:[%s282 + $0x28] sm:$0xff]
      %v441 = vld [vmem:[%s282 + $0x30] sm:$0xff]
      %v442 = vld [vmem:[%s282 + $0x38] sm:$0xff]
      %v443 = vld [vmem:[%s282 + $0x40] sm:$0xff]
      %v444 = vld [vmem:[%s282 + $0x48] sm:$0xff]
      %v445 = vld [vmem:[%s282 + $0x50] sm:$0xff]
      %v446 = vld [vmem:[%s282 + $0x58] sm:$0xff]
      %v447 = vld [vmem:[%s282 + $0x60] sm:$0xff]
      %v448 = vld [vmem:[%s282 + $0x68] sm:$0xff]
      %v449 = vld [vmem:[%s282 + $0x70] sm:$0xff]
      %v450 = vld [vmem:[%s282 + $0x78] sm:$0xff]
      %v451 = vld [vmem:[%s282 + $0x80] sm:$0xff]
      %v452 = vld [vmem:[%s282 + $0x88] sm:$0xff]
      %v453 = vld [vmem:[%s282 + $0x90] sm:$0xff]
      %v454 = vld [vmem:[%s282 + $0x98] sm:$0xff]
      %v455 = vld [vmem:[%s282 + $0xa0] sm:$0xff]
      %v456 = vld [vmem:[%s282 + $0xa8] sm:$0xff]
      %v457 = vld [vmem:[%s282 + $0xb0] sm:$0xff]
      %v458 = vld [vmem:[%s282 + $0xb8] sm:$0xff]
      %v459 = vld [vmem:[%s282 + $0xc0] sm:$0xff]
      %v460 = vld [vmem:[%s282 + $0xc8] sm:$0xff]
      %v461 = vld [vmem:[%s282 + $0xd0] sm:$0xff]
      %v462 = vld [vmem:[%s282 + $0xd8] sm:$0xff]
      %v463 = vld [vmem:[%s282 + $0xe0] sm:$0xff]
      %v464 = vld [vmem:[%s282 + $0xe8] sm:$0xff]
      %v465 = vld [vmem:[%s282 + $0xf0] sm:$0xff]
      %v466 = vld [vmem:[%s282 + $0xf8] sm:$0xff]
      %v467 = vld [vmem:[%s282 + $0x100] sm:$0xff]
      %v468 = vld [vmem:[%s282 + $0x108] sm:$0xff]
      %v469 = vld [vmem:[%s282 + $0x110] sm:$0xff]
      %v470 = vld [vmem:[%s282 + $0x118] sm:$0xff]
      %v471 = vld [vmem:[%s282 + $0x120] sm:$0xff]
      %v472 = vld [vmem:[%s282 + $0x128] sm:$0xff]
      %v473 = vld [vmem:[%s282 + $0x130] sm:$0xff]
      %v474 = vld [vmem:[%s282 + $0x138] sm:$0xff]
      %v475 = vld [vmem:[%s282 + $0x140] sm:$0xff]
      %v476 = vld [vmem:[%s282 + $0x148] sm:$0xff]
      %v477 = vld [vmem:[%s282 + $0x150] sm:$0xff]
      %v478 = vld [vmem:[%s282 + $0x158] sm:$0xff]
      %v479 = vld [vmem:[%s282 + $0x160] sm:$0xff]
      %v480 = vld [vmem:[%s282 + $0x168] sm:$0xff]
      %v481 = vld [vmem:[%s282 + $0x170] sm:$0xff]
      %v482 = vld [vmem:[%s282 + $0x178] sm:$0xff]
      %v483 = vld [vmem:[%s282 + $0x180] sm:$0xff]
      %v484 = vld [vmem:[%s282 + $0x188] sm:$0xff]
      %v485 = vld [vmem:[%s282 + $0x190] sm:$0xff]
      %v486 = vld [vmem:[%s282 + $0x198] sm:$0xff]
      %v487 = vld [vmem:[%s282 + $0x1a0] sm:$0xff]
      %v488 = vld [vmem:[%s282 + $0x1a8] sm:$0xff]
      %v489 = vld [vmem:[%s282 + $0x1b0] sm:$0xff]
      %v490 = vld [vmem:[%s282 + $0x1b8] sm:$0xff]
      %v491 = vld [vmem:[%s282 + $0x1c0] sm:$0xff]
      %v492 = vld [vmem:[%s282 + $0x1c8] sm:$0xff]
      %v493 = vld [vmem:[%s282 + $0x1d0] sm:$0xff]
      %v494 = vld [vmem:[%s282 + $0x1d8] sm:$0xff]
      %v495 = vld [vmem:[%s282 + $0x1e0] sm:$0xff]
      %v496 = vld [vmem:[%s282 + $0x1e8] sm:$0xff]
      %v497 = vld [vmem:[%s282 + $0x1f0] sm:$0xff]
      %v498 = vld [vmem:[%s282 + $0x1f8] sm:$0xff]
      %v499 = vld [vmem:[%s282 + $0x200] sm:$0xff]
      %v500 = vld [vmem:[%s282 + $0x208] sm:$0xff]
      %v501 = vld [vmem:[%s282 + $0x210] sm:$0xff]
      %v502 = vld [vmem:[%s282 + $0x218] sm:$0xff]
      %v503 = vld [vmem:[%s282 + $0x220] sm:$0xff]
      %v504 = vld [vmem:[%s282 + $0x228] sm:$0xff]
      %v505 = vld [vmem:[%s282 + $0x230] sm:$0xff]
      %v506 = vld [vmem:[%s282 + $0x238] sm:$0xff]
      %v507 = vld [vmem:[%s282 + $0x240] sm:$0xff]
      %v508 = vld [vmem:[%s282 + $0x248] sm:$0xff]
      %v509 = vld [vmem:[%s282 + $0x250] sm:$0xff]
      %v510 = vld [vmem:[%s282 + $0x258] sm:$0xff]
      %v511 = vld [vmem:[%s282 + $0x260] sm:$0xff]
      %v512 = vld [vmem:[%s282 + $0x268] sm:$0xff]
      %v513 = vld [vmem:[%s282 + $0x270] sm:$0xff]
      %v514 = vld [vmem:[%s282 + $0x278] sm:$0xff]
      %v515 = vld [vmem:[%s282 + $0x280] sm:$0xff]
      %v516 = vld [vmem:[%s282 + $0x288] sm:$0xff]
      %v517 = vld [vmem:[%s282 + $0x290] sm:$0xff]
      %v518 = vld [vmem:[%s282 + $0x298] sm:$0xff]
      %v519 = vld [vmem:[%s282 + $0x2a0] sm:$0xff]
      %v520 = vld [vmem:[%s282 + $0x2a8] sm:$0xff]
      %v521 = vld [vmem:[%s282 + $0x2b0] sm:$0xff]
      %v522 = vld [vmem:[%s282 + $0x2b8] sm:$0xff]
      %v523 = vld [vmem:[%s282 + $0x2c0] sm:$0xff]
      %v524 = vld [vmem:[%s282 + $0x2c8] sm:$0xff]
      %v525 = vld [vmem:[%s282 + $0x2d0] sm:$0xff]
      %v526 = vld [vmem:[%s282 + $0x2d8] sm:$0xff]
      %v527 = vld [vmem:[%s282 + $0x2e0] sm:$0xff]
      %v528 = vld [vmem:[%s282 + $0x2e8] sm:$0xff]
      %v529 = vld [vmem:[%s282 + $0x2f0] sm:$0xff]
      %v530 = vld [vmem:[%s282 + $0x2f8] sm:$0xff]
      %v531 = vld [vmem:[%s282 + $0x300] sm:$0xff]
      %v532 = vld [vmem:[%s282 + $0x308] sm:$0xff]
      %v533 = vld [vmem:[%s282 + $0x310] sm:$0xff]
      %v534 = vld [vmem:[%s282 + $0x318] sm:$0xff]
      %v535 = vld [vmem:[%s282 + $0x320] sm:$0xff]
      %v536 = vld [vmem:[%s282 + $0x328] sm:$0xff]
      %v537 = vld [vmem:[%s282 + $0x330] sm:$0xff]
      %v538 = vld [vmem:[%s282 + $0x338] sm:$0xff]
      %v539 = vld [vmem:[%s282 + $0x340] sm:$0xff]
      %v540 = vld [vmem:[%s282 + $0x348] sm:$0xff]
      %v541 = vld [vmem:[%s282 + $0x350] sm:$0xff]
      %v542 = vld [vmem:[%s282 + $0x358] sm:$0xff]
      %v543 = vld [vmem:[%s282 + $0x360] sm:$0xff]
      %v544 = vld [vmem:[%s282 + $0x368] sm:$0xff]
      %v545 = vld [vmem:[%s282 + $0x370] sm:$0xff]
      %v546 = vld [vmem:[%s282 + $0x378] sm:$0xff]
      %v547 = vld [vmem:[%s282 + $0x380] sm:$0xff]
      %v548 = vld [vmem:[%s282 + $0x388] sm:$0xff]
      %v549 = vld [vmem:[%s282 + $0x390] sm:$0xff]
      %v550 = vld [vmem:[%s282 + $0x398] sm:$0xff]
      %v551 = vld [vmem:[%s282 + $0x3a0] sm:$0xff]
      %v552 = vld [vmem:[%s282 + $0x3a8] sm:$0xff]
      %v553 = vld [vmem:[%s282 + $0x3b0] sm:$0xff]
      %v554 = vld [vmem:[%s282 + $0x3b8] sm:$0xff]
      %v555 = vld [vmem:[%s282 + $0x3c0] sm:$0xff]
      %v556 = vld [vmem:[%s282 + $0x3c8] sm:$0xff]
      %v557 = vld [vmem:[%s282 + $0x3d0] sm:$0xff]
      %v558 = vld [vmem:[%s282 + $0x3d8] sm:$0xff]
      %v559 = vld [vmem:[%s282 + $0x3e0] sm:$0xff]
      %v560 = vld [vmem:[%s282 + $0x3e8] sm:$0xff]
      %v561 = vld [vmem:[%s282 + $0x3f0] sm:$0xff]
      %v562 = vld [vmem:[%s282 + $0x3f8] sm:$0xff]
      %v563 = vld [vmem:[%s282 + $0x400] sm:$0xff]
      %v564 = vld [vmem:[%s282 + $0x408] sm:$0xff]
      %v565 = vld [vmem:[%s282 + $0x410] sm:$0xff]
      %v566 = vld [vmem:[%s282 + $0x418] sm:$0xff]
      %v567 = vld [vmem:[%s282 + $0x420] sm:$0xff]
      %v568 = vld [vmem:[%s282 + $0x428] sm:$0xff]
      %v569 = vld [vmem:[%s282 + $0x430] sm:$0xff]
      %v570 = vld [vmem:[%s282 + $0x438] sm:$0xff]
      %v571 = vld [vmem:[%s282 + $0x440] sm:$0xff]
      %v572 = vld [vmem:[%s282 + $0x448] sm:$0xff]
      %v573 = vld [vmem:[%s282 + $0x450] sm:$0xff]
      %v574 = vld [vmem:[%s282 + $0x458] sm:$0xff]
      %v575 = vld [vmem:[%s282 + $0x460] sm:$0xff]
      %v576 = vld [vmem:[%s282 + $0x468] sm:$0xff]
      %v577 = vld [vmem:[%s282 + $0x470] sm:$0xff]
      %v578 = vld [vmem:[%s282 + $0x478] sm:$0xff]
      %v579 = vld [vmem:[%s282 + $0x480] sm:$0xff]
      %v580 = vld [vmem:[%s282 + $0x488] sm:$0xff]
      %v581 = vld [vmem:[%s282 + $0x490] sm:$0xff]
      %v582 = vld [vmem:[%s282 + $0x498] sm:$0xff]
      %v583 = vld [vmem:[%s282 + $0x4a0] sm:$0xff]
      %v584 = vld [vmem:[%s282 + $0x4a8] sm:$0xff]
      %v585 = vld [vmem:[%s282 + $0x4b0] sm:$0xff]
      %v586 = vld [vmem:[%s282 + $0x4b8] sm:$0xff]
      %v587 = vld [vmem:[%s282 + $0x4c0] sm:$0xff]
      %v588 = vld [vmem:[%s282 + $0x4c8] sm:$0xff]
      %v589 = vld [vmem:[%s282 + $0x4d0] sm:$0xff]
      %v590 = vld [vmem:[%s282 + $0x4d8] sm:$0xff]
      %v591 = vld [vmem:[%s282 + $0x4e0] sm:$0xff]
      %v592 = vld [vmem:[%s282 + $0x4e8] sm:$0xff]
      %v593 = vld [vmem:[%s282 + $0x4f0] sm:$0xff]
      %v594 = vld [vmem:[%s282 + $0x4f8] sm:$0xff]
      %v595 = vld [vmem:[%s282 + $0x500] sm:$0xff]
      %v596 = vld [vmem:[%s282 + $0x508] sm:$0xff]
      %v597 = vld [vmem:[%s282 + $0x510] sm:$0xff]
      %v598 = vld [vmem:[%s282 + $0x518] sm:$0xff]
      %v599 = vld [vmem:[%s282 + $0x520] sm:$0xff]
      %v600 = vld [vmem:[%s282 + $0x528] sm:$0xff]
      %v601 = vld [vmem:[%s282 + $0x530] sm:$0xff]
      %v602 = vld [vmem:[%s282 + $0x538] sm:$0xff]
      %v603 = vld [vmem:[%s282 + $0x540] sm:$0xff]
      %v604 = vld [vmem:[%s282 + $0x548] sm:$0xff]
      %v605 = vld [vmem:[%s282 + $0x550] sm:$0xff]
      %v606 = vld [vmem:[%s282 + $0x558] sm:$0xff]
      %v607 = vld [vmem:[%s282 + $0x560] sm:$0xff]
      %v608 = vld [vmem:[%s282 + $0x568] sm:$0xff]
      %v609 = vld [vmem:[%s282 + $0x570] sm:$0xff]
      %v610 = vld [vmem:[%s282 + $0x578] sm:$0xff]
      %v611 = vld [vmem:[%s282 + $0x580] sm:$0xff]
      %v612 = vld [vmem:[%s282 + $0x588] sm:$0xff]
      %v613 = vld [vmem:[%s282 + $0x590] sm:$0xff]
      %v614 = vld [vmem:[%s282 + $0x598] sm:$0xff]
      %v615 = vld [vmem:[%s282 + $0x5a0] sm:$0xff]
      %v616 = vld [vmem:[%s282 + $0x5a8] sm:$0xff]
      %v617 = vld [vmem:[%s282 + $0x5b0] sm:$0xff]
      %v618 = vld [vmem:[%s282 + $0x5b8] sm:$0xff]
      %v619 = vld [vmem:[%s282 + $0x5c0] sm:$0xff]
      %v620 = vld [vmem:[%s282 + $0x5c8] sm:$0xff]
      %v621 = vld [vmem:[%s282 + $0x5d0] sm:$0xff]
      %v622 = vld [vmem:[%s282 + $0x5d8] sm:$0xff]
      %v623 = vld [vmem:[%s282 + $0x5e0] sm:$0xff]
      %v624 = vld [vmem:[%s282 + $0x5e8] sm:$0xff]
      %v625 = vld [vmem:[%s282 + $0x5f0] sm:$0xff]
      %v626 = vld [vmem:[%s282 + $0x5f8] sm:$0xff]
      %v627 = vld [vmem:[%s282 + $0x600] sm:$0xff]
      %v628 = vld [vmem:[%s282 + $0x608] sm:$0xff]
      %v629 = vld [vmem:[%s282 + $0x610] sm:$0xff]
      %v630 = vld [vmem:[%s282 + $0x618] sm:$0xff]
      %v631 = vld [vmem:[%s282 + $0x620] sm:$0xff]
      %v632 = vld [vmem:[%s282 + $0x628] sm:$0xff]
      %v633 = vld [vmem:[%s282 + $0x630] sm:$0xff]
      %v634 = vld [vmem:[%s282 + $0x638] sm:$0xff]
      %v635 = vld [vmem:[%s282 + $0x640] sm:$0xff]
      %v636 = vld [vmem:[%s282 + $0x648] sm:$0xff]
      %v637 = vld [vmem:[%s282 + $0x650] sm:$0xff]
      %v638 = vld [vmem:[%s282 + $0x658] sm:$0xff]
      %v639 = vld [vmem:[%s282 + $0x660] sm:$0xff]
      %v640 = vld [vmem:[%s282 + $0x668] sm:$0xff]
      %v641 = vld [vmem:[%s282 + $0x670] sm:$0xff]
      %v642 = vld [vmem:[%s282 + $0x678] sm:$0xff]
      %v643 = vld [vmem:[%s282 + $0x680] sm:$0xff]
      %v644 = vld [vmem:[%s282 + $0x688] sm:$0xff]
      %v645 = vld [vmem:[%s282 + $0x690] sm:$0xff]
      %v646 = vld [vmem:[%s282 + $0x698] sm:$0xff]
      %v647 = vld [vmem:[%s282 + $0x6a0] sm:$0xff]
      %v648 = vld [vmem:[%s282 + $0x6a8] sm:$0xff]
      %v649 = vld [vmem:[%s282 + $0x6b0] sm:$0xff]
      %v650 = vld [vmem:[%s282 + $0x6b8] sm:$0xff]
      %v651 = vld [vmem:[%s282 + $0x6c0] sm:$0xff]
      %v652 = vld [vmem:[%s282 + $0x6c8] sm:$0xff]
      %v653 = vld [vmem:[%s282 + $0x6d0] sm:$0xff]
      %v654 = vld [vmem:[%s282 + $0x6d8] sm:$0xff]
      %v655 = vld [vmem:[%s282 + $0x6e0] sm:$0xff]
      %v656 = vld [vmem:[%s282 + $0x6e8] sm:$0xff]
      %v657 = vld [vmem:[%s282 + $0x6f0] sm:$0xff]
      %v658 = vld [vmem:[%s282 + $0x6f8] sm:$0xff]
      %v659 = vld [vmem:[%s282 + $0x700] sm:$0xff]
      %v660 = vld [vmem:[%s282 + $0x708] sm:$0xff]
      %v661 = vld [vmem:[%s282 + $0x710] sm:$0xff]
      %v662 = vld [vmem:[%s282 + $0x718] sm:$0xff]
      %v663 = vld [vmem:[%s282 + $0x720] sm:$0xff]
      %v664 = vld [vmem:[%s282 + $0x728] sm:$0xff]
      %v665 = vld [vmem:[%s282 + $0x730] sm:$0xff]
      %v666 = vld [vmem:[%s282 + $0x738] sm:$0xff]
      %v667 = vld [vmem:[%s282 + $0x740] sm:$0xff]
      %v668 = vld [vmem:[%s282 + $0x748] sm:$0xff]
      %v669 = vld [vmem:[%s282 + $0x750] sm:$0xff]
      %v670 = vld [vmem:[%s282 + $0x758] sm:$0xff]
      %v671 = vld [vmem:[%s282 + $0x760] sm:$0xff]
      %v672 = vld [vmem:[%s282 + $0x768] sm:$0xff]
      %v673 = vld [vmem:[%s282 + $0x770] sm:$0xff]
      %v674 = vld [vmem:[%s282 + $0x778] sm:$0xff]
      %v675 = vld [vmem:[%s282 + $0x780] sm:$0xff]
      %v676 = vld [vmem:[%s282 + $0x788] sm:$0xff]
      %v677 = vld [vmem:[%s282 + $0x790] sm:$0xff]
      %v678 = vld [vmem:[%s282 + $0x798] sm:$0xff]
      %v679 = vld [vmem:[%s282 + $0x7a0] sm:$0xff]
      %v680 = vld [vmem:[%s282 + $0x7a8] sm:$0xff]
      %v681 = vld [vmem:[%s282 + $0x7b0] sm:$0xff]
      %v682 = vld [vmem:[%s282 + $0x7b8] sm:$0xff]
      %v683 = vld [vmem:[%s282 + $0x7c0] sm:$0xff]
      %v684 = vld [vmem:[%s282 + $0x7c8] sm:$0xff]
      %v685 = vld [vmem:[%s282 + $0x7d0] sm:$0xff]
      %v686 = vld [vmem:[%s282 + $0x7d8] sm:$0xff]
      %v687 = vld [vmem:[%s282 + $0x7e0] sm:$0xff]
      %v688 = vld [vmem:[%s282 + $0x7e8] sm:$0xff]
      %v689 = vld [vmem:[%s282 + $0x7f0] sm:$0xff]
      %v690 = vld [vmem:[%s282 + $0x7f8] sm:$0xff]
      %v691 = vld [vmem:[%s289] sm:$0xf]
      %v692 = vld [vmem:[%s289 + $0x4] sm:$0xf]
      %v693 = vld [vmem:[%s289 + $0x8] sm:$0xf]
      %v694 = vld [vmem:[%s289 + $0xc] sm:$0xf]
      %v695 = vld [vmem:[%s289 + $0x10] sm:$0xf]
      %v696 = vld [vmem:[%s289 + $0x14] sm:$0xf]
      %v697 = vld [vmem:[%s289 + $0x18] sm:$0xf]
      %v698 = vld [vmem:[%s289 + $0x1c] sm:$0xf]
      %v699 = vld [vmem:[%s289 + $0x20] sm:$0xf]
      %v700 = vld [vmem:[%s289 + $0x24] sm:$0xf]
      %v701 = vld [vmem:[%s289 + $0x28] sm:$0xf]
      %v702 = vld [vmem:[%s289 + $0x2c] sm:$0xf]
      %v703 = vld [vmem:[%s289 + $0x30] sm:$0xf]
      %v704 = vld [vmem:[%s289 + $0x34] sm:$0xf]
      %v705 = vld [vmem:[%s289 + $0x38] sm:$0xf]
      %v706 = vld [vmem:[%s289 + $0x3c] sm:$0xf]
      %v707 = vld [vmem:[%s289 + $0x40] sm:$0xf]
      %v708 = vld [vmem:[%s289 + $0x44] sm:$0xf]
      %v709 = vld [vmem:[%s289 + $0x48] sm:$0xf]
      %v710 = vld [vmem:[%s289 + $0x4c] sm:$0xf]
      %v711 = vld [vmem:[%s289 + $0x50] sm:$0xf]
      %v712 = vld [vmem:[%s289 + $0x54] sm:$0xf]
      %v713 = vld [vmem:[%s289 + $0x58] sm:$0xf]
      %v714 = vld [vmem:[%s289 + $0x5c] sm:$0xf]
      %v715 = vld [vmem:[%s289 + $0x60] sm:$0xf]
      %v716 = vld [vmem:[%s289 + $0x64] sm:$0xf]
      %v717 = vld [vmem:[%s289 + $0x68] sm:$0xf]
      %v718 = vld [vmem:[%s289 + $0x6c] sm:$0xf]
      %v719 = vld [vmem:[%s289 + $0x70] sm:$0xf]
      %v720 = vld [vmem:[%s289 + $0x74] sm:$0xf]
      %v721 = vld [vmem:[%s289 + $0x78] sm:$0xf]
      %v722 = vld [vmem:[%s289 + $0x7c] sm:$0xf]
      %v723 = vld [vmem:[%s289 + $0x80] sm:$0xf]
      %v724 = vld [vmem:[%s289 + $0x84] sm:$0xf]
      %v725 = vld [vmem:[%s289 + $0x88] sm:$0xf]
      %v726 = vld [vmem:[%s289 + $0x8c] sm:$0xf]
      %v727 = vld [vmem:[%s289 + $0x90] sm:$0xf]
      %v728 = vld [vmem:[%s289 + $0x94] sm:$0xf]
      %v729 = vld [vmem:[%s289 + $0x98] sm:$0xf]
      %v730 = vld [vmem:[%s289 + $0x9c] sm:$0xf]
      %v731 = vld [vmem:[%s289 + $0xa0] sm:$0xf]
      %v732 = vld [vmem:[%s289 + $0xa4] sm:$0xf]
      %v733 = vld [vmem:[%s289 + $0xa8] sm:$0xf]
      %v734 = vld [vmem:[%s289 + $0xac] sm:$0xf]
      %v735 = vld [vmem:[%s289 + $0xb0] sm:$0xf]
      %v736 = vld [vmem:[%s289 + $0xb4] sm:$0xf]
      %v737 = vld [vmem:[%s289 + $0xb8] sm:$0xf]
      %v738 = vld [vmem:[%s289 + $0xbc] sm:$0xf]
      %v739 = vld [vmem:[%s289 + $0xc0] sm:$0xf]
      %v740 = vld [vmem:[%s289 + $0xc4] sm:$0xf]
      %v741 = vld [vmem:[%s289 + $0xc8] sm:$0xf]
      %v742 = vld [vmem:[%s289 + $0xcc] sm:$0xf]
      %v743 = vld [vmem:[%s289 + $0xd0] sm:$0xf]
      %v744 = vld [vmem:[%s289 + $0xd4] sm:$0xf]
      %v745 = vld [vmem:[%s289 + $0xd8] sm:$0xf]
      %v746 = vld [vmem:[%s289 + $0xdc] sm:$0xf]
      %v747 = vld [vmem:[%s289 + $0xe0] sm:$0xf]
      %v748 = vld [vmem:[%s289 + $0xe4] sm:$0xf]
      %v749 = vld [vmem:[%s289 + $0xe8] sm:$0xf]
      %v750 = vld [vmem:[%s289 + $0xec] sm:$0xf]
      %v751 = vld [vmem:[%s289 + $0xf0] sm:$0xf]
      %v752 = vld [vmem:[%s289 + $0xf4] sm:$0xf]
      %v753 = vld [vmem:[%s289 + $0xf8] sm:$0xf]
      %v754 = vld [vmem:[%s289 + $0xfc] sm:$0xf]
      %v755 = vld [vmem:[%s289 + $0x100] sm:$0xf]
      %v756 = vld [vmem:[%s289 + $0x104] sm:$0xf]
      %v757 = vld [vmem:[%s289 + $0x108] sm:$0xf]
      %v758 = vld [vmem:[%s289 + $0x10c] sm:$0xf]
      %v759 = vld [vmem:[%s289 + $0x110] sm:$0xf]
      %v760 = vld [vmem:[%s289 + $0x114] sm:$0xf]
      %v761 = vld [vmem:[%s289 + $0x118] sm:$0xf]
      %v762 = vld [vmem:[%s289 + $0x11c] sm:$0xf]
      %v763 = vld [vmem:[%s289 + $0x120] sm:$0xf]
      %v764 = vld [vmem:[%s289 + $0x124] sm:$0xf]
      %v765 = vld [vmem:[%s289 + $0x128] sm:$0xf]
      %v766 = vld [vmem:[%s289 + $0x12c] sm:$0xf]
      %v767 = vld [vmem:[%s289 + $0x130] sm:$0xf]
      %v768 = vld [vmem:[%s289 + $0x134] sm:$0xf]
      %v769 = vld [vmem:[%s289 + $0x138] sm:$0xf]
      %v770 = vld [vmem:[%s289 + $0x13c] sm:$0xf]
      %v771 = vld [vmem:[%s289 + $0x140] sm:$0xf]
      %v772 = vld [vmem:[%s289 + $0x144] sm:$0xf]
      %v773 = vld [vmem:[%s289 + $0x148] sm:$0xf]
      %v774 = vld [vmem:[%s289 + $0x14c] sm:$0xf]
      %v775 = vld [vmem:[%s289 + $0x150] sm:$0xf]
      %v776 = vld [vmem:[%s289 + $0x154] sm:$0xf]
      %v777 = vld [vmem:[%s289 + $0x158] sm:$0xf]
      %v778 = vld [vmem:[%s289 + $0x15c] sm:$0xf]
      %v779 = vld [vmem:[%s289 + $0x160] sm:$0xf]
      %v780 = vld [vmem:[%s289 + $0x164] sm:$0xf]
      %v781 = vld [vmem:[%s289 + $0x168] sm:$0xf]
      %v782 = vld [vmem:[%s289 + $0x16c] sm:$0xf]
      %v783 = vld [vmem:[%s289 + $0x170] sm:$0xf]
      %v784 = vld [vmem:[%s289 + $0x174] sm:$0xf]
      %v785 = vld [vmem:[%s289 + $0x178] sm:$0xf]
      %v786 = vld [vmem:[%s289 + $0x17c] sm:$0xf]
      %v787 = vld [vmem:[%s289 + $0x180] sm:$0xf]
      %v788 = vld [vmem:[%s289 + $0x184] sm:$0xf]
      %v789 = vld [vmem:[%s289 + $0x188] sm:$0xf]
      %v790 = vld [vmem:[%s289 + $0x18c] sm:$0xf]
      %v791 = vld [vmem:[%s289 + $0x190] sm:$0xf]
      %v792 = vld [vmem:[%s289 + $0x194] sm:$0xf]
      %v793 = vld [vmem:[%s289 + $0x198] sm:$0xf]
      %v794 = vld [vmem:[%s289 + $0x19c] sm:$0xf]
      %v795 = vld [vmem:[%s289 + $0x1a0] sm:$0xf]
      %v796 = vld [vmem:[%s289 + $0x1a4] sm:$0xf]
      %v797 = vld [vmem:[%s289 + $0x1a8] sm:$0xf]
      %v798 = vld [vmem:[%s289 + $0x1ac] sm:$0xf]
      %v799 = vld [vmem:[%s289 + $0x1b0] sm:$0xf]
      %v800 = vld [vmem:[%s289 + $0x1b4] sm:$0xf]
      %v801 = vld [vmem:[%s289 + $0x1b8] sm:$0xf]
      %v802 = vld [vmem:[%s289 + $0x1bc] sm:$0xf]
      %v803 = vld [vmem:[%s289 + $0x1c0] sm:$0xf]
      %v804 = vld [vmem:[%s289 + $0x1c4] sm:$0xf]
      %v805 = vld [vmem:[%s289 + $0x1c8] sm:$0xf]
      %v806 = vld [vmem:[%s289 + $0x1cc] sm:$0xf]
      %v807 = vld [vmem:[%s289 + $0x1d0] sm:$0xf]
      %v808 = vld [vmem:[%s289 + $0x1d4] sm:$0xf]
      %v809 = vld [vmem:[%s289 + $0x1d8] sm:$0xf]
      %v810 = vld [vmem:[%s289 + $0x1dc] sm:$0xf]
      %v811 = vld [vmem:[%s289 + $0x1e0] sm:$0xf]
      %v812 = vld [vmem:[%s289 + $0x1e4] sm:$0xf]
      %v813 = vld [vmem:[%s289 + $0x1e8] sm:$0xf]
      %v814 = vld [vmem:[%s289 + $0x1ec] sm:$0xf]
      %v815 = vld [vmem:[%s289 + $0x1f0] sm:$0xf]
      %v816 = vld [vmem:[%s289 + $0x1f4] sm:$0xf]
      %v817 = vld [vmem:[%s289 + $0x1f8] sm:$0xf]
      %v818 = vld [vmem:[%s289 + $0x1fc] sm:$0xf]
      %v1075 = vunpack.c.l.b16 %v435
      %v1076 = vunpack.c.h.b16 %v435
      %v1077 = vunpack.c.l.b16 %v436
      %v1078 = vunpack.c.h.b16 %v436
      %v1079 = vunpack.c.l.b16 %v437
      %v1080 = vunpack.c.h.b16 %v437
      %v1081 = vunpack.c.l.b16 %v438
      %v1082 = vunpack.c.h.b16 %v438
      %v1083 = vunpack.c.l.b16 %v439
      %v1084 = vunpack.c.h.b16 %v439
      %v1085 = vunpack.c.l.b16 %v440
      %v1086 = vunpack.c.h.b16 %v440
      %v1087 = vunpack.c.l.b16 %v441
      %v1088 = vunpack.c.h.b16 %v441
      %v1089 = vunpack.c.l.b16 %v442
      %v1090 = vunpack.c.h.b16 %v442
      %v1091 = vunpack.c.l.b16 %v443
      %v1092 = vunpack.c.h.b16 %v443
      %v1093 = vunpack.c.l.b16 %v444
      %v1094 = vunpack.c.h.b16 %v444
      %v1095 = vunpack.c.l.b16 %v445
      %v1096 = vunpack.c.h.b16 %v445
      %v1097 = vunpack.c.l.b16 %v446
      %v1098 = vunpack.c.h.b16 %v446
      %v1099 = vunpack.c.l.b16 %v447
      %v1100 = vunpack.c.h.b16 %v447
      %v1101 = vunpack.c.l.b16 %v448
      %v1102 = vunpack.c.h.b16 %v448
      %v1103 = vunpack.c.l.b16 %v449
      %v1104 = vunpack.c.h.b16 %v449
      %v1105 = vunpack.c.l.b16 %v450
      %v1106 = vunpack.c.h.b16 %v450
      %v1107 = vunpack.c.l.b16 %v451
      %v1108 = vunpack.c.h.b16 %v451
      %v1109 = vunpack.c.l.b16 %v452
      %v1110 = vunpack.c.h.b16 %v452
      %v1111 = vunpack.c.l.b16 %v453
      %v1112 = vunpack.c.h.b16 %v453
      %v1113 = vunpack.c.l.b16 %v454
      %v1114 = vunpack.c.h.b16 %v454
      %v1115 = vunpack.c.l.b16 %v455
      %v1116 = vunpack.c.h.b16 %v455
      %v1117 = vunpack.c.l.b16 %v456
      %v1118 = vunpack.c.h.b16 %v456
      %v1119 = vunpack.c.l.b16 %v457
      %v1120 = vunpack.c.h.b16 %v457
      %v1121 = vunpack.c.l.b16 %v458
      %v1122 = vunpack.c.h.b16 %v458
      %v1123 = vunpack.c.l.b16 %v459
      %v1124 = vunpack.c.h.b16 %v459
      %v1125 = vunpack.c.l.b16 %v460
      %v1126 = vunpack.c.h.b16 %v460
      %v1127 = vunpack.c.l.b16 %v461
      %v1128 = vunpack.c.h.b16 %v461
      %v1129 = vunpack.c.l.b16 %v462
      %v1130 = vunpack.c.h.b16 %v462
      %v1131 = vunpack.c.l.b16 %v463
      %v1132 = vunpack.c.h.b16 %v463
      %v1133 = vunpack.c.l.b16 %v464
      %v1134 = vunpack.c.h.b16 %v464
      %v1135 = vunpack.c.l.b16 %v465
      %v1136 = vunpack.c.h.b16 %v465
      %v1137 = vunpack.c.l.b16 %v466
      %v1138 = vunpack.c.h.b16 %v466
      %v1139 = vunpack.c.l.b16 %v467
      %v1140 = vunpack.c.h.b16 %v467
      %v1141 = vunpack.c.l.b16 %v468
      %v1142 = vunpack.c.h.b16 %v468
      %v1143 = vunpack.c.l.b16 %v469
      %v1144 = vunpack.c.h.b16 %v469
      %v1145 = vunpack.c.l.b16 %v470
      %v1146 = vunpack.c.h.b16 %v470
      %v1147 = vunpack.c.l.b16 %v471
      %v1148 = vunpack.c.h.b16 %v471
      %v1149 = vunpack.c.l.b16 %v472
      %v1150 = vunpack.c.h.b16 %v472
      %v1151 = vunpack.c.l.b16 %v473
      %v1152 = vunpack.c.h.b16 %v473
      %v1153 = vunpack.c.l.b16 %v474
      %v1154 = vunpack.c.h.b16 %v474
      %v1155 = vunpack.c.l.b16 %v475
      %v1156 = vunpack.c.h.b16 %v475
      %v1157 = vunpack.c.l.b16 %v476
      %v1158 = vunpack.c.h.b16 %v476
      %v1159 = vunpack.c.l.b16 %v477
      %v1160 = vunpack.c.h.b16 %v477
      %v1161 = vunpack.c.l.b16 %v478
      %v1162 = vunpack.c.h.b16 %v478
      %v1163 = vunpack.c.l.b16 %v479
      %v1164 = vunpack.c.h.b16 %v479
      %v1165 = vunpack.c.l.b16 %v480
      %v1166 = vunpack.c.h.b16 %v480
      %v1167 = vunpack.c.l.b16 %v481
      %v1168 = vunpack.c.h.b16 %v481
      %v1169 = vunpack.c.l.b16 %v482
      %v1170 = vunpack.c.h.b16 %v482
      %v1171 = vunpack.c.l.b16 %v483
      %v1172 = vunpack.c.h.b16 %v483
      %v1173 = vunpack.c.l.b16 %v484
      %v1174 = vunpack.c.h.b16 %v484
      %v1175 = vunpack.c.l.b16 %v485
      %v1176 = vunpack.c.h.b16 %v485
      %v1177 = vunpack.c.l.b16 %v486
      %v1178 = vunpack.c.h.b16 %v486
      %v1179 = vunpack.c.l.b16 %v487
      %v1180 = vunpack.c.h.b16 %v487
      %v1181 = vunpack.c.l.b16 %v488
      %v1182 = vunpack.c.h.b16 %v488
      %v1183 = vunpack.c.l.b16 %v489
      %v1184 = vunpack.c.h.b16 %v489
      %v1185 = vunpack.c.l.b16 %v490
      %v1186 = vunpack.c.h.b16 %v490
      %v1187 = vunpack.c.l.b16 %v491
      %v1188 = vunpack.c.h.b16 %v491
      %v1189 = vunpack.c.l.b16 %v492
      %v1190 = vunpack.c.h.b16 %v492
      %v1191 = vunpack.c.l.b16 %v493
      %v1192 = vunpack.c.h.b16 %v493
      %v1193 = vunpack.c.l.b16 %v494
      %v1194 = vunpack.c.h.b16 %v494
      %v1195 = vunpack.c.l.b16 %v495
      %v1196 = vunpack.c.h.b16 %v495
      %v1197 = vunpack.c.l.b16 %v496
      %v1198 = vunpack.c.h.b16 %v496
      %v1199 = vunpack.c.l.b16 %v497
      %v1200 = vunpack.c.h.b16 %v497
      %v1201 = vunpack.c.l.b16 %v498
      %v1202 = vunpack.c.h.b16 %v498
      %v1203 = vunpack.c.l.b16 %v499
      %v1204 = vunpack.c.h.b16 %v499
      %v1205 = vunpack.c.l.b16 %v500
      %v1206 = vunpack.c.h.b16 %v500
      %v1207 = vunpack.c.l.b16 %v501
      %v1208 = vunpack.c.h.b16 %v501
      %v1209 = vunpack.c.l.b16 %v502
      %v1210 = vunpack.c.h.b16 %v502
      %v1211 = vunpack.c.l.b16 %v503
      %v1212 = vunpack.c.h.b16 %v503
      %v1213 = vunpack.c.l.b16 %v504
      %v1214 = vunpack.c.h.b16 %v504
      %v1215 = vunpack.c.l.b16 %v505
      %v1216 = vunpack.c.h.b16 %v505
      %v1217 = vunpack.c.l.b16 %v506
      %v1218 = vunpack.c.h.b16 %v506
      %v1219 = vunpack.c.l.b16 %v507
      %v1220 = vunpack.c.h.b16 %v507
      %v1221 = vunpack.c.l.b16 %v508
      %v1222 = vunpack.c.h.b16 %v508
      %v1223 = vunpack.c.l.b16 %v509
      %v1224 = vunpack.c.h.b16 %v509
      %v1225 = vunpack.c.l.b16 %v510
      %v1226 = vunpack.c.h.b16 %v510
      %v1227 = vunpack.c.l.b16 %v511
      %v1228 = vunpack.c.h.b16 %v511
      %v1229 = vunpack.c.l.b16 %v512
      %v1230 = vunpack.c.h.b16 %v512
      %v1231 = vunpack.c.l.b16 %v513
      %v1232 = vunpack.c.h.b16 %v513
      %v1233 = vunpack.c.l.b16 %v514
      %v1234 = vunpack.c.h.b16 %v514
      %v1235 = vunpack.c.l.b16 %v515
      %v1236 = vunpack.c.h.b16 %v515
      %v1237 = vunpack.c.l.b16 %v516
      %v1238 = vunpack.c.h.b16 %v516
      %v1239 = vunpack.c.l.b16 %v517
      %v1240 = vunpack.c.h.b16 %v517
      %v1241 = vunpack.c.l.b16 %v518
      %v1242 = vunpack.c.h.b16 %v518
      %v1243 = vunpack.c.l.b16 %v519
      %v1244 = vunpack.c.h.b16 %v519
      %v1245 = vunpack.c.l.b16 %v520
      %v1246 = vunpack.c.h.b16 %v520
      %v1247 = vunpack.c.l.b16 %v521
      %v1248 = vunpack.c.h.b16 %v521
      %v1249 = vunpack.c.l.b16 %v522
      %v1250 = vunpack.c.h.b16 %v522
      %v1251 = vunpack.c.l.b16 %v523
      %v1252 = vunpack.c.h.b16 %v523
      %v1253 = vunpack.c.l.b16 %v524
      %v1254 = vunpack.c.h.b16 %v524
      %v1255 = vunpack.c.l.b16 %v525
      %v1256 = vunpack.c.h.b16 %v525
      %v1257 = vunpack.c.l.b16 %v526
      %v1258 = vunpack.c.h.b16 %v526
      %v1259 = vunpack.c.l.b16 %v527
      %v1260 = vunpack.c.h.b16 %v527
      %v1261 = vunpack.c.l.b16 %v528
      %v1262 = vunpack.c.h.b16 %v528
      %v1263 = vunpack.c.l.b16 %v529
      %v1264 = vunpack.c.h.b16 %v529
      %v1265 = vunpack.c.l.b16 %v530
      %v1266 = vunpack.c.h.b16 %v530
      %v1267 = vunpack.c.l.b16 %v531
      %v1268 = vunpack.c.h.b16 %v531
      %v1269 = vunpack.c.l.b16 %v532
      %v1270 = vunpack.c.h.b16 %v532
      %v1271 = vunpack.c.l.b16 %v533
      %v1272 = vunpack.c.h.b16 %v533
      %v1273 = vunpack.c.l.b16 %v534
      %v1274 = vunpack.c.h.b16 %v534
      %v1275 = vunpack.c.l.b16 %v535
      %v1276 = vunpack.c.h.b16 %v535
      %v1277 = vunpack.c.l.b16 %v536
      %v1278 = vunpack.c.h.b16 %v536
      %v1279 = vunpack.c.l.b16 %v537
      %v1280 = vunpack.c.h.b16 %v537
      %v1281 = vunpack.c.l.b16 %v538
      %v1282 = vunpack.c.h.b16 %v538
      %v1283 = vunpack.c.l.b16 %v539
      %v1284 = vunpack.c.h.b16 %v539
      %v1285 = vunpack.c.l.b16 %v540
      %v1286 = vunpack.c.h.b16 %v540
      %v1287 = vunpack.c.l.b16 %v541
      %v1288 = vunpack.c.h.b16 %v541
      %v1289 = vunpack.c.l.b16 %v542
      %v1290 = vunpack.c.h.b16 %v542
      %v1291 = vunpack.c.l.b16 %v543
      %v1292 = vunpack.c.h.b16 %v543
      %v1293 = vunpack.c.l.b16 %v544
      %v1294 = vunpack.c.h.b16 %v544
      %v1295 = vunpack.c.l.b16 %v545
      %v1296 = vunpack.c.h.b16 %v545
      %v1297 = vunpack.c.l.b16 %v546
      %v1298 = vunpack.c.h.b16 %v546
      %v1299 = vunpack.c.l.b16 %v547
      %v1300 = vunpack.c.h.b16 %v547
      %v1301 = vunpack.c.l.b16 %v548
      %v1302 = vunpack.c.h.b16 %v548
      %v1303 = vunpack.c.l.b16 %v549
      %v1304 = vunpack.c.h.b16 %v549
      %v1305 = vunpack.c.l.b16 %v550
      %v1306 = vunpack.c.h.b16 %v550
      %v1307 = vunpack.c.l.b16 %v551
      %v1308 = vunpack.c.h.b16 %v551
      %v1309 = vunpack.c.l.b16 %v552
      %v1310 = vunpack.c.h.b16 %v552
      %v1311 = vunpack.c.l.b16 %v553
      %v1312 = vunpack.c.h.b16 %v553
      %v1313 = vunpack.c.l.b16 %v554
      %v1314 = vunpack.c.h.b16 %v554
      %v1315 = vunpack.c.l.b16 %v555
      %v1316 = vunpack.c.h.b16 %v555
      %v1317 = vunpack.c.l.b16 %v556
      %v1318 = vunpack.c.h.b16 %v556
      %v1319 = vunpack.c.l.b16 %v557
      %v1320 = vunpack.c.h.b16 %v557
      %v1321 = vunpack.c.l.b16 %v558
      %v1322 = vunpack.c.h.b16 %v558
      %v1323 = vunpack.c.l.b16 %v559
      %v1324 = vunpack.c.h.b16 %v559
      %v1325 = vunpack.c.l.b16 %v560
      %v1326 = vunpack.c.h.b16 %v560
      %v1327 = vunpack.c.l.b16 %v561
      %v1328 = vunpack.c.h.b16 %v561
      %v1329 = vunpack.c.l.b16 %v562
      %v1330 = vunpack.c.h.b16 %v562
      %v1331 = vunpack.c.l.b16 %v563
      %v1332 = vunpack.c.h.b16 %v563
      %v1333 = vunpack.c.l.b16 %v564
      %v1334 = vunpack.c.h.b16 %v564
      %v1335 = vunpack.c.l.b16 %v565
      %v1336 = vunpack.c.h.b16 %v565
      %v1337 = vunpack.c.l.b16 %v566
      %v1338 = vunpack.c.h.b16 %v566
      %v1339 = vunpack.c.l.b16 %v567
      %v1340 = vunpack.c.h.b16 %v567
      %v1341 = vunpack.c.l.b16 %v568
      %v1342 = vunpack.c.h.b16 %v568
      %v1343 = vunpack.c.l.b16 %v569
      %v1344 = vunpack.c.h.b16 %v569
      %v1345 = vunpack.c.l.b16 %v570
      %v1346 = vunpack.c.h.b16 %v570
      %v1347 = vunpack.c.l.b16 %v571
      %v1348 = vunpack.c.h.b16 %v571
      %v1349 = vunpack.c.l.b16 %v572
      %v1350 = vunpack.c.h.b16 %v572
      %v1351 = vunpack.c.l.b16 %v573
      %v1352 = vunpack.c.h.b16 %v573
      %v1353 = vunpack.c.l.b16 %v574
      %v1354 = vunpack.c.h.b16 %v574
      %v1355 = vunpack.c.l.b16 %v575
      %v1356 = vunpack.c.h.b16 %v575
      %v1357 = vunpack.c.l.b16 %v576
      %v1358 = vunpack.c.h.b16 %v576
      %v1359 = vunpack.c.l.b16 %v577
      %v1360 = vunpack.c.h.b16 %v577
      %v1361 = vunpack.c.l.b16 %v578
      %v1362 = vunpack.c.h.b16 %v578
      %v1363 = vunpack.c.l.b16 %v579
      %v1364 = vunpack.c.h.b16 %v579
      %v1365 = vunpack.c.l.b16 %v580
      %v1366 = vunpack.c.h.b16 %v580
      %v1367 = vunpack.c.l.b16 %v581
      %v1368 = vunpack.c.h.b16 %v581
      %v1369 = vunpack.c.l.b16 %v582
      %v1370 = vunpack.c.h.b16 %v582
      %v1371 = vunpack.c.l.b16 %v583
      %v1372 = vunpack.c.h.b16 %v583
      %v1373 = vunpack.c.l.b16 %v584
      %v1374 = vunpack.c.h.b16 %v584
      %v1375 = vunpack.c.l.b16 %v585
      %v1376 = vunpack.c.h.b16 %v585
      %v1377 = vunpack.c.l.b16 %v586
      %v1378 = vunpack.c.h.b16 %v586
      %v1379 = vunpack.c.l.b16 %v587
      %v1380 = vunpack.c.h.b16 %v587
      %v1381 = vunpack.c.l.b16 %v588
      %v1382 = vunpack.c.h.b16 %v588
      %v1383 = vunpack.c.l.b16 %v589
      %v1384 = vunpack.c.h.b16 %v589
      %v1385 = vunpack.c.l.b16 %v590
      %v1386 = vunpack.c.h.b16 %v590
      %v1387 = vunpack.c.l.b16 %v591
      %v1388 = vunpack.c.h.b16 %v591
      %v1389 = vunpack.c.l.b16 %v592
      %v1390 = vunpack.c.h.b16 %v592
      %v1391 = vunpack.c.l.b16 %v593
      %v1392 = vunpack.c.h.b16 %v593
      %v1393 = vunpack.c.l.b16 %v594
      %v1394 = vunpack.c.h.b16 %v594
      %v1395 = vunpack.c.l.b16 %v595
      %v1396 = vunpack.c.h.b16 %v595
      %v1397 = vunpack.c.l.b16 %v596
      %v1398 = vunpack.c.h.b16 %v596
      %v1399 = vunpack.c.l.b16 %v597
      %v1400 = vunpack.c.h.b16 %v597
      %v1401 = vunpack.c.l.b16 %v598
      %v1402 = vunpack.c.h.b16 %v598
      %v1403 = vunpack.c.l.b16 %v599
      %v1404 = vunpack.c.h.b16 %v599
      %v1405 = vunpack.c.l.b16 %v600
      %v1406 = vunpack.c.h.b16 %v600
      %v1407 = vunpack.c.l.b16 %v601
      %v1408 = vunpack.c.h.b16 %v601
      %v1409 = vunpack.c.l.b16 %v602
      %v1410 = vunpack.c.h.b16 %v602
      %v1411 = vunpack.c.l.b16 %v603
      %v1412 = vunpack.c.h.b16 %v603
      %v1413 = vunpack.c.l.b16 %v604
      %v1414 = vunpack.c.h.b16 %v604
      %v1415 = vunpack.c.l.b16 %v605
      %v1416 = vunpack.c.h.b16 %v605
      %v1417 = vunpack.c.l.b16 %v606
      %v1418 = vunpack.c.h.b16 %v606
      %v1419 = vunpack.c.l.b16 %v607
      %v1420 = vunpack.c.h.b16 %v607
      %v1421 = vunpack.c.l.b16 %v608
      %v1422 = vunpack.c.h.b16 %v608
      %v1423 = vunpack.c.l.b16 %v609
      %v1424 = vunpack.c.h.b16 %v609
      %v1425 = vunpack.c.l.b16 %v610
      %v1426 = vunpack.c.h.b16 %v610
      %v1427 = vunpack.c.l.b16 %v611
      %v1428 = vunpack.c.h.b16 %v611
      %v1429 = vunpack.c.l.b16 %v612
      %v1430 = vunpack.c.h.b16 %v612
      %v1431 = vunpack.c.l.b16 %v613
      %v1432 = vunpack.c.h.b16 %v613
      %v1433 = vunpack.c.l.b16 %v614
      %v1434 = vunpack.c.h.b16 %v614
      %v1435 = vunpack.c.l.b16 %v615
      %v1436 = vunpack.c.h.b16 %v615
      %v1437 = vunpack.c.l.b16 %v616
      %v1438 = vunpack.c.h.b16 %v616
      %v1439 = vunpack.c.l.b16 %v617
      %v1440 = vunpack.c.h.b16 %v617
      %v1441 = vunpack.c.l.b16 %v618
      %v1442 = vunpack.c.h.b16 %v618
      %v1443 = vunpack.c.l.b16 %v619
      %v1444 = vunpack.c.h.b16 %v619
      %v1445 = vunpack.c.l.b16 %v620
      %v1446 = vunpack.c.h.b16 %v620
      %v1447 = vunpack.c.l.b16 %v621
      %v1448 = vunpack.c.h.b16 %v621
      %v1449 = vunpack.c.l.b16 %v622
      %v1450 = vunpack.c.h.b16 %v622
      %v1451 = vunpack.c.l.b16 %v623
      %v1452 = vunpack.c.h.b16 %v623
      %v1453 = vunpack.c.l.b16 %v624
      %v1454 = vunpack.c.h.b16 %v624
      %v1455 = vunpack.c.l.b16 %v625
      %v1456 = vunpack.c.h.b16 %v625
      %v1457 = vunpack.c.l.b16 %v626
      %v1458 = vunpack.c.h.b16 %v626
      %v1459 = vunpack.c.l.b16 %v627
      %v1460 = vunpack.c.h.b16 %v627
      %v1461 = vunpack.c.l.b16 %v628
      %v1462 = vunpack.c.h.b16 %v628
      %v1463 = vunpack.c.l.b16 %v629
      %v1464 = vunpack.c.h.b16 %v629
      %v1465 = vunpack.c.l.b16 %v630
      %v1466 = vunpack.c.h.b16 %v630
      %v1467 = vunpack.c.l.b16 %v631
      %v1468 = vunpack.c.h.b16 %v631
      %v1469 = vunpack.c.l.b16 %v632
      %v1470 = vunpack.c.h.b16 %v632
      %v1471 = vunpack.c.l.b16 %v633
      %v1472 = vunpack.c.h.b16 %v633
      %v1473 = vunpack.c.l.b16 %v634
      %v1474 = vunpack.c.h.b16 %v634
      %v1475 = vunpack.c.l.b16 %v635
      %v1476 = vunpack.c.h.b16 %v635
      %v1477 = vunpack.c.l.b16 %v636
      %v1478 = vunpack.c.h.b16 %v636
      %v1479 = vunpack.c.l.b16 %v637
      %v1480 = vunpack.c.h.b16 %v637
      %v1481 = vunpack.c.l.b16 %v638
      %v1482 = vunpack.c.h.b16 %v638
      %v1483 = vunpack.c.l.b16 %v639
      %v1484 = vunpack.c.h.b16 %v639
      %v1485 = vunpack.c.l.b16 %v640
      %v1486 = vunpack.c.h.b16 %v640
      %v1487 = vunpack.c.l.b16 %v641
      %v1488 = vunpack.c.h.b16 %v641
      %v1489 = vunpack.c.l.b16 %v642
      %v1490 = vunpack.c.h.b16 %v642
      %v1491 = vunpack.c.l.b16 %v643
      %v1492 = vunpack.c.h.b16 %v643
      %v1493 = vunpack.c.l.b16 %v644
      %v1494 = vunpack.c.h.b16 %v644
      %v1495 = vunpack.c.l.b16 %v645
      %v1496 = vunpack.c.h.b16 %v645
      %v1497 = vunpack.c.l.b16 %v646
      %v1498 = vunpack.c.h.b16 %v646
      %v1499 = vunpack.c.l.b16 %v647
      %v1500 = vunpack.c.h.b16 %v647
      %v1501 = vunpack.c.l.b16 %v648
      %v1502 = vunpack.c.h.b16 %v648
      %v1503 = vunpack.c.l.b16 %v649
      %v1504 = vunpack.c.h.b16 %v649
      %v1505 = vunpack.c.l.b16 %v650
      %v1506 = vunpack.c.h.b16 %v650
      %v1507 = vunpack.c.l.b16 %v651
      %v1508 = vunpack.c.h.b16 %v651
      %v1509 = vunpack.c.l.b16 %v652
      %v1510 = vunpack.c.h.b16 %v652
      %v1511 = vunpack.c.l.b16 %v653
      %v1512 = vunpack.c.h.b16 %v653
      %v1513 = vunpack.c.l.b16 %v654
      %v1514 = vunpack.c.h.b16 %v654
      %v1515 = vunpack.c.l.b16 %v655
      %v1516 = vunpack.c.h.b16 %v655
      %v1517 = vunpack.c.l.b16 %v656
      %v1518 = vunpack.c.h.b16 %v656
      %v1519 = vunpack.c.l.b16 %v657
      %v1520 = vunpack.c.h.b16 %v657
      %v1521 = vunpack.c.l.b16 %v658
      %v1522 = vunpack.c.h.b16 %v658
      %v1523 = vunpack.c.l.b16 %v659
      %v1524 = vunpack.c.h.b16 %v659
      %v1525 = vunpack.c.l.b16 %v660
      %v1526 = vunpack.c.h.b16 %v660
      %v1527 = vunpack.c.l.b16 %v661
      %v1528 = vunpack.c.h.b16 %v661
      %v1529 = vunpack.c.l.b16 %v662
      %v1530 = vunpack.c.h.b16 %v662
      %v1531 = vunpack.c.l.b16 %v663
      %v1532 = vunpack.c.h.b16 %v663
      %v1533 = vunpack.c.l.b16 %v664
      %v1534 = vunpack.c.h.b16 %v664
      %v1535 = vunpack.c.l.b16 %v665
      %v1536 = vunpack.c.h.b16 %v665
      %v1537 = vunpack.c.l.b16 %v666
      %v1538 = vunpack.c.h.b16 %v666
      %v1539 = vunpack.c.l.b16 %v667
      %v1540 = vunpack.c.h.b16 %v667
      %v1541 = vunpack.c.l.b16 %v668
      %v1542 = vunpack.c.h.b16 %v668
      %v1543 = vunpack.c.l.b16 %v669
      %v1544 = vunpack.c.h.b16 %v669
      %v1545 = vunpack.c.l.b16 %v670
      %v1546 = vunpack.c.h.b16 %v670
      %v1547 = vunpack.c.l.b16 %v671
      %v1548 = vunpack.c.h.b16 %v671
      %v1549 = vunpack.c.l.b16 %v672
      %v1550 = vunpack.c.h.b16 %v672
      %v1551 = vunpack.c.l.b16 %v673
      %v1552 = vunpack.c.h.b16 %v673
      %v1553 = vunpack.c.l.b16 %v674
      %v1554 = vunpack.c.h.b16 %v674
      %v1555 = vunpack.c.l.b16 %v675
      %v1556 = vunpack.c.h.b16 %v675
      %v1557 = vunpack.c.l.b16 %v676
      %v1558 = vunpack.c.h.b16 %v676
      %v1559 = vunpack.c.l.b16 %v677
      %v1560 = vunpack.c.h.b16 %v677
      %v1561 = vunpack.c.l.b16 %v678
      %v1562 = vunpack.c.h.b16 %v678
      %v1563 = vunpack.c.l.b16 %v679
      %v1564 = vunpack.c.h.b16 %v679
      %v1565 = vunpack.c.l.b16 %v680
      %v1566 = vunpack.c.h.b16 %v680
      %v1567 = vunpack.c.l.b16 %v681
      %v1568 = vunpack.c.h.b16 %v681
      %v1569 = vunpack.c.l.b16 %v682
      %v1570 = vunpack.c.h.b16 %v682
      %v1571 = vunpack.c.l.b16 %v683
      %v1572 = vunpack.c.h.b16 %v683
      %v1573 = vunpack.c.l.b16 %v684
      %v1574 = vunpack.c.h.b16 %v684
      %v1575 = vunpack.c.l.b16 %v685
      %v1576 = vunpack.c.h.b16 %v685
      %v1577 = vunpack.c.l.b16 %v686
      %v1578 = vunpack.c.h.b16 %v686
      %v1579 = vunpack.c.l.b16 %v687
      %v1580 = vunpack.c.h.b16 %v687
      %v1581 = vunpack.c.l.b16 %v688
      %v1582 = vunpack.c.h.b16 %v688
      %v1583 = vunpack.c.l.b16 %v689
      %v1584 = vunpack.c.h.b16 %v689
      %v1585 = vunpack.c.l.b16 %v690
      %v1586 = vunpack.c.h.b16 %v690
      %v1587 = vpack.c.b16 %v1083, %v1075
      %v1588 = vpack.c.b16 %v1084, %v1076
      %v1589 = vpack.c.b16 %v1085, %v1077
      %v1590 = vpack.c.b16 %v1086, %v1078
      %v1591 = vpack.c.b16 %v1087, %v1079
      %v1592 = vpack.c.b16 %v1088, %v1080
      %v1593 = vpack.c.b16 %v1089, %v1081
      %v1594 = vpack.c.b16 %v1090, %v1082
      %v1595 = vpack.c.b16 %v1099, %v1091
      %v1596 = vpack.c.b16 %v1100, %v1092
      %v1597 = vpack.c.b16 %v1101, %v1093
      %v1598 = vpack.c.b16 %v1102, %v1094
      %v1599 = vpack.c.b16 %v1103, %v1095
      %v1600 = vpack.c.b16 %v1104, %v1096
      %v1601 = vpack.c.b16 %v1105, %v1097
      %v1602 = vpack.c.b16 %v1106, %v1098
      %v1603 = vpack.c.b16 %v1115, %v1107
      %v1604 = vpack.c.b16 %v1116, %v1108
      %v1605 = vpack.c.b16 %v1117, %v1109
      %v1606 = vpack.c.b16 %v1118, %v1110
      %v1607 = vpack.c.b16 %v1119, %v1111
      %v1608 = vpack.c.b16 %v1120, %v1112
      %v1609 = vpack.c.b16 %v1121, %v1113
      %v1610 = vpack.c.b16 %v1122, %v1114
      %v1611 = vpack.c.b16 %v1131, %v1123
      %v1612 = vpack.c.b16 %v1132, %v1124
      %v1613 = vpack.c.b16 %v1133, %v1125
      %v1614 = vpack.c.b16 %v1134, %v1126
      %v1615 = vpack.c.b16 %v1135, %v1127
      %v1616 = vpack.c.b16 %v1136, %v1128
      %v1617 = vpack.c.b16 %v1137, %v1129
      %v1618 = vpack.c.b16 %v1138, %v1130
      %v1619 = vpack.c.b16 %v1147, %v1139
      %v1620 = vpack.c.b16 %v1148, %v1140
      %v1621 = vpack.c.b16 %v1149, %v1141
      %v1622 = vpack.c.b16 %v1150, %v1142
      %v1623 = vpack.c.b16 %v1151, %v1143
      %v1624 = vpack.c.b16 %v1152, %v1144
      %v1625 = vpack.c.b16 %v1153, %v1145
      %v1626 = vpack.c.b16 %v1154, %v1146
      %v1627 = vpack.c.b16 %v1163, %v1155
      %v1628 = vpack.c.b16 %v1164, %v1156
      %v1629 = vpack.c.b16 %v1165, %v1157
      %v1630 = vpack.c.b16 %v1166, %v1158
      %v1631 = vpack.c.b16 %v1167, %v1159
      %v1632 = vpack.c.b16 %v1168, %v1160
      %v1633 = vpack.c.b16 %v1169, %v1161
      %v1634 = vpack.c.b16 %v1170, %v1162
      %v1635 = vpack.c.b16 %v1179, %v1171
      %v1636 = vpack.c.b16 %v1180, %v1172
      %v1637 = vpack.c.b16 %v1181, %v1173
      %v1638 = vpack.c.b16 %v1182, %v1174
      %v1639 = vpack.c.b16 %v1183, %v1175
      %v1640 = vpack.c.b16 %v1184, %v1176
      %v1641 = vpack.c.b16 %v1185, %v1177
      %v1642 = vpack.c.b16 %v1186, %v1178
      %v1643 = vpack.c.b16 %v1195, %v1187
      %v1644 = vpack.c.b16 %v1196, %v1188
      %v1645 = vpack.c.b16 %v1197, %v1189
      %v1646 = vpack.c.b16 %v1198, %v1190
      %v1647 = vpack.c.b16 %v1199, %v1191
      %v1648 = vpack.c.b16 %v1200, %v1192
      %v1649 = vpack.c.b16 %v1201, %v1193
      %v1650 = vpack.c.b16 %v1202, %v1194
      %v1651 = vpack.c.b16 %v1211, %v1203
      %v1652 = vpack.c.b16 %v1212, %v1204
      %v1653 = vpack.c.b16 %v1213, %v1205
      %v1654 = vpack.c.b16 %v1214, %v1206
      %v1655 = vpack.c.b16 %v1215, %v1207
      %v1656 = vpack.c.b16 %v1216, %v1208
      %v1657 = vpack.c.b16 %v1217, %v1209
      %v1658 = vpack.c.b16 %v1218, %v1210
      %v1659 = vpack.c.b16 %v1227, %v1219
      %v1660 = vpack.c.b16 %v1228, %v1220
      %v1661 = vpack.c.b16 %v1229, %v1221
      %v1662 = vpack.c.b16 %v1230, %v1222
      %v1663 = vpack.c.b16 %v1231, %v1223
      %v1664 = vpack.c.b16 %v1232, %v1224
      %v1665 = vpack.c.b16 %v1233, %v1225
      %v1666 = vpack.c.b16 %v1234, %v1226
      %v1667 = vpack.c.b16 %v1243, %v1235
      %v1668 = vpack.c.b16 %v1244, %v1236
      %v1669 = vpack.c.b16 %v1245, %v1237
      %v1670 = vpack.c.b16 %v1246, %v1238
      %v1671 = vpack.c.b16 %v1247, %v1239
      %v1672 = vpack.c.b16 %v1248, %v1240
      %v1673 = vpack.c.b16 %v1249, %v1241
      %v1674 = vpack.c.b16 %v1250, %v1242
      %v1675 = vpack.c.b16 %v1259, %v1251
      %v1676 = vpack.c.b16 %v1260, %v1252
      %v1677 = vpack.c.b16 %v1261, %v1253
      %v1678 = vpack.c.b16 %v1262, %v1254
      %v1679 = vpack.c.b16 %v1263, %v1255
      %v1680 = vpack.c.b16 %v1264, %v1256
      %v1681 = vpack.c.b16 %v1265, %v1257
      %v1682 = vpack.c.b16 %v1266, %v1258
      %v1683 = vpack.c.b16 %v1275, %v1267
      %v1684 = vpack.c.b16 %v1276, %v1268
      %v1685 = vpack.c.b16 %v1277, %v1269
      %v1686 = vpack.c.b16 %v1278, %v1270
      %v1687 = vpack.c.b16 %v1279, %v1271
      %v1688 = vpack.c.b16 %v1280, %v1272
      %v1689 = vpack.c.b16 %v1281, %v1273
      %v1690 = vpack.c.b16 %v1282, %v1274
      %v1691 = vpack.c.b16 %v1291, %v1283
      %v1692 = vpack.c.b16 %v1292, %v1284
      %v1693 = vpack.c.b16 %v1293, %v1285
      %v1694 = vpack.c.b16 %v1294, %v1286
      %v1695 = vpack.c.b16 %v1295, %v1287
      %v1696 = vpack.c.b16 %v1296, %v1288
      %v1697 = vpack.c.b16 %v1297, %v1289
      %v1698 = vpack.c.b16 %v1298, %v1290
      %v1699 = vpack.c.b16 %v1307, %v1299
      %v1700 = vpack.c.b16 %v1308, %v1300
      %v1701 = vpack.c.b16 %v1309, %v1301
      %v1702 = vpack.c.b16 %v1310, %v1302
      %v1703 = vpack.c.b16 %v1311, %v1303
      %v1704 = vpack.c.b16 %v1312, %v1304
      %v1705 = vpack.c.b16 %v1313, %v1305
      %v1706 = vpack.c.b16 %v1314, %v1306
      %v1707 = vpack.c.b16 %v1323, %v1315
      %v1708 = vpack.c.b16 %v1324, %v1316
      %v1709 = vpack.c.b16 %v1325, %v1317
      %v1710 = vpack.c.b16 %v1326, %v1318
      %v1711 = vpack.c.b16 %v1327, %v1319
      %v1712 = vpack.c.b16 %v1328, %v1320
      %v1713 = vpack.c.b16 %v1329, %v1321
      %v1714 = vpack.c.b16 %v1330, %v1322
      %v1715 = vpack.c.b16 %v1339, %v1331
      %v1716 = vpack.c.b16 %v1340, %v1332
      %v1717 = vpack.c.b16 %v1341, %v1333
      %v1718 = vpack.c.b16 %v1342, %v1334
      %v1719 = vpack.c.b16 %v1343, %v1335
      %v1720 = vpack.c.b16 %v1344, %v1336
      %v1721 = vpack.c.b16 %v1345, %v1337
      %v1722 = vpack.c.b16 %v1346, %v1338
      %v1723 = vpack.c.b16 %v1355, %v1347
      %v1724 = vpack.c.b16 %v1356, %v1348
      %v1725 = vpack.c.b16 %v1357, %v1349
      %v1726 = vpack.c.b16 %v1358, %v1350
      %v1727 = vpack.c.b16 %v1359, %v1351
      %v1728 = vpack.c.b16 %v1360, %v1352
      %v1729 = vpack.c.b16 %v1361, %v1353
      %v1730 = vpack.c.b16 %v1362, %v1354
      %v1731 = vpack.c.b16 %v1371, %v1363
      %v1732 = vpack.c.b16 %v1372, %v1364
      %v1733 = vpack.c.b16 %v1373, %v1365
      %v1734 = vpack.c.b16 %v1374, %v1366
      %v1735 = vpack.c.b16 %v1375, %v1367
      %v1736 = vpack.c.b16 %v1376, %v1368
      %v1737 = vpack.c.b16 %v1377, %v1369
      %v1738 = vpack.c.b16 %v1378, %v1370
      %v1739 = vpack.c.b16 %v1387, %v1379
      %v1740 = vpack.c.b16 %v1388, %v1380
      %v1741 = vpack.c.b16 %v1389, %v1381
      %v1742 = vpack.c.b16 %v1390, %v1382
      %v1743 = vpack.c.b16 %v1391, %v1383
      %v1744 = vpack.c.b16 %v1392, %v1384
      %v1745 = vpack.c.b16 %v1393, %v1385
      %v1746 = vpack.c.b16 %v1394, %v1386
      %v1747 = vpack.c.b16 %v1403, %v1395
      %v1748 = vpack.c.b16 %v1404, %v1396
      %v1749 = vpack.c.b16 %v1405, %v1397
      %v1750 = vpack.c.b16 %v1406, %v1398
      %v1751 = vpack.c.b16 %v1407, %v1399
      %v1752 = vpack.c.b16 %v1408, %v1400
      %v1753 = vpack.c.b16 %v1409, %v1401
      %v1754 = vpack.c.b16 %v1410, %v1402
      %v1755 = vpack.c.b16 %v1419, %v1411
      %v1756 = vpack.c.b16 %v1420, %v1412
      %v1757 = vpack.c.b16 %v1421, %v1413
      %v1758 = vpack.c.b16 %v1422, %v1414
      %v1759 = vpack.c.b16 %v1423, %v1415
      %v1760 = vpack.c.b16 %v1424, %v1416
      %v1761 = vpack.c.b16 %v1425, %v1417
      %v1762 = vpack.c.b16 %v1426, %v1418
      %v1763 = vpack.c.b16 %v1435, %v1427
      %v1764 = vpack.c.b16 %v1436, %v1428
      %v1765 = vpack.c.b16 %v1437, %v1429
      %v1766 = vpack.c.b16 %v1438, %v1430
      %v1767 = vpack.c.b16 %v1439, %v1431
      %v1768 = vpack.c.b16 %v1440, %v1432
      %v1769 = vpack.c.b16 %v1441, %v1433
      %v1770 = vpack.c.b16 %v1442, %v1434
      %v1771 = vpack.c.b16 %v1451, %v1443
      %v1772 = vpack.c.b16 %v1452, %v1444
      %v1773 = vpack.c.b16 %v1453, %v1445
      %v1774 = vpack.c.b16 %v1454, %v1446
      %v1775 = vpack.c.b16 %v1455, %v1447
      %v1776 = vpack.c.b16 %v1456, %v1448
      %v1777 = vpack.c.b16 %v1457, %v1449
      %v1778 = vpack.c.b16 %v1458, %v1450
      %v1779 = vpack.c.b16 %v1467, %v1459
      %v1780 = vpack.c.b16 %v1468, %v1460
      %v1781 = vpack.c.b16 %v1469, %v1461
      %v1782 = vpack.c.b16 %v1470, %v1462
      %v1783 = vpack.c.b16 %v1471, %v1463
      %v1784 = vpack.c.b16 %v1472, %v1464
      %v1785 = vpack.c.b16 %v1473, %v1465
      %v1786 = vpack.c.b16 %v1474, %v1466
      %v1787 = vpack.c.b16 %v1483, %v1475
      %v1788 = vpack.c.b16 %v1484, %v1476
      %v1789 = vpack.c.b16 %v1485, %v1477
      %v1790 = vpack.c.b16 %v1486, %v1478
      %v1791 = vpack.c.b16 %v1487, %v1479
      %v1792 = vpack.c.b16 %v1488, %v1480
      %v1793 = vpack.c.b16 %v1489, %v1481
      %v1794 = vpack.c.b16 %v1490, %v1482
      %v1795 = vpack.c.b16 %v1499, %v1491
      %v1796 = vpack.c.b16 %v1500, %v1492
      %v1797 = vpack.c.b16 %v1501, %v1493
      %v1798 = vpack.c.b16 %v1502, %v1494
      %v1799 = vpack.c.b16 %v1503, %v1495
      %v1800 = vpack.c.b16 %v1504, %v1496
      %v1801 = vpack.c.b16 %v1505, %v1497
      %v1802 = vpack.c.b16 %v1506, %v1498
      %v1803 = vpack.c.b16 %v1515, %v1507
      %v1804 = vpack.c.b16 %v1516, %v1508
      %v1805 = vpack.c.b16 %v1517, %v1509
      %v1806 = vpack.c.b16 %v1518, %v1510
      %v1807 = vpack.c.b16 %v1519, %v1511
      %v1808 = vpack.c.b16 %v1520, %v1512
      %v1809 = vpack.c.b16 %v1521, %v1513
      %v1810 = vpack.c.b16 %v1522, %v1514
      %v1811 = vpack.c.b16 %v1531, %v1523
      %v1812 = vpack.c.b16 %v1532, %v1524
      %v1813 = vpack.c.b16 %v1533, %v1525
      %v1814 = vpack.c.b16 %v1534, %v1526
      %v1815 = vpack.c.b16 %v1535, %v1527
      %v1816 = vpack.c.b16 %v1536, %v1528
      %v1817 = vpack.c.b16 %v1537, %v1529
      %v1818 = vpack.c.b16 %v1538, %v1530
      %v1819 = vpack.c.b16 %v1547, %v1539
      %v1820 = vpack.c.b16 %v1548, %v1540
      %v1821 = vpack.c.b16 %v1549, %v1541
      %v1822 = vpack.c.b16 %v1550, %v1542
      %v1823 = vpack.c.b16 %v1551, %v1543
      %v1824 = vpack.c.b16 %v1552, %v1544
      %v1825 = vpack.c.b16 %v1553, %v1545
      %v1826 = vpack.c.b16 %v1554, %v1546
      %v1827 = vpack.c.b16 %v1563, %v1555
      %v1828 = vpack.c.b16 %v1564, %v1556
      %v1829 = vpack.c.b16 %v1565, %v1557
      %v1830 = vpack.c.b16 %v1566, %v1558
      %v1831 = vpack.c.b16 %v1567, %v1559
      %v1832 = vpack.c.b16 %v1568, %v1560
      %v1833 = vpack.c.b16 %v1569, %v1561
      %v1834 = vpack.c.b16 %v1570, %v1562
      %v1835 = vpack.c.b16 %v1579, %v1571
      %v1836 = vpack.c.b16 %v1580, %v1572
      %v1837 = vpack.c.b16 %v1581, %v1573
      %v1838 = vpack.c.b16 %v1582, %v1574
      %v1839 = vpack.c.b16 %v1583, %v1575
      %v1840 = vpack.c.b16 %v1584, %v1576
      %v1841 = vpack.c.b16 %v1585, %v1577
      %v1842 = vpack.c.b16 %v1586, %v1578
      %v2227 = vunpack.c.l.b16 %v691
      %v2228 = vunpack.c.l.b16 %v692
      %v2229 = vunpack.c.l.b16 %v693
      %v2230 = vunpack.c.l.b16 %v694
      %v2231 = vunpack.c.l.b16 %v695
      %v2232 = vunpack.c.l.b16 %v696
      %v2233 = vunpack.c.l.b16 %v697
      %v2234 = vunpack.c.l.b16 %v698
      %v2235 = vunpack.c.l.b16 %v699
      %v2236 = vunpack.c.l.b16 %v700
      %v2237 = vunpack.c.l.b16 %v701
      %v2238 = vunpack.c.l.b16 %v702
      %v2239 = vunpack.c.l.b16 %v703
      %v2240 = vunpack.c.l.b16 %v704
      %v2241 = vunpack.c.l.b16 %v705
      %v2242 = vunpack.c.l.b16 %v706
      %v2243 = vunpack.c.l.b16 %v707
      %v2244 = vunpack.c.l.b16 %v708
      %v2245 = vunpack.c.l.b16 %v709
      %v2246 = vunpack.c.l.b16 %v710
      %v2247 = vunpack.c.l.b16 %v711
      %v2248 = vunpack.c.l.b16 %v712
      %v2249 = vunpack.c.l.b16 %v713
      %v2250 = vunpack.c.l.b16 %v714
      %v2251 = vunpack.c.l.b16 %v715
      %v2252 = vunpack.c.l.b16 %v716
      %v2253 = vunpack.c.l.b16 %v717
      %v2254 = vunpack.c.l.b16 %v718
      %v2255 = vunpack.c.l.b16 %v719
      %v2256 = vunpack.c.l.b16 %v720
      %v2257 = vunpack.c.l.b16 %v721
      %v2258 = vunpack.c.l.b16 %v722
      %v2259 = vunpack.c.l.b16 %v723
      %v2260 = vunpack.c.l.b16 %v724
      %v2261 = vunpack.c.l.b16 %v725
      %v2262 = vunpack.c.l.b16 %v726
      %v2263 = vunpack.c.l.b16 %v727
      %v2264 = vunpack.c.l.b16 %v728
      %v2265 = vunpack.c.l.b16 %v729
      %v2266 = vunpack.c.l.b16 %v730
      %v2267 = vunpack.c.l.b16 %v731
      %v2268 = vunpack.c.l.b16 %v732
      %v2269 = vunpack.c.l.b16 %v733
      %v2270 = vunpack.c.l.b16 %v734
      %v2271 = vunpack.c.l.b16 %v735
      %v2272 = vunpack.c.l.b16 %v736
      %v2273 = vunpack.c.l.b16 %v737
      %v2274 = vunpack.c.l.b16 %v738
      %v2275 = vunpack.c.l.b16 %v739
      %v2276 = vunpack.c.l.b16 %v740
      %v2277 = vunpack.c.l.b16 %v741
      %v2278 = vunpack.c.l.b16 %v742
      %v2279 = vunpack.c.l.b16 %v743
      %v2280 = vunpack.c.l.b16 %v744
      %v2281 = vunpack.c.l.b16 %v745
      %v2282 = vunpack.c.l.b16 %v746
      %v2283 = vunpack.c.l.b16 %v747
      %v2284 = vunpack.c.l.b16 %v748
      %v2285 = vunpack.c.l.b16 %v749
      %v2286 = vunpack.c.l.b16 %v750
      %v2287 = vunpack.c.l.b16 %v751
      %v2288 = vunpack.c.l.b16 %v752
      %v2289 = vunpack.c.l.b16 %v753
      %v2290 = vunpack.c.l.b16 %v754
      %v2291 = vunpack.c.l.b16 %v755
      %v2292 = vunpack.c.l.b16 %v756
      %v2293 = vunpack.c.l.b16 %v757
      %v2294 = vunpack.c.l.b16 %v758
      %v2295 = vunpack.c.l.b16 %v759
      %v2296 = vunpack.c.l.b16 %v760
      %v2297 = vunpack.c.l.b16 %v761
      %v2298 = vunpack.c.l.b16 %v762
      %v2299 = vunpack.c.l.b16 %v763
      %v2300 = vunpack.c.l.b16 %v764
      %v2301 = vunpack.c.l.b16 %v765
      %v2302 = vunpack.c.l.b16 %v766
      %v2303 = vunpack.c.l.b16 %v767
      %v2304 = vunpack.c.l.b16 %v768
      %v2305 = vunpack.c.l.b16 %v769
      %v2306 = vunpack.c.l.b16 %v770
      %v2307 = vunpack.c.l.b16 %v771
      %v2308 = vunpack.c.l.b16 %v772
      %v2309 = vunpack.c.l.b16 %v773
      %v2310 = vunpack.c.l.b16 %v774
      %v2311 = vunpack.c.l.b16 %v775
      %v2312 = vunpack.c.l.b16 %v776
      %v2313 = vunpack.c.l.b16 %v777
      %v2314 = vunpack.c.l.b16 %v778
      %v2315 = vunpack.c.l.b16 %v779
      %v2316 = vunpack.c.l.b16 %v780
      %v2317 = vunpack.c.l.b16 %v781
      %v2318 = vunpack.c.l.b16 %v782
      %v2319 = vunpack.c.l.b16 %v783
      %v2320 = vunpack.c.l.b16 %v784
      %v2321 = vunpack.c.l.b16 %v785
      %v2322 = vunpack.c.l.b16 %v786
      %v2323 = vunpack.c.l.b16 %v787
      %v2324 = vunpack.c.l.b16 %v788
      %v2325 = vunpack.c.l.b16 %v789
      %v2326 = vunpack.c.l.b16 %v790
      %v2327 = vunpack.c.l.b16 %v791
      %v2328 = vunpack.c.l.b16 %v792
      %v2329 = vunpack.c.l.b16 %v793
      %v2330 = vunpack.c.l.b16 %v794
      %v2331 = vunpack.c.l.b16 %v795
      %v2332 = vunpack.c.l.b16 %v796
      %v2333 = vunpack.c.l.b16 %v797
      %v2334 = vunpack.c.l.b16 %v798
      %v2335 = vunpack.c.l.b16 %v799
      %v2336 = vunpack.c.l.b16 %v800
      %v2337 = vunpack.c.l.b16 %v801
      %v2338 = vunpack.c.l.b16 %v802
      %v2339 = vunpack.c.l.b16 %v803
      %v2340 = vunpack.c.l.b16 %v804
      %v2341 = vunpack.c.l.b16 %v805
      %v2342 = vunpack.c.l.b16 %v806
      %v2343 = vunpack.c.l.b16 %v807
      %v2344 = vunpack.c.l.b16 %v808
      %v2345 = vunpack.c.l.b16 %v809
      %v2346 = vunpack.c.l.b16 %v810
      %v2347 = vunpack.c.l.b16 %v811
      %v2348 = vunpack.c.l.b16 %v812
      %v2349 = vunpack.c.l.b16 %v813
      %v2350 = vunpack.c.l.b16 %v814
      %v2351 = vunpack.c.l.b16 %v815
      %v2352 = vunpack.c.l.b16 %v816
      %v2353 = vunpack.c.l.b16 %v817
      %v2354 = vunpack.c.l.b16 %v818
      %v2355 = vpack.c.b16 %v2228, %v2227
      %v2356 = vpack.c.b16 %v2230, %v2229
      %v2357 = vpack.c.b16 %v2232, %v2231
      %v2358 = vpack.c.b16 %v2234, %v2233
      %v2359 = vpack.c.b16 %v2236, %v2235
      %v2360 = vpack.c.b16 %v2238, %v2237
      %v2361 = vpack.c.b16 %v2240, %v2239
      %v2362 = vpack.c.b16 %v2242, %v2241
      %v2363 = vpack.c.b16 %v2244, %v2243
      %v2364 = vpack.c.b16 %v2246, %v2245
      %v2365 = vpack.c.b16 %v2248, %v2247
      %v2366 = vpack.c.b16 %v2250, %v2249
      %v2367 = vpack.c.b16 %v2252, %v2251
      %v2368 = vpack.c.b16 %v2254, %v2253
      %v2369 = vpack.c.b16 %v2256, %v2255
      %v2370 = vpack.c.b16 %v2258, %v2257
      %v2371 = vpack.c.b16 %v2260, %v2259
      %v2372 = vpack.c.b16 %v2262, %v2261
      %v2373 = vpack.c.b16 %v2264, %v2263
      %v2374 = vpack.c.b16 %v2266, %v2265
      %v2375 = vpack.c.b16 %v2268, %v2267
      %v2376 = vpack.c.b16 %v2270, %v2269
      %v2377 = vpack.c.b16 %v2272, %v2271
      %v2378 = vpack.c.b16 %v2274, %v2273
      %v2379 = vpack.c.b16 %v2276, %v2275
      %v2380 = vpack.c.b16 %v2278, %v2277
      %v2381 = vpack.c.b16 %v2280, %v2279
      %v2382 = vpack.c.b16 %v2282, %v2281
      %v2383 = vpack.c.b16 %v2284, %v2283
      %v2384 = vpack.c.b16 %v2286, %v2285
      %v2385 = vpack.c.b16 %v2288, %v2287
      %v2386 = vpack.c.b16 %v2290, %v2289
      %v2387 = vpack.c.b16 %v2292, %v2291
      %v2388 = vpack.c.b16 %v2294, %v2293
      %v2389 = vpack.c.b16 %v2296, %v2295
      %v2390 = vpack.c.b16 %v2298, %v2297
      %v2391 = vpack.c.b16 %v2300, %v2299
      %v2392 = vpack.c.b16 %v2302, %v2301
      %v2393 = vpack.c.b16 %v2304, %v2303
      %v2394 = vpack.c.b16 %v2306, %v2305
      %v2395 = vpack.c.b16 %v2308, %v2307
      %v2396 = vpack.c.b16 %v2310, %v2309
      %v2397 = vpack.c.b16 %v2312, %v2311
      %v2398 = vpack.c.b16 %v2314, %v2313
      %v2399 = vpack.c.b16 %v2316, %v2315
      %v2400 = vpack.c.b16 %v2318, %v2317
      %v2401 = vpack.c.b16 %v2320, %v2319
      %v2402 = vpack.c.b16 %v2322, %v2321
      %v2403 = vpack.c.b16 %v2324, %v2323
      %v2404 = vpack.c.b16 %v2326, %v2325
      %v2405 = vpack.c.b16 %v2328, %v2327
      %v2406 = vpack.c.b16 %v2330, %v2329
      %v2407 = vpack.c.b16 %v2332, %v2331
      %v2408 = vpack.c.b16 %v2334, %v2333
      %v2409 = vpack.c.b16 %v2336, %v2335
      %v2410 = vpack.c.b16 %v2338, %v2337
      %v2411 = vpack.c.b16 %v2340, %v2339
      %v2412 = vpack.c.b16 %v2342, %v2341
      %v2413 = vpack.c.b16 %v2344, %v2343
      %v2414 = vpack.c.b16 %v2346, %v2345
      %v2415 = vpack.c.b16 %v2348, %v2347
      %v2416 = vpack.c.b16 %v2350, %v2349
      %v2417 = vpack.c.b16 %v2352, %v2351
      %v2418 = vpack.c.b16 %v2354, %v2353
      %2483 = vmatpush.bf16.msra.mxu0 %v2362
      %2484 = vmatpush.bf16.msra.mxu0 %v2361
      %2485 = vmatpush.bf16.msra.mxu0 %v2360
      %2486 = vmatpush.bf16.msra.mxu0 %v2359
      %2487 = vmatpush.bf16.msra.mxu0 %v2358
      %2488 = vmatpush.bf16.msra.mxu0 %v2357
      %2489 = vmatpush.bf16.msra.mxu0 %v2356
      %2490 = vmatpush.bf16.msra.mxu0 %v2355
      %2491 = vmatmul.bf16.gmra.mxu0 %v1587
      %v2492 = vpop.f32.mrf.mxu0
      %v2493 = vadd.f32 0.0, %v2492
      %v2494 = vpop.f32.mrf.mxu0
      %v2495 = vadd.f32 0.0, %v2494
      %2496 = vmatmul.bf16.gmra.mxu0 %v1595
      %v2497 = vpop.f32.mrf.mxu0
      %v2498 = vadd.f32 0.0, %v2497
      %v2499 = vpop.f32.mrf.mxu0
      %v2500 = vadd.f32 0.0, %v2499
      %2501 = vmatmul.bf16.gmra.mxu0 %v1603
      %v2502 = vpop.f32.mrf.mxu0
      %v2503 = vadd.f32 0.0, %v2502
      %v2504 = vpop.f32.mrf.mxu0
      %v2505 = vadd.f32 0.0, %v2504
      %2506 = vmatmul.bf16.gmra.mxu0 %v1611
      %v2507 = vpop.f32.mrf.mxu0
      %v2508 = vadd.f32 0.0, %v2507
      %v2509 = vpop.f32.mrf.mxu0
      %v2510 = vadd.f32 0.0, %v2509
      %2511 = vmatmul.bf16.gmra.mxu0 %v1619
      %v2512 = vpop.f32.mrf.mxu0
      %v2513 = vadd.f32 0.0, %v2512
      %v2514 = vpop.f32.mrf.mxu0
      %v2515 = vadd.f32 0.0, %v2514
      %2516 = vmatmul.bf16.gmra.mxu0 %v1627
      %v2517 = vpop.f32.mrf.mxu0
      %v2518 = vadd.f32 0.0, %v2517
      %v2519 = vpop.f32.mrf.mxu0
      %v2520 = vadd.f32 0.0, %v2519
      %2521 = vmatmul.bf16.gmra.mxu0 %v1635
      %v2522 = vpop.f32.mrf.mxu0
      %v2523 = vadd.f32 0.0, %v2522
      %v2524 = vpop.f32.mrf.mxu0
      %v2525 = vadd.f32 0.0, %v2524
      %2526 = vmatmul.bf16.gmra.mxu0 %v1643
      %v2527 = vpop.f32.mrf.mxu0
      %v2528 = vadd.f32 0.0, %v2527
      %v2529 = vpop.f32.mrf.mxu0
      %v2530 = vadd.f32 0.0, %v2529
      %2531 = vmatmul.bf16.gmra.mxu0 %v1651
      %v2532 = vpop.f32.mrf.mxu0
      %v2533 = vadd.f32 0.0, %v2532
      %v2534 = vpop.f32.mrf.mxu0
      %v2535 = vadd.f32 0.0, %v2534
      %2536 = vmatmul.bf16.gmra.mxu0 %v1659
      %v2537 = vpop.f32.mrf.mxu0
      %v2538 = vadd.f32 0.0, %v2537
      %v2539 = vpop.f32.mrf.mxu0
      %v2540 = vadd.f32 0.0, %v2539
      %2541 = vmatmul.bf16.gmra.mxu0 %v1667
      %v2542 = vpop.f32.mrf.mxu0
      %v2543 = vadd.f32 0.0, %v2542
      %v2544 = vpop.f32.mrf.mxu0
      %v2545 = vadd.f32 0.0, %v2544
      %2546 = vmatmul.bf16.gmra.mxu0 %v1675
      %v2547 = vpop.f32.mrf.mxu0
      %v2548 = vadd.f32 0.0, %v2547
      %v2549 = vpop.f32.mrf.mxu0
      %v2550 = vadd.f32 0.0, %v2549
      %2551 = vmatmul.bf16.gmra.mxu0 %v1683
      %v2552 = vpop.f32.mrf.mxu0
      %v2553 = vadd.f32 0.0, %v2552
      %v2554 = vpop.f32.mrf.mxu0
      %v2555 = vadd.f32 0.0, %v2554
      %2556 = vmatmul.bf16.gmra.mxu0 %v1691
      %v2557 = vpop.f32.mrf.mxu0
      %v2558 = vadd.f32 0.0, %v2557
      %v2559 = vpop.f32.mrf.mxu0
      %v2560 = vadd.f32 0.0, %v2559
      %2561 = vmatmul.bf16.gmra.mxu0 %v1699
      %v2562 = vpop.f32.mrf.mxu0
      %v2563 = vadd.f32 0.0, %v2562
      %v2564 = vpop.f32.mrf.mxu0
      %v2565 = vadd.f32 0.0, %v2564
      %2566 = vmatmul.bf16.gmra.mxu0 %v1707
      %v2567 = vpop.f32.mrf.mxu0
      %v2568 = vadd.f32 0.0, %v2567
      %v2569 = vpop.f32.mrf.mxu0
      %v2570 = vadd.f32 0.0, %v2569
      %2571 = vmatmul.bf16.gmra.mxu0 %v1715
      %v2572 = vpop.f32.mrf.mxu0
      %v2573 = vadd.f32 0.0, %v2572
      %v2574 = vpop.f32.mrf.mxu0
      %v2575 = vadd.f32 0.0, %v2574
      %2576 = vmatmul.bf16.gmra.mxu0 %v1723
      %v2577 = vpop.f32.mrf.mxu0
      %v2578 = vadd.f32 0.0, %v2577
      %v2579 = vpop.f32.mrf.mxu0
      %v2580 = vadd.f32 0.0, %v2579
      %2581 = vmatmul.bf16.gmra.mxu0 %v1731
      %v2582 = vpop.f32.mrf.mxu0
      %v2583 = vadd.f32 0.0, %v2582
      %v2584 = vpop.f32.mrf.mxu0
      %v2585 = vadd.f32 0.0, %v2584
      %2586 = vmatmul.bf16.gmra.mxu0 %v1739
      %v2587 = vpop.f32.mrf.mxu0
      %v2588 = vadd.f32 0.0, %v2587
      %v2589 = vpop.f32.mrf.mxu0
      %v2590 = vadd.f32 0.0, %v2589
      %2591 = vmatmul.bf16.gmra.mxu0 %v1747
      %v2592 = vpop.f32.mrf.mxu0
      %v2593 = vadd.f32 0.0, %v2592
      %v2594 = vpop.f32.mrf.mxu0
      %v2595 = vadd.f32 0.0, %v2594
      %2596 = vmatmul.bf16.gmra.mxu0 %v1755
      %v2597 = vpop.f32.mrf.mxu0
      %v2598 = vadd.f32 0.0, %v2597
      %v2599 = vpop.f32.mrf.mxu0
      %v2600 = vadd.f32 0.0, %v2599
      %2601 = vmatmul.bf16.gmra.mxu0 %v1763
      %v2602 = vpop.f32.mrf.mxu0
      %v2603 = vadd.f32 0.0, %v2602
      %v2604 = vpop.f32.mrf.mxu0
      %v2605 = vadd.f32 0.0, %v2604
      %2606 = vmatmul.bf16.gmra.mxu0 %v1771
      %v2607 = vpop.f32.mrf.mxu0
      %v2608 = vadd.f32 0.0, %v2607
      %v2609 = vpop.f32.mrf.mxu0
      %v2610 = vadd.f32 0.0, %v2609
      %2611 = vmatmul.bf16.gmra.mxu0 %v1779
      %v2612 = vpop.f32.mrf.mxu0
      %v2613 = vadd.f32 0.0, %v2612
      %v2614 = vpop.f32.mrf.mxu0
      %v2615 = vadd.f32 0.0, %v2614
      %2616 = vmatmul.bf16.gmra.mxu0 %v1787
      %v2617 = vpop.f32.mrf.mxu0
      %v2618 = vadd.f32 0.0, %v2617
      %v2619 = vpop.f32.mrf.mxu0
      %v2620 = vadd.f32 0.0, %v2619
      %2621 = vmatmul.bf16.gmra.mxu0 %v1795
      %v2622 = vpop.f32.mrf.mxu0
      %v2623 = vadd.f32 0.0, %v2622
      %v2624 = vpop.f32.mrf.mxu0
      %v2625 = vadd.f32 0.0, %v2624
      %2626 = vmatmul.bf16.gmra.mxu0 %v1803
      %v2627 = vpop.f32.mrf.mxu0
      %v2628 = vadd.f32 0.0, %v2627
      %v2629 = vpop.f32.mrf.mxu0
      %v2630 = vadd.f32 0.0, %v2629
      %2631 = vmatmul.bf16.gmra.mxu0 %v1811
      %v2632 = vpop.f32.mrf.mxu0
      %v2633 = vadd.f32 0.0, %v2632
      %v2634 = vpop.f32.mrf.mxu0
      %v2635 = vadd.f32 0.0, %v2634
      %2636 = vmatmul.bf16.gmra.mxu0 %v1819
      %v2637 = vpop.f32.mrf.mxu0
      %v2638 = vadd.f32 0.0, %v2637
      %v2639 = vpop.f32.mrf.mxu0
      %v2640 = vadd.f32 0.0, %v2639
      %2641 = vmatmul.bf16.gmra.mxu0 %v1827
      %v2642 = vpop.f32.mrf.mxu0
      %v2643 = vadd.f32 0.0, %v2642
      %v2644 = vpop.f32.mrf.mxu0
      %v2645 = vadd.f32 0.0, %v2644
      %2646 = vmatmul.bf16.gmra.mxu0 %v1835
      %v2647 = vpop.f32.mrf.mxu0
      %v2648 = vadd.f32 0.0, %v2647
      %v2649 = vpop.f32.mrf.mxu0
      %v2650 = vadd.f32 0.0, %v2649
      %2651 = vdwg.mxu0
      %2652 = vmatpush.bf16.msra.mxu0 %v2370
      %2653 = vmatpush.bf16.msra.mxu0 %v2369
      %2654 = vmatpush.bf16.msra.mxu0 %v2368
      %2655 = vmatpush.bf16.msra.mxu0 %v2367
      %2656 = vmatpush.bf16.msra.mxu0 %v2366
      %2657 = vmatpush.bf16.msra.mxu0 %v2365
      %2658 = vmatpush.bf16.msra.mxu0 %v2364
      %2659 = vmatpush.bf16.msra.mxu0 %v2363
      %2660 = vmatmul.bf16.gmra.mxu0 %v1588
      %v2661 = vpop.f32.mrf.mxu0
      %v2662 = vadd.f32 %v2493, %v2661
      %v2663 = vpop.f32.mrf.mxu0
      %v2664 = vadd.f32 %v2495, %v2663
      %2665 = vmatmul.bf16.gmra.mxu0 %v1596
      %v2666 = vpop.f32.mrf.mxu0
      %v2667 = vadd.f32 %v2498, %v2666
      %v2668 = vpop.f32.mrf.mxu0
      %v2669 = vadd.f32 %v2500, %v2668
      %2670 = vmatmul.bf16.gmra.mxu0 %v1604
      %v2671 = vpop.f32.mrf.mxu0
      %v2672 = vadd.f32 %v2503, %v2671
      %v2673 = vpop.f32.mrf.mxu0
      %v2674 = vadd.f32 %v2505, %v2673
      %2675 = vmatmul.bf16.gmra.mxu0 %v1612
      %v2676 = vpop.f32.mrf.mxu0
      %v2677 = vadd.f32 %v2508, %v2676
      %v2678 = vpop.f32.mrf.mxu0
      %v2679 = vadd.f32 %v2510, %v2678
      %2680 = vmatmul.bf16.gmra.mxu0 %v1620
      %v2681 = vpop.f32.mrf.mxu0
      %v2682 = vadd.f32 %v2513, %v2681
      %v2683 = vpop.f32.mrf.mxu0
      %v2684 = vadd.f32 %v2515, %v2683
      %2685 = vmatmul.bf16.gmra.mxu0 %v1628
      %v2686 = vpop.f32.mrf.mxu0
      %v2687 = vadd.f32 %v2518, %v2686
      %v2688 = vpop.f32.mrf.mxu0
      %v2689 = vadd.f32 %v2520, %v2688
      %2690 = vmatmul.bf16.gmra.mxu0 %v1636
      %v2691 = vpop.f32.mrf.mxu0
      %v2692 = vadd.f32 %v2523, %v2691
      %v2693 = vpop.f32.mrf.mxu0
      %v2694 = vadd.f32 %v2525, %v2693
      %2695 = vmatmul.bf16.gmra.mxu0 %v1644
      %v2696 = vpop.f32.mrf.mxu0
      %v2697 = vadd.f32 %v2528, %v2696
      %v2698 = vpop.f32.mrf.mxu0
      %v2699 = vadd.f32 %v2530, %v2698
      %2700 = vmatmul.bf16.gmra.mxu0 %v1652
      %v2701 = vpop.f32.mrf.mxu0
      %v2702 = vadd.f32 %v2533, %v2701
      %v2703 = vpop.f32.mrf.mxu0
      %v2704 = vadd.f32 %v2535, %v2703
      %2705 = vmatmul.bf16.gmra.mxu0 %v1660
      %v2706 = vpop.f32.mrf.mxu0
      %v2707 = vadd.f32 %v2538, %v2706
      %v2708 = vpop.f32.mrf.mxu0
      %v2709 = vadd.f32 %v2540, %v2708
      %2710 = vmatmul.bf16.gmra.mxu0 %v1668
      %v2711 = vpop.f32.mrf.mxu0
      %v2712 = vadd.f32 %v2543, %v2711
      %v2713 = vpop.f32.mrf.mxu0
      %v2714 = vadd.f32 %v2545, %v2713
      %2715 = vmatmul.bf16.gmra.mxu0 %v1676
      %v2716 = vpop.f32.mrf.mxu0
      %v2717 = vadd.f32 %v2548, %v2716
      %v2718 = vpop.f32.mrf.mxu0
      %v2719 = vadd.f32 %v2550, %v2718
      %2720 = vmatmul.bf16.gmra.mxu0 %v1684
      %v2721 = vpop.f32.mrf.mxu0
      %v2722 = vadd.f32 %v2553, %v2721
      %v2723 = vpop.f32.mrf.mxu0
      %v2724 = vadd.f32 %v2555, %v2723
      %2725 = vmatmul.bf16.gmra.mxu0 %v1692
      %v2726 = vpop.f32.mrf.mxu0
      %v2727 = vadd.f32 %v2558, %v2726
      %v2728 = vpop.f32.mrf.mxu0
      %v2729 = vadd.f32 %v2560, %v2728
      %2730 = vmatmul.bf16.gmra.mxu0 %v1700
      %v2731 = vpop.f32.mrf.mxu0
      %v2732 = vadd.f32 %v2563, %v2731
      %v2733 = vpop.f32.mrf.mxu0
      %v2734 = vadd.f32 %v2565, %v2733
      %2735 = vmatmul.bf16.gmra.mxu0 %v1708
      %v2736 = vpop.f32.mrf.mxu0
      %v2737 = vadd.f32 %v2568, %v2736
      %v2738 = vpop.f32.mrf.mxu0
      %v2739 = vadd.f32 %v2570, %v2738
      %2740 = vmatmul.bf16.gmra.mxu0 %v1716
      %v2741 = vpop.f32.mrf.mxu0
      %v2742 = vadd.f32 %v2573, %v2741
      %v2743 = vpop.f32.mrf.mxu0
      %v2744 = vadd.f32 %v2575, %v2743
      %2745 = vmatmul.bf16.gmra.mxu0 %v1724
      %v2746 = vpop.f32.mrf.mxu0
      %v2747 = vadd.f32 %v2578, %v2746
      %v2748 = vpop.f32.mrf.mxu0
      %v2749 = vadd.f32 %v2580, %v2748
      %2750 = vmatmul.bf16.gmra.mxu0 %v1732
      %v2751 = vpop.f32.mrf.mxu0
      %v2752 = vadd.f32 %v2583, %v2751
      %v2753 = vpop.f32.mrf.mxu0
      %v2754 = vadd.f32 %v2585, %v2753
      %2755 = vmatmul.bf16.gmra.mxu0 %v1740
      %v2756 = vpop.f32.mrf.mxu0
      %v2757 = vadd.f32 %v2588, %v2756
      %v2758 = vpop.f32.mrf.mxu0
      %v2759 = vadd.f32 %v2590, %v2758
      %2760 = vmatmul.bf16.gmra.mxu0 %v1748
      %v2761 = vpop.f32.mrf.mxu0
      %v2762 = vadd.f32 %v2593, %v2761
      %v2763 = vpop.f32.mrf.mxu0
      %v2764 = vadd.f32 %v2595, %v2763
      %2765 = vmatmul.bf16.gmra.mxu0 %v1756
      %v2766 = vpop.f32.mrf.mxu0
      %v2767 = vadd.f32 %v2598, %v2766
      %v2768 = vpop.f32.mrf.mxu0
      %v2769 = vadd.f32 %v2600, %v2768
      %2770 = vmatmul.bf16.gmra.mxu0 %v1764
      %v2771 = vpop.f32.mrf.mxu0
      %v2772 = vadd.f32 %v2603, %v2771
      %v2773 = vpop.f32.mrf.mxu0
      %v2774 = vadd.f32 %v2605, %v2773
      %2775 = vmatmul.bf16.gmra.mxu0 %v1772
      %v2776 = vpop.f32.mrf.mxu0
      %v2777 = vadd.f32 %v2608, %v2776
      %v2778 = vpop.f32.mrf.mxu0
      %v2779 = vadd.f32 %v2610, %v2778
      %2780 = vmatmul.bf16.gmra.mxu0 %v1780
      %v2781 = vpop.f32.mrf.mxu0
      %v2782 = vadd.f32 %v2613, %v2781
      %v2783 = vpop.f32.mrf.mxu0
      %v2784 = vadd.f32 %v2615, %v2783
      %2785 = vmatmul.bf16.gmra.mxu0 %v1788
      %v2786 = vpop.f32.mrf.mxu0
      %v2787 = vadd.f32 %v2618, %v2786
      %v2788 = vpop.f32.mrf.mxu0
      %v2789 = vadd.f32 %v2620, %v2788
      %2790 = vmatmul.bf16.gmra.mxu0 %v1796
      %v2791 = vpop.f32.mrf.mxu0
      %v2792 = vadd.f32 %v2623, %v2791
      %v2793 = vpop.f32.mrf.mxu0
      %v2794 = vadd.f32 %v2625, %v2793
      %2795 = vmatmul.bf16.gmra.mxu0 %v1804
      %v2796 = vpop.f32.mrf.mxu0
      %v2797 = vadd.f32 %v2628, %v2796
      %v2798 = vpop.f32.mrf.mxu0
      %v2799 = vadd.f32 %v2630, %v2798
      %2800 = vmatmul.bf16.gmra.mxu0 %v1812
      %v2801 = vpop.f32.mrf.mxu0
      %v2802 = vadd.f32 %v2633, %v2801
      %v2803 = vpop.f32.mrf.mxu0
      %v2804 = vadd.f32 %v2635, %v2803
      %2805 = vmatmul.bf16.gmra.mxu0 %v1820
      %v2806 = vpop.f32.mrf.mxu0
      %v2807 = vadd.f32 %v2638, %v2806
      %v2808 = vpop.f32.mrf.mxu0
      %v2809 = vadd.f32 %v2640, %v2808
      %2810 = vmatmul.bf16.gmra.mxu0 %v1828
      %v2811 = vpop.f32.mrf.mxu0
      %v2812 = vadd.f32 %v2643, %v2811
      %v2813 = vpop.f32.mrf.mxu0
      %v2814 = vadd.f32 %v2645, %v2813
      %2815 = vmatmul.bf16.gmra.mxu0 %v1836
      %v2816 = vpop.f32.mrf.mxu0
      %v2817 = vadd.f32 %v2648, %v2816
      %v2818 = vpop.f32.mrf.mxu0
      %v2819 = vadd.f32 %v2650, %v2818
      %2820 = vdwg.mxu0
      %2821 = vmatpush.bf16.msra.mxu0 %v2378
      %2822 = vmatpush.bf16.msra.mxu0 %v2377
      %2823 = vmatpush.bf16.msra.mxu0 %v2376
      %2824 = vmatpush.bf16.msra.mxu0 %v2375
      %2825 = vmatpush.bf16.msra.mxu0 %v2374
      %2826 = vmatpush.bf16.msra.mxu0 %v2373
      %2827 = vmatpush.bf16.msra.mxu0 %v2372
      %2828 = vmatpush.bf16.msra.mxu0 %v2371
      %2829 = vmatmul.bf16.gmra.mxu0 %v1589
      %v2830 = vpop.f32.mrf.mxu0
      %v2831 = vadd.f32 %v2662, %v2830
      %v2832 = vpop.f32.mrf.mxu0
      %v2833 = vadd.f32 %v2664, %v2832
      %2834 = vmatmul.bf16.gmra.mxu0 %v1597
      %v2835 = vpop.f32.mrf.mxu0
      %v2836 = vadd.f32 %v2667, %v2835
      %v2837 = vpop.f32.mrf.mxu0
      %v2838 = vadd.f32 %v2669, %v2837
      %2839 = vmatmul.bf16.gmra.mxu0 %v1605
      %v2840 = vpop.f32.mrf.mxu0
      %v2841 = vadd.f32 %v2672, %v2840
      %v2842 = vpop.f32.mrf.mxu0
      %v2843 = vadd.f32 %v2674, %v2842
      %2844 = vmatmul.bf16.gmra.mxu0 %v1613
      %v2845 = vpop.f32.mrf.mxu0
      %v2846 = vadd.f32 %v2677, %v2845
      %v2847 = vpop.f32.mrf.mxu0
      %v2848 = vadd.f32 %v2679, %v2847
      %2849 = vmatmul.bf16.gmra.mxu0 %v1621
      %v2850 = vpop.f32.mrf.mxu0
      %v2851 = vadd.f32 %v2682, %v2850
      %v2852 = vpop.f32.mrf.mxu0
      %v2853 = vadd.f32 %v2684, %v2852
      %2854 = vmatmul.bf16.gmra.mxu0 %v1629
      %v2855 = vpop.f32.mrf.mxu0
      %v2856 = vadd.f32 %v2687, %v2855
      %v2857 = vpop.f32.mrf.mxu0
      %v2858 = vadd.f32 %v2689, %v2857
      %2859 = vmatmul.bf16.gmra.mxu0 %v1637
      %v2860 = vpop.f32.mrf.mxu0
      %v2861 = vadd.f32 %v2692, %v2860
      %v2862 = vpop.f32.mrf.mxu0
      %v2863 = vadd.f32 %v2694, %v2862
      %2864 = vmatmul.bf16.gmra.mxu0 %v1645
      %v2865 = vpop.f32.mrf.mxu0
      %v2866 = vadd.f32 %v2697, %v2865
      %v2867 = vpop.f32.mrf.mxu0
      %v2868 = vadd.f32 %v2699, %v2867
      %2869 = vmatmul.bf16.gmra.mxu0 %v1653
      %v2870 = vpop.f32.mrf.mxu0
      %v2871 = vadd.f32 %v2702, %v2870
      %v2872 = vpop.f32.mrf.mxu0
      %v2873 = vadd.f32 %v2704, %v2872
      %2874 = vmatmul.bf16.gmra.mxu0 %v1661
      %v2875 = vpop.f32.mrf.mxu0
      %v2876 = vadd.f32 %v2707, %v2875
      %v2877 = vpop.f32.mrf.mxu0
      %v2878 = vadd.f32 %v2709, %v2877
      %2879 = vmatmul.bf16.gmra.mxu0 %v1669
      %v2880 = vpop.f32.mrf.mxu0
      %v2881 = vadd.f32 %v2712, %v2880
      %v2882 = vpop.f32.mrf.mxu0
      %v2883 = vadd.f32 %v2714, %v2882
      %2884 = vmatmul.bf16.gmra.mxu0 %v1677
      %v2885 = vpop.f32.mrf.mxu0
      %v2886 = vadd.f32 %v2717, %v2885
      %v2887 = vpop.f32.mrf.mxu0
      %v2888 = vadd.f32 %v2719, %v2887
      %2889 = vmatmul.bf16.gmra.mxu0 %v1685
      %v2890 = vpop.f32.mrf.mxu0
      %v2891 = vadd.f32 %v2722, %v2890
      %v2892 = vpop.f32.mrf.mxu0
      %v2893 = vadd.f32 %v2724, %v2892
      %2894 = vmatmul.bf16.gmra.mxu0 %v1693
      %v2895 = vpop.f32.mrf.mxu0
      %v2896 = vadd.f32 %v2727, %v2895
      %v2897 = vpop.f32.mrf.mxu0
      %v2898 = vadd.f32 %v2729, %v2897
      %2899 = vmatmul.bf16.gmra.mxu0 %v1701
      %v2900 = vpop.f32.mrf.mxu0
      %v2901 = vadd.f32 %v2732, %v2900
      %v2902 = vpop.f32.mrf.mxu0
      %v2903 = vadd.f32 %v2734, %v2902
      %2904 = vmatmul.bf16.gmra.mxu0 %v1709
      %v2905 = vpop.f32.mrf.mxu0
      %v2906 = vadd.f32 %v2737, %v2905
      %v2907 = vpop.f32.mrf.mxu0
      %v2908 = vadd.f32 %v2739, %v2907
      %2909 = vmatmul.bf16.gmra.mxu0 %v1717
      %v2910 = vpop.f32.mrf.mxu0
      %v2911 = vadd.f32 %v2742, %v2910
      %v2912 = vpop.f32.mrf.mxu0
      %v2913 = vadd.f32 %v2744, %v2912
      %2914 = vmatmul.bf16.gmra.mxu0 %v1725
      %v2915 = vpop.f32.mrf.mxu0
      %v2916 = vadd.f32 %v2747, %v2915
      %v2917 = vpop.f32.mrf.mxu0
      %v2918 = vadd.f32 %v2749, %v2917
      %2919 = vmatmul.bf16.gmra.mxu0 %v1733
      %v2920 = vpop.f32.mrf.mxu0
      %v2921 = vadd.f32 %v2752, %v2920
      %v2922 = vpop.f32.mrf.mxu0
      %v2923 = vadd.f32 %v2754, %v2922
      %2924 = vmatmul.bf16.gmra.mxu0 %v1741
      %v2925 = vpop.f32.mrf.mxu0
      %v2926 = vadd.f32 %v2757, %v2925
      %v2927 = vpop.f32.mrf.mxu0
      %v2928 = vadd.f32 %v2759, %v2927
      %2929 = vmatmul.bf16.gmra.mxu0 %v1749
      %v2930 = vpop.f32.mrf.mxu0
      %v2931 = vadd.f32 %v2762, %v2930
      %v2932 = vpop.f32.mrf.mxu0
      %v2933 = vadd.f32 %v2764, %v2932
      %2934 = vmatmul.bf16.gmra.mxu0 %v1757
      %v2935 = vpop.f32.mrf.mxu0
      %v2936 = vadd.f32 %v2767, %v2935
      %v2937 = vpop.f32.mrf.mxu0
      %v2938 = vadd.f32 %v2769, %v2937
      %2939 = vmatmul.bf16.gmra.mxu0 %v1765
      %v2940 = vpop.f32.mrf.mxu0
      %v2941 = vadd.f32 %v2772, %v2940
      %v2942 = vpop.f32.mrf.mxu0
      %v2943 = vadd.f32 %v2774, %v2942
      %2944 = vmatmul.bf16.gmra.mxu0 %v1773
      %v2945 = vpop.f32.mrf.mxu0
      %v2946 = vadd.f32 %v2777, %v2945
      %v2947 = vpop.f32.mrf.mxu0
      %v2948 = vadd.f32 %v2779, %v2947
      %2949 = vmatmul.bf16.gmra.mxu0 %v1781
      %v2950 = vpop.f32.mrf.mxu0
      %v2951 = vadd.f32 %v2782, %v2950
      %v2952 = vpop.f32.mrf.mxu0
      %v2953 = vadd.f32 %v2784, %v2952
      %2954 = vmatmul.bf16.gmra.mxu0 %v1789
      %v2955 = vpop.f32.mrf.mxu0
      %v2956 = vadd.f32 %v2787, %v2955
      %v2957 = vpop.f32.mrf.mxu0
      %v2958 = vadd.f32 %v2789, %v2957
      %2959 = vmatmul.bf16.gmra.mxu0 %v1797
      %v2960 = vpop.f32.mrf.mxu0
      %v2961 = vadd.f32 %v2792, %v2960
      %v2962 = vpop.f32.mrf.mxu0
      %v2963 = vadd.f32 %v2794, %v2962
      %2964 = vmatmul.bf16.gmra.mxu0 %v1805
      %v2965 = vpop.f32.mrf.mxu0
      %v2966 = vadd.f32 %v2797, %v2965
      %v2967 = vpop.f32.mrf.mxu0
      %v2968 = vadd.f32 %v2799, %v2967
      %2969 = vmatmul.bf16.gmra.mxu0 %v1813
      %v2970 = vpop.f32.mrf.mxu0
      %v2971 = vadd.f32 %v2802, %v2970
      %v2972 = vpop.f32.mrf.mxu0
      %v2973 = vadd.f32 %v2804, %v2972
      %2974 = vmatmul.bf16.gmra.mxu0 %v1821
      %v2975 = vpop.f32.mrf.mxu0
      %v2976 = vadd.f32 %v2807, %v2975
      %v2977 = vpop.f32.mrf.mxu0
      %v2978 = vadd.f32 %v2809, %v2977
      %2979 = vmatmul.bf16.gmra.mxu0 %v1829
      %v2980 = vpop.f32.mrf.mxu0
      %v2981 = vadd.f32 %v2812, %v2980
      %v2982 = vpop.f32.mrf.mxu0
      %v2983 = vadd.f32 %v2814, %v2982
      %2984 = vmatmul.bf16.gmra.mxu0 %v1837
      %v2985 = vpop.f32.mrf.mxu0
      %v2986 = vadd.f32 %v2817, %v2985
      %v2987 = vpop.f32.mrf.mxu0
      %v2988 = vadd.f32 %v2819, %v2987
      %2989 = vdwg.mxu0
      %2990 = vmatpush.bf16.msra.mxu0 %v2386
      %2991 = vmatpush.bf16.msra.mxu0 %v2385
      %2992 = vmatpush.bf16.msra.mxu0 %v2384
      %2993 = vmatpush.bf16.msra.mxu0 %v2383
      %2994 = vmatpush.bf16.msra.mxu0 %v2382
      %2995 = vmatpush.bf16.msra.mxu0 %v2381
      %2996 = vmatpush.bf16.msra.mxu0 %v2380
      %2997 = vmatpush.bf16.msra.mxu0 %v2379
      %2998 = vmatmul.bf16.gmra.mxu0 %v1590
      %v2999 = vpop.f32.mrf.mxu0
      %v3000 = vadd.f32 %v2831, %v2999
      %v3001 = vpop.f32.mrf.mxu0
      %v3002 = vadd.f32 %v2833, %v3001
      %3003 = vmatmul.bf16.gmra.mxu0 %v1598
      %v3004 = vpop.f32.mrf.mxu0
      %v3005 = vadd.f32 %v2836, %v3004
      %v3006 = vpop.f32.mrf.mxu0
      %v3007 = vadd.f32 %v2838, %v3006
      %3008 = vmatmul.bf16.gmra.mxu0 %v1606
      %v3009 = vpop.f32.mrf.mxu0
      %v3010 = vadd.f32 %v2841, %v3009
      %v3011 = vpop.f32.mrf.mxu0
      %v3012 = vadd.f32 %v2843, %v3011
      %3013 = vmatmul.bf16.gmra.mxu0 %v1614
      %v3014 = vpop.f32.mrf.mxu0
      %v3015 = vadd.f32 %v2846, %v3014
      %v3016 = vpop.f32.mrf.mxu0
      %v3017 = vadd.f32 %v2848, %v3016
      %3018 = vmatmul.bf16.gmra.mxu0 %v1622
      %v3019 = vpop.f32.mrf.mxu0
      %v3020 = vadd.f32 %v2851, %v3019
      %v3021 = vpop.f32.mrf.mxu0
      %v3022 = vadd.f32 %v2853, %v3021
      %3023 = vmatmul.bf16.gmra.mxu0 %v1630
      %v3024 = vpop.f32.mrf.mxu0
      %v3025 = vadd.f32 %v2856, %v3024
      %v3026 = vpop.f32.mrf.mxu0
      %v3027 = vadd.f32 %v2858, %v3026
      %3028 = vmatmul.bf16.gmra.mxu0 %v1638
      %v3029 = vpop.f32.mrf.mxu0
      %v3030 = vadd.f32 %v2861, %v3029
      %v3031 = vpop.f32.mrf.mxu0
      %v3032 = vadd.f32 %v2863, %v3031
      %3033 = vmatmul.bf16.gmra.mxu0 %v1646
      %v3034 = vpop.f32.mrf.mxu0
      %v3035 = vadd.f32 %v2866, %v3034
      %v3036 = vpop.f32.mrf.mxu0
      %v3037 = vadd.f32 %v2868, %v3036
      %3038 = vmatmul.bf16.gmra.mxu0 %v1654
      %v3039 = vpop.f32.mrf.mxu0
      %v3040 = vadd.f32 %v2871, %v3039
      %v3041 = vpop.f32.mrf.mxu0
      %v3042 = vadd.f32 %v2873, %v3041
      %3043 = vmatmul.bf16.gmra.mxu0 %v1662
      %v3044 = vpop.f32.mrf.mxu0
      %v3045 = vadd.f32 %v2876, %v3044
      %v3046 = vpop.f32.mrf.mxu0
      %v3047 = vadd.f32 %v2878, %v3046
      %3048 = vmatmul.bf16.gmra.mxu0 %v1670
      %v3049 = vpop.f32.mrf.mxu0
      %v3050 = vadd.f32 %v2881, %v3049
      %v3051 = vpop.f32.mrf.mxu0
      %v3052 = vadd.f32 %v2883, %v3051
      %3053 = vmatmul.bf16.gmra.mxu0 %v1678
      %v3054 = vpop.f32.mrf.mxu0
      %v3055 = vadd.f32 %v2886, %v3054
      %v3056 = vpop.f32.mrf.mxu0
      %v3057 = vadd.f32 %v2888, %v3056
      %3058 = vmatmul.bf16.gmra.mxu0 %v1686
      %v3059 = vpop.f32.mrf.mxu0
      %v3060 = vadd.f32 %v2891, %v3059
      %v3061 = vpop.f32.mrf.mxu0
      %v3062 = vadd.f32 %v2893, %v3061
      %3063 = vmatmul.bf16.gmra.mxu0 %v1694
      %v3064 = vpop.f32.mrf.mxu0
      %v3065 = vadd.f32 %v2896, %v3064
      %v3066 = vpop.f32.mrf.mxu0
      %v3067 = vadd.f32 %v2898, %v3066
      %3068 = vmatmul.bf16.gmra.mxu0 %v1702
      %v3069 = vpop.f32.mrf.mxu0
      %v3070 = vadd.f32 %v2901, %v3069
      %v3071 = vpop.f32.mrf.mxu0
      %v3072 = vadd.f32 %v2903, %v3071
      %3073 = vmatmul.bf16.gmra.mxu0 %v1710
      %v3074 = vpop.f32.mrf.mxu0
      %v3075 = vadd.f32 %v2906, %v3074
      %v3076 = vpop.f32.mrf.mxu0
      %v3077 = vadd.f32 %v2908, %v3076
      %3078 = vmatmul.bf16.gmra.mxu0 %v1718
      %v3079 = vpop.f32.mrf.mxu0
      %v3080 = vadd.f32 %v2911, %v3079
      %v3081 = vpop.f32.mrf.mxu0
      %v3082 = vadd.f32 %v2913, %v3081
      %3083 = vmatmul.bf16.gmra.mxu0 %v1726
      %v3084 = vpop.f32.mrf.mxu0
      %v3085 = vadd.f32 %v2916, %v3084
      %v3086 = vpop.f32.mrf.mxu0
      %v3087 = vadd.f32 %v2918, %v3086
      %3088 = vmatmul.bf16.gmra.mxu0 %v1734
      %v3089 = vpop.f32.mrf.mxu0
      %v3090 = vadd.f32 %v2921, %v3089
      %v3091 = vpop.f32.mrf.mxu0
      %v3092 = vadd.f32 %v2923, %v3091
      %3093 = vmatmul.bf16.gmra.mxu0 %v1742
      %v3094 = vpop.f32.mrf.mxu0
      %v3095 = vadd.f32 %v2926, %v3094
      %v3096 = vpop.f32.mrf.mxu0
      %v3097 = vadd.f32 %v2928, %v3096
      %3098 = vmatmul.bf16.gmra.mxu0 %v1750
      %v3099 = vpop.f32.mrf.mxu0
      %v3100 = vadd.f32 %v2931, %v3099
      %v3101 = vpop.f32.mrf.mxu0
      %v3102 = vadd.f32 %v2933, %v3101
      %3103 = vmatmul.bf16.gmra.mxu0 %v1758
      %v3104 = vpop.f32.mrf.mxu0
      %v3105 = vadd.f32 %v2936, %v3104
      %v3106 = vpop.f32.mrf.mxu0
      %v3107 = vadd.f32 %v2938, %v3106
      %3108 = vmatmul.bf16.gmra.mxu0 %v1766
      %v3109 = vpop.f32.mrf.mxu0
      %v3110 = vadd.f32 %v2941, %v3109
      %v3111 = vpop.f32.mrf.mxu0
      %v3112 = vadd.f32 %v2943, %v3111
      %3113 = vmatmul.bf16.gmra.mxu0 %v1774
      %v3114 = vpop.f32.mrf.mxu0
      %v3115 = vadd.f32 %v2946, %v3114
      %v3116 = vpop.f32.mrf.mxu0
      %v3117 = vadd.f32 %v2948, %v3116
      %3118 = vmatmul.bf16.gmra.mxu0 %v1782
      %v3119 = vpop.f32.mrf.mxu0
      %v3120 = vadd.f32 %v2951, %v3119
      %v3121 = vpop.f32.mrf.mxu0
      %v3122 = vadd.f32 %v2953, %v3121
      %3123 = vmatmul.bf16.gmra.mxu0 %v1790
      %v3124 = vpop.f32.mrf.mxu0
      %v3125 = vadd.f32 %v2956, %v3124
      %v3126 = vpop.f32.mrf.mxu0
      %v3127 = vadd.f32 %v2958, %v3126
      %3128 = vmatmul.bf16.gmra.mxu0 %v1798
      %v3129 = vpop.f32.mrf.mxu0
      %v3130 = vadd.f32 %v2961, %v3129
      %v3131 = vpop.f32.mrf.mxu0
      %v3132 = vadd.f32 %v2963, %v3131
      %3133 = vmatmul.bf16.gmra.mxu0 %v1806
      %v3134 = vpop.f32.mrf.mxu0
      %v3135 = vadd.f32 %v2966, %v3134
      %v3136 = vpop.f32.mrf.mxu0
      %v3137 = vadd.f32 %v2968, %v3136
      %3138 = vmatmul.bf16.gmra.mxu0 %v1814
      %v3139 = vpop.f32.mrf.mxu0
      %v3140 = vadd.f32 %v2971, %v3139
      %v3141 = vpop.f32.mrf.mxu0
      %v3142 = vadd.f32 %v2973, %v3141
      %3143 = vmatmul.bf16.gmra.mxu0 %v1822
      %v3144 = vpop.f32.mrf.mxu0
      %v3145 = vadd.f32 %v2976, %v3144
      %v3146 = vpop.f32.mrf.mxu0
      %v3147 = vadd.f32 %v2978, %v3146
      %3148 = vmatmul.bf16.gmra.mxu0 %v1830
      %v3149 = vpop.f32.mrf.mxu0
      %v3150 = vadd.f32 %v2981, %v3149
      %v3151 = vpop.f32.mrf.mxu0
      %v3152 = vadd.f32 %v2983, %v3151
      %3153 = vmatmul.bf16.gmra.mxu0 %v1838
      %v3154 = vpop.f32.mrf.mxu0
      %v3155 = vadd.f32 %v2986, %v3154
      %v3156 = vpop.f32.mrf.mxu0
      %v3157 = vadd.f32 %v2988, %v3156
      %3158 = vdwg.mxu0
      %3159 = vmatpush.bf16.msra.mxu0 %v2394
      %3160 = vmatpush.bf16.msra.mxu0 %v2393
      %3161 = vmatpush.bf16.msra.mxu0 %v2392
      %3162 = vmatpush.bf16.msra.mxu0 %v2391
      %3163 = vmatpush.bf16.msra.mxu0 %v2390
      %3164 = vmatpush.bf16.msra.mxu0 %v2389
      %3165 = vmatpush.bf16.msra.mxu0 %v2388
      %3166 = vmatpush.bf16.msra.mxu0 %v2387
      %3167 = vmatmul.bf16.gmra.mxu0 %v1591
      %v3168 = vpop.f32.mrf.mxu0
      %v3169 = vadd.f32 %v3000, %v3168
      %v3170 = vpop.f32.mrf.mxu0
      %v3171 = vadd.f32 %v3002, %v3170
      %3172 = vmatmul.bf16.gmra.mxu0 %v1599
      %v3173 = vpop.f32.mrf.mxu0
      %v3174 = vadd.f32 %v3005, %v3173
      %v3175 = vpop.f32.mrf.mxu0
      %v3176 = vadd.f32 %v3007, %v3175
      %3177 = vmatmul.bf16.gmra.mxu0 %v1607
      %v3178 = vpop.f32.mrf.mxu0
      %v3179 = vadd.f32 %v3010, %v3178
      %v3180 = vpop.f32.mrf.mxu0
      %v3181 = vadd.f32 %v3012, %v3180
      %3182 = vmatmul.bf16.gmra.mxu0 %v1615
      %v3183 = vpop.f32.mrf.mxu0
      %v3184 = vadd.f32 %v3015, %v3183
      %v3185 = vpop.f32.mrf.mxu0
      %v3186 = vadd.f32 %v3017, %v3185
      %3187 = vmatmul.bf16.gmra.mxu0 %v1623
      %v3188 = vpop.f32.mrf.mxu0
      %v3189 = vadd.f32 %v3020, %v3188
      %v3190 = vpop.f32.mrf.mxu0
      %v3191 = vadd.f32 %v3022, %v3190
      %3192 = vmatmul.bf16.gmra.mxu0 %v1631
      %v3193 = vpop.f32.mrf.mxu0
      %v3194 = vadd.f32 %v3025, %v3193
      %v3195 = vpop.f32.mrf.mxu0
      %v3196 = vadd.f32 %v3027, %v3195
      %3197 = vmatmul.bf16.gmra.mxu0 %v1639
      %v3198 = vpop.f32.mrf.mxu0
      %v3199 = vadd.f32 %v3030, %v3198
      %v3200 = vpop.f32.mrf.mxu0
      %v3201 = vadd.f32 %v3032, %v3200
      %3202 = vmatmul.bf16.gmra.mxu0 %v1647
      %v3203 = vpop.f32.mrf.mxu0
      %v3204 = vadd.f32 %v3035, %v3203
      %v3205 = vpop.f32.mrf.mxu0
      %v3206 = vadd.f32 %v3037, %v3205
      %3207 = vmatmul.bf16.gmra.mxu0 %v1655
      %v3208 = vpop.f32.mrf.mxu0
      %v3209 = vadd.f32 %v3040, %v3208
      %v3210 = vpop.f32.mrf.mxu0
      %v3211 = vadd.f32 %v3042, %v3210
      %3212 = vmatmul.bf16.gmra.mxu0 %v1663
      %v3213 = vpop.f32.mrf.mxu0
      %v3214 = vadd.f32 %v3045, %v3213
      %v3215 = vpop.f32.mrf.mxu0
      %v3216 = vadd.f32 %v3047, %v3215
      %3217 = vmatmul.bf16.gmra.mxu0 %v1671
      %v3218 = vpop.f32.mrf.mxu0
      %v3219 = vadd.f32 %v3050, %v3218
      %v3220 = vpop.f32.mrf.mxu0
      %v3221 = vadd.f32 %v3052, %v3220
      %3222 = vmatmul.bf16.gmra.mxu0 %v1679
      %v3223 = vpop.f32.mrf.mxu0
      %v3224 = vadd.f32 %v3055, %v3223
      %v3225 = vpop.f32.mrf.mxu0
      %v3226 = vadd.f32 %v3057, %v3225
      %3227 = vmatmul.bf16.gmra.mxu0 %v1687
      %v3228 = vpop.f32.mrf.mxu0
      %v3229 = vadd.f32 %v3060, %v3228
      %v3230 = vpop.f32.mrf.mxu0
      %v3231 = vadd.f32 %v3062, %v3230
      %3232 = vmatmul.bf16.gmra.mxu0 %v1695
      %v3233 = vpop.f32.mrf.mxu0
      %v3234 = vadd.f32 %v3065, %v3233
      %v3235 = vpop.f32.mrf.mxu0
      %v3236 = vadd.f32 %v3067, %v3235
      %3237 = vmatmul.bf16.gmra.mxu0 %v1703
      %v3238 = vpop.f32.mrf.mxu0
      %v3239 = vadd.f32 %v3070, %v3238
      %v3240 = vpop.f32.mrf.mxu0
      %v3241 = vadd.f32 %v3072, %v3240
      %3242 = vmatmul.bf16.gmra.mxu0 %v1711
      %v3243 = vpop.f32.mrf.mxu0
      %v3244 = vadd.f32 %v3075, %v3243
      %v3245 = vpop.f32.mrf.mxu0
      %v3246 = vadd.f32 %v3077, %v3245
      %3247 = vmatmul.bf16.gmra.mxu0 %v1719
      %v3248 = vpop.f32.mrf.mxu0
      %v3249 = vadd.f32 %v3080, %v3248
      %v3250 = vpop.f32.mrf.mxu0
      %v3251 = vadd.f32 %v3082, %v3250
      %3252 = vmatmul.bf16.gmra.mxu0 %v1727
      %v3253 = vpop.f32.mrf.mxu0
      %v3254 = vadd.f32 %v3085, %v3253
      %v3255 = vpop.f32.mrf.mxu0
      %v3256 = vadd.f32 %v3087, %v3255
      %3257 = vmatmul.bf16.gmra.mxu0 %v1735
      %v3258 = vpop.f32.mrf.mxu0
      %v3259 = vadd.f32 %v3090, %v3258
      %v3260 = vpop.f32.mrf.mxu0
      %v3261 = vadd.f32 %v3092, %v3260
      %3262 = vmatmul.bf16.gmra.mxu0 %v1743
      %v3263 = vpop.f32.mrf.mxu0
      %v3264 = vadd.f32 %v3095, %v3263
      %v3265 = vpop.f32.mrf.mxu0
      %v3266 = vadd.f32 %v3097, %v3265
      %3267 = vmatmul.bf16.gmra.mxu0 %v1751
      %v3268 = vpop.f32.mrf.mxu0
      %v3269 = vadd.f32 %v3100, %v3268
      %v3270 = vpop.f32.mrf.mxu0
      %v3271 = vadd.f32 %v3102, %v3270
      %3272 = vmatmul.bf16.gmra.mxu0 %v1759
      %v3273 = vpop.f32.mrf.mxu0
      %v3274 = vadd.f32 %v3105, %v3273
      %v3275 = vpop.f32.mrf.mxu0
      %v3276 = vadd.f32 %v3107, %v3275
      %3277 = vmatmul.bf16.gmra.mxu0 %v1767
      %v3278 = vpop.f32.mrf.mxu0
      %v3279 = vadd.f32 %v3110, %v3278
      %v3280 = vpop.f32.mrf.mxu0
      %v3281 = vadd.f32 %v3112, %v3280
      %3282 = vmatmul.bf16.gmra.mxu0 %v1775
      %v3283 = vpop.f32.mrf.mxu0
      %v3284 = vadd.f32 %v3115, %v3283
      %v3285 = vpop.f32.mrf.mxu0
      %v3286 = vadd.f32 %v3117, %v3285
      %3287 = vmatmul.bf16.gmra.mxu0 %v1783
      %v3288 = vpop.f32.mrf.mxu0
      %v3289 = vadd.f32 %v3120, %v3288
      %v3290 = vpop.f32.mrf.mxu0
      %v3291 = vadd.f32 %v3122, %v3290
      %3292 = vmatmul.bf16.gmra.mxu0 %v1791
      %v3293 = vpop.f32.mrf.mxu0
      %v3294 = vadd.f32 %v3125, %v3293
      %v3295 = vpop.f32.mrf.mxu0
      %v3296 = vadd.f32 %v3127, %v3295
      %3297 = vmatmul.bf16.gmra.mxu0 %v1799
      %v3298 = vpop.f32.mrf.mxu0
      %v3299 = vadd.f32 %v3130, %v3298
      %v3300 = vpop.f32.mrf.mxu0
      %v3301 = vadd.f32 %v3132, %v3300
      %3302 = vmatmul.bf16.gmra.mxu0 %v1807
      %v3303 = vpop.f32.mrf.mxu0
      %v3304 = vadd.f32 %v3135, %v3303
      %v3305 = vpop.f32.mrf.mxu0
      %v3306 = vadd.f32 %v3137, %v3305
      %3307 = vmatmul.bf16.gmra.mxu0 %v1815
      %v3308 = vpop.f32.mrf.mxu0
      %v3309 = vadd.f32 %v3140, %v3308
      %v3310 = vpop.f32.mrf.mxu0
      %v3311 = vadd.f32 %v3142, %v3310
      %3312 = vmatmul.bf16.gmra.mxu0 %v1823
      %v3313 = vpop.f32.mrf.mxu0
      %v3314 = vadd.f32 %v3145, %v3313
      %v3315 = vpop.f32.mrf.mxu0
      %v3316 = vadd.f32 %v3147, %v3315
      %3317 = vmatmul.bf16.gmra.mxu0 %v1831
      %v3318 = vpop.f32.mrf.mxu0
      %v3319 = vadd.f32 %v3150, %v3318
      %v3320 = vpop.f32.mrf.mxu0
      %v3321 = vadd.f32 %v3152, %v3320
      %3322 = vmatmul.bf16.gmra.mxu0 %v1839
      %v3323 = vpop.f32.mrf.mxu0
      %v3324 = vadd.f32 %v3155, %v3323
      %v3325 = vpop.f32.mrf.mxu0
      %v3326 = vadd.f32 %v3157, %v3325
      %3327 = vdwg.mxu0
      %3328 = vmatpush.bf16.msra.mxu0 %v2402
      %3329 = vmatpush.bf16.msra.mxu0 %v2401
      %3330 = vmatpush.bf16.msra.mxu0 %v2400
      %3331 = vmatpush.bf16.msra.mxu0 %v2399
      %3332 = vmatpush.bf16.msra.mxu0 %v2398
      %3333 = vmatpush.bf16.msra.mxu0 %v2397
      %3334 = vmatpush.bf16.msra.mxu0 %v2396
      %3335 = vmatpush.bf16.msra.mxu0 %v2395
      %3336 = vmatmul.bf16.gmra.mxu0 %v1592
      %v3337 = vpop.f32.mrf.mxu0
      %v3338 = vadd.f32 %v3169, %v3337
      %v3339 = vpop.f32.mrf.mxu0
      %v3340 = vadd.f32 %v3171, %v3339
      %3341 = vmatmul.bf16.gmra.mxu0 %v1600
      %v3342 = vpop.f32.mrf.mxu0
      %v3343 = vadd.f32 %v3174, %v3342
      %v3344 = vpop.f32.mrf.mxu0
      %v3345 = vadd.f32 %v3176, %v3344
      %3346 = vmatmul.bf16.gmra.mxu0 %v1608
      %v3347 = vpop.f32.mrf.mxu0
      %v3348 = vadd.f32 %v3179, %v3347
      %v3349 = vpop.f32.mrf.mxu0
      %v3350 = vadd.f32 %v3181, %v3349
      %3351 = vmatmul.bf16.gmra.mxu0 %v1616
      %v3352 = vpop.f32.mrf.mxu0
      %v3353 = vadd.f32 %v3184, %v3352
      %v3354 = vpop.f32.mrf.mxu0
      %v3355 = vadd.f32 %v3186, %v3354
      %3356 = vmatmul.bf16.gmra.mxu0 %v1624
      %v3357 = vpop.f32.mrf.mxu0
      %v3358 = vadd.f32 %v3189, %v3357
      %v3359 = vpop.f32.mrf.mxu0
      %v3360 = vadd.f32 %v3191, %v3359
      %3361 = vmatmul.bf16.gmra.mxu0 %v1632
      %v3362 = vpop.f32.mrf.mxu0
      %v3363 = vadd.f32 %v3194, %v3362
      %v3364 = vpop.f32.mrf.mxu0
      %v3365 = vadd.f32 %v3196, %v3364
      %3366 = vmatmul.bf16.gmra.mxu0 %v1640
      %v3367 = vpop.f32.mrf.mxu0
      %v3368 = vadd.f32 %v3199, %v3367
      %v3369 = vpop.f32.mrf.mxu0
      %v3370 = vadd.f32 %v3201, %v3369
      %3371 = vmatmul.bf16.gmra.mxu0 %v1648
      %v3372 = vpop.f32.mrf.mxu0
      %v3373 = vadd.f32 %v3204, %v3372
      %v3374 = vpop.f32.mrf.mxu0
      %v3375 = vadd.f32 %v3206, %v3374
      %3376 = vmatmul.bf16.gmra.mxu0 %v1656
      %v3377 = vpop.f32.mrf.mxu0
      %v3378 = vadd.f32 %v3209, %v3377
      %v3379 = vpop.f32.mrf.mxu0
      %v3380 = vadd.f32 %v3211, %v3379
      %3381 = vmatmul.bf16.gmra.mxu0 %v1664
      %v3382 = vpop.f32.mrf.mxu0
      %v3383 = vadd.f32 %v3214, %v3382
      %v3384 = vpop.f32.mrf.mxu0
      %v3385 = vadd.f32 %v3216, %v3384
      %3386 = vmatmul.bf16.gmra.mxu0 %v1672
      %v3387 = vpop.f32.mrf.mxu0
      %v3388 = vadd.f32 %v3219, %v3387
      %v3389 = vpop.f32.mrf.mxu0
      %v3390 = vadd.f32 %v3221, %v3389
      %3391 = vmatmul.bf16.gmra.mxu0 %v1680
      %v3392 = vpop.f32.mrf.mxu0
      %v3393 = vadd.f32 %v3224, %v3392
      %v3394 = vpop.f32.mrf.mxu0
      %v3395 = vadd.f32 %v3226, %v3394
      %3396 = vmatmul.bf16.gmra.mxu0 %v1688
      %v3397 = vpop.f32.mrf.mxu0
      %v3398 = vadd.f32 %v3229, %v3397
      %v3399 = vpop.f32.mrf.mxu0
      %v3400 = vadd.f32 %v3231, %v3399
      %3401 = vmatmul.bf16.gmra.mxu0 %v1696
      %v3402 = vpop.f32.mrf.mxu0
      %v3403 = vadd.f32 %v3234, %v3402
      %v3404 = vpop.f32.mrf.mxu0
      %v3405 = vadd.f32 %v3236, %v3404
      %3406 = vmatmul.bf16.gmra.mxu0 %v1704
      %v3407 = vpop.f32.mrf.mxu0
      %v3408 = vadd.f32 %v3239, %v3407
      %v3409 = vpop.f32.mrf.mxu0
      %v3410 = vadd.f32 %v3241, %v3409
      %3411 = vmatmul.bf16.gmra.mxu0 %v1712
      %v3412 = vpop.f32.mrf.mxu0
      %v3413 = vadd.f32 %v3244, %v3412
      %v3414 = vpop.f32.mrf.mxu0
      %v3415 = vadd.f32 %v3246, %v3414
      %3416 = vmatmul.bf16.gmra.mxu0 %v1720
      %v3417 = vpop.f32.mrf.mxu0
      %v3418 = vadd.f32 %v3249, %v3417
      %v3419 = vpop.f32.mrf.mxu0
      %v3420 = vadd.f32 %v3251, %v3419
      %3421 = vmatmul.bf16.gmra.mxu0 %v1728
      %v3422 = vpop.f32.mrf.mxu0
      %v3423 = vadd.f32 %v3254, %v3422
      %v3424 = vpop.f32.mrf.mxu0
      %v3425 = vadd.f32 %v3256, %v3424
      %3426 = vmatmul.bf16.gmra.mxu0 %v1736
      %v3427 = vpop.f32.mrf.mxu0
      %v3428 = vadd.f32 %v3259, %v3427
      %v3429 = vpop.f32.mrf.mxu0
      %v3430 = vadd.f32 %v3261, %v3429
      %3431 = vmatmul.bf16.gmra.mxu0 %v1744
      %v3432 = vpop.f32.mrf.mxu0
      %v3433 = vadd.f32 %v3264, %v3432
      %v3434 = vpop.f32.mrf.mxu0
      %v3435 = vadd.f32 %v3266, %v3434
      %3436 = vmatmul.bf16.gmra.mxu0 %v1752
      %v3437 = vpop.f32.mrf.mxu0
      %v3438 = vadd.f32 %v3269, %v3437
      %v3439 = vpop.f32.mrf.mxu0
      %v3440 = vadd.f32 %v3271, %v3439
      %3441 = vmatmul.bf16.gmra.mxu0 %v1760
      %v3442 = vpop.f32.mrf.mxu0
      %v3443 = vadd.f32 %v3274, %v3442
      %v3444 = vpop.f32.mrf.mxu0
      %v3445 = vadd.f32 %v3276, %v3444
      %3446 = vmatmul.bf16.gmra.mxu0 %v1768
      %v3447 = vpop.f32.mrf.mxu0
      %v3448 = vadd.f32 %v3279, %v3447
      %v3449 = vpop.f32.mrf.mxu0
      %v3450 = vadd.f32 %v3281, %v3449
      %3451 = vmatmul.bf16.gmra.mxu0 %v1776
      %v3452 = vpop.f32.mrf.mxu0
      %v3453 = vadd.f32 %v3284, %v3452
      %v3454 = vpop.f32.mrf.mxu0
      %v3455 = vadd.f32 %v3286, %v3454
      %3456 = vmatmul.bf16.gmra.mxu0 %v1784
      %v3457 = vpop.f32.mrf.mxu0
      %v3458 = vadd.f32 %v3289, %v3457
      %v3459 = vpop.f32.mrf.mxu0
      %v3460 = vadd.f32 %v3291, %v3459
      %3461 = vmatmul.bf16.gmra.mxu0 %v1792
      %v3462 = vpop.f32.mrf.mxu0
      %v3463 = vadd.f32 %v3294, %v3462
      %v3464 = vpop.f32.mrf.mxu0
      %v3465 = vadd.f32 %v3296, %v3464
      %3466 = vmatmul.bf16.gmra.mxu0 %v1800
      %v3467 = vpop.f32.mrf.mxu0
      %v3468 = vadd.f32 %v3299, %v3467
      %v3469 = vpop.f32.mrf.mxu0
      %v3470 = vadd.f32 %v3301, %v3469
      %3471 = vmatmul.bf16.gmra.mxu0 %v1808
      %v3472 = vpop.f32.mrf.mxu0
      %v3473 = vadd.f32 %v3304, %v3472
      %v3474 = vpop.f32.mrf.mxu0
      %v3475 = vadd.f32 %v3306, %v3474
      %3476 = vmatmul.bf16.gmra.mxu0 %v1816
      %v3477 = vpop.f32.mrf.mxu0
      %v3478 = vadd.f32 %v3309, %v3477
      %v3479 = vpop.f32.mrf.mxu0
      %v3480 = vadd.f32 %v3311, %v3479
      %3481 = vmatmul.bf16.gmra.mxu0 %v1824
      %v3482 = vpop.f32.mrf.mxu0
      %v3483 = vadd.f32 %v3314, %v3482
      %v3484 = vpop.f32.mrf.mxu0
      %v3485 = vadd.f32 %v3316, %v3484
      %3486 = vmatmul.bf16.gmra.mxu0 %v1832
      %v3487 = vpop.f32.mrf.mxu0
      %v3488 = vadd.f32 %v3319, %v3487
      %v3489 = vpop.f32.mrf.mxu0
      %v3490 = vadd.f32 %v3321, %v3489
      %3491 = vmatmul.bf16.gmra.mxu0 %v1840
      %v3492 = vpop.f32.mrf.mxu0
      %v3493 = vadd.f32 %v3324, %v3492
      %v3494 = vpop.f32.mrf.mxu0
      %v3495 = vadd.f32 %v3326, %v3494
      %3496 = vdwg.mxu0
      %3497 = vmatpush.bf16.msra.mxu0 %v2410
      %3498 = vmatpush.bf16.msra.mxu0 %v2409
      %3499 = vmatpush.bf16.msra.mxu0 %v2408
      %3500 = vmatpush.bf16.msra.mxu0 %v2407
      %3501 = vmatpush.bf16.msra.mxu0 %v2406
      %3502 = vmatpush.bf16.msra.mxu0 %v2405
      %3503 = vmatpush.bf16.msra.mxu0 %v2404
      %3504 = vmatpush.bf16.msra.mxu0 %v2403
      %3505 = vmatmul.bf16.gmra.mxu0 %v1593
      %v3506 = vpop.f32.mrf.mxu0
      %v3507 = vadd.f32 %v3338, %v3506
      %v3508 = vpop.f32.mrf.mxu0
      %v3509 = vadd.f32 %v3340, %v3508
      %3510 = vmatmul.bf16.gmra.mxu0 %v1601
      %v3511 = vpop.f32.mrf.mxu0
      %v3512 = vadd.f32 %v3343, %v3511
      %v3513 = vpop.f32.mrf.mxu0
      %v3514 = vadd.f32 %v3345, %v3513
      %3515 = vmatmul.bf16.gmra.mxu0 %v1609
      %v3516 = vpop.f32.mrf.mxu0
      %v3517 = vadd.f32 %v3348, %v3516
      %v3518 = vpop.f32.mrf.mxu0
      %v3519 = vadd.f32 %v3350, %v3518
      %3520 = vmatmul.bf16.gmra.mxu0 %v1617
      %v3521 = vpop.f32.mrf.mxu0
      %v3522 = vadd.f32 %v3353, %v3521
      %v3523 = vpop.f32.mrf.mxu0
      %v3524 = vadd.f32 %v3355, %v3523
      %3525 = vmatmul.bf16.gmra.mxu0 %v1625
      %v3526 = vpop.f32.mrf.mxu0
      %v3527 = vadd.f32 %v3358, %v3526
      %v3528 = vpop.f32.mrf.mxu0
      %v3529 = vadd.f32 %v3360, %v3528
      %3530 = vmatmul.bf16.gmra.mxu0 %v1633
      %v3531 = vpop.f32.mrf.mxu0
      %v3532 = vadd.f32 %v3363, %v3531
      %v3533 = vpop.f32.mrf.mxu0
      %v3534 = vadd.f32 %v3365, %v3533
      %3535 = vmatmul.bf16.gmra.mxu0 %v1641
      %v3536 = vpop.f32.mrf.mxu0
      %v3537 = vadd.f32 %v3368, %v3536
      %v3538 = vpop.f32.mrf.mxu0
      %v3539 = vadd.f32 %v3370, %v3538
      %3540 = vmatmul.bf16.gmra.mxu0 %v1649
      %v3541 = vpop.f32.mrf.mxu0
      %v3542 = vadd.f32 %v3373, %v3541
      %v3543 = vpop.f32.mrf.mxu0
      %v3544 = vadd.f32 %v3375, %v3543
      %3545 = vmatmul.bf16.gmra.mxu0 %v1657
      %v3546 = vpop.f32.mrf.mxu0
      %v3547 = vadd.f32 %v3378, %v3546
      %v3548 = vpop.f32.mrf.mxu0
      %v3549 = vadd.f32 %v3380, %v3548
      %3550 = vmatmul.bf16.gmra.mxu0 %v1665
      %v3551 = vpop.f32.mrf.mxu0
      %v3552 = vadd.f32 %v3383, %v3551
      %v3553 = vpop.f32.mrf.mxu0
      %v3554 = vadd.f32 %v3385, %v3553
      %3555 = vmatmul.bf16.gmra.mxu0 %v1673
      %v3556 = vpop.f32.mrf.mxu0
      %v3557 = vadd.f32 %v3388, %v3556
      %v3558 = vpop.f32.mrf.mxu0
      %v3559 = vadd.f32 %v3390, %v3558
      %3560 = vmatmul.bf16.gmra.mxu0 %v1681
      %v3561 = vpop.f32.mrf.mxu0
      %v3562 = vadd.f32 %v3393, %v3561
      %v3563 = vpop.f32.mrf.mxu0
      %v3564 = vadd.f32 %v3395, %v3563
      %3565 = vmatmul.bf16.gmra.mxu0 %v1689
      %v3566 = vpop.f32.mrf.mxu0
      %v3567 = vadd.f32 %v3398, %v3566
      %v3568 = vpop.f32.mrf.mxu0
      %v3569 = vadd.f32 %v3400, %v3568
      %3570 = vmatmul.bf16.gmra.mxu0 %v1697
      %v3571 = vpop.f32.mrf.mxu0
      %v3572 = vadd.f32 %v3403, %v3571
      %v3573 = vpop.f32.mrf.mxu0
      %v3574 = vadd.f32 %v3405, %v3573
      %3575 = vmatmul.bf16.gmra.mxu0 %v1705
      %v3576 = vpop.f32.mrf.mxu0
      %v3577 = vadd.f32 %v3408, %v3576
      %v3578 = vpop.f32.mrf.mxu0
      %v3579 = vadd.f32 %v3410, %v3578
      %3580 = vmatmul.bf16.gmra.mxu0 %v1713
      %v3581 = vpop.f32.mrf.mxu0
      %v3582 = vadd.f32 %v3413, %v3581
      %v3583 = vpop.f32.mrf.mxu0
      %v3584 = vadd.f32 %v3415, %v3583
      %3585 = vmatmul.bf16.gmra.mxu0 %v1721
      %v3586 = vpop.f32.mrf.mxu0
      %v3587 = vadd.f32 %v3418, %v3586
      %v3588 = vpop.f32.mrf.mxu0
      %v3589 = vadd.f32 %v3420, %v3588
      %3590 = vmatmul.bf16.gmra.mxu0 %v1729
      %v3591 = vpop.f32.mrf.mxu0
      %v3592 = vadd.f32 %v3423, %v3591
      %v3593 = vpop.f32.mrf.mxu0
      %v3594 = vadd.f32 %v3425, %v3593
      %3595 = vmatmul.bf16.gmra.mxu0 %v1737
      %v3596 = vpop.f32.mrf.mxu0
      %v3597 = vadd.f32 %v3428, %v3596
      %v3598 = vpop.f32.mrf.mxu0
      %v3599 = vadd.f32 %v3430, %v3598
      %3600 = vmatmul.bf16.gmra.mxu0 %v1745
      %v3601 = vpop.f32.mrf.mxu0
      %v3602 = vadd.f32 %v3433, %v3601
      %v3603 = vpop.f32.mrf.mxu0
      %v3604 = vadd.f32 %v3435, %v3603
      %3605 = vmatmul.bf16.gmra.mxu0 %v1753
      %v3606 = vpop.f32.mrf.mxu0
      %v3607 = vadd.f32 %v3438, %v3606
      %v3608 = vpop.f32.mrf.mxu0
      %v3609 = vadd.f32 %v3440, %v3608
      %3610 = vmatmul.bf16.gmra.mxu0 %v1761
      %v3611 = vpop.f32.mrf.mxu0
      %v3612 = vadd.f32 %v3443, %v3611
      %v3613 = vpop.f32.mrf.mxu0
      %v3614 = vadd.f32 %v3445, %v3613
      %3615 = vmatmul.bf16.gmra.mxu0 %v1769
      %v3616 = vpop.f32.mrf.mxu0
      %v3617 = vadd.f32 %v3448, %v3616
      %v3618 = vpop.f32.mrf.mxu0
      %v3619 = vadd.f32 %v3450, %v3618
      %3620 = vmatmul.bf16.gmra.mxu0 %v1777
      %v3621 = vpop.f32.mrf.mxu0
      %v3622 = vadd.f32 %v3453, %v3621
      %v3623 = vpop.f32.mrf.mxu0
      %v3624 = vadd.f32 %v3455, %v3623
      %3625 = vmatmul.bf16.gmra.mxu0 %v1785
      %v3626 = vpop.f32.mrf.mxu0
      %v3627 = vadd.f32 %v3458, %v3626
      %v3628 = vpop.f32.mrf.mxu0
      %v3629 = vadd.f32 %v3460, %v3628
      %3630 = vmatmul.bf16.gmra.mxu0 %v1793
      %v3631 = vpop.f32.mrf.mxu0
      %v3632 = vadd.f32 %v3463, %v3631
      %v3633 = vpop.f32.mrf.mxu0
      %v3634 = vadd.f32 %v3465, %v3633
      %3635 = vmatmul.bf16.gmra.mxu0 %v1801
      %v3636 = vpop.f32.mrf.mxu0
      %v3637 = vadd.f32 %v3468, %v3636
      %v3638 = vpop.f32.mrf.mxu0
      %v3639 = vadd.f32 %v3470, %v3638
      %3640 = vmatmul.bf16.gmra.mxu0 %v1809
      %v3641 = vpop.f32.mrf.mxu0
      %v3642 = vadd.f32 %v3473, %v3641
      %v3643 = vpop.f32.mrf.mxu0
      %v3644 = vadd.f32 %v3475, %v3643
      %3645 = vmatmul.bf16.gmra.mxu0 %v1817
      %v3646 = vpop.f32.mrf.mxu0
      %v3647 = vadd.f32 %v3478, %v3646
      %v3648 = vpop.f32.mrf.mxu0
      %v3649 = vadd.f32 %v3480, %v3648
      %3650 = vmatmul.bf16.gmra.mxu0 %v1825
      %v3651 = vpop.f32.mrf.mxu0
      %v3652 = vadd.f32 %v3483, %v3651
      %v3653 = vpop.f32.mrf.mxu0
      %v3654 = vadd.f32 %v3485, %v3653
      %3655 = vmatmul.bf16.gmra.mxu0 %v1833
      %v3656 = vpop.f32.mrf.mxu0
      %v3657 = vadd.f32 %v3488, %v3656
      %v3658 = vpop.f32.mrf.mxu0
      %v3659 = vadd.f32 %v3490, %v3658
      %3660 = vmatmul.bf16.gmra.mxu0 %v1841
      %v3661 = vpop.f32.mrf.mxu0
      %v3662 = vadd.f32 %v3493, %v3661
      %v3663 = vpop.f32.mrf.mxu0
      %v3664 = vadd.f32 %v3495, %v3663
      %3665 = vdwg.mxu0
      %3666 = vmatpush.bf16.msra.mxu0 %v2418
      %3667 = vmatpush.bf16.msra.mxu0 %v2417
      %3668 = vmatpush.bf16.msra.mxu0 %v2416
      %3669 = vmatpush.bf16.msra.mxu0 %v2415
      %3670 = vmatpush.bf16.msra.mxu0 %v2414
      %3671 = vmatpush.bf16.msra.mxu0 %v2413
      %3672 = vmatpush.bf16.msra.mxu0 %v2412
      %3673 = vmatpush.bf16.msra.mxu0 %v2411
      %3674 = vmatmul.bf16.gmra.mxu0 %v1594
      %v3675 = vpop.f32.mrf.mxu0
      %v3676 = vadd.f32 %v3507, %v3675
      %v3677 = vpop.f32.mrf.mxu0
      %v3678 = vadd.f32 %v3509, %v3677
      %3679 = vmatmul.bf16.gmra.mxu0 %v1602
      %v3680 = vpop.f32.mrf.mxu0
      %v3681 = vadd.f32 %v3512, %v3680
      %v3682 = vpop.f32.mrf.mxu0
      %v3683 = vadd.f32 %v3514, %v3682
      %3684 = vmatmul.bf16.gmra.mxu0 %v1610
      %v3685 = vpop.f32.mrf.mxu0
      %v3686 = vadd.f32 %v3517, %v3685
      %v3687 = vpop.f32.mrf.mxu0
      %v3688 = vadd.f32 %v3519, %v3687
      %3689 = vmatmul.bf16.gmra.mxu0 %v1618
      %v3690 = vpop.f32.mrf.mxu0
      %v3691 = vadd.f32 %v3522, %v3690
      %v3692 = vpop.f32.mrf.mxu0
      %v3693 = vadd.f32 %v3524, %v3692
      %3694 = vmatmul.bf16.gmra.mxu0 %v1626
      %v3695 = vpop.f32.mrf.mxu0
      %v3696 = vadd.f32 %v3527, %v3695
      %v3697 = vpop.f32.mrf.mxu0
      %v3698 = vadd.f32 %v3529, %v3697
      %3699 = vmatmul.bf16.gmra.mxu0 %v1634
      %v3700 = vpop.f32.mrf.mxu0
      %v3701 = vadd.f32 %v3532, %v3700
      %v3702 = vpop.f32.mrf.mxu0
      %v3703 = vadd.f32 %v3534, %v3702
      %3704 = vmatmul.bf16.gmra.mxu0 %v1642
      %v3705 = vpop.f32.mrf.mxu0
      %v3706 = vadd.f32 %v3537, %v3705
      %v3707 = vpop.f32.mrf.mxu0
      %v3708 = vadd.f32 %v3539, %v3707
      %3709 = vmatmul.bf16.gmra.mxu0 %v1650
      %v3710 = vpop.f32.mrf.mxu0
      %v3711 = vadd.f32 %v3542, %v3710
      %v3712 = vpop.f32.mrf.mxu0
      %v3713 = vadd.f32 %v3544, %v3712
      %3714 = vmatmul.bf16.gmra.mxu0 %v1658
      %v3715 = vpop.f32.mrf.mxu0
      %v3716 = vadd.f32 %v3547, %v3715
      %v3717 = vpop.f32.mrf.mxu0
      %v3718 = vadd.f32 %v3549, %v3717
      %3719 = vmatmul.bf16.gmra.mxu0 %v1666
      %v3720 = vpop.f32.mrf.mxu0
      %v3721 = vadd.f32 %v3552, %v3720
      %v3722 = vpop.f32.mrf.mxu0
      %v3723 = vadd.f32 %v3554, %v3722
      %3724 = vmatmul.bf16.gmra.mxu0 %v1674
      %v3725 = vpop.f32.mrf.mxu0
      %v3726 = vadd.f32 %v3557, %v3725
      %v3727 = vpop.f32.mrf.mxu0
      %v3728 = vadd.f32 %v3559, %v3727
      %3729 = vmatmul.bf16.gmra.mxu0 %v1682
      %v3730 = vpop.f32.mrf.mxu0
      %v3731 = vadd.f32 %v3562, %v3730
      %v3732 = vpop.f32.mrf.mxu0
      %v3733 = vadd.f32 %v3564, %v3732
      %3734 = vmatmul.bf16.gmra.mxu0 %v1690
      %v3735 = vpop.f32.mrf.mxu0
      %v3736 = vadd.f32 %v3567, %v3735
      %v3737 = vpop.f32.mrf.mxu0
      %v3738 = vadd.f32 %v3569, %v3737
      %3739 = vmatmul.bf16.gmra.mxu0 %v1698
      %v3740 = vpop.f32.mrf.mxu0
      %v3741 = vadd.f32 %v3572, %v3740
      %v3742 = vpop.f32.mrf.mxu0
      %v3743 = vadd.f32 %v3574, %v3742
      %3744 = vmatmul.bf16.gmra.mxu0 %v1706
      %v3745 = vpop.f32.mrf.mxu0
      %v3746 = vadd.f32 %v3577, %v3745
      %v3747 = vpop.f32.mrf.mxu0
      %v3748 = vadd.f32 %v3579, %v3747
      %3749 = vmatmul.bf16.gmra.mxu0 %v1714
      %v3750 = vpop.f32.mrf.mxu0
      %v3751 = vadd.f32 %v3582, %v3750
      %v3752 = vpop.f32.mrf.mxu0
      %v3753 = vadd.f32 %v3584, %v3752
      %3754 = vmatmul.bf16.gmra.mxu0 %v1722
      %v3755 = vpop.f32.mrf.mxu0
      %v3756 = vadd.f32 %v3587, %v3755
      %v3757 = vpop.f32.mrf.mxu0
      %v3758 = vadd.f32 %v3589, %v3757
      %3759 = vmatmul.bf16.gmra.mxu0 %v1730
      %v3760 = vpop.f32.mrf.mxu0
      %v3761 = vadd.f32 %v3592, %v3760
      %v3762 = vpop.f32.mrf.mxu0
      %v3763 = vadd.f32 %v3594, %v3762
      %3764 = vmatmul.bf16.gmra.mxu0 %v1738
      %v3765 = vpop.f32.mrf.mxu0
      %v3766 = vadd.f32 %v3597, %v3765
      %v3767 = vpop.f32.mrf.mxu0
      %v3768 = vadd.f32 %v3599, %v3767
      %3769 = vmatmul.bf16.gmra.mxu0 %v1746
      %v3770 = vpop.f32.mrf.mxu0
      %v3771 = vadd.f32 %v3602, %v3770
      %v3772 = vpop.f32.mrf.mxu0
      %v3773 = vadd.f32 %v3604, %v3772
      %3774 = vmatmul.bf16.gmra.mxu0 %v1754
      %v3775 = vpop.f32.mrf.mxu0
      %v3776 = vadd.f32 %v3607, %v3775
      %v3777 = vpop.f32.mrf.mxu0
      %v3778 = vadd.f32 %v3609, %v3777
      %3779 = vmatmul.bf16.gmra.mxu0 %v1762
      %v3780 = vpop.f32.mrf.mxu0
      %v3781 = vadd.f32 %v3612, %v3780
      %v3782 = vpop.f32.mrf.mxu0
      %v3783 = vadd.f32 %v3614, %v3782
      %3784 = vmatmul.bf16.gmra.mxu0 %v1770
      %v3785 = vpop.f32.mrf.mxu0
      %v3786 = vadd.f32 %v3617, %v3785
      %v3787 = vpop.f32.mrf.mxu0
      %v3788 = vadd.f32 %v3619, %v3787
      %3789 = vmatmul.bf16.gmra.mxu0 %v1778
      %v3790 = vpop.f32.mrf.mxu0
      %v3791 = vadd.f32 %v3622, %v3790
      %v3792 = vpop.f32.mrf.mxu0
      %v3793 = vadd.f32 %v3624, %v3792
      %3794 = vmatmul.bf16.gmra.mxu0 %v1786
      %v3795 = vpop.f32.mrf.mxu0
      %v3796 = vadd.f32 %v3627, %v3795
      %v3797 = vpop.f32.mrf.mxu0
      %v3798 = vadd.f32 %v3629, %v3797
      %3799 = vmatmul.bf16.gmra.mxu0 %v1794
      %v3800 = vpop.f32.mrf.mxu0
      %v3801 = vadd.f32 %v3632, %v3800
      %v3802 = vpop.f32.mrf.mxu0
      %v3803 = vadd.f32 %v3634, %v3802
      %3804 = vmatmul.bf16.gmra.mxu0 %v1802
      %v3805 = vpop.f32.mrf.mxu0
      %v3806 = vadd.f32 %v3637, %v3805
      %v3807 = vpop.f32.mrf.mxu0
      %v3808 = vadd.f32 %v3639, %v3807
      %3809 = vmatmul.bf16.gmra.mxu0 %v1810
      %v3810 = vpop.f32.mrf.mxu0
      %v3811 = vadd.f32 %v3642, %v3810
      %v3812 = vpop.f32.mrf.mxu0
      %v3813 = vadd.f32 %v3644, %v3812
      %3814 = vmatmul.bf16.gmra.mxu0 %v1818
      %v3815 = vpop.f32.mrf.mxu0
      %v3816 = vadd.f32 %v3647, %v3815
      %v3817 = vpop.f32.mrf.mxu0
      %v3818 = vadd.f32 %v3649, %v3817
      %3819 = vmatmul.bf16.gmra.mxu0 %v1826
      %v3820 = vpop.f32.mrf.mxu0
      %v3821 = vadd.f32 %v3652, %v3820
      %v3822 = vpop.f32.mrf.mxu0
      %v3823 = vadd.f32 %v3654, %v3822
      %3824 = vmatmul.bf16.gmra.mxu0 %v1834
      %v3825 = vpop.f32.mrf.mxu0
      %v3826 = vadd.f32 %v3657, %v3825
      %v3827 = vpop.f32.mrf.mxu0
      %v3828 = vadd.f32 %v3659, %v3827
      %3829 = vmatmul.bf16.gmra.mxu0 %v1842
      %v3830 = vpop.f32.mrf.mxu0
      %v3831 = vadd.f32 %v3662, %v3830
      %v3832 = vpop.f32.mrf.mxu0
      %v3833 = vadd.f32 %v3664, %v3832
      %3834 = vdwg.mxu0
      %v3835 = vadd.f32 %v371, %v3676
      %v3836 = vadd.f32 %v372, %v3678
      %v3837 = vadd.f32 %v373, %v3681
      %v3838 = vadd.f32 %v374, %v3683
      %v3839 = vadd.f32 %v375, %v3686
      %v3840 = vadd.f32 %v376, %v3688
      %v3841 = vadd.f32 %v377, %v3691
      %v3842 = vadd.f32 %v378, %v3693
      %v3843 = vadd.f32 %v379, %v3696
      %v3844 = vadd.f32 %v380, %v3698
      %v3845 = vadd.f32 %v381, %v3701
      %v3846 = vadd.f32 %v382, %v3703
      %v3847 = vadd.f32 %v383, %v3706
      %v3848 = vadd.f32 %v384, %v3708
      %v3849 = vadd.f32 %v385, %v3711
      %v3850 = vadd.f32 %v386, %v3713
      %v3851 = vadd.f32 %v387, %v3716
      %v3852 = vadd.f32 %v388, %v3718
      %v3853 = vadd.f32 %v389, %v3721
      %v3854 = vadd.f32 %v390, %v3723
      %v3855 = vadd.f32 %v391, %v3726
      %v3856 = vadd.f32 %v392, %v3728
      %v3857 = vadd.f32 %v393, %v3731
      %v3858 = vadd.f32 %v394, %v3733
      %v3859 = vadd.f32 %v395, %v3736
      %v3860 = vadd.f32 %v396, %v3738
      %v3861 = vadd.f32 %v397, %v3741
      %v3862 = vadd.f32 %v398, %v3743
      %v3863 = vadd.f32 %v399, %v3746
      %v3864 = vadd.f32 %v400, %v3748
      %v3865 = vadd.f32 %v401, %v3751
      %v3866 = vadd.f32 %v402, %v3753
      %v3867 = vadd.f32 %v403, %v3756
      %v3868 = vadd.f32 %v404, %v3758
      %v3869 = vadd.f32 %v405, %v3761
      %v3870 = vadd.f32 %v406, %v3763
      %v3871 = vadd.f32 %v407, %v3766
      %v3872 = vadd.f32 %v408, %v3768
      %v3873 = vadd.f32 %v409, %v3771
      %v3874 = vadd.f32 %v410, %v3773
      %v3875 = vadd.f32 %v411, %v3776
      %v3876 = vadd.f32 %v412, %v3778
      %v3877 = vadd.f32 %v413, %v3781
      %v3878 = vadd.f32 %v414, %v3783
      %v3879 = vadd.f32 %v415, %v3786
      %v3880 = vadd.f32 %v416, %v3788
      %v3881 = vadd.f32 %v417, %v3791
      %v3882 = vadd.f32 %v418, %v3793
      %v3883 = vadd.f32 %v419, %v3796
      %v3884 = vadd.f32 %v420, %v3798
      %v3885 = vadd.f32 %v421, %v3801
      %v3886 = vadd.f32 %v422, %v3803
      %v3887 = vadd.f32 %v423, %v3806
      %v3888 = vadd.f32 %v424, %v3808
      %v3889 = vadd.f32 %v425, %v3811
      %v3890 = vadd.f32 %v426, %v3813
      %v3891 = vadd.f32 %v427, %v3816
      %v3892 = vadd.f32 %v428, %v3818
      %v3893 = vadd.f32 %v429, %v3821
      %v3894 = vadd.f32 %v430, %v3823
      %v3895 = vadd.f32 %v431, %v3826
      %v3896 = vadd.f32 %v432, %v3828
      %v3897 = vadd.f32 %v433, %v3831
      %v3898 = vadd.f32 %v434, %v3833
      %3899 = vst [vmem:[#allocation2] sm:$0xff] %v3835
      %3900 = vst [vmem:[#allocation2 + $0x8] sm:$0xff] %v3836
      %3901 = vst [vmem:[#allocation2 + $0x10] sm:$0xff] %v3837
      %3902 = vst [vmem:[#allocation2 + $0x18] sm:$0xff] %v3838
      %3903 = vst [vmem:[#allocation2 + $0x20] sm:$0xff] %v3839
      %3904 = vst [vmem:[#allocation2 + $0x28] sm:$0xff] %v3840
      %3905 = vst [vmem:[#allocation2 + $0x30] sm:$0xff] %v3841
      %3906 = vst [vmem:[#allocation2 + $0x38] sm:$0xff] %v3842
      %3907 = vst [vmem:[#allocation2 + $0x40] sm:$0xff] %v3843
      %3908 = vst [vmem:[#allocation2 + $0x48] sm:$0xff] %v3844
      %3909 = vst [vmem:[#allocation2 + $0x50] sm:$0xff] %v3845
      %3910 = vst [vmem:[#allocation2 + $0x58] sm:$0xff] %v3846
      %3911 = vst [vmem:[#allocation2 + $0x60] sm:$0xff] %v3847
      %3912 = vst [vmem:[#allocation2 + $0x68] sm:$0xff] %v3848
      %3913 = vst [vmem:[#allocation2 + $0x70] sm:$0xff] %v3849
      %3914 = vst [vmem:[#allocation2 + $0x78] sm:$0xff] %v3850
      %3915 = vst [vmem:[#allocation2 + $0x80] sm:$0xff] %v3851
      %3916 = vst [vmem:[#allocation2 + $0x88] sm:$0xff] %v3852
      %3917 = vst [vmem:[#allocation2 + $0x90] sm:$0xff] %v3853
      %3918 = vst [vmem:[#allocation2 + $0x98] sm:$0xff] %v3854
      %3919 = vst [vmem:[#allocation2 + $0xa0] sm:$0xff] %v3855
      %3920 = vst [vmem:[#allocation2 + $0xa8] sm:$0xff] %v3856
      %3921 = vst [vmem:[#allocation2 + $0xb0] sm:$0xff] %v3857
      %3922 = vst [vmem:[#allocation2 + $0xb8] sm:$0xff] %v3858
      %3923 = vst [vmem:[#allocation2 + $0xc0] sm:$0xff] %v3859
      %3924 = vst [vmem:[#allocation2 + $0xc8] sm:$0xff] %v3860
      %3925 = vst [vmem:[#allocation2 + $0xd0] sm:$0xff] %v3861
      %3926 = vst [vmem:[#allocation2 + $0xd8] sm:$0xff] %v3862
      %3927 = vst [vmem:[#allocation2 + $0xe0] sm:$0xff] %v3863
      %3928 = vst [vmem:[#allocation2 + $0xe8] sm:$0xff] %v3864
      %3929 = vst [vmem:[#allocation2 + $0xf0] sm:$0xff] %v3865
      %3930 = vst [vmem:[#allocation2 + $0xf8] sm:$0xff] %v3866
      %3931 = vst [vmem:[#allocation2 + $0x100] sm:$0xff] %v3867
      %3932 = vst [vmem:[#allocation2 + $0x108] sm:$0xff] %v3868
      %3933 = vst [vmem:[#allocation2 + $0x110] sm:$0xff] %v3869
      %3934 = vst [vmem:[#allocation2 + $0x118] sm:$0xff] %v3870
      %3935 = vst [vmem:[#allocation2 + $0x120] sm:$0xff] %v3871
      %3936 = vst [vmem:[#allocation2 + $0x128] sm:$0xff] %v3872
      %3937 = vst [vmem:[#allocation2 + $0x130] sm:$0xff] %v3873
      %3938 = vst [vmem:[#allocation2 + $0x138] sm:$0xff] %v3874
      %3939 = vst [vmem:[#allocation2 + $0x140] sm:$0xff] %v3875
      %3940 = vst [vmem:[#allocation2 + $0x148] sm:$0xff] %v3876
      %3941 = vst [vmem:[#allocation2 + $0x150] sm:$0xff] %v3877
      %3942 = vst [vmem:[#allocation2 + $0x158] sm:$0xff] %v3878
      %3943 = vst [vmem:[#allocation2 + $0x160] sm:$0xff] %v3879
      %3944 = vst [vmem:[#allocation2 + $0x168] sm:$0xff] %v3880
      %3945 = vst [vmem:[#allocation2 + $0x170] sm:$0xff] %v3881
      %3946 = vst [vmem:[#allocation2 + $0x178] sm:$0xff] %v3882
      %3947 = vst [vmem:[#allocation2 + $0x180] sm:$0xff] %v3883
      %3948 = vst [vmem:[#allocation2 + $0x188] sm:$0xff] %v3884
      %3949 = vst [vmem:[#allocation2 + $0x190] sm:$0xff] %v3885
      %3950 = vst [vmem:[#allocation2 + $0x198] sm:$0xff] %v3886
      %3951 = vst [vmem:[#allocation2 + $0x1a0] sm:$0xff] %v3887
      %3952 = vst [vmem:[#allocation2 + $0x1a8] sm:$0xff] %v3888
      %3953 = vst [vmem:[#allocation2 + $0x1b0] sm:$0xff] %v3889
      %3954 = vst [vmem:[#allocation2 + $0x1b8] sm:$0xff] %v3890
      %3955 = vst [vmem:[#allocation2 + $0x1c0] sm:$0xff] %v3891
      %3956 = vst [vmem:[#allocation2 + $0x1c8] sm:$0xff] %v3892
      %3957 = vst [vmem:[#allocation2 + $0x1d0] sm:$0xff] %v3893
      %3958 = vst [vmem:[#allocation2 + $0x1d8] sm:$0xff] %v3894
      %3959 = vst [vmem:[#allocation2 + $0x1e0] sm:$0xff] %v3895
      %3960 = vst [vmem:[#allocation2 + $0x1e8] sm:$0xff] %v3896
      %3961 = vst [vmem:[#allocation2 + $0x1f0] sm:$0xff] %v3897
      %3962 = vst [vmem:[#allocation2 + $0x1f8] sm:$0xff] %v3898
      // Predicated region
      $region45: #{sage_forward.7} parent=39 // pred_check
        %p3963 = pneg %p303
      $region46: #{sage_forward.7} parent=39 // pred_check_branch
        %3965 = sbr.rel (%p3963) target = $region48
      $region47: #{sage_forward.7} parent=39 // pred_region
        %v3966 = vld [vmem:[%s295] sm:$0xf]
        %v3967 = vld [vmem:[%s295 + $0x4] sm:$0xf]
        %v3968 = vld [vmem:[%s295 + $0x8] sm:$0xf]
        %v3969 = vld [vmem:[%s295 + $0xc] sm:$0xf]
        %v3970 = vld [vmem:[%s295 + $0x10] sm:$0xf]
        %v3971 = vld [vmem:[%s295 + $0x14] sm:$0xf]
        %v3972 = vld [vmem:[%s295 + $0x18] sm:$0xf]
        %v3973 = vld [vmem:[%s295 + $0x1c] sm:$0xf]
        %v3974 = vld [vmem:[%s295 + $0x20] sm:$0xf]
        %v3975 = vld [vmem:[%s295 + $0x24] sm:$0xf]
        %v3976 = vld [vmem:[%s295 + $0x28] sm:$0xf]
        %v3977 = vld [vmem:[%s295 + $0x2c] sm:$0xf]
        %v3978 = vld [vmem:[%s295 + $0x30] sm:$0xf]
        %v3979 = vld [vmem:[%s295 + $0x34] sm:$0xf]
        %v3980 = vld [vmem:[%s295 + $0x38] sm:$0xf]
        %v3981 = vld [vmem:[%s295 + $0x3c] sm:$0xf]
        %v3982 = vld [vmem:[%s295 + $0x40] sm:$0xf]
        %v3983 = vld [vmem:[%s295 + $0x44] sm:$0xf]
        %v3984 = vld [vmem:[%s295 + $0x48] sm:$0xf]
        %v3985 = vld [vmem:[%s295 + $0x4c] sm:$0xf]
        %v3986 = vld [vmem:[%s295 + $0x50] sm:$0xf]
        %v3987 = vld [vmem:[%s295 + $0x54] sm:$0xf]
        %v3988 = vld [vmem:[%s295 + $0x58] sm:$0xf]
        %v3989 = vld [vmem:[%s295 + $0x5c] sm:$0xf]
        %v3990 = vld [vmem:[%s295 + $0x60] sm:$0xf]
        %v3991 = vld [vmem:[%s295 + $0x64] sm:$0xf]
        %v3992 = vld [vmem:[%s295 + $0x68] sm:$0xf]
        %v3993 = vld [vmem:[%s295 + $0x6c] sm:$0xf]
        %v3994 = vld [vmem:[%s295 + $0x70] sm:$0xf]
        %v3995 = vld [vmem:[%s295 + $0x74] sm:$0xf]
        %v3996 = vld [vmem:[%s295 + $0x78] sm:$0xf]
        %v3997 = vld [vmem:[%s295 + $0x7c] sm:$0xf]
        %v3998 = vld [vmem:[%s295 + $0x80] sm:$0xf]
        %v3999 = vld [vmem:[%s295 + $0x84] sm:$0xf]
        %v4000 = vld [vmem:[%s295 + $0x88] sm:$0xf]
        %v4001 = vld [vmem:[%s295 + $0x8c] sm:$0xf]
        %v4002 = vld [vmem:[%s295 + $0x90] sm:$0xf]
        %v4003 = vld [vmem:[%s295 + $0x94] sm:$0xf]
        %v4004 = vld [vmem:[%s295 + $0x98] sm:$0xf]
        %v4005 = vld [vmem:[%s295 + $0x9c] sm:$0xf]
        %v4006 = vld [vmem:[%s295 + $0xa0] sm:$0xf]
        %v4007 = vld [vmem:[%s295 + $0xa4] sm:$0xf]
        %v4008 = vld [vmem:[%s295 + $0xa8] sm:$0xf]
        %v4009 = vld [vmem:[%s295 + $0xac] sm:$0xf]
        %v4010 = vld [vmem:[%s295 + $0xb0] sm:$0xf]
        %v4011 = vld [vmem:[%s295 + $0xb4] sm:$0xf]
        %v4012 = vld [vmem:[%s295 + $0xb8] sm:$0xf]
        %v4013 = vld [vmem:[%s295 + $0xbc] sm:$0xf]
        %v4014 = vld [vmem:[%s295 + $0xc0] sm:$0xf]
        %v4015 = vld [vmem:[%s295 + $0xc4] sm:$0xf]
        %v4016 = vld [vmem:[%s295 + $0xc8] sm:$0xf]
        %v4017 = vld [vmem:[%s295 + $0xcc] sm:$0xf]
        %v4018 = vld [vmem:[%s295 + $0xd0] sm:$0xf]
        %v4019 = vld [vmem:[%s295 + $0xd4] sm:$0xf]
        %v4020 = vld [vmem:[%s295 + $0xd8] sm:$0xf]
        %v4021 = vld [vmem:[%s295 + $0xdc] sm:$0xf]
        %v4022 = vld [vmem:[%s295 + $0xe0] sm:$0xf]
        %v4023 = vld [vmem:[%s295 + $0xe4] sm:$0xf]
        %v4024 = vld [vmem:[%s295 + $0xe8] sm:$0xf]
        %v4025 = vld [vmem:[%s295 + $0xec] sm:$0xf]
        %v4026 = vld [vmem:[%s295 + $0xf0] sm:$0xf]
        %v4027 = vld [vmem:[%s295 + $0xf4] sm:$0xf]
        %v4028 = vld [vmem:[%s295 + $0xf8] sm:$0xf]
        %v4029 = vld [vmem:[%s295 + $0xfc] sm:$0xf]
        %v4030 = vld [vmem:[%s3] sm:$0xf]
        %v4031 = vld [vmem:[%s3 + $0x4] sm:$0xf]
        %v4032 = vld [vmem:[%s3 + $0x8] sm:$0xf]
        %v4033 = vld [vmem:[%s3 + $0xc] sm:$0xf]
        %v4034 = vld [vmem:[%s3 + $0x10] sm:$0xf]
        %v4035 = vld [vmem:[%s3 + $0x14] sm:$0xf]
        %v4036 = vld [vmem:[%s3 + $0x18] sm:$0xf]
        %v4037 = vld [vmem:[%s3 + $0x1c] sm:$0xf]
        %v4038 = vld [vmem:[%s3 + $0x20] sm:$0xf]
        %v4039 = vld [vmem:[%s3 + $0x24] sm:$0xf]
        %v4040 = vld [vmem:[%s3 + $0x28] sm:$0xf]
        %v4041 = vld [vmem:[%s3 + $0x2c] sm:$0xf]
        %v4042 = vld [vmem:[%s3 + $0x30] sm:$0xf]
        %v4043 = vld [vmem:[%s3 + $0x34] sm:$0xf]
        %v4044 = vld [vmem:[%s3 + $0x38] sm:$0xf]
        %v4045 = vld [vmem:[%s3 + $0x3c] sm:$0xf]
        %v4110 = vunpack.c.l.b16 %v3966
        %v4111 = vunpack.c.l.b16 %v3967
        %v4112 = vunpack.c.l.b16 %v3968
        %v4113 = vunpack.c.l.b16 %v3969
        %v4114 = vunpack.c.l.b16 %v3970
        %v4115 = vunpack.c.l.b16 %v3971
        %v4116 = vunpack.c.l.b16 %v3972
        %v4117 = vunpack.c.l.b16 %v3973
        %v4118 = vunpack.c.l.b16 %v3974
        %v4119 = vunpack.c.l.b16 %v3975
        %v4120 = vunpack.c.l.b16 %v3976
        %v4121 = vunpack.c.l.b16 %v3977
        %v4122 = vunpack.c.l.b16 %v3978
        %v4123 = vunpack.c.l.b16 %v3979
        %v4124 = vunpack.c.l.b16 %v3980
        %v4125 = vunpack.c.l.b16 %v3981
        %v4126 = vunpack.c.l.b16 %v3982
        %v4127 = vunpack.c.l.b16 %v3983
        %v4128 = vunpack.c.l.b16 %v3984
        %v4129 = vunpack.c.l.b16 %v3985
        %v4130 = vunpack.c.l.b16 %v3986
        %v4131 = vunpack.c.l.b16 %v3987
        %v4132 = vunpack.c.l.b16 %v3988
        %v4133 = vunpack.c.l.b16 %v3989
        %v4134 = vunpack.c.l.b16 %v3990
        %v4135 = vunpack.c.l.b16 %v3991
        %v4136 = vunpack.c.l.b16 %v3992
        %v4137 = vunpack.c.l.b16 %v3993
        %v4138 = vunpack.c.l.b16 %v3994
        %v4139 = vunpack.c.l.b16 %v3995
        %v4140 = vunpack.c.l.b16 %v3996
        %v4141 = vunpack.c.l.b16 %v3997
        %v4142 = vunpack.c.l.b16 %v3998
        %v4143 = vunpack.c.l.b16 %v3999
        %v4144 = vunpack.c.l.b16 %v4000
        %v4145 = vunpack.c.l.b16 %v4001
        %v4146 = vunpack.c.l.b16 %v4002
        %v4147 = vunpack.c.l.b16 %v4003
        %v4148 = vunpack.c.l.b16 %v4004
        %v4149 = vunpack.c.l.b16 %v4005
        %v4150 = vunpack.c.l.b16 %v4006
        %v4151 = vunpack.c.l.b16 %v4007
        %v4152 = vunpack.c.l.b16 %v4008
        %v4153 = vunpack.c.l.b16 %v4009
        %v4154 = vunpack.c.l.b16 %v4010
        %v4155 = vunpack.c.l.b16 %v4011
        %v4156 = vunpack.c.l.b16 %v4012
        %v4157 = vunpack.c.l.b16 %v4013
        %v4158 = vunpack.c.l.b16 %v4014
        %v4159 = vunpack.c.l.b16 %v4015
        %v4160 = vunpack.c.l.b16 %v4016
        %v4161 = vunpack.c.l.b16 %v4017
        %v4162 = vunpack.c.l.b16 %v4018
        %v4163 = vunpack.c.l.b16 %v4019
        %v4164 = vunpack.c.l.b16 %v4020
        %v4165 = vunpack.c.l.b16 %v4021
        %v4166 = vunpack.c.l.b16 %v4022
        %v4167 = vunpack.c.l.b16 %v4023
        %v4168 = vunpack.c.l.b16 %v4024
        %v4169 = vunpack.c.l.b16 %v4025
        %v4170 = vunpack.c.l.b16 %v4026
        %v4171 = vunpack.c.l.b16 %v4027
        %v4172 = vunpack.c.l.b16 %v4028
        %v4173 = vunpack.c.l.b16 %v4029
        %v4174 = vpack.c.b16 %v4111, %v4110
        %v4175 = vpack.c.b16 %v4113, %v4112
        %v4176 = vpack.c.b16 %v4115, %v4114
        %v4177 = vpack.c.b16 %v4117, %v4116
        %v4178 = vpack.c.b16 %v4119, %v4118
        %v4179 = vpack.c.b16 %v4121, %v4120
        %v4180 = vpack.c.b16 %v4123, %v4122
        %v4181 = vpack.c.b16 %v4125, %v4124
        %v4182 = vpack.c.b16 %v4127, %v4126
        %v4183 = vpack.c.b16 %v4129, %v4128
        %v4184 = vpack.c.b16 %v4131, %v4130
        %v4185 = vpack.c.b16 %v4133, %v4132
        %v4186 = vpack.c.b16 %v4135, %v4134
        %v4187 = vpack.c.b16 %v4137, %v4136
        %v4188 = vpack.c.b16 %v4139, %v4138
        %v4189 = vpack.c.b16 %v4141, %v4140
        %v4190 = vpack.c.b16 %v4143, %v4142
        %v4191 = vpack.c.b16 %v4145, %v4144
        %v4192 = vpack.c.b16 %v4147, %v4146
        %v4193 = vpack.c.b16 %v4149, %v4148
        %v4194 = vpack.c.b16 %v4151, %v4150
        %v4195 = vpack.c.b16 %v4153, %v4152
        %v4196 = vpack.c.b16 %v4155, %v4154
        %v4197 = vpack.c.b16 %v4157, %v4156
        %v4198 = vpack.c.b16 %v4159, %v4158
        %v4199 = vpack.c.b16 %v4161, %v4160
        %v4200 = vpack.c.b16 %v4163, %v4162
        %v4201 = vpack.c.b16 %v4165, %v4164
        %v4202 = vpack.c.b16 %v4167, %v4166
        %v4203 = vpack.c.b16 %v4169, %v4168
        %v4204 = vpack.c.b16 %v4171, %v4170
        %v4205 = vpack.c.b16 %v4173, %v4172
        %v4254 = vunpack.c.l.b16 %v4030
        %v4255 = vunpack.c.l.b16 %v4031
        %v4256 = vunpack.c.l.b16 %v4032
        %v4257 = vunpack.c.l.b16 %v4033
        %v4258 = vunpack.c.l.b16 %v4034
        %v4259 = vunpack.c.l.b16 %v4035
        %v4260 = vunpack.c.l.b16 %v4036
        %v4261 = vunpack.c.l.b16 %v4037
        %v4262 = vunpack.c.l.b16 %v4038
        %v4263 = vunpack.c.l.b16 %v4039
        %v4264 = vunpack.c.l.b16 %v4040
        %v4265 = vunpack.c.l.b16 %v4041
        %v4266 = vunpack.c.l.b16 %v4042
        %v4267 = vunpack.c.l.b16 %v4043
        %v4268 = vunpack.c.l.b16 %v4044
        %v4269 = vunpack.c.l.b16 %v4045
        %v4270 = vpack.c.b16 %v4255, %v4254
        %v4271 = vpack.c.b16 %v4257, %v4256
        %v4272 = vpack.c.b16 %v4259, %v4258
        %v4273 = vpack.c.b16 %v4261, %v4260
        %v4274 = vpack.c.b16 %v4263, %v4262
        %v4275 = vpack.c.b16 %v4265, %v4264
        %v4276 = vpack.c.b16 %v4267, %v4266
        %v4277 = vpack.c.b16 %v4269, %v4268
        %4286 = vmatpush.bf16.msra.mxu0 %v4277
        %4287 = vmatpush.bf16.msra.mxu0 %v4276
        %4288 = vmatpush.bf16.msra.mxu0 %v4275
        %4289 = vmatpush.bf16.msra.mxu0 %v4274
        %4290 = vmatpush.bf16.msra.mxu0 %v4273
        %4291 = vmatpush.bf16.msra.mxu0 %v4272
        %4292 = vmatpush.bf16.msra.mxu0 %v4271
        %4293 = vmatpush.bf16.msra.mxu0 %v4270
        %4294 = vmatmul.bf16.gmra.mxu0 %v4174
        %v4295 = vpop.f32.mrf.mxu0
        %v4296 = vadd.f32 0.0, %v4295
        %v4297 = vpop.f32.mrf.mxu0
        %v4298 = vadd.f32 0.0, %v4297
        %4299 = vmatmul.bf16.gmra.mxu0 %v4175
        %v4300 = vpop.f32.mrf.mxu0
        %v4301 = vadd.f32 0.0, %v4300
        %v4302 = vpop.f32.mrf.mxu0
        %v4303 = vadd.f32 0.0, %v4302
        %4304 = vmatmul.bf16.gmra.mxu0 %v4176
        %v4305 = vpop.f32.mrf.mxu0
        %v4306 = vadd.f32 0.0, %v4305
        %v4307 = vpop.f32.mrf.mxu0
        %v4308 = vadd.f32 0.0, %v4307
        %4309 = vmatmul.bf16.gmra.mxu0 %v4177
        %v4310 = vpop.f32.mrf.mxu0
        %v4311 = vadd.f32 0.0, %v4310
        %v4312 = vpop.f32.mrf.mxu0
        %v4313 = vadd.f32 0.0, %v4312
        %4314 = vmatmul.bf16.gmra.mxu0 %v4178
        %v4315 = vpop.f32.mrf.mxu0
        %v4316 = vadd.f32 0.0, %v4315
        %v4317 = vpop.f32.mrf.mxu0
        %v4318 = vadd.f32 0.0, %v4317
        %4319 = vmatmul.bf16.gmra.mxu0 %v4179
        %v4320 = vpop.f32.mrf.mxu0
        %v4321 = vadd.f32 0.0, %v4320
        %v4322 = vpop.f32.mrf.mxu0
        %v4323 = vadd.f32 0.0, %v4322
        %4324 = vmatmul.bf16.gmra.mxu0 %v4180
        %v4325 = vpop.f32.mrf.mxu0
        %v4326 = vadd.f32 0.0, %v4325
        %v4327 = vpop.f32.mrf.mxu0
        %v4328 = vadd.f32 0.0, %v4327
        %4329 = vmatmul.bf16.gmra.mxu0 %v4181
        %v4330 = vpop.f32.mrf.mxu0
        %v4331 = vadd.f32 0.0, %v4330
        %v4332 = vpop.f32.mrf.mxu0
        %v4333 = vadd.f32 0.0, %v4332
        %4334 = vmatmul.bf16.gmra.mxu0 %v4182
        %v4335 = vpop.f32.mrf.mxu0
        %v4336 = vadd.f32 0.0, %v4335
        %v4337 = vpop.f32.mrf.mxu0
        %v4338 = vadd.f32 0.0, %v4337
        %4339 = vmatmul.bf16.gmra.mxu0 %v4183
        %v4340 = vpop.f32.mrf.mxu0
        %v4341 = vadd.f32 0.0, %v4340
        %v4342 = vpop.f32.mrf.mxu0
        %v4343 = vadd.f32 0.0, %v4342
        %4344 = vmatmul.bf16.gmra.mxu0 %v4184
        %v4345 = vpop.f32.mrf.mxu0
        %v4346 = vadd.f32 0.0, %v4345
        %v4347 = vpop.f32.mrf.mxu0
        %v4348 = vadd.f32 0.0, %v4347
        %4349 = vmatmul.bf16.gmra.mxu0 %v4185
        %v4350 = vpop.f32.mrf.mxu0
        %v4351 = vadd.f32 0.0, %v4350
        %v4352 = vpop.f32.mrf.mxu0
        %v4353 = vadd.f32 0.0, %v4352
        %4354 = vmatmul.bf16.gmra.mxu0 %v4186
        %v4355 = vpop.f32.mrf.mxu0
        %v4356 = vadd.f32 0.0, %v4355
        %v4357 = vpop.f32.mrf.mxu0
        %v4358 = vadd.f32 0.0, %v4357
        %4359 = vmatmul.bf16.gmra.mxu0 %v4187
        %v4360 = vpop.f32.mrf.mxu0
        %v4361 = vadd.f32 0.0, %v4360
        %v4362 = vpop.f32.mrf.mxu0
        %v4363 = vadd.f32 0.0, %v4362
        %4364 = vmatmul.bf16.gmra.mxu0 %v4188
        %v4365 = vpop.f32.mrf.mxu0
        %v4366 = vadd.f32 0.0, %v4365
        %v4367 = vpop.f32.mrf.mxu0
        %v4368 = vadd.f32 0.0, %v4367
        %4369 = vmatmul.bf16.gmra.mxu0 %v4189
        %v4370 = vpop.f32.mrf.mxu0
        %v4371 = vadd.f32 0.0, %v4370
        %v4372 = vpop.f32.mrf.mxu0
        %v4373 = vadd.f32 0.0, %v4372
        %4374 = vmatmul.bf16.gmra.mxu0 %v4190
        %v4375 = vpop.f32.mrf.mxu0
        %v4376 = vadd.f32 0.0, %v4375
        %v4377 = vpop.f32.mrf.mxu0
        %v4378 = vadd.f32 0.0, %v4377
        %4379 = vmatmul.bf16.gmra.mxu0 %v4191
        %v4380 = vpop.f32.mrf.mxu0
        %v4381 = vadd.f32 0.0, %v4380
        %v4382 = vpop.f32.mrf.mxu0
        %v4383 = vadd.f32 0.0, %v4382
        %4384 = vmatmul.bf16.gmra.mxu0 %v4192
        %v4385 = vpop.f32.mrf.mxu0
        %v4386 = vadd.f32 0.0, %v4385
        %v4387 = vpop.f32.mrf.mxu0
        %v4388 = vadd.f32 0.0, %v4387
        %4389 = vmatmul.bf16.gmra.mxu0 %v4193
        %v4390 = vpop.f32.mrf.mxu0
        %v4391 = vadd.f32 0.0, %v4390
        %v4392 = vpop.f32.mrf.mxu0
        %v4393 = vadd.f32 0.0, %v4392
        %4394 = vmatmul.bf16.gmra.mxu0 %v4194
        %v4395 = vpop.f32.mrf.mxu0
        %v4396 = vadd.f32 0.0, %v4395
        %v4397 = vpop.f32.mrf.mxu0
        %v4398 = vadd.f32 0.0, %v4397
        %4399 = vmatmul.bf16.gmra.mxu0 %v4195
        %v4400 = vpop.f32.mrf.mxu0
        %v4401 = vadd.f32 0.0, %v4400
        %v4402 = vpop.f32.mrf.mxu0
        %v4403 = vadd.f32 0.0, %v4402
        %4404 = vmatmul.bf16.gmra.mxu0 %v4196
        %v4405 = vpop.f32.mrf.mxu0
        %v4406 = vadd.f32 0.0, %v4405
        %v4407 = vpop.f32.mrf.mxu0
        %v4408 = vadd.f32 0.0, %v4407
        %4409 = vmatmul.bf16.gmra.mxu0 %v4197
        %v4410 = vpop.f32.mrf.mxu0
        %v4411 = vadd.f32 0.0, %v4410
        %v4412 = vpop.f32.mrf.mxu0
        %v4413 = vadd.f32 0.0, %v4412
        %4414 = vmatmul.bf16.gmra.mxu0 %v4198
        %v4415 = vpop.f32.mrf.mxu0
        %v4416 = vadd.f32 0.0, %v4415
        %v4417 = vpop.f32.mrf.mxu0
        %v4418 = vadd.f32 0.0, %v4417
        %4419 = vmatmul.bf16.gmra.mxu0 %v4199
        %v4420 = vpop.f32.mrf.mxu0
        %v4421 = vadd.f32 0.0, %v4420
        %v4422 = vpop.f32.mrf.mxu0
        %v4423 = vadd.f32 0.0, %v4422
        %4424 = vmatmul.bf16.gmra.mxu0 %v4200
        %v4425 = vpop.f32.mrf.mxu0
        %v4426 = vadd.f32 0.0, %v4425
        %v4427 = vpop.f32.mrf.mxu0
        %v4428 = vadd.f32 0.0, %v4427
        %4429 = vmatmul.bf16.gmra.mxu0 %v4201
        %v4430 = vpop.f32.mrf.mxu0
        %v4431 = vadd.f32 0.0, %v4430
        %v4432 = vpop.f32.mrf.mxu0
        %v4433 = vadd.f32 0.0, %v4432
        %4434 = vmatmul.bf16.gmra.mxu0 %v4202
        %v4435 = vpop.f32.mrf.mxu0
        %v4436 = vadd.f32 0.0, %v4435
        %v4437 = vpop.f32.mrf.mxu0
        %v4438 = vadd.f32 0.0, %v4437
        %4439 = vmatmul.bf16.gmra.mxu0 %v4203
        %v4440 = vpop.f32.mrf.mxu0
        %v4441 = vadd.f32 0.0, %v4440
        %v4442 = vpop.f32.mrf.mxu0
        %v4443 = vadd.f32 0.0, %v4442
        %4444 = vmatmul.bf16.gmra.mxu0 %v4204
        %v4445 = vpop.f32.mrf.mxu0
        %v4446 = vadd.f32 0.0, %v4445
        %v4447 = vpop.f32.mrf.mxu0
        %v4448 = vadd.f32 0.0, %v4447
        %4449 = vmatmul.bf16.gmra.mxu0 %v4205
        %v4450 = vpop.f32.mrf.mxu0
        %v4451 = vadd.f32 0.0, %v4450
        %v4452 = vpop.f32.mrf.mxu0
        %v4453 = vadd.f32 0.0, %v4452
        %4454 = vdwg.mxu0
        %v4455 = vld [vmem:[#allocation2] sm:$0xff]
        %v4456 = vld [vmem:[#allocation2 + $0x8] sm:$0xff]
        %v4457 = vld [vmem:[#allocation2 + $0x10] sm:$0xff]
        %v4458 = vld [vmem:[#allocation2 + $0x18] sm:$0xff]
        %v4459 = vld [vmem:[#allocation2 + $0x20] sm:$0xff]
        %v4460 = vld [vmem:[#allocation2 + $0x28] sm:$0xff]
        %v4461 = vld [vmem:[#allocation2 + $0x30] sm:$0xff]
        %v4462 = vld [vmem:[#allocation2 + $0x38] sm:$0xff]
        %v4463 = vld [vmem:[#allocation2 + $0x40] sm:$0xff]
        %v4464 = vld [vmem:[#allocation2 + $0x48] sm:$0xff]
        %v4465 = vld [vmem:[#allocation2 + $0x50] sm:$0xff]
        %v4466 = vld [vmem:[#allocation2 + $0x58] sm:$0xff]
        %v4467 = vld [vmem:[#allocation2 + $0x60] sm:$0xff]
        %v4468 = vld [vmem:[#allocation2 + $0x68] sm:$0xff]
        %v4469 = vld [vmem:[#allocation2 + $0x70] sm:$0xff]
        %v4470 = vld [vmem:[#allocation2 + $0x78] sm:$0xff]
        %v4471 = vld [vmem:[#allocation2 + $0x80] sm:$0xff]
        %v4472 = vld [vmem:[#allocation2 + $0x88] sm:$0xff]
        %v4473 = vld [vmem:[#allocation2 + $0x90] sm:$0xff]
        %v4474 = vld [vmem:[#allocation2 + $0x98] sm:$0xff]
        %v4475 = vld [vmem:[#allocation2 + $0xa0] sm:$0xff]
        %v4476 = vld [vmem:[#allocation2 + $0xa8] sm:$0xff]
        %v4477 = vld [vmem:[#allocation2 + $0xb0] sm:$0xff]
        %v4478 = vld [vmem:[#allocation2 + $0xb8] sm:$0xff]
        %v4479 = vld [vmem:[#allocation2 + $0xc0] sm:$0xff]
        %v4480 = vld [vmem:[#allocation2 + $0xc8] sm:$0xff]
        %v4481 = vld [vmem:[#allocation2 + $0xd0] sm:$0xff]
        %v4482 = vld [vmem:[#allocation2 + $0xd8] sm:$0xff]
        %v4483 = vld [vmem:[#allocation2 + $0xe0] sm:$0xff]
        %v4484 = vld [vmem:[#allocation2 + $0xe8] sm:$0xff]
        %v4485 = vld [vmem:[#allocation2 + $0xf0] sm:$0xff]
        %v4486 = vld [vmem:[#allocation2 + $0xf8] sm:$0xff]
        %v4487 = vld [vmem:[#allocation2 + $0x100] sm:$0xff]
        %v4488 = vld [vmem:[#allocation2 + $0x108] sm:$0xff]
        %v4489 = vld [vmem:[#allocation2 + $0x110] sm:$0xff]
        %v4490 = vld [vmem:[#allocation2 + $0x118] sm:$0xff]
        %v4491 = vld [vmem:[#allocation2 + $0x120] sm:$0xff]
        %v4492 = vld [vmem:[#allocation2 + $0x128] sm:$0xff]
        %v4493 = vld [vmem:[#allocation2 + $0x130] sm:$0xff]
        %v4494 = vld [vmem:[#allocation2 + $0x138] sm:$0xff]
        %v4495 = vld [vmem:[#allocation2 + $0x140] sm:$0xff]
        %v4496 = vld [vmem:[#allocation2 + $0x148] sm:$0xff]
        %v4497 = vld [vmem:[#allocation2 + $0x150] sm:$0xff]
        %v4498 = vld [vmem:[#allocation2 + $0x158] sm:$0xff]
        %v4499 = vld [vmem:[#allocation2 + $0x160] sm:$0xff]
        %v4500 = vld [vmem:[#allocation2 + $0x168] sm:$0xff]
        %v4501 = vld [vmem:[#allocation2 + $0x170] sm:$0xff]
        %v4502 = vld [vmem:[#allocation2 + $0x178] sm:$0xff]
        %v4503 = vld [vmem:[#allocation2 + $0x180] sm:$0xff]
        %v4504 = vld [vmem:[#allocation2 + $0x188] sm:$0xff]
        %v4505 = vld [vmem:[#allocation2 + $0x190] sm:$0xff]
        %v4506 = vld [vmem:[#allocation2 + $0x198] sm:$0xff]
        %v4507 = vld [vmem:[#allocation2 + $0x1a0] sm:$0xff]
        %v4508 = vld [vmem:[#allocation2 + $0x1a8] sm:$0xff]
        %v4509 = vld [vmem:[#allocation2 + $0x1b0] sm:$0xff]
        %v4510 = vld [vmem:[#allocation2 + $0x1b8] sm:$0xff]
        %v4511 = vld [vmem:[#allocation2 + $0x1c0] sm:$0xff]
        %v4512 = vld [vmem:[#allocation2 + $0x1c8] sm:$0xff]
        %v4513 = vld [vmem:[#allocation2 + $0x1d0] sm:$0xff]
        %v4514 = vld [vmem:[#allocation2 + $0x1d8] sm:$0xff]
        %v4515 = vld [vmem:[#allocation2 + $0x1e0] sm:$0xff]
        %v4516 = vld [vmem:[#allocation2 + $0x1e8] sm:$0xff]
        %v4517 = vld [vmem:[#allocation2 + $0x1f0] sm:$0xff]
        %v4518 = vld [vmem:[#allocation2 + $0x1f8] sm:$0xff]
        %v4519 = vadd.f32 %v4455, %v4296
        %v4520 = vadd.f32 %v4456, %v4298
        %v4521 = vadd.f32 %v4457, %v4301
        %v4522 = vadd.f32 %v4458, %v4303
        %v4523 = vadd.f32 %v4459, %v4306
        %v4524 = vadd.f32 %v4460, %v4308
        %v4525 = vadd.f32 %v4461, %v4311
        %v4526 = vadd.f32 %v4462, %v4313
        %v4527 = vadd.f32 %v4463, %v4316
        %v4528 = vadd.f32 %v4464, %v4318
        %v4529 = vadd.f32 %v4465, %v4321
        %v4530 = vadd.f32 %v4466, %v4323
        %v4531 = vadd.f32 %v4467, %v4326
        %v4532 = vadd.f32 %v4468, %v4328
        %v4533 = vadd.f32 %v4469, %v4331
        %v4534 = vadd.f32 %v4470, %v4333
        %v4535 = vadd.f32 %v4471, %v4336
        %v4536 = vadd.f32 %v4472, %v4338
        %v4537 = vadd.f32 %v4473, %v4341
        %v4538 = vadd.f32 %v4474, %v4343
        %v4539 = vadd.f32 %v4475, %v4346
        %v4540 = vadd.f32 %v4476, %v4348
        %v4541 = vadd.f32 %v4477, %v4351
        %v4542 = vadd.f32 %v4478, %v4353
        %v4543 = vadd.f32 %v4479, %v4356
        %v4544 = vadd.f32 %v4480, %v4358
        %v4545 = vadd.f32 %v4481, %v4361
        %v4546 = vadd.f32 %v4482, %v4363
        %v4547 = vadd.f32 %v4483, %v4366
        %v4548 = vadd.f32 %v4484, %v4368
        %v4549 = vadd.f32 %v4485, %v4371
        %v4550 = vadd.f32 %v4486, %v4373
        %v4551 = vadd.f32 %v4487, %v4376
        %v4552 = vadd.f32 %v4488, %v4378
        %v4553 = vadd.f32 %v4489, %v4381
        %v4554 = vadd.f32 %v4490, %v4383
        %v4555 = vadd.f32 %v4491, %v4386
        %v4556 = vadd.f32 %v4492, %v4388
        %v4557 = vadd.f32 %v4493, %v4391
        %v4558 = vadd.f32 %v4494, %v4393
        %v4559 = vadd.f32 %v4495, %v4396
        %v4560 = vadd.f32 %v4496, %v4398
        %v4561 = vadd.f32 %v4497, %v4401
        %v4562 = vadd.f32 %v4498, %v4403
        %v4563 = vadd.f32 %v4499, %v4406
        %v4564 = vadd.f32 %v4500, %v4408
        %v4565 = vadd.f32 %v4501, %v4411
        %v4566 = vadd.f32 %v4502, %v4413
        %v4567 = vadd.f32 %v4503, %v4416
        %v4568 = vadd.f32 %v4504, %v4418
        %v4569 = vadd.f32 %v4505, %v4421
        %v4570 = vadd.f32 %v4506, %v4423
        %v4571 = vadd.f32 %v4507, %v4426
        %v4572 = vadd.f32 %v4508, %v4428
        %v4573 = vadd.f32 %v4509, %v4431
        %v4574 = vadd.f32 %v4510, %v4433
        %v4575 = vadd.f32 %v4511, %v4436
        %v4576 = vadd.f32 %v4512, %v4438
        %v4577 = vadd.f32 %v4513, %v4441
        %v4578 = vadd.f32 %v4514, %v4443
        %v4579 = vadd.f32 %v4515, %v4446
        %v4580 = vadd.f32 %v4516, %v4448
        %v4581 = vadd.f32 %v4517, %v4451
        %v4582 = vadd.f32 %v4518, %v4453
        %v4583 = vld [vmem:[%s4] sm:$0x1]
        %v4585 = vperm.slane %v4583, 0
        %v4587 = vadd.f32 %v4519, %v4585
        %v4588 = vadd.f32 %v4520, %v4585
        %v4589 = vadd.f32 %v4521, %v4585
        %v4590 = vadd.f32 %v4522, %v4585
        %v4591 = vadd.f32 %v4523, %v4585
        %v4592 = vadd.f32 %v4524, %v4585
        %v4593 = vadd.f32 %v4525, %v4585
        %v4594 = vadd.f32 %v4526, %v4585
        %v4595 = vadd.f32 %v4527, %v4585
        %v4596 = vadd.f32 %v4528, %v4585
        %v4597 = vadd.f32 %v4529, %v4585
        %v4598 = vadd.f32 %v4530, %v4585
        %v4599 = vadd.f32 %v4531, %v4585
        %v4600 = vadd.f32 %v4532, %v4585
        %v4601 = vadd.f32 %v4533, %v4585
        %v4602 = vadd.f32 %v4534, %v4585
        %v4603 = vadd.f32 %v4535, %v4585
        %v4604 = vadd.f32 %v4536, %v4585
        %v4605 = vadd.f32 %v4537, %v4585
        %v4606 = vadd.f32 %v4538, %v4585
        %v4607 = vadd.f32 %v4539, %v4585
        %v4608 = vadd.f32 %v4540, %v4585
        %v4609 = vadd.f32 %v4541, %v4585
        %v4610 = vadd.f32 %v4542, %v4585
        %v4611 = vadd.f32 %v4543, %v4585
        %v4612 = vadd.f32 %v4544, %v4585
        %v4613 = vadd.f32 %v4545, %v4585
        %v4614 = vadd.f32 %v4546, %v4585
        %v4615 = vadd.f32 %v4547, %v4585
        %v4616 = vadd.f32 %v4548, %v4585
        %v4617 = vadd.f32 %v4549, %v4585
        %v4618 = vadd.f32 %v4550, %v4585
        %v4619 = vadd.f32 %v4551, %v4585
        %v4620 = vadd.f32 %v4552, %v4585
        %v4621 = vadd.f32 %v4553, %v4585
        %v4622 = vadd.f32 %v4554, %v4585
        %v4623 = vadd.f32 %v4555, %v4585
        %v4624 = vadd.f32 %v4556, %v4585
        %v4625 = vadd.f32 %v4557, %v4585
        %v4626 = vadd.f32 %v4558, %v4585
        %v4627 = vadd.f32 %v4559, %v4585
        %v4628 = vadd.f32 %v4560, %v4585
        %v4629 = vadd.f32 %v4561, %v4585
        %v4630 = vadd.f32 %v4562, %v4585
        %v4631 = vadd.f32 %v4563, %v4585
        %v4632 = vadd.f32 %v4564, %v4585
        %v4633 = vadd.f32 %v4565, %v4585
        %v4634 = vadd.f32 %v4566, %v4585
        %v4635 = vadd.f32 %v4567, %v4585
        %v4636 = vadd.f32 %v4568, %v4585
        %v4637 = vadd.f32 %v4569, %v4585
        %v4638 = vadd.f32 %v4570, %v4585
        %v4639 = vadd.f32 %v4571, %v4585
        %v4640 = vadd.f32 %v4572, %v4585
        %v4641 = vadd.f32 %v4573, %v4585
        %v4642 = vadd.f32 %v4574, %v4585
        %v4643 = vadd.f32 %v4575, %v4585
        %v4644 = vadd.f32 %v4576, %v4585
        %v4645 = vadd.f32 %v4577, %v4585
        %v4646 = vadd.f32 %v4578, %v4585
        %v4647 = vadd.f32 %v4579, %v4585
        %v4648 = vadd.f32 %v4580, %v4585
        %v4649 = vadd.f32 %v4581, %v4585
        %v4650 = vadd.f32 %v4582, %v4585
        %v4651 = vmax.f32 %v4587, 0.0
        %v4652 = vmax.f32 %v4588, 0.0
        %v4653 = vmax.f32 %v4589, 0.0
        %v4654 = vmax.f32 %v4590, 0.0
        %v4655 = vmax.f32 %v4591, 0.0
        %v4656 = vmax.f32 %v4592, 0.0
        %v4657 = vmax.f32 %v4593, 0.0
        %v4658 = vmax.f32 %v4594, 0.0
        %v4659 = vmax.f32 %v4595, 0.0
        %v4660 = vmax.f32 %v4596, 0.0
        %v4661 = vmax.f32 %v4597, 0.0
        %v4662 = vmax.f32 %v4598, 0.0
        %v4663 = vmax.f32 %v4599, 0.0
        %v4664 = vmax.f32 %v4600, 0.0
        %v4665 = vmax.f32 %v4601, 0.0
        %v4666 = vmax.f32 %v4602, 0.0
        %v4667 = vmax.f32 %v4603, 0.0
        %v4668 = vmax.f32 %v4604, 0.0
        %v4669 = vmax.f32 %v4605, 0.0
        %v4670 = vmax.f32 %v4606, 0.0
        %v4671 = vmax.f32 %v4607, 0.0
        %v4672 = vmax.f32 %v4608, 0.0
        %v4673 = vmax.f32 %v4609, 0.0
        %v4674 = vmax.f32 %v4610, 0.0
        %v4675 = vmax.f32 %v4611, 0.0
        %v4676 = vmax.f32 %v4612, 0.0
        %v4677 = vmax.f32 %v4613, 0.0
        %v4678 = vmax.f32 %v4614, 0.0
        %v4679 = vmax.f32 %v4615, 0.0
        %v4680 = vmax.f32 %v4616, 0.0
        %v4681 = vmax.f32 %v4617, 0.0
        %v4682 = vmax.f32 %v4618, 0.0
        %v4683 = vmax.f32 %v4619, 0.0
        %v4684 = vmax.f32 %v4620, 0.0
        %v4685 = vmax.f32 %v4621, 0.0
        %v4686 = vmax.f32 %v4622, 0.0
        %v4687 = vmax.f32 %v4623, 0.0
        %v4688 = vmax.f32 %v4624, 0.0
        %v4689 = vmax.f32 %v4625, 0.0
        %v4690 = vmax.f32 %v4626, 0.0
        %v4691 = vmax.f32 %v4627, 0.0
        %v4692 = vmax.f32 %v4628, 0.0
        %v4693 = vmax.f32 %v4629, 0.0
        %v4694 = vmax.f32 %v4630, 0.0
        %v4695 = vmax.f32 %v4631, 0.0
        %v4696 = vmax.f32 %v4632, 0.0
        %v4697 = vmax.f32 %v4633, 0.0
        %v4698 = vmax.f32 %v4634, 0.0
        %v4699 = vmax.f32 %v4635, 0.0
        %v4700 = vmax.f32 %v4636, 0.0
        %v4701 = vmax.f32 %v4637, 0.0
        %v4702 = vmax.f32 %v4638, 0.0
        %v4703 = vmax.f32 %v4639, 0.0
        %v4704 = vmax.f32 %v4640, 0.0
        %v4705 = vmax.f32 %v4641, 0.0
        %v4706 = vmax.f32 %v4642, 0.0
        %v4707 = vmax.f32 %v4643, 0.0
        %v4708 = vmax.f32 %v4644, 0.0
        %v4709 = vmax.f32 %v4645, 0.0
        %v4710 = vmax.f32 %v4646, 0.0
        %v4711 = vmax.f32 %v4647, 0.0
        %v4712 = vmax.f32 %v4648, 0.0
        %v4713 = vmax.f32 %v4649, 0.0
        %v4714 = vmax.f32 %v4650, 0.0
        %v4715 = vpack.c.bf16 %v4651, %v4651
        %v4716 = vpack.c.bf16 %v4652, %v4652
        %v4717 = vpack.c.bf16 %v4653, %v4653
        %v4718 = vpack.c.bf16 %v4654, %v4654
        %v4719 = vpack.c.bf16 %v4655, %v4655
        %v4720 = vpack.c.bf16 %v4656, %v4656
        %v4721 = vpack.c.bf16 %v4657, %v4657
        %v4722 = vpack.c.bf16 %v4658, %v4658
        %v4723 = vpack.c.bf16 %v4659, %v4659
        %v4724 = vpack.c.bf16 %v4660, %v4660
        %v4725 = vpack.c.bf16 %v4661, %v4661
        %v4726 = vpack.c.bf16 %v4662, %v4662
        %v4727 = vpack.c.bf16 %v4663, %v4663
        %v4728 = vpack.c.bf16 %v4664, %v4664
        %v4729 = vpack.c.bf16 %v4665, %v4665
        %v4730 = vpack.c.bf16 %v4666, %v4666
        %v4731 = vpack.c.bf16 %v4667, %v4667
        %v4732 = vpack.c.bf16 %v4668, %v4668
        %v4733 = vpack.c.bf16 %v4669, %v4669
        %v4734 = vpack.c.bf16 %v4670, %v4670
        %v4735 = vpack.c.bf16 %v4671, %v4671
        %v4736 = vpack.c.bf16 %v4672, %v4672
        %v4737 = vpack.c.bf16 %v4673, %v4673
        %v4738 = vpack.c.bf16 %v4674, %v4674
        %v4739 = vpack.c.bf16 %v4675, %v4675
        %v4740 = vpack.c.bf16 %v4676, %v4676
        %v4741 = vpack.c.bf16 %v4677, %v4677
        %v4742 = vpack.c.bf16 %v4678, %v4678
        %v4743 = vpack.c.bf16 %v4679, %v4679
        %v4744 = vpack.c.bf16 %v4680, %v4680
        %v4745 = vpack.c.bf16 %v4681, %v4681
        %v4746 = vpack.c.bf16 %v4682, %v4682
        %v4747 = vpack.c.bf16 %v4683, %v4683
        %v4748 = vpack.c.bf16 %v4684, %v4684
        %v4749 = vpack.c.bf16 %v4685, %v4685
        %v4750 = vpack.c.bf16 %v4686, %v4686
        %v4751 = vpack.c.bf16 %v4687, %v4687
        %v4752 = vpack.c.bf16 %v4688, %v4688
        %v4753 = vpack.c.bf16 %v4689, %v4689
        %v4754 = vpack.c.bf16 %v4690, %v4690
        %v4755 = vpack.c.bf16 %v4691, %v4691
        %v4756 = vpack.c.bf16 %v4692, %v4692
        %v4757 = vpack.c.bf16 %v4693, %v4693
        %v4758 = vpack.c.bf16 %v4694, %v4694
        %v4759 = vpack.c.bf16 %v4695, %v4695
        %v4760 = vpack.c.bf16 %v4696, %v4696
        %v4761 = vpack.c.bf16 %v4697, %v4697
        %v4762 = vpack.c.bf16 %v4698, %v4698
        %v4763 = vpack.c.bf16 %v4699, %v4699
        %v4764 = vpack.c.bf16 %v4700, %v4700
        %v4765 = vpack.c.bf16 %v4701, %v4701
        %v4766 = vpack.c.bf16 %v4702, %v4702
        %v4767 = vpack.c.bf16 %v4703, %v4703
        %v4768 = vpack.c.bf16 %v4704, %v4704
        %v4769 = vpack.c.bf16 %v4705, %v4705
        %v4770 = vpack.c.bf16 %v4706, %v4706
        %v4771 = vpack.c.bf16 %v4707, %v4707
        %v4772 = vpack.c.bf16 %v4708, %v4708
        %v4773 = vpack.c.bf16 %v4709, %v4709
        %v4774 = vpack.c.bf16 %v4710, %v4710
        %v4775 = vpack.c.bf16 %v4711, %v4711
        %v4776 = vpack.c.bf16 %v4712, %v4712
        %v4777 = vpack.c.bf16 %v4713, %v4713
        %v4778 = vpack.c.bf16 %v4714, %v4714
        %4779 = vst [vmem:[%s301] sm:$0xf] %v4715
        %4780 = vst [vmem:[%s301 + $0x4] sm:$0xf] %v4716
        %4781 = vst [vmem:[%s301 + $0x8] sm:$0xf] %v4717
        %4782 = vst [vmem:[%s301 + $0xc] sm:$0xf] %v4718
        %4783 = vst [vmem:[%s301 + $0x10] sm:$0xf] %v4719
        %4784 = vst [vmem:[%s301 + $0x14] sm:$0xf] %v4720
        %4785 = vst [vmem:[%s301 + $0x18] sm:$0xf] %v4721
        %4786 = vst [vmem:[%s301 + $0x1c] sm:$0xf] %v4722
        %4787 = vst [vmem:[%s301 + $0x20] sm:$0xf] %v4723
        %4788 = vst [vmem:[%s301 + $0x24] sm:$0xf] %v4724
        %4789 = vst [vmem:[%s301 + $0x28] sm:$0xf] %v4725
        %4790 = vst [vmem:[%s301 + $0x2c] sm:$0xf] %v4726
        %4791 = vst [vmem:[%s301 + $0x30] sm:$0xf] %v4727
        %4792 = vst [vmem:[%s301 + $0x34] sm:$0xf] %v4728
        %4793 = vst [vmem:[%s301 + $0x38] sm:$0xf] %v4729
        %4794 = vst [vmem:[%s301 + $0x3c] sm:$0xf] %v4730
        %4795 = vst [vmem:[%s301 + $0x40] sm:$0xf] %v4731
        %4796 = vst [vmem:[%s301 + $0x44] sm:$0xf] %v4732
        %4797 = vst [vmem:[%s301 + $0x48] sm:$0xf] %v4733
        %4798 = vst [vmem:[%s301 + $0x4c] sm:$0xf] %v4734
        %4799 = vst [vmem:[%s301 + $0x50] sm:$0xf] %v4735
        %4800 = vst [vmem:[%s301 + $0x54] sm:$0xf] %v4736
        %4801 = vst [vmem:[%s301 + $0x58] sm:$0xf] %v4737
        %4802 = vst [vmem:[%s301 + $0x5c] sm:$0xf] %v4738
        %4803 = vst [vmem:[%s301 + $0x60] sm:$0xf] %v4739
        %4804 = vst [vmem:[%s301 + $0x64] sm:$0xf] %v4740
        %4805 = vst [vmem:[%s301 + $0x68] sm:$0xf] %v4741
        %4806 = vst [vmem:[%s301 + $0x6c] sm:$0xf] %v4742
        %4807 = vst [vmem:[%s301 + $0x70] sm:$0xf] %v4743
        %4808 = vst [vmem:[%s301 + $0x74] sm:$0xf] %v4744
        %4809 = vst [vmem:[%s301 + $0x78] sm:$0xf] %v4745
        %4810 = vst [vmem:[%s301 + $0x7c] sm:$0xf] %v4746
        %4811 = vst [vmem:[%s301 + $0x80] sm:$0xf] %v4747
        %4812 = vst [vmem:[%s301 + $0x84] sm:$0xf] %v4748
        %4813 = vst [vmem:[%s301 + $0x88] sm:$0xf] %v4749
        %4814 = vst [vmem:[%s301 + $0x8c] sm:$0xf] %v4750
        %4815 = vst [vmem:[%s301 + $0x90] sm:$0xf] %v4751
        %4816 = vst [vmem:[%s301 + $0x94] sm:$0xf] %v4752
        %4817 = vst [vmem:[%s301 + $0x98] sm:$0xf] %v4753
        %4818 = vst [vmem:[%s301 + $0x9c] sm:$0xf] %v4754
        %4819 = vst [vmem:[%s301 + $0xa0] sm:$0xf] %v4755
        %4820 = vst [vmem:[%s301 + $0xa4] sm:$0xf] %v4756
        %4821 = vst [vmem:[%s301 + $0xa8] sm:$0xf] %v4757
        %4822 = vst [vmem:[%s301 + $0xac] sm:$0xf] %v4758
        %4823 = vst [vmem:[%s301 + $0xb0] sm:$0xf] %v4759
        %4824 = vst [vmem:[%s301 + $0xb4] sm:$0xf] %v4760
        %4825 = vst [vmem:[%s301 + $0xb8] sm:$0xf] %v4761
        %4826 = vst [vmem:[%s301 + $0xbc] sm:$0xf] %v4762
        %4827 = vst [vmem:[%s301 + $0xc0] sm:$0xf] %v4763
        %4828 = vst [vmem:[%s301 + $0xc4] sm:$0xf] %v4764
        %4829 = vst [vmem:[%s301 + $0xc8] sm:$0xf] %v4765
        %4830 = vst [vmem:[%s301 + $0xcc] sm:$0xf] %v4766
        %4831 = vst [vmem:[%s301 + $0xd0] sm:$0xf] %v4767
        %4832 = vst [vmem:[%s301 + $0xd4] sm:$0xf] %v4768
        %4833 = vst [vmem:[%s301 + $0xd8] sm:$0xf] %v4769
        %4834 = vst [vmem:[%s301 + $0xdc] sm:$0xf] %v4770
        %4835 = vst [vmem:[%s301 + $0xe0] sm:$0xf] %v4771
        %4836 = vst [vmem:[%s301 + $0xe4] sm:$0xf] %v4772
        %4837 = vst [vmem:[%s301 + $0xe8] sm:$0xf] %v4773
        %4838 = vst [vmem:[%s301 + $0xec] sm:$0xf] %v4774
        %4839 = vst [vmem:[%s301 + $0xf0] sm:$0xf] %v4775
        %4840 = vst [vmem:[%s301 + $0xf4] sm:$0xf] %v4776
        %4841 = vst [vmem:[%s301 + $0xf8] sm:$0xf] %v4777
        %4842 = vst [vmem:[%s301 + $0xfc] sm:$0xf] %v4778
      $region48: #{sage_forward.7} parent=39 // pred_fallthru
        _
      %s4843 = smul.u32 64, %s20
      %p4844 = scmp.lt.s32.totalorder %s4843, 127
      %s4845 = scalar_select %p4844, %s4843, 127
      %s4846 = smul.addr %s4845, 4
      %s4847 = scalar_lea.vmem %s5, %s4846
      // Predicated region
      $region49: #{sage_forward.7} parent=39 // pred_check
        %p4848 = pneg %p168
      $region50: #{sage_forward.7} parent=39 // pred_check_branch
        %4850 = sbr.rel (%p4848) target = $region52
      $region51: #{sage_forward.7} parent=39 // pred_region
        %s4851 = smul.u32 64, %s20
      $region52: #{sage_forward.7} parent=39 // pred_fallthru
        _
    $region40: #{sage_forward.7} parent=5 // pred_fallthru
      _
    %p4852 = scmp.le.s32.totalorder 2, %s11
    // Predicated region
    $region53: #{sage_forward.7} parent=5 // pred_check
      %p4853 = pneg %p4852
    $region54: #{sage_forward.7} parent=5 // pred_check_branch
      %4855 = sbr.rel (%p4853) target = $region56
    $region55: #{sage_forward.7} parent=5 // pred_region
      %s4856 = ssub.s32 %s11, 2
      // Predicated region
      $region57: #{sage_forward.7} parent=55 // pred_check
        %p4857 = pneg %p174
      $region58: #{sage_forward.7} parent=55 // pred_check_branch
        %4859 = sbr.rel (%p4857) target = $region60
      $region59: #{sage_forward.7} parent=55 // pred_region
        %s4860 = smul.u32 64, %s22
        %p4861 = scmp.lt.s32.totalorder %s4860, 127
        %s4862 = scalar_select %p4861, %s4860, 127
        %s4863 = smul.addr %s4862, 4
        %s4864 = scalar_lea.vmem %s5, %s4863
      $region60: #{sage_forward.7} parent=55 // pred_fallthru
        _
    $region56: #{sage_forward.7} parent=5 // pred_fallthru
      _
  $region6: #{sage_forward.7} parent=0 // loop_footer
    %s15 = sadd.s32 1, %s11
  $region7: #{sage_forward.7} parent=0 // loop_footer_branch
    %10 = sbr.rel target = $region3
  $region8: #{sage_forward.7} parent=0 // loop_exit
    _

// kernel: sage_forward.11
$region0: #{sage_forward.11}
  #allocation0 [shape = 'u32[]', space=smem, size = 0x4, offset = 0x4, fixed_abs, tag = 'smem constant byte address 0x4 - core index']
  #allocation1 [shape = 'u32[72,128]{1,0:T(1,128)}', space=vmem, size = 0x9000, scoped, tag = 'internal scratch']
  #allocation2 [shape = 'f32[512,128]{1,0:T(8,128)}', space=vmem, size = 0x40000, scoped, tag = 'scratch operand']
  %s0 = inlined_call_operand.vmem [shape: bf16[1024,1024], index: 0, kind: input, shape index: {}]
  %s1 = inlined_call_operand.vmem [shape: bf16[1024,128], index: 1, kind: input, shape index: {}]
  %s2 = inlined_call_operand.vmem [shape: bf16[1024,128], index: 2, kind: input, shape index: {}]
  %s3 = inlined_call_operand.vmem [shape: bf16[128,128], index: 3, kind: input, shape index: {}]
  %s4 = inlined_call_operand.vmem [shape: f32[1,128], index: 4, kind: input, shape index: {}]
  %s5 = inlined_call_operand.vmem [shape: f32[1024,128], index: 5, kind: output, shape index: {}]
  %s6 = sld [smem:[#allocation0]]
  $region61: #{sage_forward.11} parent=0
    _
  %s8 = ssub.s32 1, %s6
  %s9 = scalar_select 0, %s8, %s6
  loop: start=0, step=1, limit=4
  $region2: #{sage_forward.11} parent=0 // loop_pre_header
    _
  $region3: #{sage_forward.11} parent=0 // loop_header
    %s11 = sphi 0, %s15
    %p12 = scmp.ge.s32.totalorder %s11, 4
    %s18 = sphi 0, %s30
    %s19 = sphi 0, %s26
    %s20 = sphi 0, %s18
    %s21 = sphi 0, %s19
    %s22 = sphi 0, %s20
    %s23 = sphi 0, %s21
    %s35 = sphi 0, %s37
    %s38 = sphi 0, %s35
    %s39 = sphi 0, %s38
    %s55 = sphi 0, %s39
    %s61 = sphi 0, %s63
    %s64 = sphi 0, %s61
    %s65 = sphi 0, %s64
    %s81 = sphi 0, %s65
    %s87 = sphi 0, %s89
    %s90 = sphi 0, %s87
    %s91 = sphi 0, %s90
    %s107 = sphi 0, %s91
    %s111 = sphi 0, %s111
    %s113 = sphi 0, %s111
    %s114 = sphi 0, %s113
    %s128 = sphi 0, %s114
    %s132 = sphi 0, %s132
    %s134 = sphi 0, %s132
    %s135 = sphi 0, %s134
    %s149 = sphi 0, %s135
    %s155 = sphi 0, %s157
    %s158 = sphi 0, %s155
    %s159 = sphi 0, %s158
    %s175 = sphi 0, %s159
  $region4: #{sage_forward.11} parent=0 // loop_header_branch
    %14 = sbr.rel (%p12) target = $region8
  $region5: #{sage_forward.11} parent=0 // loop_body
    %s16 = ssub.s32 %s11, 1
    %s17 = ssub.s32 %s11, 2
    %s24 = sadd.s32 1, %s19
    %p25 = scmp.ge.s32.totalorder %s24, 1
    %s26 = scalar_select %p25, 0, %s24
    %s27 = sadd.s32 1, %s18
    %s28 = scalar_select %p25, %s27, %s18
    %p29 = scmp.ge.s32.totalorder %s28, 2
    %s30 = scalar_select %p29, 0, %s28
    %s31 = ssub.s32 %s18, %s30
    %s32 = ssub.s32 %s19, %s26
    %s33 = sor.u32 %s31, %s32
    %p34 = scmp.eq.s32.totalorder %s33, 0
    %s36 = sadd.s32 %s35, 1
    %s37 = scalar_select %p34, %s35, %s36
    %p40 = pneg %p34
    %p41 = scmp.eq.s32.totalorder %s11, 1
    %p42 = por %p40, %p41
    %p43 = scmp.ne.s32.totalorder %s35, %s38
    %p44 = scmp.eq.s32.totalorder %s11, 0
    %p45 = por %p43, %p44
    %p46 = scmp.ne.s32.totalorder %s35, %s38
    %p47 = scmp.eq.s32.totalorder %s16, 1
    %p48 = por %p46, %p47
    %p49 = scmp.ne.s32.totalorder %s38, %s39
    %p50 = scmp.eq.s32.totalorder %s16, 0
    %p51 = por %p49, %p50
    %p52 = scmp.ne.s32.totalorder %s38, %s39
    %p53 = scmp.eq.s32.totalorder %s17, 1
    %p54 = por %p52, %p53
    %p56 = scmp.ne.s32.totalorder %s39, %s55
    %p57 = scmp.eq.s32.totalorder %s17, 0
    %p58 = por %p56, %p57
    %s59 = ssub.s32 %s19, %s26
    %p60 = scmp.eq.s32.totalorder %s59, 0
    %s62 = sadd.s32 %s61, 1
    %s63 = scalar_select %p60, %s61, %s62
    %p66 = pneg %p60
    %p67 = scmp.eq.s32.totalorder %s11, 1
    %p68 = por %p66, %p67
    %p69 = scmp.ne.s32.totalorder %s61, %s64
    %p70 = scmp.eq.s32.totalorder %s11, 0
    %p71 = por %p69, %p70
    %p72 = scmp.ne.s32.totalorder %s61, %s64
    %p73 = scmp.eq.s32.totalorder %s16, 1
    %p74 = por %p72, %p73
    %p75 = scmp.ne.s32.totalorder %s64, %s65
    %p76 = scmp.eq.s32.totalorder %s16, 0
    %p77 = por %p75, %p76
    %p78 = scmp.ne.s32.totalorder %s64, %s65
    %p79 = scmp.eq.s32.totalorder %s17, 1
    %p80 = por %p78, %p79
    %p82 = scmp.ne.s32.totalorder %s65, %s81
    %p83 = scmp.eq.s32.totalorder %s17, 0
    %p84 = por %p82, %p83
    %s85 = ssub.s32 %s18, %s30
    %p86 = scmp.eq.s32.totalorder %s85, 0
    %s88 = sadd.s32 %s87, 1
    %s89 = scalar_select %p86, %s87, %s88
    %p92 = pneg %p86
    %p93 = scmp.eq.s32.totalorder %s11, 1
    %p94 = por %p92, %p93
    %p95 = scmp.ne.s32.totalorder %s87, %s90
    %p96 = scmp.eq.s32.totalorder %s11, 0
    %p97 = por %p95, %p96
    %p98 = scmp.ne.s32.totalorder %s87, %s90
    %p99 = scmp.eq.s32.totalorder %s16, 1
    %p100 = por %p98, %p99
    %p101 = scmp.ne.s32.totalorder %s90, %s91
    %p102 = scmp.eq.s32.totalorder %s16, 0
    %p103 = por %p101, %p102
    %p104 = scmp.ne.s32.totalorder %s90, %s91
    %p105 = scmp.eq.s32.totalorder %s17, 1
    %p106 = por %p104, %p105
    %p108 = scmp.ne.s32.totalorder %s91, %s107
    %p109 = scmp.eq.s32.totalorder %s17, 0
    %p110 = por %p108, %p109
    %s112 = sadd.s32 %s111, 1
    %p115 = scmp.eq.s32.totalorder %s11, 1
    %p116 = scmp.ne.s32.totalorder %s111, %s113
    %p117 = scmp.eq.s32.totalorder %s11, 0
    %p118 = por %p116, %p117
    %p119 = scmp.ne.s32.totalorder %s111, %s113
    %p120 = scmp.eq.s32.totalorder %s16, 1
    %p121 = por %p119, %p120
    %p122 = scmp.ne.s32.totalorder %s113, %s114
    %p123 = scmp.eq.s32.totalorder %s16, 0
    %p124 = por %p122, %p123
    %p125 = scmp.ne.s32.totalorder %s113, %s114
    %p126 = scmp.eq.s32.totalorder %s17, 1
    %p127 = por %p125, %p126
    %p129 = scmp.ne.s32.totalorder %s114, %s128
    %p130 = scmp.eq.s32.totalorder %s17, 0
    %p131 = por %p129, %p130
    %s133 = sadd.s32 %s132, 1
    %p136 = scmp.eq.s32.totalorder %s11, 1
    %p137 = scmp.ne.s32.totalorder %s132, %s134
    %p138 = scmp.eq.s32.totalorder %s11, 0
    %p139 = por %p137, %p138
    %p140 = scmp.ne.s32.totalorder %s132, %s134
    %p141 = scmp.eq.s32.totalorder %s16, 1
    %p142 = por %p140, %p141
    %p143 = scmp.ne.s32.totalorder %s134, %s135
    %p144 = scmp.eq.s32.totalorder %s16, 0
    %p145 = por %p143, %p144
    %p146 = scmp.ne.s32.totalorder %s134, %s135
    %p147 = scmp.eq.s32.totalorder %s17, 1
    %p148 = por %p146, %p147
    %p150 = scmp.ne.s32.totalorder %s135, %s149
    %p151 = scmp.eq.s32.totalorder %s17, 0
    %p152 = por %p150, %p151
    %s153 = ssub.s32 %s18, %s30
    %p154 = scmp.eq.s32.totalorder %s153, 0
    %s156 = sadd.s32 %s155, 1
    %s157 = scalar_select %p154, %s155, %s156
    %p160 = pneg %p154
    %p161 = scmp.eq.s32.totalorder %s11, 1
    %p162 = por %p160, %p161
    %p163 = scmp.ne.s32.totalorder %s155, %s158
    %p164 = scmp.eq.s32.totalorder %s11, 0
    %p165 = por %p163, %p164
    %p166 = scmp.ne.s32.totalorder %s155, %s158
    %p167 = scmp.eq.s32.totalorder %s16, 1
    %p168 = por %p166, %p167
    %p169 = scmp.ne.s32.totalorder %s158, %s159
    %p170 = scmp.eq.s32.totalorder %s16, 0
    %p171 = por %p169, %p170
    %p172 = scmp.ne.s32.totalorder %s158, %s159
    %p173 = scmp.eq.s32.totalorder %s17, 1
    %p174 = por %p172, %p173
    %p176 = scmp.ne.s32.totalorder %s159, %s175
    %p177 = scmp.eq.s32.totalorder %s17, 0
    %p178 = por %p176, %p177
    %p179 = scmp.le.s32.totalorder 1, %s11
    %p180 = scmp.lt.s32.totalorder %s11, 3
    %p181 = pnand %p179, %p180
    %p182 = pneg %p181
    // Predicated region
    $region9: #{sage_forward.11} parent=5 // pred_check
      _
    $region10: #{sage_forward.11} parent=5 // pred_check_branch
      %184 = sbr.rel (%p181) target = $region12
    $region11: #{sage_forward.11} parent=5 // pred_region
      %s185 = ssub.s32 %s11, 1
      // Predicated region
      $region13: #{sage_forward.11} parent=11 // pred_check
        %p186 = pneg %p77
      $region14: #{sage_forward.11} parent=11 // pred_check_branch
        %188 = sbr.rel (%p186) target = $region16
      $region15: #{sage_forward.11} parent=11 // pred_region
        %s189 = smul.u32 128, %s21
        %p190 = scmp.lt.s32.totalorder %s189, 127
        %s191 = scalar_select %p190, %s189, 127
        %s192 = smul.addr %s191, 4
        %s193 = scalar_lea.vmem %s1, %s192
        %s194 = smul.u32 128, %s21
      $region16: #{sage_forward.11} parent=11 // pred_fallthru
        _
      // Predicated region
      $region17: #{sage_forward.11} parent=11 // pred_check
        %p195 = pneg %p124
      $region18: #{sage_forward.11} parent=11 // pred_check_branch
        %197 = sbr.rel (%p195) target = $region20
      $region19: #{sage_forward.11} parent=11 // pred_region
        _
      $region20: #{sage_forward.11} parent=11 // pred_fallthru
        _
      // Predicated region
      $region21: #{sage_forward.11} parent=11 // pred_check
        %p198 = pneg %p145
      $region22: #{sage_forward.11} parent=11 // pred_check_branch
        %200 = sbr.rel (%p198) target = $region24
      $region23: #{sage_forward.11} parent=11 // pred_region
        _
      $region24: #{sage_forward.11} parent=11 // pred_fallthru
        _
    $region12: #{sage_forward.11} parent=5 // pred_fallthru
      _
    %p201 = scmp.lt.s32.totalorder %s11, 2
    // Predicated region
    $region25: #{sage_forward.11} parent=5 // pred_check
      %p202 = pneg %p201
    $region26: #{sage_forward.11} parent=5 // pred_check_branch
      %204 = sbr.rel (%p202) target = $region28
    $region27: #{sage_forward.11} parent=5 // pred_region
      // Predicated region
      $region29: #{sage_forward.11} parent=27 // pred_check
        %p205 = pneg %p45
      $region30: #{sage_forward.11} parent=27 // pred_check_branch
        %207 = sbr.rel (%p205) target = $region32
      $region31: #{sage_forward.11} parent=27 // pred_region
        %s208 = smul.u32 64, %s18
        %s209 = smul.u32 8, %s19
        %p210 = scmp.lt.s32.totalorder %s208, 127
        %s211 = scalar_select %p210, %s208, 127
        %p212 = scmp.lt.s32.totalorder %s209, 7
        %s213 = scalar_select %p212, %s209, 7
        %s214 = smul.addr %s211, 8
        %s215 = sadd.s32 %s213, %s214
        %s216 = smul.addr %s215, 4
        %s217 = scalar_lea.vmem %s0, %s216
        %s218 = smul.u32 64, %s18
        %s219 = smul.u32 8, %s19
      $region32: #{sage_forward.11} parent=27 // pred_fallthru
        _
      // Predicated region
      $region33: #{sage_forward.11} parent=27 // pred_check
        %p220 = pneg %p97
      $region34: #{sage_forward.11} parent=27 // pred_check_branch
        %222 = sbr.rel (%p220) target = $region36
      $region35: #{sage_forward.11} parent=27 // pred_region
        %s223 = smul.u32 64, %s18
        %p224 = scmp.lt.s32.totalorder %s223, 127
        %s225 = scalar_select %p224, %s223, 127
        %s226 = smul.addr %s225, 4
        %s227 = scalar_lea.vmem %s2, %s226
        %s228 = smul.u32 64, %s18
      $region36: #{sage_forward.11} parent=27 // pred_fallthru
        _
    $region28: #{sage_forward.11} parent=5 // pred_fallthru
      _
    %p229 = scmp.le.s32.totalorder 1, %s11
    %p230 = scmp.lt.s32.totalorder %s11, 3
    %p231 = pnand %p229, %p230
    %p232 = pneg %p231
    // Predicated region
    $region37: #{sage_forward.11} parent=5 // pred_check
      _
    $region38: #{sage_forward.11} parent=5 // pred_check_branch
      %234 = sbr.rel (%p231) target = $region40
    $region39: #{sage_forward.11} parent=5 // pred_region
      %s235 = ssub.s32 %s11, 1
      %s236 = smul.u32 64, %s20
      %s237 = smul.u32 8, %s21
      %p238 = scmp.lt.s32.totalorder %s236, 127
      %s239 = scalar_select %p238, %s236, 127
      %p240 = scmp.lt.s32.totalorder %s237, 7
      %s241 = scalar_select %p240, %s237, 7
      %s242 = smul.addr %s239, 8
      %s243 = sadd.s32 %s241, %s242
      %s244 = smul.addr %s243, 4
      %s245 = scalar_lea.vmem %s0, %s244
      %p246 = pneg %p51
      %p247 = pneg %p48
      %s248 = smul.u32 128, %s21
      %p249 = scmp.lt.s32.totalorder %s248, 127
      %s250 = scalar_select %p249, %s248, 127
      %s251 = smul.addr %s250, 4
      %s252 = scalar_lea.vmem %s1, %s251
      %p253 = pneg %p77
      %p254 = pneg %p74
      %s255 = smul.u32 64, %s20
      %p256 = scmp.lt.s32.totalorder %s255, 127
      %s257 = scalar_select %p256, %s255, 127
      %s258 = smul.addr %s257, 4
      %s259 = scalar_lea.vmem %s2, %s258
      %p260 = pneg %p103
      %p261 = pneg %p100
      %p262 = pneg %p124
      %p263 = pneg %p121
      %p264 = pneg %p145
      %p265 = pneg %p142
      %p266 = pneg %p171
      %p267 = pneg %p168
      %s268 = smul.u32 64, %s20
      %p269 = scmp.lt.s32.totalorder %s268, 127
      %s270 = scalar_select %p269, %s268, 127
      %s271 = smul.addr %s270, 8
      %s272 = scalar_lea.vmem %s5, %s271
      %s273 = smul.u32 64, %s20
      %s274 = smul.u32 8, %s21
      %p275 = scmp.lt.s32.totalorder %s273, 127
      %s276 = scalar_select %p275, %s273, 127
      %p277 = scmp.lt.s32.totalorder %s274, 7
      %s278 = scalar_select %p277, %s274, 7
      %s279 = smul.addr %s276, 8
      %s280 = sadd.s32 %s278, %s279
      %s281 = smul.addr %s280, 4
      %s282 = scalar_lea.vmem %s0, %s281
      %s283 = smul.u32 64, %s20
      %s284 = smul.u32 8, %s21
      %s285 = smul.u32 128, %s21
      %p286 = scmp.lt.s32.totalorder %s285, 127
      %s287 = scalar_select %p286, %s285, 127
      %s288 = smul.addr %s287, 4
      %s289 = scalar_lea.vmem %s1, %s288
      %s290 = smul.u32 128, %s21
      %s291 = smul.u32 64, %s20
      %p292 = scmp.lt.s32.totalorder %s291, 127
      %s293 = scalar_select %p292, %s291, 127
      %s294 = smul.addr %s293, 4
      %s295 = scalar_lea.vmem %s2, %s294
      %s296 = smul.u32 64, %s20
      %s297 = smul.u32 64, %s20
      %p298 = scmp.lt.s32.totalorder %s297, 127
      %s299 = scalar_select %p298, %s297, 127
      %s300 = smul.addr %s299, 8
      %s301 = scalar_lea.vmem %s5, %s300
      %s302 = smul.u32 64, %s20
      %p303 = scmp.eq.s32.totalorder %s21, 0
      // Predicated region
      $region41: #{sage_forward.11} parent=39 // pred_check
        %p304 = pneg %p303
      $region42: #{sage_forward.11} parent=39 // pred_check_branch
        %306 = sbr.rel (%p304) target = $region44
      $region43: #{sage_forward.11} parent=39 // pred_region
        %307 = vst [vmem:[#allocation2] sm:$0xff] 0.0
        %308 = vst [vmem:[#allocation2 + $0x8] sm:$0xff] 0.0
        %309 = vst [vmem:[#allocation2 + $0x10] sm:$0xff] 0.0
        %310 = vst [vmem:[#allocation2 + $0x18] sm:$0xff] 0.0
        %311 = vst [vmem:[#allocation2 + $0x20] sm:$0xff] 0.0
        %312 = vst [vmem:[#allocation2 + $0x28] sm:$0xff] 0.0
        %313 = vst [vmem:[#allocation2 + $0x30] sm:$0xff] 0.0
        %314 = vst [vmem:[#allocation2 + $0x38] sm:$0xff] 0.0
        %315 = vst [vmem:[#allocation2 + $0x40] sm:$0xff] 0.0
        %316 = vst [vmem:[#allocation2 + $0x48] sm:$0xff] 0.0
        %317 = vst [vmem:[#allocation2 + $0x50] sm:$0xff] 0.0
        %318 = vst [vmem:[#allocation2 + $0x58] sm:$0xff] 0.0
        %319 = vst [vmem:[#allocation2 + $0x60] sm:$0xff] 0.0
        %320 = vst [vmem:[#allocation2 + $0x68] sm:$0xff] 0.0
        %321 = vst [vmem:[#allocation2 + $0x70] sm:$0xff] 0.0
        %322 = vst [vmem:[#allocation2 + $0x78] sm:$0xff] 0.0
        %323 = vst [vmem:[#allocation2 + $0x80] sm:$0xff] 0.0
        %324 = vst [vmem:[#allocation2 + $0x88] sm:$0xff] 0.0
        %325 = vst [vmem:[#allocation2 + $0x90] sm:$0xff] 0.0
        %326 = vst [vmem:[#allocation2 + $0x98] sm:$0xff] 0.0
        %327 = vst [vmem:[#allocation2 + $0xa0] sm:$0xff] 0.0
        %328 = vst [vmem:[#allocation2 + $0xa8] sm:$0xff] 0.0
        %329 = vst [vmem:[#allocation2 + $0xb0] sm:$0xff] 0.0
        %330 = vst [vmem:[#allocation2 + $0xb8] sm:$0xff] 0.0
        %331 = vst [vmem:[#allocation2 + $0xc0] sm:$0xff] 0.0
        %332 = vst [vmem:[#allocation2 + $0xc8] sm:$0xff] 0.0
        %333 = vst [vmem:[#allocation2 + $0xd0] sm:$0xff] 0.0
        %334 = vst [vmem:[#allocation2 + $0xd8] sm:$0xff] 0.0
        %335 = vst [vmem:[#allocation2 + $0xe0] sm:$0xff] 0.0
        %336 = vst [vmem:[#allocation2 + $0xe8] sm:$0xff] 0.0
        %337 = vst [vmem:[#allocation2 + $0xf0] sm:$0xff] 0.0
        %338 = vst [vmem:[#allocation2 + $0xf8] sm:$0xff] 0.0
        %339 = vst [vmem:[#allocation2 + $0x100] sm:$0xff] 0.0
        %340 = vst [vmem:[#allocation2 + $0x108] sm:$0xff] 0.0
        %341 = vst [vmem:[#allocation2 + $0x110] sm:$0xff] 0.0
        %342 = vst [vmem:[#allocation2 + $0x118] sm:$0xff] 0.0
        %343 = vst [vmem:[#allocation2 + $0x120] sm:$0xff] 0.0
        %344 = vst [vmem:[#allocation2 + $0x128] sm:$0xff] 0.0
        %345 = vst [vmem:[#allocation2 + $0x130] sm:$0xff] 0.0
        %346 = vst [vmem:[#allocation2 + $0x138] sm:$0xff] 0.0
        %347 = vst [vmem:[#allocation2 + $0x140] sm:$0xff] 0.0
        %348 = vst [vmem:[#allocation2 + $0x148] sm:$0xff] 0.0
        %349 = vst [vmem:[#allocation2 + $0x150] sm:$0xff] 0.0
        %350 = vst [vmem:[#allocation2 + $0x158] sm:$0xff] 0.0
        %351 = vst [vmem:[#allocation2 + $0x160] sm:$0xff] 0.0
        %352 = vst [vmem:[#allocation2 + $0x168] sm:$0xff] 0.0
        %353 = vst [vmem:[#allocation2 + $0x170] sm:$0xff] 0.0
        %354 = vst [vmem:[#allocation2 + $0x178] sm:$0xff] 0.0
        %355 = vst [vmem:[#allocation2 + $0x180] sm:$0xff] 0.0
        %356 = vst [vmem:[#allocation2 + $0x188] sm:$0xff] 0.0
        %357 = vst [vmem:[#allocation2 + $0x190] sm:$0xff] 0.0
        %358 = vst [vmem:[#allocation2 + $0x198] sm:$0xff] 0.0
        %359 = vst [vmem:[#allocation2 + $0x1a0] sm:$0xff] 0.0
        %360 = vst [vmem:[#allocation2 + $0x1a8] sm:$0xff] 0.0
        %361 = vst [vmem:[#allocation2 + $0x1b0] sm:$0xff] 0.0
        %362 = vst [vmem:[#allocation2 + $0x1b8] sm:$0xff] 0.0
        %363 = vst [vmem:[#allocation2 + $0x1c0] sm:$0xff] 0.0
        %364 = vst [vmem:[#allocation2 + $0x1c8] sm:$0xff] 0.0
        %365 = vst [vmem:[#allocation2 + $0x1d0] sm:$0xff] 0.0
        %366 = vst [vmem:[#allocation2 + $0x1d8] sm:$0xff] 0.0
        %367 = vst [vmem:[#allocation2 + $0x1e0] sm:$0xff] 0.0
        %368 = vst [vmem:[#allocation2 + $0x1e8] sm:$0xff] 0.0
        %369 = vst [vmem:[#allocation2 + $0x1f0] sm:$0xff] 0.0
        %370 = vst [vmem:[#allocation2 + $0x1f8] sm:$0xff] 0.0
      $region44: #{sage_forward.11} parent=39 // pred_fallthru
        _
      %v371 = vld [vmem:[#allocation2] sm:$0xff]
      %v372 = vld [vmem:[#allocation2 + $0x8] sm:$0xff]
      %v373 = vld [vmem:[#allocation2 + $0x10] sm:$0xff]
      %v374 = vld [vmem:[#allocation2 + $0x18] sm:$0xff]
      %v375 = vld [vmem:[#allocation2 + $0x20] sm:$0xff]
      %v376 = vld [vmem:[#allocation2 + $0x28] sm:$0xff]
      %v377 = vld [vmem:[#allocation2 + $0x30] sm:$0xff]
      %v378 = vld [vmem:[#allocation2 + $0x38] sm:$0xff]
      %v379 = vld [vmem:[#allocation2 + $0x40] sm:$0xff]
      %v380 = vld [vmem:[#allocation2 + $0x48] sm:$0xff]
      %v381 = vld [vmem:[#allocation2 + $0x50] sm:$0xff]
      %v382 = vld [vmem:[#allocation2 + $0x58] sm:$0xff]
      %v383 = vld [vmem:[#allocation2 + $0x60] sm:$0xff]
      %v384 = vld [vmem:[#allocation2 + $0x68] sm:$0xff]
      %v385 = vld [vmem:[#allocation2 + $0x70] sm:$0xff]
      %v386 = vld [vmem:[#allocation2 + $0x78] sm:$0xff]
      %v387 = vld [vmem:[#allocation2 + $0x80] sm:$0xff]
      %v388 = vld [vmem:[#allocation2 + $0x88] sm:$0xff]
      %v389 = vld [vmem:[#allocation2 + $0x90] sm:$0xff]
      %v390 = vld [vmem:[#allocation2 + $0x98] sm:$0xff]
      %v391 = vld [vmem:[#allocation2 + $0xa0] sm:$0xff]
      %v392 = vld [vmem:[#allocation2 + $0xa8] sm:$0xff]
      %v393 = vld [vmem:[#allocation2 + $0xb0] sm:$0xff]
      %v394 = vld [vmem:[#allocation2 + $0xb8] sm:$0xff]
      %v395 = vld [vmem:[#allocation2 + $0xc0] sm:$0xff]
      %v396 = vld [vmem:[#allocation2 + $0xc8] sm:$0xff]
      %v397 = vld [vmem:[#allocation2 + $0xd0] sm:$0xff]
      %v398 = vld [vmem:[#allocation2 + $0xd8] sm:$0xff]
      %v399 = vld [vmem:[#allocation2 + $0xe0] sm:$0xff]
      %v400 = vld [vmem:[#allocation2 + $0xe8] sm:$0xff]
      %v401 = vld [vmem:[#allocation2 + $0xf0] sm:$0xff]
      %v402 = vld [vmem:[#allocation2 + $0xf8] sm:$0xff]
      %v403 = vld [vmem:[#allocation2 + $0x100] sm:$0xff]
      %v404 = vld [vmem:[#allocation2 + $0x108] sm:$0xff]
      %v405 = vld [vmem:[#allocation2 + $0x110] sm:$0xff]
      %v406 = vld [vmem:[#allocation2 + $0x118] sm:$0xff]
      %v407 = vld [vmem:[#allocation2 + $0x120] sm:$0xff]
      %v408 = vld [vmem:[#allocation2 + $0x128] sm:$0xff]
      %v409 = vld [vmem:[#allocation2 + $0x130] sm:$0xff]
      %v410 = vld [vmem:[#allocation2 + $0x138] sm:$0xff]
      %v411 = vld [vmem:[#allocation2 + $0x140] sm:$0xff]
      %v412 = vld [vmem:[#allocation2 + $0x148] sm:$0xff]
      %v413 = vld [vmem:[#allocation2 + $0x150] sm:$0xff]
      %v414 = vld [vmem:[#allocation2 + $0x158] sm:$0xff]
      %v415 = vld [vmem:[#allocation2 + $0x160] sm:$0xff]
      %v416 = vld [vmem:[#allocation2 + $0x168] sm:$0xff]
      %v417 = vld [vmem:[#allocation2 + $0x170] sm:$0xff]
      %v418 = vld [vmem:[#allocation2 + $0x178] sm:$0xff]
      %v419 = vld [vmem:[#allocation2 + $0x180] sm:$0xff]
      %v420 = vld [vmem:[#allocation2 + $0x188] sm:$0xff]
      %v421 = vld [vmem:[#allocation2 + $0x190] sm:$0xff]
      %v422 = vld [vmem:[#allocation2 + $0x198] sm:$0xff]
      %v423 = vld [vmem:[#allocation2 + $0x1a0] sm:$0xff]
      %v424 = vld [vmem:[#allocation2 + $0x1a8] sm:$0xff]
      %v425 = vld [vmem:[#allocation2 + $0x1b0] sm:$0xff]
      %v426 = vld [vmem:[#allocation2 + $0x1b8] sm:$0xff]
      %v427 = vld [vmem:[#allocation2 + $0x1c0] sm:$0xff]
      %v428 = vld [vmem:[#allocation2 + $0x1c8] sm:$0xff]
      %v429 = vld [vmem:[#allocation2 + $0x1d0] sm:$0xff]
      %v430 = vld [vmem:[#allocation2 + $0x1d8] sm:$0xff]
      %v431 = vld [vmem:[#allocation2 + $0x1e0] sm:$0xff]
      %v432 = vld [vmem:[#allocation2 + $0x1e8] sm:$0xff]
      %v433 = vld [vmem:[#allocation2 + $0x1f0] sm:$0xff]
      %v434 = vld [vmem:[#allocation2 + $0x1f8] sm:$0xff]
      %v435 = vld [vmem:[%s282] sm:$0xff]
      %v436 = vld [vmem:[%s282 + $0x8] sm:$0xff]
      %v437 = vld [vmem:[%s282 + $0x10] sm:$0xff]
      %v438 = vld [vmem:[%s282 + $0x18] sm:$0xff]
      %v439 = vld [vmem:[%s282 + $0x20] sm:$0xff]
      %v440 = vld [vmem:[%s282 + $0x28] sm:$0xff]
      %v441 = vld [vmem:[%s282 + $0x30] sm:$0xff]
      %v442 = vld [vmem:[%s282 + $0x38] sm:$0xff]
      %v443 = vld [vmem:[%s282 + $0x40] sm:$0xff]
      %v444 = vld [vmem:[%s282 + $0x48] sm:$0xff]
      %v445 = vld [vmem:[%s282 + $0x50] sm:$0xff]
      %v446 = vld [vmem:[%s282 + $0x58] sm:$0xff]
      %v447 = vld [vmem:[%s282 + $0x60] sm:$0xff]
      %v448 = vld [vmem:[%s282 + $0x68] sm:$0xff]
      %v449 = vld [vmem:[%s282 + $0x70] sm:$0xff]
      %v450 = vld [vmem:[%s282 + $0x78] sm:$0xff]
      %v451 = vld [vmem:[%s282 + $0x80] sm:$0xff]
      %v452 = vld [vmem:[%s282 + $0x88] sm:$0xff]
      %v453 = vld [vmem:[%s282 + $0x90] sm:$0xff]
      %v454 = vld [vmem:[%s282 + $0x98] sm:$0xff]
      %v455 = vld [vmem:[%s282 + $0xa0] sm:$0xff]
      %v456 = vld [vmem:[%s282 + $0xa8] sm:$0xff]
      %v457 = vld [vmem:[%s282 + $0xb0] sm:$0xff]
      %v458 = vld [vmem:[%s282 + $0xb8] sm:$0xff]
      %v459 = vld [vmem:[%s282 + $0xc0] sm:$0xff]
      %v460 = vld [vmem:[%s282 + $0xc8] sm:$0xff]
      %v461 = vld [vmem:[%s282 + $0xd0] sm:$0xff]
      %v462 = vld [vmem:[%s282 + $0xd8] sm:$0xff]
      %v463 = vld [vmem:[%s282 + $0xe0] sm:$0xff]
      %v464 = vld [vmem:[%s282 + $0xe8] sm:$0xff]
      %v465 = vld [vmem:[%s282 + $0xf0] sm:$0xff]
      %v466 = vld [vmem:[%s282 + $0xf8] sm:$0xff]
      %v467 = vld [vmem:[%s282 + $0x100] sm:$0xff]
      %v468 = vld [vmem:[%s282 + $0x108] sm:$0xff]
      %v469 = vld [vmem:[%s282 + $0x110] sm:$0xff]
      %v470 = vld [vmem:[%s282 + $0x118] sm:$0xff]
      %v471 = vld [vmem:[%s282 + $0x120] sm:$0xff]
      %v472 = vld [vmem:[%s282 + $0x128] sm:$0xff]
      %v473 = vld [vmem:[%s282 + $0x130] sm:$0xff]
      %v474 = vld [vmem:[%s282 + $0x138] sm:$0xff]
      %v475 = vld [vmem:[%s282 + $0x140] sm:$0xff]
      %v476 = vld [vmem:[%s282 + $0x148] sm:$0xff]
      %v477 = vld [vmem:[%s282 + $0x150] sm:$0xff]
      %v478 = vld [vmem:[%s282 + $0x158] sm:$0xff]
      %v479 = vld [vmem:[%s282 + $0x160] sm:$0xff]
      %v480 = vld [vmem:[%s282 + $0x168] sm:$0xff]
      %v481 = vld [vmem:[%s282 + $0x170] sm:$0xff]
      %v482 = vld [vmem:[%s282 + $0x178] sm:$0xff]
      %v483 = vld [vmem:[%s282 + $0x180] sm:$0xff]
      %v484 = vld [vmem:[%s282 + $0x188] sm:$0xff]
      %v485 = vld [vmem:[%s282 + $0x190] sm:$0xff]
      %v486 = vld [vmem:[%s282 + $0x198] sm:$0xff]
      %v487 = vld [vmem:[%s282 + $0x1a0] sm:$0xff]
      %v488 = vld [vmem:[%s282 + $0x1a8] sm:$0xff]
      %v489 = vld [vmem:[%s282 + $0x1b0] sm:$0xff]
      %v490 = vld [vmem:[%s282 + $0x1b8] sm:$0xff]
      %v491 = vld [vmem:[%s282 + $0x1c0] sm:$0xff]
      %v492 = vld [vmem:[%s282 + $0x1c8] sm:$0xff]
      %v493 = vld [vmem:[%s282 + $0x1d0] sm:$0xff]
      %v494 = vld [vmem:[%s282 + $0x1d8] sm:$0xff]
      %v495 = vld [vmem:[%s282 + $0x1e0] sm:$0xff]
      %v496 = vld [vmem:[%s282 + $0x1e8] sm:$0xff]
      %v497 = vld [vmem:[%s282 + $0x1f0] sm:$0xff]
      %v498 = vld [vmem:[%s282 + $0x1f8] sm:$0xff]
      %v499 = vld [vmem:[%s282 + $0x200] sm:$0xff]
      %v500 = vld [vmem:[%s282 + $0x208] sm:$0xff]
      %v501 = vld [vmem:[%s282 + $0x210] sm:$0xff]
      %v502 = vld [vmem:[%s282 + $0x218] sm:$0xff]
      %v503 = vld [vmem:[%s282 + $0x220] sm:$0xff]
      %v504 = vld [vmem:[%s282 + $0x228] sm:$0xff]
      %v505 = vld [vmem:[%s282 + $0x230] sm:$0xff]
      %v506 = vld [vmem:[%s282 + $0x238] sm:$0xff]
      %v507 = vld [vmem:[%s282 + $0x240] sm:$0xff]
      %v508 = vld [vmem:[%s282 + $0x248] sm:$0xff]
      %v509 = vld [vmem:[%s282 + $0x250] sm:$0xff]
      %v510 = vld [vmem:[%s282 + $0x258] sm:$0xff]
      %v511 = vld [vmem:[%s282 + $0x260] sm:$0xff]
      %v512 = vld [vmem:[%s282 + $0x268] sm:$0xff]
      %v513 = vld [vmem:[%s282 + $0x270] sm:$0xff]
      %v514 = vld [vmem:[%s282 + $0x278] sm:$0xff]
      %v515 = vld [vmem:[%s282 + $0x280] sm:$0xff]
      %v516 = vld [vmem:[%s282 + $0x288] sm:$0xff]
      %v517 = vld [vmem:[%s282 + $0x290] sm:$0xff]
      %v518 = vld [vmem:[%s282 + $0x298] sm:$0xff]
      %v519 = vld [vmem:[%s282 + $0x2a0] sm:$0xff]
      %v520 = vld [vmem:[%s282 + $0x2a8] sm:$0xff]
      %v521 = vld [vmem:[%s282 + $0x2b0] sm:$0xff]
      %v522 = vld [vmem:[%s282 + $0x2b8] sm:$0xff]
      %v523 = vld [vmem:[%s282 + $0x2c0] sm:$0xff]
      %v524 = vld [vmem:[%s282 + $0x2c8] sm:$0xff]
      %v525 = vld [vmem:[%s282 + $0x2d0] sm:$0xff]
      %v526 = vld [vmem:[%s282 + $0x2d8] sm:$0xff]
      %v527 = vld [vmem:[%s282 + $0x2e0] sm:$0xff]
      %v528 = vld [vmem:[%s282 + $0x2e8] sm:$0xff]
      %v529 = vld [vmem:[%s282 + $0x2f0] sm:$0xff]
      %v530 = vld [vmem:[%s282 + $0x2f8] sm:$0xff]
      %v531 = vld [vmem:[%s282 + $0x300] sm:$0xff]
      %v532 = vld [vmem:[%s282 + $0x308] sm:$0xff]
      %v533 = vld [vmem:[%s282 + $0x310] sm:$0xff]
      %v534 = vld [vmem:[%s282 + $0x318] sm:$0xff]
      %v535 = vld [vmem:[%s282 + $0x320] sm:$0xff]
      %v536 = vld [vmem:[%s282 + $0x328] sm:$0xff]
      %v537 = vld [vmem:[%s282 + $0x330] sm:$0xff]
      %v538 = vld [vmem:[%s282 + $0x338] sm:$0xff]
      %v539 = vld [vmem:[%s282 + $0x340] sm:$0xff]
      %v540 = vld [vmem:[%s282 + $0x348] sm:$0xff]
      %v541 = vld [vmem:[%s282 + $0x350] sm:$0xff]
      %v542 = vld [vmem:[%s282 + $0x358] sm:$0xff]
      %v543 = vld [vmem:[%s282 + $0x360] sm:$0xff]
      %v544 = vld [vmem:[%s282 + $0x368] sm:$0xff]
      %v545 = vld [vmem:[%s282 + $0x370] sm:$0xff]
      %v546 = vld [vmem:[%s282 + $0x378] sm:$0xff]
      %v547 = vld [vmem:[%s282 + $0x380] sm:$0xff]
      %v548 = vld [vmem:[%s282 + $0x388] sm:$0xff]
      %v549 = vld [vmem:[%s282 + $0x390] sm:$0xff]
      %v550 = vld [vmem:[%s282 + $0x398] sm:$0xff]
      %v551 = vld [vmem:[%s282 + $0x3a0] sm:$0xff]
      %v552 = vld [vmem:[%s282 + $0x3a8] sm:$0xff]
      %v553 = vld [vmem:[%s282 + $0x3b0] sm:$0xff]
      %v554 = vld [vmem:[%s282 + $0x3b8] sm:$0xff]
      %v555 = vld [vmem:[%s282 + $0x3c0] sm:$0xff]
      %v556 = vld [vmem:[%s282 + $0x3c8] sm:$0xff]
      %v557 = vld [vmem:[%s282 + $0x3d0] sm:$0xff]
      %v558 = vld [vmem:[%s282 + $0x3d8] sm:$0xff]
      %v559 = vld [vmem:[%s282 + $0x3e0] sm:$0xff]
      %v560 = vld [vmem:[%s282 + $0x3e8] sm:$0xff]
      %v561 = vld [vmem:[%s282 + $0x3f0] sm:$0xff]
      %v562 = vld [vmem:[%s282 + $0x3f8] sm:$0xff]
      %v563 = vld [vmem:[%s282 + $0x400] sm:$0xff]
      %v564 = vld [vmem:[%s282 + $0x408] sm:$0xff]
      %v565 = vld [vmem:[%s282 + $0x410] sm:$0xff]
      %v566 = vld [vmem:[%s282 + $0x418] sm:$0xff]
      %v567 = vld [vmem:[%s282 + $0x420] sm:$0xff]
      %v568 = vld [vmem:[%s282 + $0x428] sm:$0xff]
      %v569 = vld [vmem:[%s282 + $0x430] sm:$0xff]
      %v570 = vld [vmem:[%s282 + $0x438] sm:$0xff]
      %v571 = vld [vmem:[%s282 + $0x440] sm:$0xff]
      %v572 = vld [vmem:[%s282 + $0x448] sm:$0xff]
      %v573 = vld [vmem:[%s282 + $0x450] sm:$0xff]
      %v574 = vld [vmem:[%s282 + $0x458] sm:$0xff]
      %v575 = vld [vmem:[%s282 + $0x460] sm:$0xff]
      %v576 = vld [vmem:[%s282 + $0x468] sm:$0xff]
      %v577 = vld [vmem:[%s282 + $0x470] sm:$0xff]
      %v578 = vld [vmem:[%s282 + $0x478] sm:$0xff]
      %v579 = vld [vmem:[%s282 + $0x480] sm:$0xff]
      %v580 = vld [vmem:[%s282 + $0x488] sm:$0xff]
      %v581 = vld [vmem:[%s282 + $0x490] sm:$0xff]
      %v582 = vld [vmem:[%s282 + $0x498] sm:$0xff]
      %v583 = vld [vmem:[%s282 + $0x4a0] sm:$0xff]
      %v584 = vld [vmem:[%s282 + $0x4a8] sm:$0xff]
      %v585 = vld [vmem:[%s282 + $0x4b0] sm:$0xff]
      %v586 = vld [vmem:[%s282 + $0x4b8] sm:$0xff]
      %v587 = vld [vmem:[%s282 + $0x4c0] sm:$0xff]
      %v588 = vld [vmem:[%s282 + $0x4c8] sm:$0xff]
      %v589 = vld [vmem:[%s282 + $0x4d0] sm:$0xff]
      %v590 = vld [vmem:[%s282 + $0x4d8] sm:$0xff]
      %v591 = vld [vmem:[%s282 + $0x4e0] sm:$0xff]
      %v592 = vld [vmem:[%s282 + $0x4e8] sm:$0xff]
      %v593 = vld [vmem:[%s282 + $0x4f0] sm:$0xff]
      %v594 = vld [vmem:[%s282 + $0x4f8] sm:$0xff]
      %v595 = vld [vmem:[%s282 + $0x500] sm:$0xff]
      %v596 = vld [vmem:[%s282 + $0x508] sm:$0xff]
      %v597 = vld [vmem:[%s282 + $0x510] sm:$0xff]
      %v598 = vld [vmem:[%s282 + $0x518] sm:$0xff]
      %v599 = vld [vmem:[%s282 + $0x520] sm:$0xff]
      %v600 = vld [vmem:[%s282 + $0x528] sm:$0xff]
      %v601 = vld [vmem:[%s282 + $0x530] sm:$0xff]
      %v602 = vld [vmem:[%s282 + $0x538] sm:$0xff]
      %v603 = vld [vmem:[%s282 + $0x540] sm:$0xff]
      %v604 = vld [vmem:[%s282 + $0x548] sm:$0xff]
      %v605 = vld [vmem:[%s282 + $0x550] sm:$0xff]
      %v606 = vld [vmem:[%s282 + $0x558] sm:$0xff]
      %v607 = vld [vmem:[%s282 + $0x560] sm:$0xff]
      %v608 = vld [vmem:[%s282 + $0x568] sm:$0xff]
      %v609 = vld [vmem:[%s282 + $0x570] sm:$0xff]
      %v610 = vld [vmem:[%s282 + $0x578] sm:$0xff]
      %v611 = vld [vmem:[%s282 + $0x580] sm:$0xff]
      %v612 = vld [vmem:[%s282 + $0x588] sm:$0xff]
      %v613 = vld [vmem:[%s282 + $0x590] sm:$0xff]
      %v614 = vld [vmem:[%s282 + $0x598] sm:$0xff]
      %v615 = vld [vmem:[%s282 + $0x5a0] sm:$0xff]
      %v616 = vld [vmem:[%s282 + $0x5a8] sm:$0xff]
      %v617 = vld [vmem:[%s282 + $0x5b0] sm:$0xff]
      %v618 = vld [vmem:[%s282 + $0x5b8] sm:$0xff]
      %v619 = vld [vmem:[%s282 + $0x5c0] sm:$0xff]
      %v620 = vld [vmem:[%s282 + $0x5c8] sm:$0xff]
      %v621 = vld [vmem:[%s282 + $0x5d0] sm:$0xff]
      %v622 = vld [vmem:[%s282 + $0x5d8] sm:$0xff]
      %v623 = vld [vmem:[%s282 + $0x5e0] sm:$0xff]
      %v624 = vld [vmem:[%s282 + $0x5e8] sm:$0xff]
      %v625 = vld [vmem:[%s282 + $0x5f0] sm:$0xff]
      %v626 = vld [vmem:[%s282 + $0x5f8] sm:$0xff]
      %v627 = vld [vmem:[%s282 + $0x600] sm:$0xff]
      %v628 = vld [vmem:[%s282 + $0x608] sm:$0xff]
      %v629 = vld [vmem:[%s282 + $0x610] sm:$0xff]
      %v630 = vld [vmem:[%s282 + $0x618] sm:$0xff]
      %v631 = vld [vmem:[%s282 + $0x620] sm:$0xff]
      %v632 = vld [vmem:[%s282 + $0x628] sm:$0xff]
      %v633 = vld [vmem:[%s282 + $0x630] sm:$0xff]
      %v634 = vld [vmem:[%s282 + $0x638] sm:$0xff]
      %v635 = vld [vmem:[%s282 + $0x640] sm:$0xff]
      %v636 = vld [vmem:[%s282 + $0x648] sm:$0xff]
      %v637 = vld [vmem:[%s282 + $0x650] sm:$0xff]
      %v638 = vld [vmem:[%s282 + $0x658] sm:$0xff]
      %v639 = vld [vmem:[%s282 + $0x660] sm:$0xff]
      %v640 = vld [vmem:[%s282 + $0x668] sm:$0xff]
      %v641 = vld [vmem:[%s282 + $0x670] sm:$0xff]
      %v642 = vld [vmem:[%s282 + $0x678] sm:$0xff]
      %v643 = vld [vmem:[%s282 + $0x680] sm:$0xff]
      %v644 = vld [vmem:[%s282 + $0x688] sm:$0xff]
      %v645 = vld [vmem:[%s282 + $0x690] sm:$0xff]
      %v646 = vld [vmem:[%s282 + $0x698] sm:$0xff]
      %v647 = vld [vmem:[%s282 + $0x6a0] sm:$0xff]
      %v648 = vld [vmem:[%s282 + $0x6a8] sm:$0xff]
      %v649 = vld [vmem:[%s282 + $0x6b0] sm:$0xff]
      %v650 = vld [vmem:[%s282 + $0x6b8] sm:$0xff]
      %v651 = vld [vmem:[%s282 + $0x6c0] sm:$0xff]
      %v652 = vld [vmem:[%s282 + $0x6c8] sm:$0xff]
      %v653 = vld [vmem:[%s282 + $0x6d0] sm:$0xff]
      %v654 = vld [vmem:[%s282 + $0x6d8] sm:$0xff]
      %v655 = vld [vmem:[%s282 + $0x6e0] sm:$0xff]
      %v656 = vld [vmem:[%s282 + $0x6e8] sm:$0xff]
      %v657 = vld [vmem:[%s282 + $0x6f0] sm:$0xff]
      %v658 = vld [vmem:[%s282 + $0x6f8] sm:$0xff]
      %v659 = vld [vmem:[%s282 + $0x700] sm:$0xff]
      %v660 = vld [vmem:[%s282 + $0x708] sm:$0xff]
      %v661 = vld [vmem:[%s282 + $0x710] sm:$0xff]
      %v662 = vld [vmem:[%s282 + $0x718] sm:$0xff]
      %v663 = vld [vmem:[%s282 + $0x720] sm:$0xff]
      %v664 = vld [vmem:[%s282 + $0x728] sm:$0xff]
      %v665 = vld [vmem:[%s282 + $0x730] sm:$0xff]
      %v666 = vld [vmem:[%s282 + $0x738] sm:$0xff]
      %v667 = vld [vmem:[%s282 + $0x740] sm:$0xff]
      %v668 = vld [vmem:[%s282 + $0x748] sm:$0xff]
      %v669 = vld [vmem:[%s282 + $0x750] sm:$0xff]
      %v670 = vld [vmem:[%s282 + $0x758] sm:$0xff]
      %v671 = vld [vmem:[%s282 + $0x760] sm:$0xff]
      %v672 = vld [vmem:[%s282 + $0x768] sm:$0xff]
      %v673 = vld [vmem:[%s282 + $0x770] sm:$0xff]
      %v674 = vld [vmem:[%s282 + $0x778] sm:$0xff]
      %v675 = vld [vmem:[%s282 + $0x780] sm:$0xff]
      %v676 = vld [vmem:[%s282 + $0x788] sm:$0xff]
      %v677 = vld [vmem:[%s282 + $0x790] sm:$0xff]
      %v678 = vld [vmem:[%s282 + $0x798] sm:$0xff]
      %v679 = vld [vmem:[%s282 + $0x7a0] sm:$0xff]
      %v680 = vld [vmem:[%s282 + $0x7a8] sm:$0xff]
      %v681 = vld [vmem:[%s282 + $0x7b0] sm:$0xff]
      %v682 = vld [vmem:[%s282 + $0x7b8] sm:$0xff]
      %v683 = vld [vmem:[%s282 + $0x7c0] sm:$0xff]
      %v684 = vld [vmem:[%s282 + $0x7c8] sm:$0xff]
      %v685 = vld [vmem:[%s282 + $0x7d0] sm:$0xff]
      %v686 = vld [vmem:[%s282 + $0x7d8] sm:$0xff]
      %v687 = vld [vmem:[%s282 + $0x7e0] sm:$0xff]
      %v688 = vld [vmem:[%s282 + $0x7e8] sm:$0xff]
      %v689 = vld [vmem:[%s282 + $0x7f0] sm:$0xff]
      %v690 = vld [vmem:[%s282 + $0x7f8] sm:$0xff]
      %v691 = vld [vmem:[%s289] sm:$0xf]
      %v692 = vld [vmem:[%s289 + $0x4] sm:$0xf]
      %v693 = vld [vmem:[%s289 + $0x8] sm:$0xf]
      %v694 = vld [vmem:[%s289 + $0xc] sm:$0xf]
      %v695 = vld [vmem:[%s289 + $0x10] sm:$0xf]
      %v696 = vld [vmem:[%s289 + $0x14] sm:$0xf]
      %v697 = vld [vmem:[%s289 + $0x18] sm:$0xf]
      %v698 = vld [vmem:[%s289 + $0x1c] sm:$0xf]
      %v699 = vld [vmem:[%s289 + $0x20] sm:$0xf]
      %v700 = vld [vmem:[%s289 + $0x24] sm:$0xf]
      %v701 = vld [vmem:[%s289 + $0x28] sm:$0xf]
      %v702 = vld [vmem:[%s289 + $0x2c] sm:$0xf]
      %v703 = vld [vmem:[%s289 + $0x30] sm:$0xf]
      %v704 = vld [vmem:[%s289 + $0x34] sm:$0xf]
      %v705 = vld [vmem:[%s289 + $0x38] sm:$0xf]
      %v706 = vld [vmem:[%s289 + $0x3c] sm:$0xf]
      %v707 = vld [vmem:[%s289 + $0x40] sm:$0xf]
      %v708 = vld [vmem:[%s289 + $0x44] sm:$0xf]
      %v709 = vld [vmem:[%s289 + $0x48] sm:$0xf]
      %v710 = vld [vmem:[%s289 + $0x4c] sm:$0xf]
      %v711 = vld [vmem:[%s289 + $0x50] sm:$0xf]
      %v712 = vld [vmem:[%s289 + $0x54] sm:$0xf]
      %v713 = vld [vmem:[%s289 + $0x58] sm:$0xf]
      %v714 = vld [vmem:[%s289 + $0x5c] sm:$0xf]
      %v715 = vld [vmem:[%s289 + $0x60] sm:$0xf]
      %v716 = vld [vmem:[%s289 + $0x64] sm:$0xf]
      %v717 = vld [vmem:[%s289 + $0x68] sm:$0xf]
      %v718 = vld [vmem:[%s289 + $0x6c] sm:$0xf]
      %v719 = vld [vmem:[%s289 + $0x70] sm:$0xf]
      %v720 = vld [vmem:[%s289 + $0x74] sm:$0xf]
      %v721 = vld [vmem:[%s289 + $0x78] sm:$0xf]
      %v722 = vld [vmem:[%s289 + $0x7c] sm:$0xf]
      %v723 = vld [vmem:[%s289 + $0x80] sm:$0xf]
      %v724 = vld [vmem:[%s289 + $0x84] sm:$0xf]
      %v725 = vld [vmem:[%s289 + $0x88] sm:$0xf]
      %v726 = vld [vmem:[%s289 + $0x8c] sm:$0xf]
      %v727 = vld [vmem:[%s289 + $0x90] sm:$0xf]
      %v728 = vld [vmem:[%s289 + $0x94] sm:$0xf]
      %v729 = vld [vmem:[%s289 + $0x98] sm:$0xf]
      %v730 = vld [vmem:[%s289 + $0x9c] sm:$0xf]
      %v731 = vld [vmem:[%s289 + $0xa0] sm:$0xf]
      %v732 = vld [vmem:[%s289 + $0xa4] sm:$0xf]
      %v733 = vld [vmem:[%s289 + $0xa8] sm:$0xf]
      %v734 = vld [vmem:[%s289 + $0xac] sm:$0xf]
      %v735 = vld [vmem:[%s289 + $0xb0] sm:$0xf]
      %v736 = vld [vmem:[%s289 + $0xb4] sm:$0xf]
      %v737 = vld [vmem:[%s289 + $0xb8] sm:$0xf]
      %v738 = vld [vmem:[%s289 + $0xbc] sm:$0xf]
      %v739 = vld [vmem:[%s289 + $0xc0] sm:$0xf]
      %v740 = vld [vmem:[%s289 + $0xc4] sm:$0xf]
      %v741 = vld [vmem:[%s289 + $0xc8] sm:$0xf]
      %v742 = vld [vmem:[%s289 + $0xcc] sm:$0xf]
      %v743 = vld [vmem:[%s289 + $0xd0] sm:$0xf]
      %v744 = vld [vmem:[%s289 + $0xd4] sm:$0xf]
      %v745 = vld [vmem:[%s289 + $0xd8] sm:$0xf]
      %v746 = vld [vmem:[%s289 + $0xdc] sm:$0xf]
      %v747 = vld [vmem:[%s289 + $0xe0] sm:$0xf]
      %v748 = vld [vmem:[%s289 + $0xe4] sm:$0xf]
      %v749 = vld [vmem:[%s289 + $0xe8] sm:$0xf]
      %v750 = vld [vmem:[%s289 + $0xec] sm:$0xf]
      %v751 = vld [vmem:[%s289 + $0xf0] sm:$0xf]
      %v752 = vld [vmem:[%s289 + $0xf4] sm:$0xf]
      %v753 = vld [vmem:[%s289 + $0xf8] sm:$0xf]
      %v754 = vld [vmem:[%s289 + $0xfc] sm:$0xf]
      %v755 = vld [vmem:[%s289 + $0x100] sm:$0xf]
      %v756 = vld [vmem:[%s289 + $0x104] sm:$0xf]
      %v757 = vld [vmem:[%s289 + $0x108] sm:$0xf]
      %v758 = vld [vmem:[%s289 + $0x10c] sm:$0xf]
      %v759 = vld [vmem:[%s289 + $0x110] sm:$0xf]
      %v760 = vld [vmem:[%s289 + $0x114] sm:$0xf]
      %v761 = vld [vmem:[%s289 + $0x118] sm:$0xf]
      %v762 = vld [vmem:[%s289 + $0x11c] sm:$0xf]
      %v763 = vld [vmem:[%s289 + $0x120] sm:$0xf]
      %v764 = vld [vmem:[%s289 + $0x124] sm:$0xf]
      %v765 = vld [vmem:[%s289 + $0x128] sm:$0xf]
      %v766 = vld [vmem:[%s289 + $0x12c] sm:$0xf]
      %v767 = vld [vmem:[%s289 + $0x130] sm:$0xf]
      %v768 = vld [vmem:[%s289 + $0x134] sm:$0xf]
      %v769 = vld [vmem:[%s289 + $0x138] sm:$0xf]
      %v770 = vld [vmem:[%s289 + $0x13c] sm:$0xf]
      %v771 = vld [vmem:[%s289 + $0x140] sm:$0xf]
      %v772 = vld [vmem:[%s289 + $0x144] sm:$0xf]
      %v773 = vld [vmem:[%s289 + $0x148] sm:$0xf]
      %v774 = vld [vmem:[%s289 + $0x14c] sm:$0xf]
      %v775 = vld [vmem:[%s289 + $0x150] sm:$0xf]
      %v776 = vld [vmem:[%s289 + $0x154] sm:$0xf]
      %v777 = vld [vmem:[%s289 + $0x158] sm:$0xf]
      %v778 = vld [vmem:[%s289 + $0x15c] sm:$0xf]
      %v779 = vld [vmem:[%s289 + $0x160] sm:$0xf]
      %v780 = vld [vmem:[%s289 + $0x164] sm:$0xf]
      %v781 = vld [vmem:[%s289 + $0x168] sm:$0xf]
      %v782 = vld [vmem:[%s289 + $0x16c] sm:$0xf]
      %v783 = vld [vmem:[%s289 + $0x170] sm:$0xf]
      %v784 = vld [vmem:[%s289 + $0x174] sm:$0xf]
      %v785 = vld [vmem:[%s289 + $0x178] sm:$0xf]
      %v786 = vld [vmem:[%s289 + $0x17c] sm:$0xf]
      %v787 = vld [vmem:[%s289 + $0x180] sm:$0xf]
      %v788 = vld [vmem:[%s289 + $0x184] sm:$0xf]
      %v789 = vld [vmem:[%s289 + $0x188] sm:$0xf]
      %v790 = vld [vmem:[%s289 + $0x18c] sm:$0xf]
      %v791 = vld [vmem:[%s289 + $0x190] sm:$0xf]
      %v792 = vld [vmem:[%s289 + $0x194] sm:$0xf]
      %v793 = vld [vmem:[%s289 + $0x198] sm:$0xf]
      %v794 = vld [vmem:[%s289 + $0x19c] sm:$0xf]
      %v795 = vld [vmem:[%s289 + $0x1a0] sm:$0xf]
      %v796 = vld [vmem:[%s289 + $0x1a4] sm:$0xf]
      %v797 = vld [vmem:[%s289 + $0x1a8] sm:$0xf]
      %v798 = vld [vmem:[%s289 + $0x1ac] sm:$0xf]
      %v799 = vld [vmem:[%s289 + $0x1b0] sm:$0xf]
      %v800 = vld [vmem:[%s289 + $0x1b4] sm:$0xf]
      %v801 = vld [vmem:[%s289 + $0x1b8] sm:$0xf]
      %v802 = vld [vmem:[%s289 + $0x1bc] sm:$0xf]
      %v803 = vld [vmem:[%s289 + $0x1c0] sm:$0xf]
      %v804 = vld [vmem:[%s289 + $0x1c4] sm:$0xf]
      %v805 = vld [vmem:[%s289 + $0x1c8] sm:$0xf]
      %v806 = vld [vmem:[%s289 + $0x1cc] sm:$0xf]
      %v807 = vld [vmem:[%s289 + $0x1d0] sm:$0xf]
      %v808 = vld [vmem:[%s289 + $0x1d4] sm:$0xf]
      %v809 = vld [vmem:[%s289 + $0x1d8] sm:$0xf]
      %v810 = vld [vmem:[%s289 + $0x1dc] sm:$0xf]
      %v811 = vld [vmem:[%s289 + $0x1e0] sm:$0xf]
      %v812 = vld [vmem:[%s289 + $0x1e4] sm:$0xf]
      %v813 = vld [vmem:[%s289 + $0x1e8] sm:$0xf]
      %v814 = vld [vmem:[%s289 + $0x1ec] sm:$0xf]
      %v815 = vld [vmem:[%s289 + $0x1f0] sm:$0xf]
      %v816 = vld [vmem:[%s289 + $0x1f4] sm:$0xf]
      %v817 = vld [vmem:[%s289 + $0x1f8] sm:$0xf]
      %v818 = vld [vmem:[%s289 + $0x1fc] sm:$0xf]
      %v1075 = vunpack.c.l.b16 %v435
      %v1076 = vunpack.c.h.b16 %v435
      %v1077 = vunpack.c.l.b16 %v436
      %v1078 = vunpack.c.h.b16 %v436
      %v1079 = vunpack.c.l.b16 %v437
      %v1080 = vunpack.c.h.b16 %v437
      %v1081 = vunpack.c.l.b16 %v438
      %v1082 = vunpack.c.h.b16 %v438
      %v1083 = vunpack.c.l.b16 %v439
      %v1084 = vunpack.c.h.b16 %v439
      %v1085 = vunpack.c.l.b16 %v440
      %v1086 = vunpack.c.h.b16 %v440
      %v1087 = vunpack.c.l.b16 %v441
      %v1088 = vunpack.c.h.b16 %v441
      %v1089 = vunpack.c.l.b16 %v442
      %v1090 = vunpack.c.h.b16 %v442
      %v1091 = vunpack.c.l.b16 %v443
      %v1092 = vunpack.c.h.b16 %v443
      %v1093 = vunpack.c.l.b16 %v444
      %v1094 = vunpack.c.h.b16 %v444
      %v1095 = vunpack.c.l.b16 %v445
      %v1096 = vunpack.c.h.b16 %v445
      %v1097 = vunpack.c.l.b16 %v446
      %v1098 = vunpack.c.h.b16 %v446
      %v1099 = vunpack.c.l.b16 %v447
      %v1100 = vunpack.c.h.b16 %v447
      %v1101 = vunpack.c.l.b16 %v448
      %v1102 = vunpack.c.h.b16 %v448
      %v1103 = vunpack.c.l.b16 %v449
      %v1104 = vunpack.c.h.b16 %v449
      %v1105 = vunpack.c.l.b16 %v450
      %v1106 = vunpack.c.h.b16 %v450
      %v1107 = vunpack.c.l.b16 %v451
      %v1108 = vunpack.c.h.b16 %v451
      %v1109 = vunpack.c.l.b16 %v452
      %v1110 = vunpack.c.h.b16 %v452
      %v1111 = vunpack.c.l.b16 %v453
      %v1112 = vunpack.c.h.b16 %v453
      %v1113 = vunpack.c.l.b16 %v454
      %v1114 = vunpack.c.h.b16 %v454
      %v1115 = vunpack.c.l.b16 %v455
      %v1116 = vunpack.c.h.b16 %v455
      %v1117 = vunpack.c.l.b16 %v456
      %v1118 = vunpack.c.h.b16 %v456
      %v1119 = vunpack.c.l.b16 %v457
      %v1120 = vunpack.c.h.b16 %v457
      %v1121 = vunpack.c.l.b16 %v458
      %v1122 = vunpack.c.h.b16 %v458
      %v1123 = vunpack.c.l.b16 %v459
      %v1124 = vunpack.c.h.b16 %v459
      %v1125 = vunpack.c.l.b16 %v460
      %v1126 = vunpack.c.h.b16 %v460
      %v1127 = vunpack.c.l.b16 %v461
      %v1128 = vunpack.c.h.b16 %v461
      %v1129 = vunpack.c.l.b16 %v462
      %v1130 = vunpack.c.h.b16 %v462
      %v1131 = vunpack.c.l.b16 %v463
      %v1132 = vunpack.c.h.b16 %v463
      %v1133 = vunpack.c.l.b16 %v464
      %v1134 = vunpack.c.h.b16 %v464
      %v1135 = vunpack.c.l.b16 %v465
      %v1136 = vunpack.c.h.b16 %v465
      %v1137 = vunpack.c.l.b16 %v466
      %v1138 = vunpack.c.h.b16 %v466
      %v1139 = vunpack.c.l.b16 %v467
      %v1140 = vunpack.c.h.b16 %v467
      %v1141 = vunpack.c.l.b16 %v468
      %v1142 = vunpack.c.h.b16 %v468
      %v1143 = vunpack.c.l.b16 %v469
      %v1144 = vunpack.c.h.b16 %v469
      %v1145 = vunpack.c.l.b16 %v470
      %v1146 = vunpack.c.h.b16 %v470
      %v1147 = vunpack.c.l.b16 %v471
      %v1148 = vunpack.c.h.b16 %v471
      %v1149 = vunpack.c.l.b16 %v472
      %v1150 = vunpack.c.h.b16 %v472
      %v1151 = vunpack.c.l.b16 %v473
      %v1152 = vunpack.c.h.b16 %v473
      %v1153 = vunpack.c.l.b16 %v474
      %v1154 = vunpack.c.h.b16 %v474
      %v1155 = vunpack.c.l.b16 %v475
      %v1156 = vunpack.c.h.b16 %v475
      %v1157 = vunpack.c.l.b16 %v476
      %v1158 = vunpack.c.h.b16 %v476
      %v1159 = vunpack.c.l.b16 %v477
      %v1160 = vunpack.c.h.b16 %v477
      %v1161 = vunpack.c.l.b16 %v478
      %v1162 = vunpack.c.h.b16 %v478
      %v1163 = vunpack.c.l.b16 %v479
      %v1164 = vunpack.c.h.b16 %v479
      %v1165 = vunpack.c.l.b16 %v480
      %v1166 = vunpack.c.h.b16 %v480
      %v1167 = vunpack.c.l.b16 %v481
      %v1168 = vunpack.c.h.b16 %v481
      %v1169 = vunpack.c.l.b16 %v482
      %v1170 = vunpack.c.h.b16 %v482
      %v1171 = vunpack.c.l.b16 %v483
      %v1172 = vunpack.c.h.b16 %v483
      %v1173 = vunpack.c.l.b16 %v484
      %v1174 = vunpack.c.h.b16 %v484
      %v1175 = vunpack.c.l.b16 %v485
      %v1176 = vunpack.c.h.b16 %v485
      %v1177 = vunpack.c.l.b16 %v486
      %v1178 = vunpack.c.h.b16 %v486
      %v1179 = vunpack.c.l.b16 %v487
      %v1180 = vunpack.c.h.b16 %v487
      %v1181 = vunpack.c.l.b16 %v488
      %v1182 = vunpack.c.h.b16 %v488
      %v1183 = vunpack.c.l.b16 %v489
      %v1184 = vunpack.c.h.b16 %v489
      %v1185 = vunpack.c.l.b16 %v490
      %v1186 = vunpack.c.h.b16 %v490
      %v1187 = vunpack.c.l.b16 %v491
      %v1188 = vunpack.c.h.b16 %v491
      %v1189 = vunpack.c.l.b16 %v492
      %v1190 = vunpack.c.h.b16 %v492
      %v1191 = vunpack.c.l.b16 %v493
      %v1192 = vunpack.c.h.b16 %v493
      %v1193 = vunpack.c.l.b16 %v494
      %v1194 = vunpack.c.h.b16 %v494
      %v1195 = vunpack.c.l.b16 %v495
      %v1196 = vunpack.c.h.b16 %v495
      %v1197 = vunpack.c.l.b16 %v496
      %v1198 = vunpack.c.h.b16 %v496
      %v1199 = vunpack.c.l.b16 %v497
      %v1200 = vunpack.c.h.b16 %v497
      %v1201 = vunpack.c.l.b16 %v498
      %v1202 = vunpack.c.h.b16 %v498
      %v1203 = vunpack.c.l.b16 %v499
      %v1204 = vunpack.c.h.b16 %v499
      %v1205 = vunpack.c.l.b16 %v500
      %v1206 = vunpack.c.h.b16 %v500
      %v1207 = vunpack.c.l.b16 %v501
      %v1208 = vunpack.c.h.b16 %v501
      %v1209 = vunpack.c.l.b16 %v502
      %v1210 = vunpack.c.h.b16 %v502
      %v1211 = vunpack.c.l.b16 %v503
      %v1212 = vunpack.c.h.b16 %v503
      %v1213 = vunpack.c.l.b16 %v504
      %v1214 = vunpack.c.h.b16 %v504
      %v1215 = vunpack.c.l.b16 %v505
      %v1216 = vunpack.c.h.b16 %v505
      %v1217 = vunpack.c.l.b16 %v506
      %v1218 = vunpack.c.h.b16 %v506
      %v1219 = vunpack.c.l.b16 %v507
      %v1220 = vunpack.c.h.b16 %v507
      %v1221 = vunpack.c.l.b16 %v508
      %v1222 = vunpack.c.h.b16 %v508
      %v1223 = vunpack.c.l.b16 %v509
      %v1224 = vunpack.c.h.b16 %v509
      %v1225 = vunpack.c.l.b16 %v510
      %v1226 = vunpack.c.h.b16 %v510
      %v1227 = vunpack.c.l.b16 %v511
      %v1228 = vunpack.c.h.b16 %v511
      %v1229 = vunpack.c.l.b16 %v512
      %v1230 = vunpack.c.h.b16 %v512
      %v1231 = vunpack.c.l.b16 %v513
      %v1232 = vunpack.c.h.b16 %v513
      %v1233 = vunpack.c.l.b16 %v514
      %v1234 = vunpack.c.h.b16 %v514
      %v1235 = vunpack.c.l.b16 %v515
      %v1236 = vunpack.c.h.b16 %v515
      %v1237 = vunpack.c.l.b16 %v516
      %v1238 = vunpack.c.h.b16 %v516
      %v1239 = vunpack.c.l.b16 %v517
      %v1240 = vunpack.c.h.b16 %v517
      %v1241 = vunpack.c.l.b16 %v518
      %v1242 = vunpack.c.h.b16 %v518
      %v1243 = vunpack.c.l.b16 %v519
      %v1244 = vunpack.c.h.b16 %v519
      %v1245 = vunpack.c.l.b16 %v520
      %v1246 = vunpack.c.h.b16 %v520
      %v1247 = vunpack.c.l.b16 %v521
      %v1248 = vunpack.c.h.b16 %v521
      %v1249 = vunpack.c.l.b16 %v522
      %v1250 = vunpack.c.h.b16 %v522
      %v1251 = vunpack.c.l.b16 %v523
      %v1252 = vunpack.c.h.b16 %v523
      %v1253 = vunpack.c.l.b16 %v524
      %v1254 = vunpack.c.h.b16 %v524
      %v1255 = vunpack.c.l.b16 %v525
      %v1256 = vunpack.c.h.b16 %v525
      %v1257 = vunpack.c.l.b16 %v526
      %v1258 = vunpack.c.h.b16 %v526
      %v1259 = vunpack.c.l.b16 %v527
      %v1260 = vunpack.c.h.b16 %v527
      %v1261 = vunpack.c.l.b16 %v528
      %v1262 = vunpack.c.h.b16 %v528
      %v1263 = vunpack.c.l.b16 %v529
      %v1264 = vunpack.c.h.b16 %v529
      %v1265 = vunpack.c.l.b16 %v530
      %v1266 = vunpack.c.h.b16 %v530
      %v1267 = vunpack.c.l.b16 %v531
      %v1268 = vunpack.c.h.b16 %v531
      %v1269 = vunpack.c.l.b16 %v532
      %v1270 = vunpack.c.h.b16 %v532
      %v1271 = vunpack.c.l.b16 %v533
      %v1272 = vunpack.c.h.b16 %v533
      %v1273 = vunpack.c.l.b16 %v534
      %v1274 = vunpack.c.h.b16 %v534
      %v1275 = vunpack.c.l.b16 %v535
      %v1276 = vunpack.c.h.b16 %v535
      %v1277 = vunpack.c.l.b16 %v536
      %v1278 = vunpack.c.h.b16 %v536
      %v1279 = vunpack.c.l.b16 %v537
      %v1280 = vunpack.c.h.b16 %v537
      %v1281 = vunpack.c.l.b16 %v538
      %v1282 = vunpack.c.h.b16 %v538
      %v1283 = vunpack.c.l.b16 %v539
      %v1284 = vunpack.c.h.b16 %v539
      %v1285 = vunpack.c.l.b16 %v540
      %v1286 = vunpack.c.h.b16 %v540
      %v1287 = vunpack.c.l.b16 %v541
      %v1288 = vunpack.c.h.b16 %v541
      %v1289 = vunpack.c.l.b16 %v542
      %v1290 = vunpack.c.h.b16 %v542
      %v1291 = vunpack.c.l.b16 %v543
      %v1292 = vunpack.c.h.b16 %v543
      %v1293 = vunpack.c.l.b16 %v544
      %v1294 = vunpack.c.h.b16 %v544
      %v1295 = vunpack.c.l.b16 %v545
      %v1296 = vunpack.c.h.b16 %v545
      %v1297 = vunpack.c.l.b16 %v546
      %v1298 = vunpack.c.h.b16 %v546
      %v1299 = vunpack.c.l.b16 %v547
      %v1300 = vunpack.c.h.b16 %v547
      %v1301 = vunpack.c.l.b16 %v548
      %v1302 = vunpack.c.h.b16 %v548
      %v1303 = vunpack.c.l.b16 %v549
      %v1304 = vunpack.c.h.b16 %v549
      %v1305 = vunpack.c.l.b16 %v550
      %v1306 = vunpack.c.h.b16 %v550
      %v1307 = vunpack.c.l.b16 %v551
      %v1308 = vunpack.c.h.b16 %v551
      %v1309 = vunpack.c.l.b16 %v552
      %v1310 = vunpack.c.h.b16 %v552
      %v1311 = vunpack.c.l.b16 %v553
      %v1312 = vunpack.c.h.b16 %v553
      %v1313 = vunpack.c.l.b16 %v554
      %v1314 = vunpack.c.h.b16 %v554
      %v1315 = vunpack.c.l.b16 %v555
      %v1316 = vunpack.c.h.b16 %v555
      %v1317 = vunpack.c.l.b16 %v556
      %v1318 = vunpack.c.h.b16 %v556
      %v1319 = vunpack.c.l.b16 %v557
      %v1320 = vunpack.c.h.b16 %v557
      %v1321 = vunpack.c.l.b16 %v558
      %v1322 = vunpack.c.h.b16 %v558
      %v1323 = vunpack.c.l.b16 %v559
      %v1324 = vunpack.c.h.b16 %v559
      %v1325 = vunpack.c.l.b16 %v560
      %v1326 = vunpack.c.h.b16 %v560
      %v1327 = vunpack.c.l.b16 %v561
      %v1328 = vunpack.c.h.b16 %v561
      %v1329 = vunpack.c.l.b16 %v562
      %v1330 = vunpack.c.h.b16 %v562
      %v1331 = vunpack.c.l.b16 %v563
      %v1332 = vunpack.c.h.b16 %v563
      %v1333 = vunpack.c.l.b16 %v564
      %v1334 = vunpack.c.h.b16 %v564
      %v1335 = vunpack.c.l.b16 %v565
      %v1336 = vunpack.c.h.b16 %v565
      %v1337 = vunpack.c.l.b16 %v566
      %v1338 = vunpack.c.h.b16 %v566
      %v1339 = vunpack.c.l.b16 %v567
      %v1340 = vunpack.c.h.b16 %v567
      %v1341 = vunpack.c.l.b16 %v568
      %v1342 = vunpack.c.h.b16 %v568
      %v1343 = vunpack.c.l.b16 %v569
      %v1344 = vunpack.c.h.b16 %v569
      %v1345 = vunpack.c.l.b16 %v570
      %v1346 = vunpack.c.h.b16 %v570
      %v1347 = vunpack.c.l.b16 %v571
      %v1348 = vunpack.c.h.b16 %v571
      %v1349 = vunpack.c.l.b16 %v572
      %v1350 = vunpack.c.h.b16 %v572
      %v1351 = vunpack.c.l.b16 %v573
      %v1352 = vunpack.c.h.b16 %v573
      %v1353 = vunpack.c.l.b16 %v574
      %v1354 = vunpack.c.h.b16 %v574
      %v1355 = vunpack.c.l.b16 %v575
      %v1356 = vunpack.c.h.b16 %v575
      %v1357 = vunpack.c.l.b16 %v576
      %v1358 = vunpack.c.h.b16 %v576
      %v1359 = vunpack.c.l.b16 %v577
      %v1360 = vunpack.c.h.b16 %v577
      %v1361 = vunpack.c.l.b16 %v578
      %v1362 = vunpack.c.h.b16 %v578
      %v1363 = vunpack.c.l.b16 %v579
      %v1364 = vunpack.c.h.b16 %v579
      %v1365 = vunpack.c.l.b16 %v580
      %v1366 = vunpack.c.h.b16 %v580
      %v1367 = vunpack.c.l.b16 %v581
      %v1368 = vunpack.c.h.b16 %v581
      %v1369 = vunpack.c.l.b16 %v582
      %v1370 = vunpack.c.h.b16 %v582
      %v1371 = vunpack.c.l.b16 %v583
      %v1372 = vunpack.c.h.b16 %v583
      %v1373 = vunpack.c.l.b16 %v584
      %v1374 = vunpack.c.h.b16 %v584
      %v1375 = vunpack.c.l.b16 %v585
      %v1376 = vunpack.c.h.b16 %v585
      %v1377 = vunpack.c.l.b16 %v586
      %v1378 = vunpack.c.h.b16 %v586
      %v1379 = vunpack.c.l.b16 %v587
      %v1380 = vunpack.c.h.b16 %v587
      %v1381 = vunpack.c.l.b16 %v588
      %v1382 = vunpack.c.h.b16 %v588
      %v1383 = vunpack.c.l.b16 %v589
      %v1384 = vunpack.c.h.b16 %v589
      %v1385 = vunpack.c.l.b16 %v590
      %v1386 = vunpack.c.h.b16 %v590
      %v1387 = vunpack.c.l.b16 %v591
      %v1388 = vunpack.c.h.b16 %v591
      %v1389 = vunpack.c.l.b16 %v592
      %v1390 = vunpack.c.h.b16 %v592
      %v1391 = vunpack.c.l.b16 %v593
      %v1392 = vunpack.c.h.b16 %v593
      %v1393 = vunpack.c.l.b16 %v594
      %v1394 = vunpack.c.h.b16 %v594
      %v1395 = vunpack.c.l.b16 %v595
      %v1396 = vunpack.c.h.b16 %v595
      %v1397 = vunpack.c.l.b16 %v596
      %v1398 = vunpack.c.h.b16 %v596
      %v1399 = vunpack.c.l.b16 %v597
      %v1400 = vunpack.c.h.b16 %v597
      %v1401 = vunpack.c.l.b16 %v598
      %v1402 = vunpack.c.h.b16 %v598
      %v1403 = vunpack.c.l.b16 %v599
      %v1404 = vunpack.c.h.b16 %v599
      %v1405 = vunpack.c.l.b16 %v600
      %v1406 = vunpack.c.h.b16 %v600
      %v1407 = vunpack.c.l.b16 %v601
      %v1408 = vunpack.c.h.b16 %v601
      %v1409 = vunpack.c.l.b16 %v602
      %v1410 = vunpack.c.h.b16 %v602
      %v1411 = vunpack.c.l.b16 %v603
      %v1412 = vunpack.c.h.b16 %v603
      %v1413 = vunpack.c.l.b16 %v604
      %v1414 = vunpack.c.h.b16 %v604
      %v1415 = vunpack.c.l.b16 %v605
      %v1416 = vunpack.c.h.b16 %v605
      %v1417 = vunpack.c.l.b16 %v606
      %v1418 = vunpack.c.h.b16 %v606
      %v1419 = vunpack.c.l.b16 %v607
      %v1420 = vunpack.c.h.b16 %v607
      %v1421 = vunpack.c.l.b16 %v608
      %v1422 = vunpack.c.h.b16 %v608
      %v1423 = vunpack.c.l.b16 %v609
      %v1424 = vunpack.c.h.b16 %v609
      %v1425 = vunpack.c.l.b16 %v610
      %v1426 = vunpack.c.h.b16 %v610
      %v1427 = vunpack.c.l.b16 %v611
      %v1428 = vunpack.c.h.b16 %v611
      %v1429 = vunpack.c.l.b16 %v612
      %v1430 = vunpack.c.h.b16 %v612
      %v1431 = vunpack.c.l.b16 %v613
      %v1432 = vunpack.c.h.b16 %v613
      %v1433 = vunpack.c.l.b16 %v614
      %v1434 = vunpack.c.h.b16 %v614
      %v1435 = vunpack.c.l.b16 %v615
      %v1436 = vunpack.c.h.b16 %v615
      %v1437 = vunpack.c.l.b16 %v616
      %v1438 = vunpack.c.h.b16 %v616
      %v1439 = vunpack.c.l.b16 %v617
      %v1440 = vunpack.c.h.b16 %v617
      %v1441 = vunpack.c.l.b16 %v618
      %v1442 = vunpack.c.h.b16 %v618
      %v1443 = vunpack.c.l.b16 %v619
      %v1444 = vunpack.c.h.b16 %v619
      %v1445 = vunpack.c.l.b16 %v620
      %v1446 = vunpack.c.h.b16 %v620
      %v1447 = vunpack.c.l.b16 %v621
      %v1448 = vunpack.c.h.b16 %v621
      %v1449 = vunpack.c.l.b16 %v622
      %v1450 = vunpack.c.h.b16 %v622
      %v1451 = vunpack.c.l.b16 %v623
      %v1452 = vunpack.c.h.b16 %v623
      %v1453 = vunpack.c.l.b16 %v624
      %v1454 = vunpack.c.h.b16 %v624
      %v1455 = vunpack.c.l.b16 %v625
      %v1456 = vunpack.c.h.b16 %v625
      %v1457 = vunpack.c.l.b16 %v626
      %v1458 = vunpack.c.h.b16 %v626
      %v1459 = vunpack.c.l.b16 %v627
      %v1460 = vunpack.c.h.b16 %v627
      %v1461 = vunpack.c.l.b16 %v628
      %v1462 = vunpack.c.h.b16 %v628
      %v1463 = vunpack.c.l.b16 %v629
      %v1464 = vunpack.c.h.b16 %v629
      %v1465 = vunpack.c.l.b16 %v630
      %v1466 = vunpack.c.h.b16 %v630
      %v1467 = vunpack.c.l.b16 %v631
      %v1468 = vunpack.c.h.b16 %v631
      %v1469 = vunpack.c.l.b16 %v632
      %v1470 = vunpack.c.h.b16 %v632
      %v1471 = vunpack.c.l.b16 %v633
      %v1472 = vunpack.c.h.b16 %v633
      %v1473 = vunpack.c.l.b16 %v634
      %v1474 = vunpack.c.h.b16 %v634
      %v1475 = vunpack.c.l.b16 %v635
      %v1476 = vunpack.c.h.b16 %v635
      %v1477 = vunpack.c.l.b16 %v636
      %v1478 = vunpack.c.h.b16 %v636
      %v1479 = vunpack.c.l.b16 %v637
      %v1480 = vunpack.c.h.b16 %v637
      %v1481 = vunpack.c.l.b16 %v638
      %v1482 = vunpack.c.h.b16 %v638
      %v1483 = vunpack.c.l.b16 %v639
      %v1484 = vunpack.c.h.b16 %v639
      %v1485 = vunpack.c.l.b16 %v640
      %v1486 = vunpack.c.h.b16 %v640
      %v1487 = vunpack.c.l.b16 %v641
      %v1488 = vunpack.c.h.b16 %v641
      %v1489 = vunpack.c.l.b16 %v642
      %v1490 = vunpack.c.h.b16 %v642
      %v1491 = vunpack.c.l.b16 %v643
      %v1492 = vunpack.c.h.b16 %v643
      %v1493 = vunpack.c.l.b16 %v644
      %v1494 = vunpack.c.h.b16 %v644
      %v1495 = vunpack.c.l.b16 %v645
      %v1496 = vunpack.c.h.b16 %v645
      %v1497 = vunpack.c.l.b16 %v646
      %v1498 = vunpack.c.h.b16 %v646
      %v1499 = vunpack.c.l.b16 %v647
      %v1500 = vunpack.c.h.b16 %v647
      %v1501 = vunpack.c.l.b16 %v648
      %v1502 = vunpack.c.h.b16 %v648
      %v1503 = vunpack.c.l.b16 %v649
      %v1504 = vunpack.c.h.b16 %v649
      %v1505 = vunpack.c.l.b16 %v650
      %v1506 = vunpack.c.h.b16 %v650
      %v1507 = vunpack.c.l.b16 %v651
      %v1508 = vunpack.c.h.b16 %v651
      %v1509 = vunpack.c.l.b16 %v652
      %v1510 = vunpack.c.h.b16 %v652
      %v1511 = vunpack.c.l.b16 %v653
      %v1512 = vunpack.c.h.b16 %v653
      %v1513 = vunpack.c.l.b16 %v654
      %v1514 = vunpack.c.h.b16 %v654
      %v1515 = vunpack.c.l.b16 %v655
      %v1516 = vunpack.c.h.b16 %v655
      %v1517 = vunpack.c.l.b16 %v656
      %v1518 = vunpack.c.h.b16 %v656
      %v1519 = vunpack.c.l.b16 %v657
      %v1520 = vunpack.c.h.b16 %v657
      %v1521 = vunpack.c.l.b16 %v658
      %v1522 = vunpack.c.h.b16 %v658
      %v1523 = vunpack.c.l.b16 %v659
      %v1524 = vunpack.c.h.b16 %v659
      %v1525 = vunpack.c.l.b16 %v660
      %v1526 = vunpack.c.h.b16 %v660
      %v1527 = vunpack.c.l.b16 %v661
      %v1528 = vunpack.c.h.b16 %v661
      %v1529 = vunpack.c.l.b16 %v662
      %v1530 = vunpack.c.h.b16 %v662
      %v1531 = vunpack.c.l.b16 %v663
      %v1532 = vunpack.c.h.b16 %v663
      %v1533 = vunpack.c.l.b16 %v664
      %v1534 = vunpack.c.h.b16 %v664
      %v1535 = vunpack.c.l.b16 %v665
      %v1536 = vunpack.c.h.b16 %v665
      %v1537 = vunpack.c.l.b16 %v666
      %v1538 = vunpack.c.h.b16 %v666
      %v1539 = vunpack.c.l.b16 %v667
      %v1540 = vunpack.c.h.b16 %v667
      %v1541 = vunpack.c.l.b16 %v668
      %v1542 = vunpack.c.h.b16 %v668
      %v1543 = vunpack.c.l.b16 %v669
      %v1544 = vunpack.c.h.b16 %v669
      %v1545 = vunpack.c.l.b16 %v670
      %v1546 = vunpack.c.h.b16 %v670
      %v1547 = vunpack.c.l.b16 %v671
      %v1548 = vunpack.c.h.b16 %v671
      %v1549 = vunpack.c.l.b16 %v672
      %v1550 = vunpack.c.h.b16 %v672
      %v1551 = vunpack.c.l.b16 %v673
      %v1552 = vunpack.c.h.b16 %v673
      %v1553 = vunpack.c.l.b16 %v674
      %v1554 = vunpack.c.h.b16 %v674
      %v1555 = vunpack.c.l.b16 %v675
      %v1556 = vunpack.c.h.b16 %v675
      %v1557 = vunpack.c.l.b16 %v676
      %v1558 = vunpack.c.h.b16 %v676
      %v1559 = vunpack.c.l.b16 %v677
      %v1560 = vunpack.c.h.b16 %v677
      %v1561 = vunpack.c.l.b16 %v678
      %v1562 = vunpack.c.h.b16 %v678
      %v1563 = vunpack.c.l.b16 %v679
      %v1564 = vunpack.c.h.b16 %v679
      %v1565 = vunpack.c.l.b16 %v680
      %v1566 = vunpack.c.h.b16 %v680
      %v1567 = vunpack.c.l.b16 %v681
      %v1568 = vunpack.c.h.b16 %v681
      %v1569 = vunpack.c.l.b16 %v682
      %v1570 = vunpack.c.h.b16 %v682
      %v1571 = vunpack.c.l.b16 %v683
      %v1572 = vunpack.c.h.b16 %v683
      %v1573 = vunpack.c.l.b16 %v684
      %v1574 = vunpack.c.h.b16 %v684
      %v1575 = vunpack.c.l.b16 %v685
      %v1576 = vunpack.c.h.b16 %v685
      %v1577 = vunpack.c.l.b16 %v686
      %v1578 = vunpack.c.h.b16 %v686
      %v1579 = vunpack.c.l.b16 %v687
      %v1580 = vunpack.c.h.b16 %v687
      %v1581 = vunpack.c.l.b16 %v688
      %v1582 = vunpack.c.h.b16 %v688
      %v1583 = vunpack.c.l.b16 %v689
      %v1584 = vunpack.c.h.b16 %v689
      %v1585 = vunpack.c.l.b16 %v690
      %v1586 = vunpack.c.h.b16 %v690
      %v1587 = vpack.c.b16 %v1083, %v1075
      %v1588 = vpack.c.b16 %v1084, %v1076
      %v1589 = vpack.c.b16 %v1085, %v1077
      %v1590 = vpack.c.b16 %v1086, %v1078
      %v1591 = vpack.c.b16 %v1087, %v1079
      %v1592 = vpack.c.b16 %v1088, %v1080
      %v1593 = vpack.c.b16 %v1089, %v1081
      %v1594 = vpack.c.b16 %v1090, %v1082
      %v1595 = vpack.c.b16 %v1099, %v1091
      %v1596 = vpack.c.b16 %v1100, %v1092
      %v1597 = vpack.c.b16 %v1101, %v1093
      %v1598 = vpack.c.b16 %v1102, %v1094
      %v1599 = vpack.c.b16 %v1103, %v1095
      %v1600 = vpack.c.b16 %v1104, %v1096
      %v1601 = vpack.c.b16 %v1105, %v1097
      %v1602 = vpack.c.b16 %v1106, %v1098
      %v1603 = vpack.c.b16 %v1115, %v1107
      %v1604 = vpack.c.b16 %v1116, %v1108
      %v1605 = vpack.c.b16 %v1117, %v1109
      %v1606 = vpack.c.b16 %v1118, %v1110
      %v1607 = vpack.c.b16 %v1119, %v1111
      %v1608 = vpack.c.b16 %v1120, %v1112
      %v1609 = vpack.c.b16 %v1121, %v1113
      %v1610 = vpack.c.b16 %v1122, %v1114
      %v1611 = vpack.c.b16 %v1131, %v1123
      %v1612 = vpack.c.b16 %v1132, %v1124
      %v1613 = vpack.c.b16 %v1133, %v1125
      %v1614 = vpack.c.b16 %v1134, %v1126
      %v1615 = vpack.c.b16 %v1135, %v1127
      %v1616 = vpack.c.b16 %v1136, %v1128
      %v1617 = vpack.c.b16 %v1137, %v1129
      %v1618 = vpack.c.b16 %v1138, %v1130
      %v1619 = vpack.c.b16 %v1147, %v1139
      %v1620 = vpack.c.b16 %v1148, %v1140
      %v1621 = vpack.c.b16 %v1149, %v1141
      %v1622 = vpack.c.b16 %v1150, %v1142
      %v1623 = vpack.c.b16 %v1151, %v1143
      %v1624 = vpack.c.b16 %v1152, %v1144
      %v1625 = vpack.c.b16 %v1153, %v1145
      %v1626 = vpack.c.b16 %v1154, %v1146
      %v1627 = vpack.c.b16 %v1163, %v1155
      %v1628 = vpack.c.b16 %v1164, %v1156
      %v1629 = vpack.c.b16 %v1165, %v1157
      %v1630 = vpack.c.b16 %v1166, %v1158
      %v1631 = vpack.c.b16 %v1167, %v1159
      %v1632 = vpack.c.b16 %v1168, %v1160
      %v1633 = vpack.c.b16 %v1169, %v1161
      %v1634 = vpack.c.b16 %v1170, %v1162
      %v1635 = vpack.c.b16 %v1179, %v1171
      %v1636 = vpack.c.b16 %v1180, %v1172
      %v1637 = vpack.c.b16 %v1181, %v1173
      %v1638 = vpack.c.b16 %v1182, %v1174
      %v1639 = vpack.c.b16 %v1183, %v1175
      %v1640 = vpack.c.b16 %v1184, %v1176
      %v1641 = vpack.c.b16 %v1185, %v1177
      %v1642 = vpack.c.b16 %v1186, %v1178
      %v1643 = vpack.c.b16 %v1195, %v1187
      %v1644 = vpack.c.b16 %v1196, %v1188
      %v1645 = vpack.c.b16 %v1197, %v1189
      %v1646 = vpack.c.b16 %v1198, %v1190
      %v1647 = vpack.c.b16 %v1199, %v1191
      %v1648 = vpack.c.b16 %v1200, %v1192
      %v1649 = vpack.c.b16 %v1201, %v1193
      %v1650 = vpack.c.b16 %v1202, %v1194
      %v1651 = vpack.c.b16 %v1211, %v1203
      %v1652 = vpack.c.b16 %v1212, %v1204
      %v1653 = vpack.c.b16 %v1213, %v1205
      %v1654 = vpack.c.b16 %v1214, %v1206
      %v1655 = vpack.c.b16 %v1215, %v1207
      %v1656 = vpack.c.b16 %v1216, %v1208
      %v1657 = vpack.c.b16 %v1217, %v1209
      %v1658 = vpack.c.b16 %v1218, %v1210
      %v1659 = vpack.c.b16 %v1227, %v1219
      %v1660 = vpack.c.b16 %v1228, %v1220
      %v1661 = vpack.c.b16 %v1229, %v1221
      %v1662 = vpack.c.b16 %v1230, %v1222
      %v1663 = vpack.c.b16 %v1231, %v1223
      %v1664 = vpack.c.b16 %v1232, %v1224
      %v1665 = vpack.c.b16 %v1233, %v1225
      %v1666 = vpack.c.b16 %v1234, %v1226
      %v1667 = vpack.c.b16 %v1243, %v1235
      %v1668 = vpack.c.b16 %v1244, %v1236
      %v1669 = vpack.c.b16 %v1245, %v1237
      %v1670 = vpack.c.b16 %v1246, %v1238
      %v1671 = vpack.c.b16 %v1247, %v1239
      %v1672 = vpack.c.b16 %v1248, %v1240
      %v1673 = vpack.c.b16 %v1249, %v1241
      %v1674 = vpack.c.b16 %v1250, %v1242
      %v1675 = vpack.c.b16 %v1259, %v1251
      %v1676 = vpack.c.b16 %v1260, %v1252
      %v1677 = vpack.c.b16 %v1261, %v1253
      %v1678 = vpack.c.b16 %v1262, %v1254
      %v1679 = vpack.c.b16 %v1263, %v1255
      %v1680 = vpack.c.b16 %v1264, %v1256
      %v1681 = vpack.c.b16 %v1265, %v1257
      %v1682 = vpack.c.b16 %v1266, %v1258
      %v1683 = vpack.c.b16 %v1275, %v1267
      %v1684 = vpack.c.b16 %v1276, %v1268
      %v1685 = vpack.c.b16 %v1277, %v1269
      %v1686 = vpack.c.b16 %v1278, %v1270
      %v1687 = vpack.c.b16 %v1279, %v1271
      %v1688 = vpack.c.b16 %v1280, %v1272
      %v1689 = vpack.c.b16 %v1281, %v1273
      %v1690 = vpack.c.b16 %v1282, %v1274
      %v1691 = vpack.c.b16 %v1291, %v1283
      %v1692 = vpack.c.b16 %v1292, %v1284
      %v1693 = vpack.c.b16 %v1293, %v1285
      %v1694 = vpack.c.b16 %v1294, %v1286
      %v1695 = vpack.c.b16 %v1295, %v1287
      %v1696 = vpack.c.b16 %v1296, %v1288
      %v1697 = vpack.c.b16 %v1297, %v1289
      %v1698 = vpack.c.b16 %v1298, %v1290
      %v1699 = vpack.c.b16 %v1307, %v1299
      %v1700 = vpack.c.b16 %v1308, %v1300
      %v1701 = vpack.c.b16 %v1309, %v1301
      %v1702 = vpack.c.b16 %v1310, %v1302
      %v1703 = vpack.c.b16 %v1311, %v1303
      %v1704 = vpack.c.b16 %v1312, %v1304
      %v1705 = vpack.c.b16 %v1313, %v1305
      %v1706 = vpack.c.b16 %v1314, %v1306
      %v1707 = vpack.c.b16 %v1323, %v1315
      %v1708 = vpack.c.b16 %v1324, %v1316
      %v1709 = vpack.c.b16 %v1325, %v1317
      %v1710 = vpack.c.b16 %v1326, %v1318
      %v1711 = vpack.c.b16 %v1327, %v1319
      %v1712 = vpack.c.b16 %v1328, %v1320
      %v1713 = vpack.c.b16 %v1329, %v1321
      %v1714 = vpack.c.b16 %v1330, %v1322
      %v1715 = vpack.c.b16 %v1339, %v1331
      %v1716 = vpack.c.b16 %v1340, %v1332
      %v1717 = vpack.c.b16 %v1341, %v1333
      %v1718 = vpack.c.b16 %v1342, %v1334
      %v1719 = vpack.c.b16 %v1343, %v1335
      %v1720 = vpack.c.b16 %v1344, %v1336
      %v1721 = vpack.c.b16 %v1345, %v1337
      %v1722 = vpack.c.b16 %v1346, %v1338
      %v1723 = vpack.c.b16 %v1355, %v1347
      %v1724 = vpack.c.b16 %v1356, %v1348
      %v1725 = vpack.c.b16 %v1357, %v1349
      %v1726 = vpack.c.b16 %v1358, %v1350
      %v1727 = vpack.c.b16 %v1359, %v1351
      %v1728 = vpack.c.b16 %v1360, %v1352
      %v1729 = vpack.c.b16 %v1361, %v1353
      %v1730 = vpack.c.b16 %v1362, %v1354
      %v1731 = vpack.c.b16 %v1371, %v1363
      %v1732 = vpack.c.b16 %v1372, %v1364
      %v1733 = vpack.c.b16 %v1373, %v1365
      %v1734 = vpack.c.b16 %v1374, %v1366
      %v1735 = vpack.c.b16 %v1375, %v1367
      %v1736 = vpack.c.b16 %v1376, %v1368
      %v1737 = vpack.c.b16 %v1377, %v1369
      %v1738 = vpack.c.b16 %v1378, %v1370
      %v1739 = vpack.c.b16 %v1387, %v1379
      %v1740 = vpack.c.b16 %v1388, %v1380
      %v1741 = vpack.c.b16 %v1389, %v1381
      %v1742 = vpack.c.b16 %v1390, %v1382
      %v1743 = vpack.c.b16 %v1391, %v1383
      %v1744 = vpack.c.b16 %v1392, %v1384
      %v1745 = vpack.c.b16 %v1393, %v1385
      %v1746 = vpack.c.b16 %v1394, %v1386
      %v1747 = vpack.c.b16 %v1403, %v1395
      %v1748 = vpack.c.b16 %v1404, %v1396
      %v1749 = vpack.c.b16 %v1405, %v1397
      %v1750 = vpack.c.b16 %v1406, %v1398
      %v1751 = vpack.c.b16 %v1407, %v1399
      %v1752 = vpack.c.b16 %v1408, %v1400
      %v1753 = vpack.c.b16 %v1409, %v1401
      %v1754 = vpack.c.b16 %v1410, %v1402
      %v1755 = vpack.c.b16 %v1419, %v1411
      %v1756 = vpack.c.b16 %v1420, %v1412
      %v1757 = vpack.c.b16 %v1421, %v1413
      %v1758 = vpack.c.b16 %v1422, %v1414
      %v1759 = vpack.c.b16 %v1423, %v1415
      %v1760 = vpack.c.b16 %v1424, %v1416
      %v1761 = vpack.c.b16 %v1425, %v1417
      %v1762 = vpack.c.b16 %v1426, %v1418
      %v1763 = vpack.c.b16 %v1435, %v1427
      %v1764 = vpack.c.b16 %v1436, %v1428
      %v1765 = vpack.c.b16 %v1437, %v1429
      %v1766 = vpack.c.b16 %v1438, %v1430
      %v1767 = vpack.c.b16 %v1439, %v1431
      %v1768 = vpack.c.b16 %v1440, %v1432
      %v1769 = vpack.c.b16 %v1441, %v1433
      %v1770 = vpack.c.b16 %v1442, %v1434
      %v1771 = vpack.c.b16 %v1451, %v1443
      %v1772 = vpack.c.b16 %v1452, %v1444
      %v1773 = vpack.c.b16 %v1453, %v1445
      %v1774 = vpack.c.b16 %v1454, %v1446
      %v1775 = vpack.c.b16 %v1455, %v1447
      %v1776 = vpack.c.b16 %v1456, %v1448
      %v1777 = vpack.c.b16 %v1457, %v1449
      %v1778 = vpack.c.b16 %v1458, %v1450
      %v1779 = vpack.c.b16 %v1467, %v1459
      %v1780 = vpack.c.b16 %v1468, %v1460
      %v1781 = vpack.c.b16 %v1469, %v1461
      %v1782 = vpack.c.b16 %v1470, %v1462
      %v1783 = vpack.c.b16 %v1471, %v1463
      %v1784 = vpack.c.b16 %v1472, %v1464
      %v1785 = vpack.c.b16 %v1473, %v1465
      %v1786 = vpack.c.b16 %v1474, %v1466
      %v1787 = vpack.c.b16 %v1483, %v1475
      %v1788 = vpack.c.b16 %v1484, %v1476
      %v1789 = vpack.c.b16 %v1485, %v1477
      %v1790 = vpack.c.b16 %v1486, %v1478
      %v1791 = vpack.c.b16 %v1487, %v1479
      %v1792 = vpack.c.b16 %v1488, %v1480
      %v1793 = vpack.c.b16 %v1489, %v1481
      %v1794 = vpack.c.b16 %v1490, %v1482
      %v1795 = vpack.c.b16 %v1499, %v1491
      %v1796 = vpack.c.b16 %v1500, %v1492
      %v1797 = vpack.c.b16 %v1501, %v1493
      %v1798 = vpack.c.b16 %v1502, %v1494
      %v1799 = vpack.c.b16 %v1503, %v1495
      %v1800 = vpack.c.b16 %v1504, %v1496
      %v1801 = vpack.c.b16 %v1505, %v1497
      %v1802 = vpack.c.b16 %v1506, %v1498
      %v1803 = vpack.c.b16 %v1515, %v1507
      %v1804 = vpack.c.b16 %v1516, %v1508
      %v1805 = vpack.c.b16 %v1517, %v1509
      %v1806 = vpack.c.b16 %v1518, %v1510
      %v1807 = vpack.c.b16 %v1519, %v1511
      %v1808 = vpack.c.b16 %v1520, %v1512
      %v1809 = vpack.c.b16 %v1521, %v1513
      %v1810 = vpack.c.b16 %v1522, %v1514
      %v1811 = vpack.c.b16 %v1531, %v1523
      %v1812 = vpack.c.b16 %v1532, %v1524
      %v1813 = vpack.c.b16 %v1533, %v1525
      %v1814 = vpack.c.b16 %v1534, %v1526
      %v1815 = vpack.c.b16 %v1535, %v1527
      %v1816 = vpack.c.b16 %v1536, %v1528
      %v1817 = vpack.c.b16 %v1537, %v1529
      %v1818 = vpack.c.b16 %v1538, %v1530
      %v1819 = vpack.c.b16 %v1547, %v1539
      %v1820 = vpack.c.b16 %v1548, %v1540
      %v1821 = vpack.c.b16 %v1549, %v1541
      %v1822 = vpack.c.b16 %v1550, %v1542
      %v1823 = vpack.c.b16 %v1551, %v1543
      %v1824 = vpack.c.b16 %v1552, %v1544
      %v1825 = vpack.c.b16 %v1553, %v1545
      %v1826 = vpack.c.b16 %v1554, %v1546
      %v1827 = vpack.c.b16 %v1563, %v1555
      %v1828 = vpack.c.b16 %v1564, %v1556
      %v1829 = vpack.c.b16 %v1565, %v1557
      %v1830 = vpack.c.b16 %v1566, %v1558
      %v1831 = vpack.c.b16 %v1567, %v1559
      %v1832 = vpack.c.b16 %v1568, %v1560
      %v1833 = vpack.c.b16 %v1569, %v1561
      %v1834 = vpack.c.b16 %v1570, %v1562
      %v1835 = vpack.c.b16 %v1579, %v1571
      %v1836 = vpack.c.b16 %v1580, %v1572
      %v1837 = vpack.c.b16 %v1581, %v1573
      %v1838 = vpack.c.b16 %v1582, %v1574
      %v1839 = vpack.c.b16 %v1583, %v1575
      %v1840 = vpack.c.b16 %v1584, %v1576
      %v1841 = vpack.c.b16 %v1585, %v1577
      %v1842 = vpack.c.b16 %v1586, %v1578
      %v2227 = vunpack.c.l.b16 %v691
      %v2228 = vunpack.c.l.b16 %v692
      %v2229 = vunpack.c.l.b16 %v693
      %v2230 = vunpack.c.l.b16 %v694
      %v2231 = vunpack.c.l.b16 %v695
      %v2232 = vunpack.c.l.b16 %v696
      %v2233 = vunpack.c.l.b16 %v697
      %v2234 = vunpack.c.l.b16 %v698
      %v2235 = vunpack.c.l.b16 %v699
      %v2236 = vunpack.c.l.b16 %v700
      %v2237 = vunpack.c.l.b16 %v701
      %v2238 = vunpack.c.l.b16 %v702
      %v2239 = vunpack.c.l.b16 %v703
      %v2240 = vunpack.c.l.b16 %v704
      %v2241 = vunpack.c.l.b16 %v705
      %v2242 = vunpack.c.l.b16 %v706
      %v2243 = vunpack.c.l.b16 %v707
      %v2244 = vunpack.c.l.b16 %v708
      %v2245 = vunpack.c.l.b16 %v709
      %v2246 = vunpack.c.l.b16 %v710
      %v2247 = vunpack.c.l.b16 %v711
      %v2248 = vunpack.c.l.b16 %v712
      %v2249 = vunpack.c.l.b16 %v713
      %v2250 = vunpack.c.l.b16 %v714
      %v2251 = vunpack.c.l.b16 %v715
      %v2252 = vunpack.c.l.b16 %v716
      %v2253 = vunpack.c.l.b16 %v717
      %v2254 = vunpack.c.l.b16 %v718
      %v2255 = vunpack.c.l.b16 %v719
      %v2256 = vunpack.c.l.b16 %v720
      %v2257 = vunpack.c.l.b16 %v721
      %v2258 = vunpack.c.l.b16 %v722
      %v2259 = vunpack.c.l.b16 %v723
      %v2260 = vunpack.c.l.b16 %v724
      %v2261 = vunpack.c.l.b16 %v725
      %v2262 = vunpack.c.l.b16 %v726
      %v2263 = vunpack.c.l.b16 %v727
      %v2264 = vunpack.c.l.b16 %v728
      %v2265 = vunpack.c.l.b16 %v729
      %v2266 = vunpack.c.l.b16 %v730
      %v2267 = vunpack.c.l.b16 %v731
      %v2268 = vunpack.c.l.b16 %v732
      %v2269 = vunpack.c.l.b16 %v733
      %v2270 = vunpack.c.l.b16 %v734
      %v2271 = vunpack.c.l.b16 %v735
      %v2272 = vunpack.c.l.b16 %v736
      %v2273 = vunpack.c.l.b16 %v737
      %v2274 = vunpack.c.l.b16 %v738
      %v2275 = vunpack.c.l.b16 %v739
      %v2276 = vunpack.c.l.b16 %v740
      %v2277 = vunpack.c.l.b16 %v741
      %v2278 = vunpack.c.l.b16 %v742
      %v2279 = vunpack.c.l.b16 %v743
      %v2280 = vunpack.c.l.b16 %v744
      %v2281 = vunpack.c.l.b16 %v745
      %v2282 = vunpack.c.l.b16 %v746
      %v2283 = vunpack.c.l.b16 %v747
      %v2284 = vunpack.c.l.b16 %v748
      %v2285 = vunpack.c.l.b16 %v749
      %v2286 = vunpack.c.l.b16 %v750
      %v2287 = vunpack.c.l.b16 %v751
      %v2288 = vunpack.c.l.b16 %v752
      %v2289 = vunpack.c.l.b16 %v753
      %v2290 = vunpack.c.l.b16 %v754
      %v2291 = vunpack.c.l.b16 %v755
      %v2292 = vunpack.c.l.b16 %v756
      %v2293 = vunpack.c.l.b16 %v757
      %v2294 = vunpack.c.l.b16 %v758
      %v2295 = vunpack.c.l.b16 %v759
      %v2296 = vunpack.c.l.b16 %v760
      %v2297 = vunpack.c.l.b16 %v761
      %v2298 = vunpack.c.l.b16 %v762
      %v2299 = vunpack.c.l.b16 %v763
      %v2300 = vunpack.c.l.b16 %v764
      %v2301 = vunpack.c.l.b16 %v765
      %v2302 = vunpack.c.l.b16 %v766
      %v2303 = vunpack.c.l.b16 %v767
      %v2304 = vunpack.c.l.b16 %v768
      %v2305 = vunpack.c.l.b16 %v769
      %v2306 = vunpack.c.l.b16 %v770
      %v2307 = vunpack.c.l.b16 %v771
      %v2308 = vunpack.c.l.b16 %v772
      %v2309 = vunpack.c.l.b16 %v773
      %v2310 = vunpack.c.l.b16 %v774
      %v2311 = vunpack.c.l.b16 %v775
      %v2312 = vunpack.c.l.b16 %v776
      %v2313 = vunpack.c.l.b16 %v777
      %v2314 = vunpack.c.l.b16 %v778
      %v2315 = vunpack.c.l.b16 %v779
      %v2316 = vunpack.c.l.b16 %v780
      %v2317 = vunpack.c.l.b16 %v781
      %v2318 = vunpack.c.l.b16 %v782
      %v2319 = vunpack.c.l.b16 %v783
      %v2320 = vunpack.c.l.b16 %v784
      %v2321 = vunpack.c.l.b16 %v785
      %v2322 = vunpack.c.l.b16 %v786
      %v2323 = vunpack.c.l.b16 %v787
      %v2324 = vunpack.c.l.b16 %v788
      %v2325 = vunpack.c.l.b16 %v789
      %v2326 = vunpack.c.l.b16 %v790
      %v2327 = vunpack.c.l.b16 %v791
      %v2328 = vunpack.c.l.b16 %v792
      %v2329 = vunpack.c.l.b16 %v793
      %v2330 = vunpack.c.l.b16 %v794
      %v2331 = vunpack.c.l.b16 %v795
      %v2332 = vunpack.c.l.b16 %v796
      %v2333 = vunpack.c.l.b16 %v797
      %v2334 = vunpack.c.l.b16 %v798
      %v2335 = vunpack.c.l.b16 %v799
      %v2336 = vunpack.c.l.b16 %v800
      %v2337 = vunpack.c.l.b16 %v801
      %v2338 = vunpack.c.l.b16 %v802
      %v2339 = vunpack.c.l.b16 %v803
      %v2340 = vunpack.c.l.b16 %v804
      %v2341 = vunpack.c.l.b16 %v805
      %v2342 = vunpack.c.l.b16 %v806
      %v2343 = vunpack.c.l.b16 %v807
      %v2344 = vunpack.c.l.b16 %v808
      %v2345 = vunpack.c.l.b16 %v809
      %v2346 = vunpack.c.l.b16 %v810
      %v2347 = vunpack.c.l.b16 %v811
      %v2348 = vunpack.c.l.b16 %v812
      %v2349 = vunpack.c.l.b16 %v813
      %v2350 = vunpack.c.l.b16 %v814
      %v2351 = vunpack.c.l.b16 %v815
      %v2352 = vunpack.c.l.b16 %v816
      %v2353 = vunpack.c.l.b16 %v817
      %v2354 = vunpack.c.l.b16 %v818
      %v2355 = vpack.c.b16 %v2228, %v2227
      %v2356 = vpack.c.b16 %v2230, %v2229
      %v2357 = vpack.c.b16 %v2232, %v2231
      %v2358 = vpack.c.b16 %v2234, %v2233
      %v2359 = vpack.c.b16 %v2236, %v2235
      %v2360 = vpack.c.b16 %v2238, %v2237
      %v2361 = vpack.c.b16 %v2240, %v2239
      %v2362 = vpack.c.b16 %v2242, %v2241
      %v2363 = vpack.c.b16 %v2244, %v2243
      %v2364 = vpack.c.b16 %v2246, %v2245
      %v2365 = vpack.c.b16 %v2248, %v2247
      %v2366 = vpack.c.b16 %v2250, %v2249
      %v2367 = vpack.c.b16 %v2252, %v2251
      %v2368 = vpack.c.b16 %v2254, %v2253
      %v2369 = vpack.c.b16 %v2256, %v2255
      %v2370 = vpack.c.b16 %v2258, %v2257
      %v2371 = vpack.c.b16 %v2260, %v2259
      %v2372 = vpack.c.b16 %v2262, %v2261
      %v2373 = vpack.c.b16 %v2264, %v2263
      %v2374 = vpack.c.b16 %v2266, %v2265
      %v2375 = vpack.c.b16 %v2268, %v2267
      %v2376 = vpack.c.b16 %v2270, %v2269
      %v2377 = vpack.c.b16 %v2272, %v2271
      %v2378 = vpack.c.b16 %v2274, %v2273
      %v2379 = vpack.c.b16 %v2276, %v2275
      %v2380 = vpack.c.b16 %v2278, %v2277
      %v2381 = vpack.c.b16 %v2280, %v2279
      %v2382 = vpack.c.b16 %v2282, %v2281
      %v2383 = vpack.c.b16 %v2284, %v2283
      %v2384 = vpack.c.b16 %v2286, %v2285
      %v2385 = vpack.c.b16 %v2288, %v2287
      %v2386 = vpack.c.b16 %v2290, %v2289
      %v2387 = vpack.c.b16 %v2292, %v2291
      %v2388 = vpack.c.b16 %v2294, %v2293
      %v2389 = vpack.c.b16 %v2296, %v2295
      %v2390 = vpack.c.b16 %v2298, %v2297
      %v2391 = vpack.c.b16 %v2300, %v2299
      %v2392 = vpack.c.b16 %v2302, %v2301
      %v2393 = vpack.c.b16 %v2304, %v2303
      %v2394 = vpack.c.b16 %v2306, %v2305
      %v2395 = vpack.c.b16 %v2308, %v2307
      %v2396 = vpack.c.b16 %v2310, %v2309
      %v2397 = vpack.c.b16 %v2312, %v2311
      %v2398 = vpack.c.b16 %v2314, %v2313
      %v2399 = vpack.c.b16 %v2316, %v2315
      %v2400 = vpack.c.b16 %v2318, %v2317
      %v2401 = vpack.c.b16 %v2320, %v2319
      %v2402 = vpack.c.b16 %v2322, %v2321
      %v2403 = vpack.c.b16 %v2324, %v2323
      %v2404 = vpack.c.b16 %v2326, %v2325
      %v2405 = vpack.c.b16 %v2328, %v2327
      %v2406 = vpack.c.b16 %v2330, %v2329
      %v2407 = vpack.c.b16 %v2332, %v2331
      %v2408 = vpack.c.b16 %v2334, %v2333
      %v2409 = vpack.c.b16 %v2336, %v2335
      %v2410 = vpack.c.b16 %v2338, %v2337
      %v2411 = vpack.c.b16 %v2340, %v2339
      %v2412 = vpack.c.b16 %v2342, %v2341
      %v2413 = vpack.c.b16 %v2344, %v2343
      %v2414 = vpack.c.b16 %v2346, %v2345
      %v2415 = vpack.c.b16 %v2348, %v2347
      %v2416 = vpack.c.b16 %v2350, %v2349
      %v2417 = vpack.c.b16 %v2352, %v2351
      %v2418 = vpack.c.b16 %v2354, %v2353
      %2483 = vmatpush.bf16.msra.mxu0 %v2362
      %2484 = vmatpush.bf16.msra.mxu0 %v2361
      %2485 = vmatpush.bf16.msra.mxu0 %v2360
      %2486 = vmatpush.bf16.msra.mxu0 %v2359
      %2487 = vmatpush.bf16.msra.mxu0 %v2358
      %2488 = vmatpush.bf16.msra.mxu0 %v2357
      %2489 = vmatpush.bf16.msra.mxu0 %v2356
      %2490 = vmatpush.bf16.msra.mxu0 %v2355
      %2491 = vmatmul.bf16.gmra.mxu0 %v1587
      %v2492 = vpop.f32.mrf.mxu0
      %v2493 = vadd.f32 0.0, %v2492
      %v2494 = vpop.f32.mrf.mxu0
      %v2495 = vadd.f32 0.0, %v2494
      %2496 = vmatmul.bf16.gmra.mxu0 %v1595
      %v2497 = vpop.f32.mrf.mxu0
      %v2498 = vadd.f32 0.0, %v2497
      %v2499 = vpop.f32.mrf.mxu0
      %v2500 = vadd.f32 0.0, %v2499
      %2501 = vmatmul.bf16.gmra.mxu0 %v1603
      %v2502 = vpop.f32.mrf.mxu0
      %v2503 = vadd.f32 0.0, %v2502
      %v2504 = vpop.f32.mrf.mxu0
      %v2505 = vadd.f32 0.0, %v2504
      %2506 = vmatmul.bf16.gmra.mxu0 %v1611
      %v2507 = vpop.f32.mrf.mxu0
      %v2508 = vadd.f32 0.0, %v2507
      %v2509 = vpop.f32.mrf.mxu0
      %v2510 = vadd.f32 0.0, %v2509
      %2511 = vmatmul.bf16.gmra.mxu0 %v1619
      %v2512 = vpop.f32.mrf.mxu0
      %v2513 = vadd.f32 0.0, %v2512
      %v2514 = vpop.f32.mrf.mxu0
      %v2515 = vadd.f32 0.0, %v2514
      %2516 = vmatmul.bf16.gmra.mxu0 %v1627
      %v2517 = vpop.f32.mrf.mxu0
      %v2518 = vadd.f32 0.0, %v2517
      %v2519 = vpop.f32.mrf.mxu0
      %v2520 = vadd.f32 0.0, %v2519
      %2521 = vmatmul.bf16.gmra.mxu0 %v1635
      %v2522 = vpop.f32.mrf.mxu0
      %v2523 = vadd.f32 0.0, %v2522
      %v2524 = vpop.f32.mrf.mxu0
      %v2525 = vadd.f32 0.0, %v2524
      %2526 = vmatmul.bf16.gmra.mxu0 %v1643
      %v2527 = vpop.f32.mrf.mxu0
      %v2528 = vadd.f32 0.0, %v2527
      %v2529 = vpop.f32.mrf.mxu0
      %v2530 = vadd.f32 0.0, %v2529
      %2531 = vmatmul.bf16.gmra.mxu0 %v1651
      %v2532 = vpop.f32.mrf.mxu0
      %v2533 = vadd.f32 0.0, %v2532
      %v2534 = vpop.f32.mrf.mxu0
      %v2535 = vadd.f32 0.0, %v2534
      %2536 = vmatmul.bf16.gmra.mxu0 %v1659
      %v2537 = vpop.f32.mrf.mxu0
      %v2538 = vadd.f32 0.0, %v2537
      %v2539 = vpop.f32.mrf.mxu0
      %v2540 = vadd.f32 0.0, %v2539
      %2541 = vmatmul.bf16.gmra.mxu0 %v1667
      %v2542 = vpop.f32.mrf.mxu0
      %v2543 = vadd.f32 0.0, %v2542
      %v2544 = vpop.f32.mrf.mxu0
      %v2545 = vadd.f32 0.0, %v2544
      %2546 = vmatmul.bf16.gmra.mxu0 %v1675
      %v2547 = vpop.f32.mrf.mxu0
      %v2548 = vadd.f32 0.0, %v2547
      %v2549 = vpop.f32.mrf.mxu0
      %v2550 = vadd.f32 0.0, %v2549
      %2551 = vmatmul.bf16.gmra.mxu0 %v1683
      %v2552 = vpop.f32.mrf.mxu0
      %v2553 = vadd.f32 0.0, %v2552
      %v2554 = vpop.f32.mrf.mxu0
      %v2555 = vadd.f32 0.0, %v2554
      %2556 = vmatmul.bf16.gmra.mxu0 %v1691
      %v2557 = vpop.f32.mrf.mxu0
      %v2558 = vadd.f32 0.0, %v2557
      %v2559 = vpop.f32.mrf.mxu0
      %v2560 = vadd.f32 0.0, %v2559
      %2561 = vmatmul.bf16.gmra.mxu0 %v1699
      %v2562 = vpop.f32.mrf.mxu0
      %v2563 = vadd.f32 0.0, %v2562
      %v2564 = vpop.f32.mrf.mxu0
      %v2565 = vadd.f32 0.0, %v2564
      %2566 = vmatmul.bf16.gmra.mxu0 %v1707
      %v2567 = vpop.f32.mrf.mxu0
      %v2568 = vadd.f32 0.0, %v2567
      %v2569 = vpop.f32.mrf.mxu0
      %v2570 = vadd.f32 0.0, %v2569
      %2571 = vmatmul.bf16.gmra.mxu0 %v1715
      %v2572 = vpop.f32.mrf.mxu0
      %v2573 = vadd.f32 0.0, %v2572
      %v2574 = vpop.f32.mrf.mxu0
      %v2575 = vadd.f32 0.0, %v2574
      %2576 = vmatmul.bf16.gmra.mxu0 %v1723
      %v2577 = vpop.f32.mrf.mxu0
      %v2578 = vadd.f32 0.0, %v2577
      %v2579 = vpop.f32.mrf.mxu0
      %v2580 = vadd.f32 0.0, %v2579
      %2581 = vmatmul.bf16.gmra.mxu0 %v1731
      %v2582 = vpop.f32.mrf.mxu0
      %v2583 = vadd.f32 0.0, %v2582
      %v2584 = vpop.f32.mrf.mxu0
      %v2585 = vadd.f32 0.0, %v2584
      %2586 = vmatmul.bf16.gmra.mxu0 %v1739
      %v2587 = vpop.f32.mrf.mxu0
      %v2588 = vadd.f32 0.0, %v2587
      %v2589 = vpop.f32.mrf.mxu0
      %v2590 = vadd.f32 0.0, %v2589
      %2591 = vmatmul.bf16.gmra.mxu0 %v1747
      %v2592 = vpop.f32.mrf.mxu0
      %v2593 = vadd.f32 0.0, %v2592
      %v2594 = vpop.f32.mrf.mxu0
      %v2595 = vadd.f32 0.0, %v2594
      %2596 = vmatmul.bf16.gmra.mxu0 %v1755
      %v2597 = vpop.f32.mrf.mxu0
      %v2598 = vadd.f32 0.0, %v2597
      %v2599 = vpop.f32.mrf.mxu0
      %v2600 = vadd.f32 0.0, %v2599
      %2601 = vmatmul.bf16.gmra.mxu0 %v1763
      %v2602 = vpop.f32.mrf.mxu0
      %v2603 = vadd.f32 0.0, %v2602
      %v2604 = vpop.f32.mrf.mxu0
      %v2605 = vadd.f32 0.0, %v2604
      %2606 = vmatmul.bf16.gmra.mxu0 %v1771
      %v2607 = vpop.f32.mrf.mxu0
      %v2608 = vadd.f32 0.0, %v2607
      %v2609 = vpop.f32.mrf.mxu0
      %v2610 = vadd.f32 0.0, %v2609
      %2611 = vmatmul.bf16.gmra.mxu0 %v1779
      %v2612 = vpop.f32.mrf.mxu0
      %v2613 = vadd.f32 0.0, %v2612
      %v2614 = vpop.f32.mrf.mxu0
      %v2615 = vadd.f32 0.0, %v2614
      %2616 = vmatmul.bf16.gmra.mxu0 %v1787
      %v2617 = vpop.f32.mrf.mxu0
      %v2618 = vadd.f32 0.0, %v2617
      %v2619 = vpop.f32.mrf.mxu0
      %v2620 = vadd.f32 0.0, %v2619
      %2621 = vmatmul.bf16.gmra.mxu0 %v1795
      %v2622 = vpop.f32.mrf.mxu0
      %v2623 = vadd.f32 0.0, %v2622
      %v2624 = vpop.f32.mrf.mxu0
      %v2625 = vadd.f32 0.0, %v2624
      %2626 = vmatmul.bf16.gmra.mxu0 %v1803
      %v2627 = vpop.f32.mrf.mxu0
      %v2628 = vadd.f32 0.0, %v2627
      %v2629 = vpop.f32.mrf.mxu0
      %v2630 = vadd.f32 0.0, %v2629
      %2631 = vmatmul.bf16.gmra.mxu0 %v1811
      %v2632 = vpop.f32.mrf.mxu0
      %v2633 = vadd.f32 0.0, %v2632
      %v2634 = vpop.f32.mrf.mxu0
      %v2635 = vadd.f32 0.0, %v2634
      %2636 = vmatmul.bf16.gmra.mxu0 %v1819
      %v2637 = vpop.f32.mrf.mxu0
      %v2638 = vadd.f32 0.0, %v2637
      %v2639 = vpop.f32.mrf.mxu0
      %v2640 = vadd.f32 0.0, %v2639
      %2641 = vmatmul.bf16.gmra.mxu0 %v1827
      %v2642 = vpop.f32.mrf.mxu0
      %v2643 = vadd.f32 0.0, %v2642
      %v2644 = vpop.f32.mrf.mxu0
      %v2645 = vadd.f32 0.0, %v2644
      %2646 = vmatmul.bf16.gmra.mxu0 %v1835
      %v2647 = vpop.f32.mrf.mxu0
      %v2648 = vadd.f32 0.0, %v2647
      %v2649 = vpop.f32.mrf.mxu0
      %v2650 = vadd.f32 0.0, %v2649
      %2651 = vdwg.mxu0
      %2652 = vmatpush.bf16.msra.mxu0 %v2370
      %2653 = vmatpush.bf16.msra.mxu0 %v2369
      %2654 = vmatpush.bf16.msra.mxu0 %v2368
      %2655 = vmatpush.bf16.msra.mxu0 %v2367
      %2656 = vmatpush.bf16.msra.mxu0 %v2366
      %2657 = vmatpush.bf16.msra.mxu0 %v2365
      %2658 = vmatpush.bf16.msra.mxu0 %v2364
      %2659 = vmatpush.bf16.msra.mxu0 %v2363
      %2660 = vmatmul.bf16.gmra.mxu0 %v1588
      %v2661 = vpop.f32.mrf.mxu0
      %v2662 = vadd.f32 %v2493, %v2661
      %v2663 = vpop.f32.mrf.mxu0
      %v2664 = vadd.f32 %v2495, %v2663
      %2665 = vmatmul.bf16.gmra.mxu0 %v1596
      %v2666 = vpop.f32.mrf.mxu0
      %v2667 = vadd.f32 %v2498, %v2666
      %v2668 = vpop.f32.mrf.mxu0
      %v2669 = vadd.f32 %v2500, %v2668
      %2670 = vmatmul.bf16.gmra.mxu0 %v1604
      %v2671 = vpop.f32.mrf.mxu0
      %v2672 = vadd.f32 %v2503, %v2671
      %v2673 = vpop.f32.mrf.mxu0
      %v2674 = vadd.f32 %v2505, %v2673
      %2675 = vmatmul.bf16.gmra.mxu0 %v1612
      %v2676 = vpop.f32.mrf.mxu0
      %v2677 = vadd.f32 %v2508, %v2676
      %v2678 = vpop.f32.mrf.mxu0
      %v2679 = vadd.f32 %v2510, %v2678
      %2680 = vmatmul.bf16.gmra.mxu0 %v1620
      %v2681 = vpop.f32.mrf.mxu0
      %v2682 = vadd.f32 %v2513, %v2681
      %v2683 = vpop.f32.mrf.mxu0
      %v2684 = vadd.f32 %v2515, %v2683
      %2685 = vmatmul.bf16.gmra.mxu0 %v1628
      %v2686 = vpop.f32.mrf.mxu0
      %v2687 = vadd.f32 %v2518, %v2686
      %v2688 = vpop.f32.mrf.mxu0
      %v2689 = vadd.f32 %v2520, %v2688
      %2690 = vmatmul.bf16.gmra.mxu0 %v1636
      %v2691 = vpop.f32.mrf.mxu0
      %v2692 = vadd.f32 %v2523, %v2691
      %v2693 = vpop.f32.mrf.mxu0
      %v2694 = vadd.f32 %v2525, %v2693
      %2695 = vmatmul.bf16.gmra.mxu0 %v1644
      %v2696 = vpop.f32.mrf.mxu0
      %v2697 = vadd.f32 %v2528, %v2696
      %v2698 = vpop.f32.mrf.mxu0
      %v2699 = vadd.f32 %v2530, %v2698
      %2700 = vmatmul.bf16.gmra.mxu0 %v1652
      %v2701 = vpop.f32.mrf.mxu0
      %v2702 = vadd.f32 %v2533, %v2701
      %v2703 = vpop.f32.mrf.mxu0
      %v2704 = vadd.f32 %v2535, %v2703
      %2705 = vmatmul.bf16.gmra.mxu0 %v1660
      %v2706 = vpop.f32.mrf.mxu0
      %v2707 = vadd.f32 %v2538, %v2706
      %v2708 = vpop.f32.mrf.mxu0
      %v2709 = vadd.f32 %v2540, %v2708
      %2710 = vmatmul.bf16.gmra.mxu0 %v1668
      %v2711 = vpop.f32.mrf.mxu0
      %v2712 = vadd.f32 %v2543, %v2711
      %v2713 = vpop.f32.mrf.mxu0
      %v2714 = vadd.f32 %v2545, %v2713
      %2715 = vmatmul.bf16.gmra.mxu0 %v1676
      %v2716 = vpop.f32.mrf.mxu0
      %v2717 = vadd.f32 %v2548, %v2716
      %v2718 = vpop.f32.mrf.mxu0
      %v2719 = vadd.f32 %v2550, %v2718
      %2720 = vmatmul.bf16.gmra.mxu0 %v1684
      %v2721 = vpop.f32.mrf.mxu0
      %v2722 = vadd.f32 %v2553, %v2721
      %v2723 = vpop.f32.mrf.mxu0
      %v2724 = vadd.f32 %v2555, %v2723
      %2725 = vmatmul.bf16.gmra.mxu0 %v1692
      %v2726 = vpop.f32.mrf.mxu0
      %v2727 = vadd.f32 %v2558, %v2726
      %v2728 = vpop.f32.mrf.mxu0
      %v2729 = vadd.f32 %v2560, %v2728
      %2730 = vmatmul.bf16.gmra.mxu0 %v1700
      %v2731 = vpop.f32.mrf.mxu0
      %v2732 = vadd.f32 %v2563, %v2731
      %v2733 = vpop.f32.mrf.mxu0
      %v2734 = vadd.f32 %v2565, %v2733
      %2735 = vmatmul.bf16.gmra.mxu0 %v1708
      %v2736 = vpop.f32.mrf.mxu0
      %v2737 = vadd.f32 %v2568, %v2736
      %v2738 = vpop.f32.mrf.mxu0
      %v2739 = vadd.f32 %v2570, %v2738
      %2740 = vmatmul.bf16.gmra.mxu0 %v1716
      %v2741 = vpop.f32.mrf.mxu0
      %v2742 = vadd.f32 %v2573, %v2741
      %v2743 = vpop.f32.mrf.mxu0
      %v2744 = vadd.f32 %v2575, %v2743
      %2745 = vmatmul.bf16.gmra.mxu0 %v1724
      %v2746 = vpop.f32.mrf.mxu0
      %v2747 = vadd.f32 %v2578, %v2746
      %v2748 = vpop.f32.mrf.mxu0
      %v2749 = vadd.f32 %v2580, %v2748
      %2750 = vmatmul.bf16.gmra.mxu0 %v1732
      %v2751 = vpop.f32.mrf.mxu0
      %v2752 = vadd.f32 %v2583, %v2751
      %v2753 = vpop.f32.mrf.mxu0
      %v2754 = vadd.f32 %v2585, %v2753
      %2755 = vmatmul.bf16.gmra.mxu0 %v1740
      %v2756 = vpop.f32.mrf.mxu0
      %v2757 = vadd.f32 %v2588, %v2756
      %v2758 = vpop.f32.mrf.mxu0
      %v2759 = vadd.f32 %v2590, %v2758
      %2760 = vmatmul.bf16.gmra.mxu0 %v1748
      %v2761 = vpop.f32.mrf.mxu0
      %v2762 = vadd.f32 %v2593, %v2761
      %v2763 = vpop.f32.mrf.mxu0
      %v2764 = vadd.f32 %v2595, %v2763
      %2765 = vmatmul.bf16.gmra.mxu0 %v1756
      %v2766 = vpop.f32.mrf.mxu0
      %v2767 = vadd.f32 %v2598, %v2766
      %v2768 = vpop.f32.mrf.mxu0
      %v2769 = vadd.f32 %v2600, %v2768
      %2770 = vmatmul.bf16.gmra.mxu0 %v1764
      %v2771 = vpop.f32.mrf.mxu0
      %v2772 = vadd.f32 %v2603, %v2771
      %v2773 = vpop.f32.mrf.mxu0
      %v2774 = vadd.f32 %v2605, %v2773
      %2775 = vmatmul.bf16.gmra.mxu0 %v1772
      %v2776 = vpop.f32.mrf.mxu0
      %v2777 = vadd.f32 %v2608, %v2776
      %v2778 = vpop.f32.mrf.mxu0
      %v2779 = vadd.f32 %v2610, %v2778
      %2780 = vmatmul.bf16.gmra.mxu0 %v1780
      %v2781 = vpop.f32.mrf.mxu0
      %v2782 = vadd.f32 %v2613, %v2781
      %v2783 = vpop.f32.mrf.mxu0
      %v2784 = vadd.f32 %v2615, %v2783
      %2785 = vmatmul.bf16.gmra.mxu0 %v1788
      %v2786 = vpop.f32.mrf.mxu0
      %v2787 = vadd.f32 %v2618, %v2786
      %v2788 = vpop.f32.mrf.mxu0
      %v2789 = vadd.f32 %v2620, %v2788
      %2790 = vmatmul.bf16.gmra.mxu0 %v1796
      %v2791 = vpop.f32.mrf.mxu0
      %v2792 = vadd.f32 %v2623, %v2791
      %v2793 = vpop.f32.mrf.mxu0
      %v2794 = vadd.f32 %v2625, %v2793
      %2795 = vmatmul.bf16.gmra.mxu0 %v1804
      %v2796 = vpop.f32.mrf.mxu0
      %v2797 = vadd.f32 %v2628, %v2796
      %v2798 = vpop.f32.mrf.mxu0
      %v2799 = vadd.f32 %v2630, %v2798
      %2800 = vmatmul.bf16.gmra.mxu0 %v1812
      %v2801 = vpop.f32.mrf.mxu0
      %v2802 = vadd.f32 %v2633, %v2801
      %v2803 = vpop.f32.mrf.mxu0
      %v2804 = vadd.f32 %v2635, %v2803
      %2805 = vmatmul.bf16.gmra.mxu0 %v1820
      %v2806 = vpop.f32.mrf.mxu0
      %v2807 = vadd.f32 %v2638, %v2806
      %v2808 = vpop.f32.mrf.mxu0
      %v2809 = vadd.f32 %v2640, %v2808
      %2810 = vmatmul.bf16.gmra.mxu0 %v1828
      %v2811 = vpop.f32.mrf.mxu0
      %v2812 = vadd.f32 %v2643, %v2811
      %v2813 = vpop.f32.mrf.mxu0
      %v2814 = vadd.f32 %v2645, %v2813
      %2815 = vmatmul.bf16.gmra.mxu0 %v1836
      %v2816 = vpop.f32.mrf.mxu0
      %v2817 = vadd.f32 %v2648, %v2816
      %v2818 = vpop.f32.mrf.mxu0
      %v2819 = vadd.f32 %v2650, %v2818
      %2820 = vdwg.mxu0
      %2821 = vmatpush.bf16.msra.mxu0 %v2378
      %2822 = vmatpush.bf16.msra.mxu0 %v2377
      %2823 = vmatpush.bf16.msra.mxu0 %v2376
      %2824 = vmatpush.bf16.msra.mxu0 %v2375
      %2825 = vmatpush.bf16.msra.mxu0 %v2374
      %2826 = vmatpush.bf16.msra.mxu0 %v2373
      %2827 = vmatpush.bf16.msra.mxu0 %v2372
      %2828 = vmatpush.bf16.msra.mxu0 %v2371
      %2829 = vmatmul.bf16.gmra.mxu0 %v1589
      %v2830 = vpop.f32.mrf.mxu0
      %v2831 = vadd.f32 %v2662, %v2830
      %v2832 = vpop.f32.mrf.mxu0
      %v2833 = vadd.f32 %v2664, %v2832
      %2834 = vmatmul.bf16.gmra.mxu0 %v1597
      %v2835 = vpop.f32.mrf.mxu0
      %v2836 = vadd.f32 %v2667, %v2835
      %v2837 = vpop.f32.mrf.mxu0
      %v2838 = vadd.f32 %v2669, %v2837
      %2839 = vmatmul.bf16.gmra.mxu0 %v1605
      %v2840 = vpop.f32.mrf.mxu0
      %v2841 = vadd.f32 %v2672, %v2840
      %v2842 = vpop.f32.mrf.mxu0
      %v2843 = vadd.f32 %v2674, %v2842
      %2844 = vmatmul.bf16.gmra.mxu0 %v1613
      %v2845 = vpop.f32.mrf.mxu0
      %v2846 = vadd.f32 %v2677, %v2845
      %v2847 = vpop.f32.mrf.mxu0
      %v2848 = vadd.f32 %v2679, %v2847
      %2849 = vmatmul.bf16.gmra.mxu0 %v1621
      %v2850 = vpop.f32.mrf.mxu0
      %v2851 = vadd.f32 %v2682, %v2850
      %v2852 = vpop.f32.mrf.mxu0
      %v2853 = vadd.f32 %v2684, %v2852
      %2854 = vmatmul.bf16.gmra.mxu0 %v1629
      %v2855 = vpop.f32.mrf.mxu0
      %v2856 = vadd.f32 %v2687, %v2855
      %v2857 = vpop.f32.mrf.mxu0
      %v2858 = vadd.f32 %v2689, %v2857
      %2859 = vmatmul.bf16.gmra.mxu0 %v1637
      %v2860 = vpop.f32.mrf.mxu0
      %v2861 = vadd.f32 %v2692, %v2860
      %v2862 = vpop.f32.mrf.mxu0
      %v2863 = vadd.f32 %v2694, %v2862
      %2864 = vmatmul.bf16.gmra.mxu0 %v1645
      %v2865 = vpop.f32.mrf.mxu0
      %v2866 = vadd.f32 %v2697, %v2865
      %v2867 = vpop.f32.mrf.mxu0
      %v2868 = vadd.f32 %v2699, %v2867
      %2869 = vmatmul.bf16.gmra.mxu0 %v1653
      %v2870 = vpop.f32.mrf.mxu0
      %v2871 = vadd.f32 %v2702, %v2870
      %v2872 = vpop.f32.mrf.mxu0
      %v2873 = vadd.f32 %v2704, %v2872
      %2874 = vmatmul.bf16.gmra.mxu0 %v1661
      %v2875 = vpop.f32.mrf.mxu0
      %v2876 = vadd.f32 %v2707, %v2875
      %v2877 = vpop.f32.mrf.mxu0
      %v2878 = vadd.f32 %v2709, %v2877
      %2879 = vmatmul.bf16.gmra.mxu0 %v1669
      %v2880 = vpop.f32.mrf.mxu0
      %v2881 = vadd.f32 %v2712, %v2880
      %v2882 = vpop.f32.mrf.mxu0
      %v2883 = vadd.f32 %v2714, %v2882
      %2884 = vmatmul.bf16.gmra.mxu0 %v1677
      %v2885 = vpop.f32.mrf.mxu0
      %v2886 = vadd.f32 %v2717, %v2885
      %v2887 = vpop.f32.mrf.mxu0
      %v2888 = vadd.f32 %v2719, %v2887
      %2889 = vmatmul.bf16.gmra.mxu0 %v1685
      %v2890 = vpop.f32.mrf.mxu0
      %v2891 = vadd.f32 %v2722, %v2890
      %v2892 = vpop.f32.mrf.mxu0
      %v2893 = vadd.f32 %v2724, %v2892
      %2894 = vmatmul.bf16.gmra.mxu0 %v1693
      %v2895 = vpop.f32.mrf.mxu0
      %v2896 = vadd.f32 %v2727, %v2895
      %v2897 = vpop.f32.mrf.mxu0
      %v2898 = vadd.f32 %v2729, %v2897
      %2899 = vmatmul.bf16.gmra.mxu0 %v1701
      %v2900 = vpop.f32.mrf.mxu0
      %v2901 = vadd.f32 %v2732, %v2900
      %v2902 = vpop.f32.mrf.mxu0
      %v2903 = vadd.f32 %v2734, %v2902
      %2904 = vmatmul.bf16.gmra.mxu0 %v1709
      %v2905 = vpop.f32.mrf.mxu0
      %v2906 = vadd.f32 %v2737, %v2905
      %v2907 = vpop.f32.mrf.mxu0
      %v2908 = vadd.f32 %v2739, %v2907
      %2909 = vmatmul.bf16.gmra.mxu0 %v1717
      %v2910 = vpop.f32.mrf.mxu0
      %v2911 = vadd.f32 %v2742, %v2910
      %v2912 = vpop.f32.mrf.mxu0
      %v2913 = vadd.f32 %v2744, %v2912
      %2914 = vmatmul.bf16.gmra.mxu0 %v1725
      %v2915 = vpop.f32.mrf.mxu0
      %v2916 = vadd.f32 %v2747, %v2915
      %v2917 = vpop.f32.mrf.mxu0
      %v2918 = vadd.f32 %v2749, %v2917
      %2919 = vmatmul.bf16.gmra.mxu0 %v1733
      %v2920 = vpop.f32.mrf.mxu0
      %v2921 = vadd.f32 %v2752, %v2920
      %v2922 = vpop.f32.mrf.mxu0
      %v2923 = vadd.f32 %v2754, %v2922
      %2924 = vmatmul.bf16.gmra.mxu0 %v1741
      %v2925 = vpop.f32.mrf.mxu0
      %v2926 = vadd.f32 %v2757, %v2925
      %v2927 = vpop.f32.mrf.mxu0
      %v2928 = vadd.f32 %v2759, %v2927
      %2929 = vmatmul.bf16.gmra.mxu0 %v1749
      %v2930 = vpop.f32.mrf.mxu0
      %v2931 = vadd.f32 %v2762, %v2930
      %v2932 = vpop.f32.mrf.mxu0
      %v2933 = vadd.f32 %v2764, %v2932
      %2934 = vmatmul.bf16.gmra.mxu0 %v1757
      %v2935 = vpop.f32.mrf.mxu0
      %v2936 = vadd.f32 %v2767, %v2935
      %v2937 = vpop.f32.mrf.mxu0
      %v2938 = vadd.f32 %v2769, %v2937
      %2939 = vmatmul.bf16.gmra.mxu0 %v1765
      %v2940 = vpop.f32.mrf.mxu0
      %v2941 = vadd.f32 %v2772, %v2940
      %v2942 = vpop.f32.mrf.mxu0
      %v2943 = vadd.f32 %v2774, %v2942
      %2944 = vmatmul.bf16.gmra.mxu0 %v1773
      %v2945 = vpop.f32.mrf.mxu0
      %v2946 = vadd.f32 %v2777, %v2945
      %v2947 = vpop.f32.mrf.mxu0
      %v2948 = vadd.f32 %v2779, %v2947
      %2949 = vmatmul.bf16.gmra.mxu0 %v1781
      %v2950 = vpop.f32.mrf.mxu0
      %v2951 = vadd.f32 %v2782, %v2950
      %v2952 = vpop.f32.mrf.mxu0
      %v2953 = vadd.f32 %v2784, %v2952
      %2954 = vmatmul.bf16.gmra.mxu0 %v1789
      %v2955 = vpop.f32.mrf.mxu0
      %v2956 = vadd.f32 %v2787, %v2955
      %v2957 = vpop.f32.mrf.mxu0
      %v2958 = vadd.f32 %v2789, %v2957
      %2959 = vmatmul.bf16.gmra.mxu0 %v1797
      %v2960 = vpop.f32.mrf.mxu0
      %v2961 = vadd.f32 %v2792, %v2960
      %v2962 = vpop.f32.mrf.mxu0
      %v2963 = vadd.f32 %v2794, %v2962
      %2964 = vmatmul.bf16.gmra.mxu0 %v1805
      %v2965 = vpop.f32.mrf.mxu0
      %v2966 = vadd.f32 %v2797, %v2965
      %v2967 = vpop.f32.mrf.mxu0
      %v2968 = vadd.f32 %v2799, %v2967
      %2969 = vmatmul.bf16.gmra.mxu0 %v1813
      %v2970 = vpop.f32.mrf.mxu0
      %v2971 = vadd.f32 %v2802, %v2970
      %v2972 = vpop.f32.mrf.mxu0
      %v2973 = vadd.f32 %v2804, %v2972
      %2974 = vmatmul.bf16.gmra.mxu0 %v1821
      %v2975 = vpop.f32.mrf.mxu0
      %v2976 = vadd.f32 %v2807, %v2975
      %v2977 = vpop.f32.mrf.mxu0
      %v2978 = vadd.f32 %v2809, %v2977
      %2979 = vmatmul.bf16.gmra.mxu0 %v1829
      %v2980 = vpop.f32.mrf.mxu0
      %v2981 = vadd.f32 %v2812, %v2980
      %v2982 = vpop.f32.mrf.mxu0
      %v2983 = vadd.f32 %v2814, %v2982
      %2984 = vmatmul.bf16.gmra.mxu0 %v1837
      %v2985 = vpop.f32.mrf.mxu0
      %v2986 = vadd.f32 %v2817, %v2985
      %v2987 = vpop.f32.mrf.mxu0
      %v2988 = vadd.f32 %v2819, %v2987
      %2989 = vdwg.mxu0
      %2990 = vmatpush.bf16.msra.mxu0 %v2386
      %2991 = vmatpush.bf16.msra.mxu0 %v2385
      %2992 = vmatpush.bf16.msra.mxu0 %v2384
      %2993 = vmatpush.bf16.msra.mxu0 %v2383
      %2994 = vmatpush.bf16.msra.mxu0 %v2382
      %2995 = vmatpush.bf16.msra.mxu0 %v2381
      %2996 = vmatpush.bf16.msra.mxu0 %v2380
      %2997 = vmatpush.bf16.msra.mxu0 %v2379
      %2998 = vmatmul.bf16.gmra.mxu0 %v1590
      %v2999 = vpop.f32.mrf.mxu0
      %v3000 = vadd.f32 %v2831, %v2999
      %v3001 = vpop.f32.mrf.mxu0
      %v3002 = vadd.f32 %v2833, %v3001
      %3003 = vmatmul.bf16.gmra.mxu0 %v1598
      %v3004 = vpop.f32.mrf.mxu0
      %v3005 = vadd.f32 %v2836, %v3004
      %v3006 = vpop.f32.mrf.mxu0
      %v3007 = vadd.f32 %v2838, %v3006
      %3008 = vmatmul.bf16.gmra.mxu0 %v1606
      %v3009 = vpop.f32.mrf.mxu0
      %v3010 = vadd.f32 %v2841, %v3009
      %v3011 = vpop.f32.mrf.mxu0
      %v3012 = vadd.f32 %v2843, %v3011
      %3013 = vmatmul.bf16.gmra.mxu0 %v1614
      %v3014 = vpop.f32.mrf.mxu0
      %v3015 = vadd.f32 %v2846, %v3014
      %v3016 = vpop.f32.mrf.mxu0
      %v3017 = vadd.f32 %v2848, %v3016
      %3018 = vmatmul.bf16.gmra.mxu0 %v1622
      %v3019 = vpop.f32.mrf.mxu0
      %v3020 = vadd.f32 %v2851, %v3019
      %v3021 = vpop.f32.mrf.mxu0
      %v3022 = vadd.f32 %v2853, %v3021
      %3023 = vmatmul.bf16.gmra.mxu0 %v1630
      %v3024 = vpop.f32.mrf.mxu0
      %v3025 = vadd.f32 %v2856, %v3024
      %v3026 = vpop.f32.mrf.mxu0
      %v3027 = vadd.f32 %v2858, %v3026
      %3028 = vmatmul.bf16.gmra.mxu0 %v1638
      %v3029 = vpop.f32.mrf.mxu0
      %v3030 = vadd.f32 %v2861, %v3029
      %v3031 = vpop.f32.mrf.mxu0
      %v3032 = vadd.f32 %v2863, %v3031
      %3033 = vmatmul.bf16.gmra.mxu0 %v1646
      %v3034 = vpop.f32.mrf.mxu0
      %v3035 = vadd.f32 %v2866, %v3034
      %v3036 = vpop.f32.mrf.mxu0
      %v3037 = vadd.f32 %v2868, %v3036
      %3038 = vmatmul.bf16.gmra.mxu0 %v1654
      %v3039 = vpop.f32.mrf.mxu0
      %v3040 = vadd.f32 %v2871, %v3039
      %v3041 = vpop.f32.mrf.mxu0
      %v3042 = vadd.f32 %v2873, %v3041
      %3043 = vmatmul.bf16.gmra.mxu0 %v1662
      %v3044 = vpop.f32.mrf.mxu0
      %v3045 = vadd.f32 %v2876, %v3044
      %v3046 = vpop.f32.mrf.mxu0
      %v3047 = vadd.f32 %v2878, %v3046
      %3048 = vmatmul.bf16.gmra.mxu0 %v1670
      %v3049 = vpop.f32.mrf.mxu0
      %v3050 = vadd.f32 %v2881, %v3049
      %v3051 = vpop.f32.mrf.mxu0
      %v3052 = vadd.f32 %v2883, %v3051
      %3053 = vmatmul.bf16.gmra.mxu0 %v1678
      %v3054 = vpop.f32.mrf.mxu0
      %v3055 = vadd.f32 %v2886, %v3054
      %v3056 = vpop.f32.mrf.mxu0
      %v3057 = vadd.f32 %v2888, %v3056
      %3058 = vmatmul.bf16.gmra.mxu0 %v1686
      %v3059 = vpop.f32.mrf.mxu0
      %v3060 = vadd.f32 %v2891, %v3059
      %v3061 = vpop.f32.mrf.mxu0
      %v3062 = vadd.f32 %v2893, %v3061
      %3063 = vmatmul.bf16.gmra.mxu0 %v1694
      %v3064 = vpop.f32.mrf.mxu0
      %v3065 = vadd.f32 %v2896, %v3064
      %v3066 = vpop.f32.mrf.mxu0
      %v3067 = vadd.f32 %v2898, %v3066
      %3068 = vmatmul.bf16.gmra.mxu0 %v1702
      %v3069 = vpop.f32.mrf.mxu0
      %v3070 = vadd.f32 %v2901, %v3069
      %v3071 = vpop.f32.mrf.mxu0
      %v3072 = vadd.f32 %v2903, %v3071
      %3073 = vmatmul.bf16.gmra.mxu0 %v1710
      %v3074 = vpop.f32.mrf.mxu0
      %v3075 = vadd.f32 %v2906, %v3074
      %v3076 = vpop.f32.mrf.mxu0
      %v3077 = vadd.f32 %v2908, %v3076
      %3078 = vmatmul.bf16.gmra.mxu0 %v1718
      %v3079 = vpop.f32.mrf.mxu0
      %v3080 = vadd.f32 %v2911, %v3079
      %v3081 = vpop.f32.mrf.mxu0
      %v3082 = vadd.f32 %v2913, %v3081
      %3083 = vmatmul.bf16.gmra.mxu0 %v1726
      %v3084 = vpop.f32.mrf.mxu0
      %v3085 = vadd.f32 %v2916, %v3084
      %v3086 = vpop.f32.mrf.mxu0
      %v3087 = vadd.f32 %v2918, %v3086
      %3088 = vmatmul.bf16.gmra.mxu0 %v1734
      %v3089 = vpop.f32.mrf.mxu0
      %v3090 = vadd.f32 %v2921, %v3089
      %v3091 = vpop.f32.mrf.mxu0
      %v3092 = vadd.f32 %v2923, %v3091
      %3093 = vmatmul.bf16.gmra.mxu0 %v1742
      %v3094 = vpop.f32.mrf.mxu0
      %v3095 = vadd.f32 %v2926, %v3094
      %v3096 = vpop.f32.mrf.mxu0
      %v3097 = vadd.f32 %v2928, %v3096
      %3098 = vmatmul.bf16.gmra.mxu0 %v1750
      %v3099 = vpop.f32.mrf.mxu0
      %v3100 = vadd.f32 %v2931, %v3099
      %v3101 = vpop.f32.mrf.mxu0
      %v3102 = vadd.f32 %v2933, %v3101
      %3103 = vmatmul.bf16.gmra.mxu0 %v1758
      %v3104 = vpop.f32.mrf.mxu0
      %v3105 = vadd.f32 %v2936, %v3104
      %v3106 = vpop.f32.mrf.mxu0
      %v3107 = vadd.f32 %v2938, %v3106
      %3108 = vmatmul.bf16.gmra.mxu0 %v1766
      %v3109 = vpop.f32.mrf.mxu0
      %v3110 = vadd.f32 %v2941, %v3109
      %v3111 = vpop.f32.mrf.mxu0
      %v3112 = vadd.f32 %v2943, %v3111
      %3113 = vmatmul.bf16.gmra.mxu0 %v1774
      %v3114 = vpop.f32.mrf.mxu0
      %v3115 = vadd.f32 %v2946, %v3114
      %v3116 = vpop.f32.mrf.mxu0
      %v3117 = vadd.f32 %v2948, %v3116
      %3118 = vmatmul.bf16.gmra.mxu0 %v1782
      %v3119 = vpop.f32.mrf.mxu0
      %v3120 = vadd.f32 %v2951, %v3119
      %v3121 = vpop.f32.mrf.mxu0
      %v3122 = vadd.f32 %v2953, %v3121
      %3123 = vmatmul.bf16.gmra.mxu0 %v1790
      %v3124 = vpop.f32.mrf.mxu0
      %v3125 = vadd.f32 %v2956, %v3124
      %v3126 = vpop.f32.mrf.mxu0
      %v3127 = vadd.f32 %v2958, %v3126
      %3128 = vmatmul.bf16.gmra.mxu0 %v1798
      %v3129 = vpop.f32.mrf.mxu0
      %v3130 = vadd.f32 %v2961, %v3129
      %v3131 = vpop.f32.mrf.mxu0
      %v3132 = vadd.f32 %v2963, %v3131
      %3133 = vmatmul.bf16.gmra.mxu0 %v1806
      %v3134 = vpop.f32.mrf.mxu0
      %v3135 = vadd.f32 %v2966, %v3134
      %v3136 = vpop.f32.mrf.mxu0
      %v3137 = vadd.f32 %v2968, %v3136
      %3138 = vmatmul.bf16.gmra.mxu0 %v1814
      %v3139 = vpop.f32.mrf.mxu0
      %v3140 = vadd.f32 %v2971, %v3139
      %v3141 = vpop.f32.mrf.mxu0
      %v3142 = vadd.f32 %v2973, %v3141
      %3143 = vmatmul.bf16.gmra.mxu0 %v1822
      %v3144 = vpop.f32.mrf.mxu0
      %v3145 = vadd.f32 %v2976, %v3144
      %v3146 = vpop.f32.mrf.mxu0
      %v3147 = vadd.f32 %v2978, %v3146
      %3148 = vmatmul.bf16.gmra.mxu0 %v1830
      %v3149 = vpop.f32.mrf.mxu0
      %v3150 = vadd.f32 %v2981, %v3149
      %v3151 = vpop.f32.mrf.mxu0
      %v3152 = vadd.f32 %v2983, %v3151
      %3153 = vmatmul.bf16.gmra.mxu0 %v1838
      %v3154 = vpop.f32.mrf.mxu0
      %v3155 = vadd.f32 %v2986, %v3154
      %v3156 = vpop.f32.mrf.mxu0
      %v3157 = vadd.f32 %v2988, %v3156
      %3158 = vdwg.mxu0
      %3159 = vmatpush.bf16.msra.mxu0 %v2394
      %3160 = vmatpush.bf16.msra.mxu0 %v2393
      %3161 = vmatpush.bf16.msra.mxu0 %v2392
      %3162 = vmatpush.bf16.msra.mxu0 %v2391
      %3163 = vmatpush.bf16.msra.mxu0 %v2390
      %3164 = vmatpush.bf16.msra.mxu0 %v2389
      %3165 = vmatpush.bf16.msra.mxu0 %v2388
      %3166 = vmatpush.bf16.msra.mxu0 %v2387
      %3167 = vmatmul.bf16.gmra.mxu0 %v1591
      %v3168 = vpop.f32.mrf.mxu0
      %v3169 = vadd.f32 %v3000, %v3168
      %v3170 = vpop.f32.mrf.mxu0
      %v3171 = vadd.f32 %v3002, %v3170
      %3172 = vmatmul.bf16.gmra.mxu0 %v1599
      %v3173 = vpop.f32.mrf.mxu0
      %v3174 = vadd.f32 %v3005, %v3173
      %v3175 = vpop.f32.mrf.mxu0
      %v3176 = vadd.f32 %v3007, %v3175
      %3177 = vmatmul.bf16.gmra.mxu0 %v1607
      %v3178 = vpop.f32.mrf.mxu0
      %v3179 = vadd.f32 %v3010, %v3178
      %v3180 = vpop.f32.mrf.mxu0
      %v3181 = vadd.f32 %v3012, %v3180
      %3182 = vmatmul.bf16.gmra.mxu0 %v1615
      %v3183 = vpop.f32.mrf.mxu0
      %v3184 = vadd.f32 %v3015, %v3183
      %v3185 = vpop.f32.mrf.mxu0
      %v3186 = vadd.f32 %v3017, %v3185
      %3187 = vmatmul.bf16.gmra.mxu0 %v1623
      %v3188 = vpop.f32.mrf.mxu0
      %v3189 = vadd.f32 %v3020, %v3188
      %v3190 = vpop.f32.mrf.mxu0
      %v3191 = vadd.f32 %v3022, %v3190
      %3192 = vmatmul.bf16.gmra.mxu0 %v1631
      %v3193 = vpop.f32.mrf.mxu0
      %v3194 = vadd.f32 %v3025, %v3193
      %v3195 = vpop.f32.mrf.mxu0
      %v3196 = vadd.f32 %v3027, %v3195
      %3197 = vmatmul.bf16.gmra.mxu0 %v1639
      %v3198 = vpop.f32.mrf.mxu0
      %v3199 = vadd.f32 %v3030, %v3198
      %v3200 = vpop.f32.mrf.mxu0
      %v3201 = vadd.f32 %v3032, %v3200
      %3202 = vmatmul.bf16.gmra.mxu0 %v1647
      %v3203 = vpop.f32.mrf.mxu0
      %v3204 = vadd.f32 %v3035, %v3203
      %v3205 = vpop.f32.mrf.mxu0
      %v3206 = vadd.f32 %v3037, %v3205
      %3207 = vmatmul.bf16.gmra.mxu0 %v1655
      %v3208 = vpop.f32.mrf.mxu0
      %v3209 = vadd.f32 %v3040, %v3208
      %v3210 = vpop.f32.mrf.mxu0
      %v3211 = vadd.f32 %v3042, %v3210
      %3212 = vmatmul.bf16.gmra.mxu0 %v1663
      %v3213 = vpop.f32.mrf.mxu0
      %v3214 = vadd.f32 %v3045, %v3213
      %v3215 = vpop.f32.mrf.mxu0
      %v3216 = vadd.f32 %v3047, %v3215
      %3217 = vmatmul.bf16.gmra.mxu0 %v1671
      %v3218 = vpop.f32.mrf.mxu0
      %v3219 = vadd.f32 %v3050, %v3218
      %v3220 = vpop.f32.mrf.mxu0
      %v3221 = vadd.f32 %v3052, %v3220
      %3222 = vmatmul.bf16.gmra.mxu0 %v1679
      %v3223 = vpop.f32.mrf.mxu0
      %v3224 = vadd.f32 %v3055, %v3223
      %v3225 = vpop.f32.mrf.mxu0
      %v3226 = vadd.f32 %v3057, %v3225
      %3227 = vmatmul.bf16.gmra.mxu0 %v1687
      %v3228 = vpop.f32.mrf.mxu0
      %v3229 = vadd.f32 %v3060, %v3228
      %v3230 = vpop.f32.mrf.mxu0
      %v3231 = vadd.f32 %v3062, %v3230
      %3232 = vmatmul.bf16.gmra.mxu0 %v1695
      %v3233 = vpop.f32.mrf.mxu0
      %v3234 = vadd.f32 %v3065, %v3233
      %v3235 = vpop.f32.mrf.mxu0
      %v3236 = vadd.f32 %v3067, %v3235
      %3237 = vmatmul.bf16.gmra.mxu0 %v1703
      %v3238 = vpop.f32.mrf.mxu0
      %v3239 = vadd.f32 %v3070, %v3238
      %v3240 = vpop.f32.mrf.mxu0
      %v3241 = vadd.f32 %v3072, %v3240
      %3242 = vmatmul.bf16.gmra.mxu0 %v1711
      %v3243 = vpop.f32.mrf.mxu0
      %v3244 = vadd.f32 %v3075, %v3243
      %v3245 = vpop.f32.mrf.mxu0
      %v3246 = vadd.f32 %v3077, %v3245
      %3247 = vmatmul.bf16.gmra.mxu0 %v1719
      %v3248 = vpop.f32.mrf.mxu0
      %v3249 = vadd.f32 %v3080, %v3248
      %v3250 = vpop.f32.mrf.mxu0
      %v3251 = vadd.f32 %v3082, %v3250
      %3252 = vmatmul.bf16.gmra.mxu0 %v1727
      %v3253 = vpop.f32.mrf.mxu0
      %v3254 = vadd.f32 %v3085, %v3253
      %v3255 = vpop.f32.mrf.mxu0
      %v3256 = vadd.f32 %v3087, %v3255
      %3257 = vmatmul.bf16.gmra.mxu0 %v1735
      %v3258 = vpop.f32.mrf.mxu0
      %v3259 = vadd.f32 %v3090, %v3258
      %v3260 = vpop.f32.mrf.mxu0
      %v3261 = vadd.f32 %v3092, %v3260
      %3262 = vmatmul.bf16.gmra.mxu0 %v1743
      %v3263 = vpop.f32.mrf.mxu0
      %v3264 = vadd.f32 %v3095, %v3263
      %v3265 = vpop.f32.mrf.mxu0
      %v3266 = vadd.f32 %v3097, %v3265
      %3267 = vmatmul.bf16.gmra.mxu0 %v1751
      %v3268 = vpop.f32.mrf.mxu0
      %v3269 = vadd.f32 %v3100, %v3268
      %v3270 = vpop.f32.mrf.mxu0
      %v3271 = vadd.f32 %v3102, %v3270
      %3272 = vmatmul.bf16.gmra.mxu0 %v1759
      %v3273 = vpop.f32.mrf.mxu0
      %v3274 = vadd.f32 %v3105, %v3273
      %v3275 = vpop.f32.mrf.mxu0
      %v3276 = vadd.f32 %v3107, %v3275
      %3277 = vmatmul.bf16.gmra.mxu0 %v1767
      %v3278 = vpop.f32.mrf.mxu0
      %v3279 = vadd.f32 %v3110, %v3278
      %v3280 = vpop.f32.mrf.mxu0
      %v3281 = vadd.f32 %v3112, %v3280
      %3282 = vmatmul.bf16.gmra.mxu0 %v1775
      %v3283 = vpop.f32.mrf.mxu0
      %v3284 = vadd.f32 %v3115, %v3283
      %v3285 = vpop.f32.mrf.mxu0
      %v3286 = vadd.f32 %v3117, %v3285
      %3287 = vmatmul.bf16.gmra.mxu0 %v1783
      %v3288 = vpop.f32.mrf.mxu0
      %v3289 = vadd.f32 %v3120, %v3288
      %v3290 = vpop.f32.mrf.mxu0
      %v3291 = vadd.f32 %v3122, %v3290
      %3292 = vmatmul.bf16.gmra.mxu0 %v1791
      %v3293 = vpop.f32.mrf.mxu0
      %v3294 = vadd.f32 %v3125, %v3293
      %v3295 = vpop.f32.mrf.mxu0
      %v3296 = vadd.f32 %v3127, %v3295
      %3297 = vmatmul.bf16.gmra.mxu0 %v1799
      %v3298 = vpop.f32.mrf.mxu0
      %v3299 = vadd.f32 %v3130, %v3298
      %v3300 = vpop.f32.mrf.mxu0
      %v3301 = vadd.f32 %v3132, %v3300
      %3302 = vmatmul.bf16.gmra.mxu0 %v1807
      %v3303 = vpop.f32.mrf.mxu0
      %v3304 = vadd.f32 %v3135, %v3303
      %v3305 = vpop.f32.mrf.mxu0
      %v3306 = vadd.f32 %v3137, %v3305
      %3307 = vmatmul.bf16.gmra.mxu0 %v1815
      %v3308 = vpop.f32.mrf.mxu0
      %v3309 = vadd.f32 %v3140, %v3308
      %v3310 = vpop.f32.mrf.mxu0
      %v3311 = vadd.f32 %v3142, %v3310
      %3312 = vmatmul.bf16.gmra.mxu0 %v1823
      %v3313 = vpop.f32.mrf.mxu0
      %v3314 = vadd.f32 %v3145, %v3313
      %v3315 = vpop.f32.mrf.mxu0
      %v3316 = vadd.f32 %v3147, %v3315
      %3317 = vmatmul.bf16.gmra.mxu0 %v1831
      %v3318 = vpop.f32.mrf.mxu0
      %v3319 = vadd.f32 %v3150, %v3318
      %v3320 = vpop.f32.mrf.mxu0
      %v3321 = vadd.f32 %v3152, %v3320
      %3322 = vmatmul.bf16.gmra.mxu0 %v1839
      %v3323 = vpop.f32.mrf.mxu0
      %v3324 = vadd.f32 %v3155, %v3323
      %v3325 = vpop.f32.mrf.mxu0
      %v3326 = vadd.f32 %v3157, %v3325
      %3327 = vdwg.mxu0
      %3328 = vmatpush.bf16.msra.mxu0 %v2402
      %3329 = vmatpush.bf16.msra.mxu0 %v2401
      %3330 = vmatpush.bf16.msra.mxu0 %v2400
      %3331 = vmatpush.bf16.msra.mxu0 %v2399
      %3332 = vmatpush.bf16.msra.mxu0 %v2398
      %3333 = vmatpush.bf16.msra.mxu0 %v2397
      %3334 = vmatpush.bf16.msra.mxu0 %v2396
      %3335 = vmatpush.bf16.msra.mxu0 %v2395
      %3336 = vmatmul.bf16.gmra.mxu0 %v1592
      %v3337 = vpop.f32.mrf.mxu0
      %v3338 = vadd.f32 %v3169, %v3337
      %v3339 = vpop.f32.mrf.mxu0
      %v3340 = vadd.f32 %v3171, %v3339
      %3341 = vmatmul.bf16.gmra.mxu0 %v1600
      %v3342 = vpop.f32.mrf.mxu0
      %v3343 = vadd.f32 %v3174, %v3342
      %v3344 = vpop.f32.mrf.mxu0
      %v3345 = vadd.f32 %v3176, %v3344
      %3346 = vmatmul.bf16.gmra.mxu0 %v1608
      %v3347 = vpop.f32.mrf.mxu0
      %v3348 = vadd.f32 %v3179, %v3347
      %v3349 = vpop.f32.mrf.mxu0
      %v3350 = vadd.f32 %v3181, %v3349
      %3351 = vmatmul.bf16.gmra.mxu0 %v1616
      %v3352 = vpop.f32.mrf.mxu0
      %v3353 = vadd.f32 %v3184, %v3352
      %v3354 = vpop.f32.mrf.mxu0
      %v3355 = vadd.f32 %v3186, %v3354
      %3356 = vmatmul.bf16.gmra.mxu0 %v1624
      %v3357 = vpop.f32.mrf.mxu0
      %v3358 = vadd.f32 %v3189, %v3357
      %v3359 = vpop.f32.mrf.mxu0
      %v3360 = vadd.f32 %v3191, %v3359
      %3361 = vmatmul.bf16.gmra.mxu0 %v1632
      %v3362 = vpop.f32.mrf.mxu0
      %v3363 = vadd.f32 %v3194, %v3362
      %v3364 = vpop.f32.mrf.mxu0
      %v3365 = vadd.f32 %v3196, %v3364
      %3366 = vmatmul.bf16.gmra.mxu0 %v1640
      %v3367 = vpop.f32.mrf.mxu0
      %v3368 = vadd.f32 %v3199, %v3367
      %v3369 = vpop.f32.mrf.mxu0
      %v3370 = vadd.f32 %v3201, %v3369
      %3371 = vmatmul.bf16.gmra.mxu0 %v1648
      %v3372 = vpop.f32.mrf.mxu0
      %v3373 = vadd.f32 %v3204, %v3372
      %v3374 = vpop.f32.mrf.mxu0
      %v3375 = vadd.f32 %v3206, %v3374
      %3376 = vmatmul.bf16.gmra.mxu0 %v1656
      %v3377 = vpop.f32.mrf.mxu0
      %v3378 = vadd.f32 %v3209, %v3377
      %v3379 = vpop.f32.mrf.mxu0
      %v3380 = vadd.f32 %v3211, %v3379
      %3381 = vmatmul.bf16.gmra.mxu0 %v1664
      %v3382 = vpop.f32.mrf.mxu0
      %v3383 = vadd.f32 %v3214, %v3382
      %v3384 = vpop.f32.mrf.mxu0
      %v3385 = vadd.f32 %v3216, %v3384
      %3386 = vmatmul.bf16.gmra.mxu0 %v1672
      %v3387 = vpop.f32.mrf.mxu0
      %v3388 = vadd.f32 %v3219, %v3387
      %v3389 = vpop.f32.mrf.mxu0
      %v3390 = vadd.f32 %v3221, %v3389
      %3391 = vmatmul.bf16.gmra.mxu0 %v1680
      %v3392 = vpop.f32.mrf.mxu0
      %v3393 = vadd.f32 %v3224, %v3392
      %v3394 = vpop.f32.mrf.mxu0
      %v3395 = vadd.f32 %v3226, %v3394
      %3396 = vmatmul.bf16.gmra.mxu0 %v1688
      %v3397 = vpop.f32.mrf.mxu0
      %v3398 = vadd.f32 %v3229, %v3397
      %v3399 = vpop.f32.mrf.mxu0
      %v3400 = vadd.f32 %v3231, %v3399
      %3401 = vmatmul.bf16.gmra.mxu0 %v1696
      %v3402 = vpop.f32.mrf.mxu0
      %v3403 = vadd.f32 %v3234, %v3402
      %v3404 = vpop.f32.mrf.mxu0
      %v3405 = vadd.f32 %v3236, %v3404
      %3406 = vmatmul.bf16.gmra.mxu0 %v1704
      %v3407 = vpop.f32.mrf.mxu0
      %v3408 = vadd.f32 %v3239, %v3407
      %v3409 = vpop.f32.mrf.mxu0
      %v3410 = vadd.f32 %v3241, %v3409
      %3411 = vmatmul.bf16.gmra.mxu0 %v1712
      %v3412 = vpop.f32.mrf.mxu0
      %v3413 = vadd.f32 %v3244, %v3412
      %v3414 = vpop.f32.mrf.mxu0
      %v3415 = vadd.f32 %v3246, %v3414
      %3416 = vmatmul.bf16.gmra.mxu0 %v1720
      %v3417 = vpop.f32.mrf.mxu0
      %v3418 = vadd.f32 %v3249, %v3417
      %v3419 = vpop.f32.mrf.mxu0
      %v3420 = vadd.f32 %v3251, %v3419
      %3421 = vmatmul.bf16.gmra.mxu0 %v1728
      %v3422 = vpop.f32.mrf.mxu0
      %v3423 = vadd.f32 %v3254, %v3422
      %v3424 = vpop.f32.mrf.mxu0
      %v3425 = vadd.f32 %v3256, %v3424
      %3426 = vmatmul.bf16.gmra.mxu0 %v1736
      %v3427 = vpop.f32.mrf.mxu0
      %v3428 = vadd.f32 %v3259, %v3427
      %v3429 = vpop.f32.mrf.mxu0
      %v3430 = vadd.f32 %v3261, %v3429
      %3431 = vmatmul.bf16.gmra.mxu0 %v1744
      %v3432 = vpop.f32.mrf.mxu0
      %v3433 = vadd.f32 %v3264, %v3432
      %v3434 = vpop.f32.mrf.mxu0
      %v3435 = vadd.f32 %v3266, %v3434
      %3436 = vmatmul.bf16.gmra.mxu0 %v1752
      %v3437 = vpop.f32.mrf.mxu0
      %v3438 = vadd.f32 %v3269, %v3437
      %v3439 = vpop.f32.mrf.mxu0
      %v3440 = vadd.f32 %v3271, %v3439
      %3441 = vmatmul.bf16.gmra.mxu0 %v1760
      %v3442 = vpop.f32.mrf.mxu0
      %v3443 = vadd.f32 %v3274, %v3442
      %v3444 = vpop.f32.mrf.mxu0
      %v3445 = vadd.f32 %v3276, %v3444
      %3446 = vmatmul.bf16.gmra.mxu0 %v1768
      %v3447 = vpop.f32.mrf.mxu0
      %v3448 = vadd.f32 %v3279, %v3447
      %v3449 = vpop.f32.mrf.mxu0
      %v3450 = vadd.f32 %v3281, %v3449
      %3451 = vmatmul.bf16.gmra.mxu0 %v1776
      %v3452 = vpop.f32.mrf.mxu0
      %v3453 = vadd.f32 %v3284, %v3452
      %v3454 = vpop.f32.mrf.mxu0
      %v3455 = vadd.f32 %v3286, %v3454
      %3456 = vmatmul.bf16.gmra.mxu0 %v1784
      %v3457 = vpop.f32.mrf.mxu0
      %v3458 = vadd.f32 %v3289, %v3457
      %v3459 = vpop.f32.mrf.mxu0
      %v3460 = vadd.f32 %v3291, %v3459
      %3461 = vmatmul.bf16.gmra.mxu0 %v1792
      %v3462 = vpop.f32.mrf.mxu0
      %v3463 = vadd.f32 %v3294, %v3462
      %v3464 = vpop.f32.mrf.mxu0
      %v3465 = vadd.f32 %v3296, %v3464
      %3466 = vmatmul.bf16.gmra.mxu0 %v1800
      %v3467 = vpop.f32.mrf.mxu0
      %v3468 = vadd.f32 %v3299, %v3467
      %v3469 = vpop.f32.mrf.mxu0
      %v3470 = vadd.f32 %v3301, %v3469
      %3471 = vmatmul.bf16.gmra.mxu0 %v1808
      %v3472 = vpop.f32.mrf.mxu0
      %v3473 = vadd.f32 %v3304, %v3472
      %v3474 = vpop.f32.mrf.mxu0
      %v3475 = vadd.f32 %v3306, %v3474
      %3476 = vmatmul.bf16.gmra.mxu0 %v1816
      %v3477 = vpop.f32.mrf.mxu0
      %v3478 = vadd.f32 %v3309, %v3477
      %v3479 = vpop.f32.mrf.mxu0
      %v3480 = vadd.f32 %v3311, %v3479
      %3481 = vmatmul.bf16.gmra.mxu0 %v1824
      %v3482 = vpop.f32.mrf.mxu0
      %v3483 = vadd.f32 %v3314, %v3482
      %v3484 = vpop.f32.mrf.mxu0
      %v3485 = vadd.f32 %v3316, %v3484
      %3486 = vmatmul.bf16.gmra.mxu0 %v1832
      %v3487 = vpop.f32.mrf.mxu0
      %v3488 = vadd.f32 %v3319, %v3487
      %v3489 = vpop.f32.mrf.mxu0
      %v3490 = vadd.f32 %v3321, %v3489
      %3491 = vmatmul.bf16.gmra.mxu0 %v1840
      %v3492 = vpop.f32.mrf.mxu0
      %v3493 = vadd.f32 %v3324, %v3492
      %v3494 = vpop.f32.mrf.mxu0
      %v3495 = vadd.f32 %v3326, %v3494
      %3496 = vdwg.mxu0
      %3497 = vmatpush.bf16.msra.mxu0 %v2410
      %3498 = vmatpush.bf16.msra.mxu0 %v2409
      %3499 = vmatpush.bf16.msra.mxu0 %v2408
      %3500 = vmatpush.bf16.msra.mxu0 %v2407
      %3501 = vmatpush.bf16.msra.mxu0 %v2406
      %3502 = vmatpush.bf16.msra.mxu0 %v2405
      %3503 = vmatpush.bf16.msra.mxu0 %v2404
      %3504 = vmatpush.bf16.msra.mxu0 %v2403
      %3505 = vmatmul.bf16.gmra.mxu0 %v1593
      %v3506 = vpop.f32.mrf.mxu0
      %v3507 = vadd.f32 %v3338, %v3506
      %v3508 = vpop.f32.mrf.mxu0
      %v3509 = vadd.f32 %v3340, %v3508
      %3510 = vmatmul.bf16.gmra.mxu0 %v1601
      %v3511 = vpop.f32.mrf.mxu0
      %v3512 = vadd.f32 %v3343, %v3511
      %v3513 = vpop.f32.mrf.mxu0
      %v3514 = vadd.f32 %v3345, %v3513
      %3515 = vmatmul.bf16.gmra.mxu0 %v1609
      %v3516 = vpop.f32.mrf.mxu0
      %v3517 = vadd.f32 %v3348, %v3516
      %v3518 = vpop.f32.mrf.mxu0
      %v3519 = vadd.f32 %v3350, %v3518
      %3520 = vmatmul.bf16.gmra.mxu0 %v1617
      %v3521 = vpop.f32.mrf.mxu0
      %v3522 = vadd.f32 %v3353, %v3521
      %v3523 = vpop.f32.mrf.mxu0
      %v3524 = vadd.f32 %v3355, %v3523
      %3525 = vmatmul.bf16.gmra.mxu0 %v1625
      %v3526 = vpop.f32.mrf.mxu0
      %v3527 = vadd.f32 %v3358, %v3526
      %v3528 = vpop.f32.mrf.mxu0
      %v3529 = vadd.f32 %v3360, %v3528
      %3530 = vmatmul.bf16.gmra.mxu0 %v1633
      %v3531 = vpop.f32.mrf.mxu0
      %v3532 = vadd.f32 %v3363, %v3531
      %v3533 = vpop.f32.mrf.mxu0
      %v3534 = vadd.f32 %v3365, %v3533
      %3535 = vmatmul.bf16.gmra.mxu0 %v1641
      %v3536 = vpop.f32.mrf.mxu0
      %v3537 = vadd.f32 %v3368, %v3536
      %v3538 = vpop.f32.mrf.mxu0
      %v3539 = vadd.f32 %v3370, %v3538
      %3540 = vmatmul.bf16.gmra.mxu0 %v1649
      %v3541 = vpop.f32.mrf.mxu0
      %v3542 = vadd.f32 %v3373, %v3541
      %v3543 = vpop.f32.mrf.mxu0
      %v3544 = vadd.f32 %v3375, %v3543
      %3545 = vmatmul.bf16.gmra.mxu0 %v1657
      %v3546 = vpop.f32.mrf.mxu0
      %v3547 = vadd.f32 %v3378, %v3546
      %v3548 = vpop.f32.mrf.mxu0
      %v3549 = vadd.f32 %v3380, %v3548
      %3550 = vmatmul.bf16.gmra.mxu0 %v1665
      %v3551 = vpop.f32.mrf.mxu0
      %v3552 = vadd.f32 %v3383, %v3551
      %v3553 = vpop.f32.mrf.mxu0
      %v3554 = vadd.f32 %v3385, %v3553
      %3555 = vmatmul.bf16.gmra.mxu0 %v1673
      %v3556 = vpop.f32.mrf.mxu0
      %v3557 = vadd.f32 %v3388, %v3556
      %v3558 = vpop.f32.mrf.mxu0
      %v3559 = vadd.f32 %v3390, %v3558
      %3560 = vmatmul.bf16.gmra.mxu0 %v1681
      %v3561 = vpop.f32.mrf.mxu0
      %v3562 = vadd.f32 %v3393, %v3561
      %v3563 = vpop.f32.mrf.mxu0
      %v3564 = vadd.f32 %v3395, %v3563
      %3565 = vmatmul.bf16.gmra.mxu0 %v1689
      %v3566 = vpop.f32.mrf.mxu0
      %v3567 = vadd.f32 %v3398, %v3566
      %v3568 = vpop.f32.mrf.mxu0
      %v3569 = vadd.f32 %v3400, %v3568
      %3570 = vmatmul.bf16.gmra.mxu0 %v1697
      %v3571 = vpop.f32.mrf.mxu0
      %v3572 = vadd.f32 %v3403, %v3571
      %v3573 = vpop.f32.mrf.mxu0
      %v3574 = vadd.f32 %v3405, %v3573
      %3575 = vmatmul.bf16.gmra.mxu0 %v1705
      %v3576 = vpop.f32.mrf.mxu0
      %v3577 = vadd.f32 %v3408, %v3576
      %v3578 = vpop.f32.mrf.mxu0
      %v3579 = vadd.f32 %v3410, %v3578
      %3580 = vmatmul.bf16.gmra.mxu0 %v1713
      %v3581 = vpop.f32.mrf.mxu0
      %v3582 = vadd.f32 %v3413, %v3581
      %v3583 = vpop.f32.mrf.mxu0
      %v3584 = vadd.f32 %v3415, %v3583
      %3585 = vmatmul.bf16.gmra.mxu0 %v1721
      %v3586 = vpop.f32.mrf.mxu0
      %v3587 = vadd.f32 %v3418, %v3586
      %v3588 = vpop.f32.mrf.mxu0
      %v3589 = vadd.f32 %v3420, %v3588
      %3590 = vmatmul.bf16.gmra.mxu0 %v1729
      %v3591 = vpop.f32.mrf.mxu0
      %v3592 = vadd.f32 %v3423, %v3591
      %v3593 = vpop.f32.mrf.mxu0
      %v3594 = vadd.f32 %v3425, %v3593
      %3595 = vmatmul.bf16.gmra.mxu0 %v1737
      %v3596 = vpop.f32.mrf.mxu0
      %v3597 = vadd.f32 %v3428, %v3596
      %v3598 = vpop.f32.mrf.mxu0
      %v3599 = vadd.f32 %v3430, %v3598
      %3600 = vmatmul.bf16.gmra.mxu0 %v1745
      %v3601 = vpop.f32.mrf.mxu0
      %v3602 = vadd.f32 %v3433, %v3601
      %v3603 = vpop.f32.mrf.mxu0
      %v3604 = vadd.f32 %v3435, %v3603
      %3605 = vmatmul.bf16.gmra.mxu0 %v1753
      %v3606 = vpop.f32.mrf.mxu0
      %v3607 = vadd.f32 %v3438, %v3606
      %v3608 = vpop.f32.mrf.mxu0
      %v3609 = vadd.f32 %v3440, %v3608
      %3610 = vmatmul.bf16.gmra.mxu0 %v1761
      %v3611 = vpop.f32.mrf.mxu0
      %v3612 = vadd.f32 %v3443, %v3611
      %v3613 = vpop.f32.mrf.mxu0
      %v3614 = vadd.f32 %v3445, %v3613
      %3615 = vmatmul.bf16.gmra.mxu0 %v1769
      %v3616 = vpop.f32.mrf.mxu0
      %v3617 = vadd.f32 %v3448, %v3616
      %v3618 = vpop.f32.mrf.mxu0
      %v3619 = vadd.f32 %v3450, %v3618
      %3620 = vmatmul.bf16.gmra.mxu0 %v1777
      %v3621 = vpop.f32.mrf.mxu0
      %v3622 = vadd.f32 %v3453, %v3621
      %v3623 = vpop.f32.mrf.mxu0
      %v3624 = vadd.f32 %v3455, %v3623
      %3625 = vmatmul.bf16.gmra.mxu0 %v1785
      %v3626 = vpop.f32.mrf.mxu0
      %v3627 = vadd.f32 %v3458, %v3626
      %v3628 = vpop.f32.mrf.mxu0
      %v3629 = vadd.f32 %v3460, %v3628
      %3630 = vmatmul.bf16.gmra.mxu0 %v1793
      %v3631 = vpop.f32.mrf.mxu0
      %v3632 = vadd.f32 %v3463, %v3631
      %v3633 = vpop.f32.mrf.mxu0
      %v3634 = vadd.f32 %v3465, %v3633
      %3635 = vmatmul.bf16.gmra.mxu0 %v1801
      %v3636 = vpop.f32.mrf.mxu0
      %v3637 = vadd.f32 %v3468, %v3636
      %v3638 = vpop.f32.mrf.mxu0
      %v3639 = vadd.f32 %v3470, %v3638
      %3640 = vmatmul.bf16.gmra.mxu0 %v1809
      %v3641 = vpop.f32.mrf.mxu0
      %v3642 = vadd.f32 %v3473, %v3641
      %v3643 = vpop.f32.mrf.mxu0
      %v3644 = vadd.f32 %v3475, %v3643
      %3645 = vmatmul.bf16.gmra.mxu0 %v1817
      %v3646 = vpop.f32.mrf.mxu0
      %v3647 = vadd.f32 %v3478, %v3646
      %v3648 = vpop.f32.mrf.mxu0
      %v3649 = vadd.f32 %v3480, %v3648
      %3650 = vmatmul.bf16.gmra.mxu0 %v1825
      %v3651 = vpop.f32.mrf.mxu0
      %v3652 = vadd.f32 %v3483, %v3651
      %v3653 = vpop.f32.mrf.mxu0
      %v3654 = vadd.f32 %v3485, %v3653
      %3655 = vmatmul.bf16.gmra.mxu0 %v1833
      %v3656 = vpop.f32.mrf.mxu0
      %v3657 = vadd.f32 %v3488, %v3656
      %v3658 = vpop.f32.mrf.mxu0
      %v3659 = vadd.f32 %v3490, %v3658
      %3660 = vmatmul.bf16.gmra.mxu0 %v1841
      %v3661 = vpop.f32.mrf.mxu0
      %v3662 = vadd.f32 %v3493, %v3661
      %v3663 = vpop.f32.mrf.mxu0
      %v3664 = vadd.f32 %v3495, %v3663
      %3665 = vdwg.mxu0
      %3666 = vmatpush.bf16.msra.mxu0 %v2418
      %3667 = vmatpush.bf16.msra.mxu0 %v2417
      %3668 = vmatpush.bf16.msra.mxu0 %v2416
      %3669 = vmatpush.bf16.msra.mxu0 %v2415
      %3670 = vmatpush.bf16.msra.mxu0 %v2414
      %3671 = vmatpush.bf16.msra.mxu0 %v2413
      %3672 = vmatpush.bf16.msra.mxu0 %v2412
      %3673 = vmatpush.bf16.msra.mxu0 %v2411
      %3674 = vmatmul.bf16.gmra.mxu0 %v1594
      %v3675 = vpop.f32.mrf.mxu0
      %v3676 = vadd.f32 %v3507, %v3675
      %v3677 = vpop.f32.mrf.mxu0
      %v3678 = vadd.f32 %v3509, %v3677
      %3679 = vmatmul.bf16.gmra.mxu0 %v1602
      %v3680 = vpop.f32.mrf.mxu0
      %v3681 = vadd.f32 %v3512, %v3680
      %v3682 = vpop.f32.mrf.mxu0
      %v3683 = vadd.f32 %v3514, %v3682
      %3684 = vmatmul.bf16.gmra.mxu0 %v1610
      %v3685 = vpop.f32.mrf.mxu0
      %v3686 = vadd.f32 %v3517, %v3685
      %v3687 = vpop.f32.mrf.mxu0
      %v3688 = vadd.f32 %v3519, %v3687
      %3689 = vmatmul.bf16.gmra.mxu0 %v1618
      %v3690 = vpop.f32.mrf.mxu0
      %v3691 = vadd.f32 %v3522, %v3690
      %v3692 = vpop.f32.mrf.mxu0
      %v3693 = vadd.f32 %v3524, %v3692
      %3694 = vmatmul.bf16.gmra.mxu0 %v1626
      %v3695 = vpop.f32.mrf.mxu0
      %v3696 = vadd.f32 %v3527, %v3695
      %v3697 = vpop.f32.mrf.mxu0
      %v3698 = vadd.f32 %v3529, %v3697
      %3699 = vmatmul.bf16.gmra.mxu0 %v1634
      %v3700 = vpop.f32.mrf.mxu0
      %v3701 = vadd.f32 %v3532, %v3700
      %v3702 = vpop.f32.mrf.mxu0
      %v3703 = vadd.f32 %v3534, %v3702
      %3704 = vmatmul.bf16.gmra.mxu0 %v1642
      %v3705 = vpop.f32.mrf.mxu0
      %v3706 = vadd.f32 %v3537, %v3705
      %v3707 = vpop.f32.mrf.mxu0
      %v3708 = vadd.f32 %v3539, %v3707
      %3709 = vmatmul.bf16.gmra.mxu0 %v1650
      %v3710 = vpop.f32.mrf.mxu0
      %v3711 = vadd.f32 %v3542, %v3710
      %v3712 = vpop.f32.mrf.mxu0
      %v3713 = vadd.f32 %v3544, %v3712
      %3714 = vmatmul.bf16.gmra.mxu0 %v1658
      %v3715 = vpop.f32.mrf.mxu0
      %v3716 = vadd.f32 %v3547, %v3715
      %v3717 = vpop.f32.mrf.mxu0
      %v3718 = vadd.f32 %v3549, %v3717
      %3719 = vmatmul.bf16.gmra.mxu0 %v1666
      %v3720 = vpop.f32.mrf.mxu0
      %v3721 = vadd.f32 %v3552, %v3720
      %v3722 = vpop.f32.mrf.mxu0
      %v3723 = vadd.f32 %v3554, %v3722
      %3724 = vmatmul.bf16.gmra.mxu0 %v1674
      %v3725 = vpop.f32.mrf.mxu0
      %v3726 = vadd.f32 %v3557, %v3725
      %v3727 = vpop.f32.mrf.mxu0
      %v3728 = vadd.f32 %v3559, %v3727
      %3729 = vmatmul.bf16.gmra.mxu0 %v1682
      %v3730 = vpop.f32.mrf.mxu0
      %v3731 = vadd.f32 %v3562, %v3730
      %v3732 = vpop.f32.mrf.mxu0
      %v3733 = vadd.f32 %v3564, %v3732
      %3734 = vmatmul.bf16.gmra.mxu0 %v1690
      %v3735 = vpop.f32.mrf.mxu0
      %v3736 = vadd.f32 %v3567, %v3735
      %v3737 = vpop.f32.mrf.mxu0
      %v3738 = vadd.f32 %v3569, %v3737
      %3739 = vmatmul.bf16.gmra.mxu0 %v1698
      %v3740 = vpop.f32.mrf.mxu0
      %v3741 = vadd.f32 %v3572, %v3740
      %v3742 = vpop.f32.mrf.mxu0
      %v3743 = vadd.f32 %v3574, %v3742
      %3744 = vmatmul.bf16.gmra.mxu0 %v1706
      %v3745 = vpop.f32.mrf.mxu0
      %v3746 = vadd.f32 %v3577, %v3745
      %v3747 = vpop.f32.mrf.mxu0
      %v3748 = vadd.f32 %v3579, %v3747
      %3749 = vmatmul.bf16.gmra.mxu0 %v1714
      %v3750 = vpop.f32.mrf.mxu0
      %v3751 = vadd.f32 %v3582, %v3750
      %v3752 = vpop.f32.mrf.mxu0
      %v3753 = vadd.f32 %v3584, %v3752
      %3754 = vmatmul.bf16.gmra.mxu0 %v1722
      %v3755 = vpop.f32.mrf.mxu0
      %v3756 = vadd.f32 %v3587, %v3755
      %v3757 = vpop.f32.mrf.mxu0
      %v3758 = vadd.f32 %v3589, %v3757
      %3759 = vmatmul.bf16.gmra.mxu0 %v1730
      %v3760 = vpop.f32.mrf.mxu0
      %v3761 = vadd.f32 %v3592, %v3760
      %v3762 = vpop.f32.mrf.mxu0
      %v3763 = vadd.f32 %v3594, %v3762
      %3764 = vmatmul.bf16.gmra.mxu0 %v1738
      %v3765 = vpop.f32.mrf.mxu0
      %v3766 = vadd.f32 %v3597, %v3765
      %v3767 = vpop.f32.mrf.mxu0
      %v3768 = vadd.f32 %v3599, %v3767
      %3769 = vmatmul.bf16.gmra.mxu0 %v1746
      %v3770 = vpop.f32.mrf.mxu0
      %v3771 = vadd.f32 %v3602, %v3770
      %v3772 = vpop.f32.mrf.mxu0
      %v3773 = vadd.f32 %v3604, %v3772
      %3774 = vmatmul.bf16.gmra.mxu0 %v1754
      %v3775 = vpop.f32.mrf.mxu0
      %v3776 = vadd.f32 %v3607, %v3775
      %v3777 = vpop.f32.mrf.mxu0
      %v3778 = vadd.f32 %v3609, %v3777
      %3779 = vmatmul.bf16.gmra.mxu0 %v1762
      %v3780 = vpop.f32.mrf.mxu0
      %v3781 = vadd.f32 %v3612, %v3780
      %v3782 = vpop.f32.mrf.mxu0
      %v3783 = vadd.f32 %v3614, %v3782
      %3784 = vmatmul.bf16.gmra.mxu0 %v1770
      %v3785 = vpop.f32.mrf.mxu0
      %v3786 = vadd.f32 %v3617, %v3785
      %v3787 = vpop.f32.mrf.mxu0
      %v3788 = vadd.f32 %v3619, %v3787
      %3789 = vmatmul.bf16.gmra.mxu0 %v1778
      %v3790 = vpop.f32.mrf.mxu0
      %v3791 = vadd.f32 %v3622, %v3790
      %v3792 = vpop.f32.mrf.mxu0
      %v3793 = vadd.f32 %v3624, %v3792
      %3794 = vmatmul.bf16.gmra.mxu0 %v1786
      %v3795 = vpop.f32.mrf.mxu0
      %v3796 = vadd.f32 %v3627, %v3795
      %v3797 = vpop.f32.mrf.mxu0
      %v3798 = vadd.f32 %v3629, %v3797
      %3799 = vmatmul.bf16.gmra.mxu0 %v1794
      %v3800 = vpop.f32.mrf.mxu0
      %v3801 = vadd.f32 %v3632, %v3800
      %v3802 = vpop.f32.mrf.mxu0
      %v3803 = vadd.f32 %v3634, %v3802
      %3804 = vmatmul.bf16.gmra.mxu0 %v1802
      %v3805 = vpop.f32.mrf.mxu0
      %v3806 = vadd.f32 %v3637, %v3805
      %v3807 = vpop.f32.mrf.mxu0
      %v3808 = vadd.f32 %v3639, %v3807
      %3809 = vmatmul.bf16.gmra.mxu0 %v1810
      %v3810 = vpop.f32.mrf.mxu0
      %v3811 = vadd.f32 %v3642, %v3810
      %v3812 = vpop.f32.mrf.mxu0
      %v3813 = vadd.f32 %v3644, %v3812
      %3814 = vmatmul.bf16.gmra.mxu0 %v1818
      %v3815 = vpop.f32.mrf.mxu0
      %v3816 = vadd.f32 %v3647, %v3815
      %v3817 = vpop.f32.mrf.mxu0
      %v3818 = vadd.f32 %v3649, %v3817
      %3819 = vmatmul.bf16.gmra.mxu0 %v1826
      %v3820 = vpop.f32.mrf.mxu0
      %v3821 = vadd.f32 %v3652, %v3820
      %v3822 = vpop.f32.mrf.mxu0
      %v3823 = vadd.f32 %v3654, %v3822
      %3824 = vmatmul.bf16.gmra.mxu0 %v1834
      %v3825 = vpop.f32.mrf.mxu0
      %v3826 = vadd.f32 %v3657, %v3825
      %v3827 = vpop.f32.mrf.mxu0
      %v3828 = vadd.f32 %v3659, %v3827
      %3829 = vmatmul.bf16.gmra.mxu0 %v1842
      %v3830 = vpop.f32.mrf.mxu0
      %v3831 = vadd.f32 %v3662, %v3830
      %v3832 = vpop.f32.mrf.mxu0
      %v3833 = vadd.f32 %v3664, %v3832
      %3834 = vdwg.mxu0
      %v3835 = vadd.f32 %v371, %v3676
      %v3836 = vadd.f32 %v372, %v3678
      %v3837 = vadd.f32 %v373, %v3681
      %v3838 = vadd.f32 %v374, %v3683
      %v3839 = vadd.f32 %v375, %v3686
      %v3840 = vadd.f32 %v376, %v3688
      %v3841 = vadd.f32 %v377, %v3691
      %v3842 = vadd.f32 %v378, %v3693
      %v3843 = vadd.f32 %v379, %v3696
      %v3844 = vadd.f32 %v380, %v3698
      %v3845 = vadd.f32 %v381, %v3701
      %v3846 = vadd.f32 %v382, %v3703
      %v3847 = vadd.f32 %v383, %v3706
      %v3848 = vadd.f32 %v384, %v3708
      %v3849 = vadd.f32 %v385, %v3711
      %v3850 = vadd.f32 %v386, %v3713
      %v3851 = vadd.f32 %v387, %v3716
      %v3852 = vadd.f32 %v388, %v3718
      %v3853 = vadd.f32 %v389, %v3721
      %v3854 = vadd.f32 %v390, %v3723
      %v3855 = vadd.f32 %v391, %v3726
      %v3856 = vadd.f32 %v392, %v3728
      %v3857 = vadd.f32 %v393, %v3731
      %v3858 = vadd.f32 %v394, %v3733
      %v3859 = vadd.f32 %v395, %v3736
      %v3860 = vadd.f32 %v396, %v3738
      %v3861 = vadd.f32 %v397, %v3741
      %v3862 = vadd.f32 %v398, %v3743
      %v3863 = vadd.f32 %v399, %v3746
      %v3864 = vadd.f32 %v400, %v3748
      %v3865 = vadd.f32 %v401, %v3751
      %v3866 = vadd.f32 %v402, %v3753
      %v3867 = vadd.f32 %v403, %v3756
      %v3868 = vadd.f32 %v404, %v3758
      %v3869 = vadd.f32 %v405, %v3761
      %v3870 = vadd.f32 %v406, %v3763
      %v3871 = vadd.f32 %v407, %v3766
      %v3872 = vadd.f32 %v408, %v3768
      %v3873 = vadd.f32 %v409, %v3771
      %v3874 = vadd.f32 %v410, %v3773
      %v3875 = vadd.f32 %v411, %v3776
      %v3876 = vadd.f32 %v412, %v3778
      %v3877 = vadd.f32 %v413, %v3781
      %v3878 = vadd.f32 %v414, %v3783
      %v3879 = vadd.f32 %v415, %v3786
      %v3880 = vadd.f32 %v416, %v3788
      %v3881 = vadd.f32 %v417, %v3791
      %v3882 = vadd.f32 %v418, %v3793
      %v3883 = vadd.f32 %v419, %v3796
      %v3884 = vadd.f32 %v420, %v3798
      %v3885 = vadd.f32 %v421, %v3801
      %v3886 = vadd.f32 %v422, %v3803
      %v3887 = vadd.f32 %v423, %v3806
      %v3888 = vadd.f32 %v424, %v3808
      %v3889 = vadd.f32 %v425, %v3811
      %v3890 = vadd.f32 %v426, %v3813
      %v3891 = vadd.f32 %v427, %v3816
      %v3892 = vadd.f32 %v428, %v3818
      %v3893 = vadd.f32 %v429, %v3821
      %v3894 = vadd.f32 %v430, %v3823
      %v3895 = vadd.f32 %v431, %v3826
      %v3896 = vadd.f32 %v432, %v3828
      %v3897 = vadd.f32 %v433, %v3831
      %v3898 = vadd.f32 %v434, %v3833
      %3899 = vst [vmem:[#allocation2] sm:$0xff] %v3835
      %3900 = vst [vmem:[#allocation2 + $0x8] sm:$0xff] %v3836
      %3901 = vst [vmem:[#allocation2 + $0x10] sm:$0xff] %v3837
      %3902 = vst [vmem:[#allocation2 + $0x18] sm:$0xff] %v3838
      %3903 = vst [vmem:[#allocation2 + $0x20] sm:$0xff] %v3839
      %3904 = vst [vmem:[#allocation2 + $0x28] sm:$0xff] %v3840
      %3905 = vst [vmem:[#allocation2 + $0x30] sm:$0xff] %v3841
      %3906 = vst [vmem:[#allocation2 + $0x38] sm:$0xff] %v3842
      %3907 = vst [vmem:[#allocation2 + $0x40] sm:$0xff] %v3843
      %3908 = vst [vmem:[#allocation2 + $0x48] sm:$0xff] %v3844
      %3909 = vst [vmem:[#allocation2 + $0x50] sm:$0xff] %v3845
      %3910 = vst [vmem:[#allocation2 + $0x58] sm:$0xff] %v3846
      %3911 = vst [vmem:[#allocation2 + $0x60] sm:$0xff] %v3847
      %3912 = vst [vmem:[#allocation2 + $0x68] sm:$0xff] %v3848
      %3913 = vst [vmem:[#allocation2 + $0x70] sm:$0xff] %v3849
      %3914 = vst [vmem:[#allocation2 + $0x78] sm:$0xff] %v3850
      %3915 = vst [vmem:[#allocation2 + $0x80] sm:$0xff] %v3851
      %3916 = vst [vmem:[#allocation2 + $0x88] sm:$0xff] %v3852
      %3917 = vst [vmem:[#allocation2 + $0x90] sm:$0xff] %v3853
      %3918 = vst [vmem:[#allocation2 + $0x98] sm:$0xff] %v3854
      %3919 = vst [vmem:[#allocation2 + $0xa0] sm:$0xff] %v3855
      %3920 = vst [vmem:[#allocation2 + $0xa8] sm:$0xff] %v3856
      %3921 = vst [vmem:[#allocation2 + $0xb0] sm:$0xff] %v3857
      %3922 = vst [vmem:[#allocation2 + $0xb8] sm:$0xff] %v3858
      %3923 = vst [vmem:[#allocation2 + $0xc0] sm:$0xff] %v3859
      %3924 = vst [vmem:[#allocation2 + $0xc8] sm:$0xff] %v3860
      %3925 = vst [vmem:[#allocation2 + $0xd0] sm:$0xff] %v3861
      %3926 = vst [vmem:[#allocation2 + $0xd8] sm:$0xff] %v3862
      %3927 = vst [vmem:[#allocation2 + $0xe0] sm:$0xff] %v3863
      %3928 = vst [vmem:[#allocation2 + $0xe8] sm:$0xff] %v3864
      %3929 = vst [vmem:[#allocation2 + $0xf0] sm:$0xff] %v3865
      %3930 = vst [vmem:[#allocation2 + $0xf8] sm:$0xff] %v3866
      %3931 = vst [vmem:[#allocation2 + $0x100] sm:$0xff] %v3867
      %3932 = vst [vmem:[#allocation2 + $0x108] sm:$0xff] %v3868
      %3933 = vst [vmem:[#allocation2 + $0x110] sm:$0xff] %v3869
      %3934 = vst [vmem:[#allocation2 + $0x118] sm:$0xff] %v3870
      %3935 = vst [vmem:[#allocation2 + $0x120] sm:$0xff] %v3871
      %3936 = vst [vmem:[#allocation2 + $0x128] sm:$0xff] %v3872
      %3937 = vst [vmem:[#allocation2 + $0x130] sm:$0xff] %v3873
      %3938 = vst [vmem:[#allocation2 + $0x138] sm:$0xff] %v3874
      %3939 = vst [vmem:[#allocation2 + $0x140] sm:$0xff] %v3875
      %3940 = vst [vmem:[#allocation2 + $0x148] sm:$0xff] %v3876
      %3941 = vst [vmem:[#allocation2 + $0x150] sm:$0xff] %v3877
      %3942 = vst [vmem:[#allocation2 + $0x158] sm:$0xff] %v3878
      %3943 = vst [vmem:[#allocation2 + $0x160] sm:$0xff] %v3879
      %3944 = vst [vmem:[#allocation2 + $0x168] sm:$0xff] %v3880
      %3945 = vst [vmem:[#allocation2 + $0x170] sm:$0xff] %v3881
      %3946 = vst [vmem:[#allocation2 + $0x178] sm:$0xff] %v3882
      %3947 = vst [vmem:[#allocation2 + $0x180] sm:$0xff] %v3883
      %3948 = vst [vmem:[#allocation2 + $0x188] sm:$0xff] %v3884
      %3949 = vst [vmem:[#allocation2 + $0x190] sm:$0xff] %v3885
      %3950 = vst [vmem:[#allocation2 + $0x198] sm:$0xff] %v3886
      %3951 = vst [vmem:[#allocation2 + $0x1a0] sm:$0xff] %v3887
      %3952 = vst [vmem:[#allocation2 + $0x1a8] sm:$0xff] %v3888
      %3953 = vst [vmem:[#allocation2 + $0x1b0] sm:$0xff] %v3889
      %3954 = vst [vmem:[#allocation2 + $0x1b8] sm:$0xff] %v3890
      %3955 = vst [vmem:[#allocation2 + $0x1c0] sm:$0xff] %v3891
      %3956 = vst [vmem:[#allocation2 + $0x1c8] sm:$0xff] %v3892
      %3957 = vst [vmem:[#allocation2 + $0x1d0] sm:$0xff] %v3893
      %3958 = vst [vmem:[#allocation2 + $0x1d8] sm:$0xff] %v3894
      %3959 = vst [vmem:[#allocation2 + $0x1e0] sm:$0xff] %v3895
      %3960 = vst [vmem:[#allocation2 + $0x1e8] sm:$0xff] %v3896
      %3961 = vst [vmem:[#allocation2 + $0x1f0] sm:$0xff] %v3897
      %3962 = vst [vmem:[#allocation2 + $0x1f8] sm:$0xff] %v3898
      // Predicated region
      $region45: #{sage_forward.11} parent=39 // pred_check
        %p3963 = pneg %p303
      $region46: #{sage_forward.11} parent=39 // pred_check_branch
        %3965 = sbr.rel (%p3963) target = $region48
      $region47: #{sage_forward.11} parent=39 // pred_region
        %v3966 = vld [vmem:[%s295] sm:$0xf]
        %v3967 = vld [vmem:[%s295 + $0x4] sm:$0xf]
        %v3968 = vld [vmem:[%s295 + $0x8] sm:$0xf]
        %v3969 = vld [vmem:[%s295 + $0xc] sm:$0xf]
        %v3970 = vld [vmem:[%s295 + $0x10] sm:$0xf]
        %v3971 = vld [vmem:[%s295 + $0x14] sm:$0xf]
        %v3972 = vld [vmem:[%s295 + $0x18] sm:$0xf]
        %v3973 = vld [vmem:[%s295 + $0x1c] sm:$0xf]
        %v3974 = vld [vmem:[%s295 + $0x20] sm:$0xf]
        %v3975 = vld [vmem:[%s295 + $0x24] sm:$0xf]
        %v3976 = vld [vmem:[%s295 + $0x28] sm:$0xf]
        %v3977 = vld [vmem:[%s295 + $0x2c] sm:$0xf]
        %v3978 = vld [vmem:[%s295 + $0x30] sm:$0xf]
        %v3979 = vld [vmem:[%s295 + $0x34] sm:$0xf]
        %v3980 = vld [vmem:[%s295 + $0x38] sm:$0xf]
        %v3981 = vld [vmem:[%s295 + $0x3c] sm:$0xf]
        %v3982 = vld [vmem:[%s295 + $0x40] sm:$0xf]
        %v3983 = vld [vmem:[%s295 + $0x44] sm:$0xf]
        %v3984 = vld [vmem:[%s295 + $0x48] sm:$0xf]
        %v3985 = vld [vmem:[%s295 + $0x4c] sm:$0xf]
        %v3986 = vld [vmem:[%s295 + $0x50] sm:$0xf]
        %v3987 = vld [vmem:[%s295 + $0x54] sm:$0xf]
        %v3988 = vld [vmem:[%s295 + $0x58] sm:$0xf]
        %v3989 = vld [vmem:[%s295 + $0x5c] sm:$0xf]
        %v3990 = vld [vmem:[%s295 + $0x60] sm:$0xf]
        %v3991 = vld [vmem:[%s295 + $0x64] sm:$0xf]
        %v3992 = vld [vmem:[%s295 + $0x68] sm:$0xf]
        %v3993 = vld [vmem:[%s295 + $0x6c] sm:$0xf]
        %v3994 = vld [vmem:[%s295 + $0x70] sm:$0xf]
        %v3995 = vld [vmem:[%s295 + $0x74] sm:$0xf]
        %v3996 = vld [vmem:[%s295 + $0x78] sm:$0xf]
        %v3997 = vld [vmem:[%s295 + $0x7c] sm:$0xf]
        %v3998 = vld [vmem:[%s295 + $0x80] sm:$0xf]
        %v3999 = vld [vmem:[%s295 + $0x84] sm:$0xf]
        %v4000 = vld [vmem:[%s295 + $0x88] sm:$0xf]
        %v4001 = vld [vmem:[%s295 + $0x8c] sm:$0xf]
        %v4002 = vld [vmem:[%s295 + $0x90] sm:$0xf]
        %v4003 = vld [vmem:[%s295 + $0x94] sm:$0xf]
        %v4004 = vld [vmem:[%s295 + $0x98] sm:$0xf]
        %v4005 = vld [vmem:[%s295 + $0x9c] sm:$0xf]
        %v4006 = vld [vmem:[%s295 + $0xa0] sm:$0xf]
        %v4007 = vld [vmem:[%s295 + $0xa4] sm:$0xf]
        %v4008 = vld [vmem:[%s295 + $0xa8] sm:$0xf]
        %v4009 = vld [vmem:[%s295 + $0xac] sm:$0xf]
        %v4010 = vld [vmem:[%s295 + $0xb0] sm:$0xf]
        %v4011 = vld [vmem:[%s295 + $0xb4] sm:$0xf]
        %v4012 = vld [vmem:[%s295 + $0xb8] sm:$0xf]
        %v4013 = vld [vmem:[%s295 + $0xbc] sm:$0xf]
        %v4014 = vld [vmem:[%s295 + $0xc0] sm:$0xf]
        %v4015 = vld [vmem:[%s295 + $0xc4] sm:$0xf]
        %v4016 = vld [vmem:[%s295 + $0xc8] sm:$0xf]
        %v4017 = vld [vmem:[%s295 + $0xcc] sm:$0xf]
        %v4018 = vld [vmem:[%s295 + $0xd0] sm:$0xf]
        %v4019 = vld [vmem:[%s295 + $0xd4] sm:$0xf]
        %v4020 = vld [vmem:[%s295 + $0xd8] sm:$0xf]
        %v4021 = vld [vmem:[%s295 + $0xdc] sm:$0xf]
        %v4022 = vld [vmem:[%s295 + $0xe0] sm:$0xf]
        %v4023 = vld [vmem:[%s295 + $0xe4] sm:$0xf]
        %v4024 = vld [vmem:[%s295 + $0xe8] sm:$0xf]
        %v4025 = vld [vmem:[%s295 + $0xec] sm:$0xf]
        %v4026 = vld [vmem:[%s295 + $0xf0] sm:$0xf]
        %v4027 = vld [vmem:[%s295 + $0xf4] sm:$0xf]
        %v4028 = vld [vmem:[%s295 + $0xf8] sm:$0xf]
        %v4029 = vld [vmem:[%s295 + $0xfc] sm:$0xf]
        %v4030 = vld [vmem:[%s3] sm:$0xf]
        %v4031 = vld [vmem:[%s3 + $0x4] sm:$0xf]
        %v4032 = vld [vmem:[%s3 + $0x8] sm:$0xf]
        %v4033 = vld [vmem:[%s3 + $0xc] sm:$0xf]
        %v4034 = vld [vmem:[%s3 + $0x10] sm:$0xf]
        %v4035 = vld [vmem:[%s3 + $0x14] sm:$0xf]
        %v4036 = vld [vmem:[%s3 + $0x18] sm:$0xf]
        %v4037 = vld [vmem:[%s3 + $0x1c] sm:$0xf]
        %v4038 = vld [vmem:[%s3 + $0x20] sm:$0xf]
        %v4039 = vld [vmem:[%s3 + $0x24] sm:$0xf]
        %v4040 = vld [vmem:[%s3 + $0x28] sm:$0xf]
        %v4041 = vld [vmem:[%s3 + $0x2c] sm:$0xf]
        %v4042 = vld [vmem:[%s3 + $0x30] sm:$0xf]
        %v4043 = vld [vmem:[%s3 + $0x34] sm:$0xf]
        %v4044 = vld [vmem:[%s3 + $0x38] sm:$0xf]
        %v4045 = vld [vmem:[%s3 + $0x3c] sm:$0xf]
        %v4110 = vunpack.c.l.b16 %v3966
        %v4111 = vunpack.c.l.b16 %v3967
        %v4112 = vunpack.c.l.b16 %v3968
        %v4113 = vunpack.c.l.b16 %v3969
        %v4114 = vunpack.c.l.b16 %v3970
        %v4115 = vunpack.c.l.b16 %v3971
        %v4116 = vunpack.c.l.b16 %v3972
        %v4117 = vunpack.c.l.b16 %v3973
        %v4118 = vunpack.c.l.b16 %v3974
        %v4119 = vunpack.c.l.b16 %v3975
        %v4120 = vunpack.c.l.b16 %v3976
        %v4121 = vunpack.c.l.b16 %v3977
        %v4122 = vunpack.c.l.b16 %v3978
        %v4123 = vunpack.c.l.b16 %v3979
        %v4124 = vunpack.c.l.b16 %v3980
        %v4125 = vunpack.c.l.b16 %v3981
        %v4126 = vunpack.c.l.b16 %v3982
        %v4127 = vunpack.c.l.b16 %v3983
        %v4128 = vunpack.c.l.b16 %v3984
        %v4129 = vunpack.c.l.b16 %v3985
        %v4130 = vunpack.c.l.b16 %v3986
        %v4131 = vunpack.c.l.b16 %v3987
        %v4132 = vunpack.c.l.b16 %v3988
        %v4133 = vunpack.c.l.b16 %v3989
        %v4134 = vunpack.c.l.b16 %v3990
        %v4135 = vunpack.c.l.b16 %v3991
        %v4136 = vunpack.c.l.b16 %v3992
        %v4137 = vunpack.c.l.b16 %v3993
        %v4138 = vunpack.c.l.b16 %v3994
        %v4139 = vunpack.c.l.b16 %v3995
        %v4140 = vunpack.c.l.b16 %v3996
        %v4141 = vunpack.c.l.b16 %v3997
        %v4142 = vunpack.c.l.b16 %v3998
        %v4143 = vunpack.c.l.b16 %v3999
        %v4144 = vunpack.c.l.b16 %v4000
        %v4145 = vunpack.c.l.b16 %v4001
        %v4146 = vunpack.c.l.b16 %v4002
        %v4147 = vunpack.c.l.b16 %v4003
        %v4148 = vunpack.c.l.b16 %v4004
        %v4149 = vunpack.c.l.b16 %v4005
        %v4150 = vunpack.c.l.b16 %v4006
        %v4151 = vunpack.c.l.b16 %v4007
        %v4152 = vunpack.c.l.b16 %v4008
        %v4153 = vunpack.c.l.b16 %v4009
        %v4154 = vunpack.c.l.b16 %v4010
        %v4155 = vunpack.c.l.b16 %v4011
        %v4156 = vunpack.c.l.b16 %v4012
        %v4157 = vunpack.c.l.b16 %v4013
        %v4158 = vunpack.c.l.b16 %v4014
        %v4159 = vunpack.c.l.b16 %v4015
        %v4160 = vunpack.c.l.b16 %v4016
        %v4161 = vunpack.c.l.b16 %v4017
        %v4162 = vunpack.c.l.b16 %v4018
        %v4163 = vunpack.c.l.b16 %v4019
        %v4164 = vunpack.c.l.b16 %v4020
        %v4165 = vunpack.c.l.b16 %v4021
        %v4166 = vunpack.c.l.b16 %v4022
        %v4167 = vunpack.c.l.b16 %v4023
        %v4168 = vunpack.c.l.b16 %v4024
        %v4169 = vunpack.c.l.b16 %v4025
        %v4170 = vunpack.c.l.b16 %v4026
        %v4171 = vunpack.c.l.b16 %v4027
        %v4172 = vunpack.c.l.b16 %v4028
        %v4173 = vunpack.c.l.b16 %v4029
        %v4174 = vpack.c.b16 %v4111, %v4110
        %v4175 = vpack.c.b16 %v4113, %v4112
        %v4176 = vpack.c.b16 %v4115, %v4114
        %v4177 = vpack.c.b16 %v4117, %v4116
        %v4178 = vpack.c.b16 %v4119, %v4118
        %v4179 = vpack.c.b16 %v4121, %v4120
        %v4180 = vpack.c.b16 %v4123, %v4122
        %v4181 = vpack.c.b16 %v4125, %v4124
        %v4182 = vpack.c.b16 %v4127, %v4126
        %v4183 = vpack.c.b16 %v4129, %v4128
        %v4184 = vpack.c.b16 %v4131, %v4130
        %v4185 = vpack.c.b16 %v4133, %v4132
        %v4186 = vpack.c.b16 %v4135, %v4134
        %v4187 = vpack.c.b16 %v4137, %v4136
        %v4188 = vpack.c.b16 %v4139, %v4138
        %v4189 = vpack.c.b16 %v4141, %v4140
        %v4190 = vpack.c.b16 %v4143, %v4142
        %v4191 = vpack.c.b16 %v4145, %v4144
        %v4192 = vpack.c.b16 %v4147, %v4146
        %v4193 = vpack.c.b16 %v4149, %v4148
        %v4194 = vpack.c.b16 %v4151, %v4150
        %v4195 = vpack.c.b16 %v4153, %v4152
        %v4196 = vpack.c.b16 %v4155, %v4154
        %v4197 = vpack.c.b16 %v4157, %v4156
        %v4198 = vpack.c.b16 %v4159, %v4158
        %v4199 = vpack.c.b16 %v4161, %v4160
        %v4200 = vpack.c.b16 %v4163, %v4162
        %v4201 = vpack.c.b16 %v4165, %v4164
        %v4202 = vpack.c.b16 %v4167, %v4166
        %v4203 = vpack.c.b16 %v4169, %v4168
        %v4204 = vpack.c.b16 %v4171, %v4170
        %v4205 = vpack.c.b16 %v4173, %v4172
        %v4254 = vunpack.c.l.b16 %v4030
        %v4255 = vunpack.c.l.b16 %v4031
        %v4256 = vunpack.c.l.b16 %v4032
        %v4257 = vunpack.c.l.b16 %v4033
        %v4258 = vunpack.c.l.b16 %v4034
        %v4259 = vunpack.c.l.b16 %v4035
        %v4260 = vunpack.c.l.b16 %v4036
        %v4261 = vunpack.c.l.b16 %v4037
        %v4262 = vunpack.c.l.b16 %v4038
        %v4263 = vunpack.c.l.b16 %v4039
        %v4264 = vunpack.c.l.b16 %v4040
        %v4265 = vunpack.c.l.b16 %v4041
        %v4266 = vunpack.c.l.b16 %v4042
        %v4267 = vunpack.c.l.b16 %v4043
        %v4268 = vunpack.c.l.b16 %v4044
        %v4269 = vunpack.c.l.b16 %v4045
        %v4270 = vpack.c.b16 %v4255, %v4254
        %v4271 = vpack.c.b16 %v4257, %v4256
        %v4272 = vpack.c.b16 %v4259, %v4258
        %v4273 = vpack.c.b16 %v4261, %v4260
        %v4274 = vpack.c.b16 %v4263, %v4262
        %v4275 = vpack.c.b16 %v4265, %v4264
        %v4276 = vpack.c.b16 %v4267, %v4266
        %v4277 = vpack.c.b16 %v4269, %v4268
        %4286 = vmatpush.bf16.msra.mxu0 %v4277
        %4287 = vmatpush.bf16.msra.mxu0 %v4276
        %4288 = vmatpush.bf16.msra.mxu0 %v4275
        %4289 = vmatpush.bf16.msra.mxu0 %v4274
        %4290 = vmatpush.bf16.msra.mxu0 %v4273
        %4291 = vmatpush.bf16.msra.mxu0 %v4272
        %4292 = vmatpush.bf16.msra.mxu0 %v4271
        %4293 = vmatpush.bf16.msra.mxu0 %v4270
        %4294 = vmatmul.bf16.gmra.mxu0 %v4174
        %v4295 = vpop.f32.mrf.mxu0
        %v4296 = vadd.f32 0.0, %v4295
        %v4297 = vpop.f32.mrf.mxu0
        %v4298 = vadd.f32 0.0, %v4297
        %4299 = vmatmul.bf16.gmra.mxu0 %v4175
        %v4300 = vpop.f32.mrf.mxu0
        %v4301 = vadd.f32 0.0, %v4300
        %v4302 = vpop.f32.mrf.mxu0
        %v4303 = vadd.f32 0.0, %v4302
        %4304 = vmatmul.bf16.gmra.mxu0 %v4176
        %v4305 = vpop.f32.mrf.mxu0
        %v4306 = vadd.f32 0.0, %v4305
        %v4307 = vpop.f32.mrf.mxu0
        %v4308 = vadd.f32 0.0, %v4307
        %4309 = vmatmul.bf16.gmra.mxu0 %v4177
        %v4310 = vpop.f32.mrf.mxu0
        %v4311 = vadd.f32 0.0, %v4310
        %v4312 = vpop.f32.mrf.mxu0
        %v4313 = vadd.f32 0.0, %v4312
        %4314 = vmatmul.bf16.gmra.mxu0 %v4178
        %v4315 = vpop.f32.mrf.mxu0
        %v4316 = vadd.f32 0.0, %v4315
        %v4317 = vpop.f32.mrf.mxu0
        %v4318 = vadd.f32 0.0, %v4317
        %4319 = vmatmul.bf16.gmra.mxu0 %v4179
        %v4320 = vpop.f32.mrf.mxu0
        %v4321 = vadd.f32 0.0, %v4320
        %v4322 = vpop.f32.mrf.mxu0
        %v4323 = vadd.f32 0.0, %v4322
        %4324 = vmatmul.bf16.gmra.mxu0 %v4180
        %v4325 = vpop.f32.mrf.mxu0
        %v4326 = vadd.f32 0.0, %v4325
        %v4327 = vpop.f32.mrf.mxu0
        %v4328 = vadd.f32 0.0, %v4327
        %4329 = vmatmul.bf16.gmra.mxu0 %v4181
        %v4330 = vpop.f32.mrf.mxu0
        %v4331 = vadd.f32 0.0, %v4330
        %v4332 = vpop.f32.mrf.mxu0
        %v4333 = vadd.f32 0.0, %v4332
        %4334 = vmatmul.bf16.gmra.mxu0 %v4182
        %v4335 = vpop.f32.mrf.mxu0
        %v4336 = vadd.f32 0.0, %v4335
        %v4337 = vpop.f32.mrf.mxu0
        %v4338 = vadd.f32 0.0, %v4337
        %4339 = vmatmul.bf16.gmra.mxu0 %v4183
        %v4340 = vpop.f32.mrf.mxu0
        %v4341 = vadd.f32 0.0, %v4340
        %v4342 = vpop.f32.mrf.mxu0
        %v4343 = vadd.f32 0.0, %v4342
        %4344 = vmatmul.bf16.gmra.mxu0 %v4184
        %v4345 = vpop.f32.mrf.mxu0
        %v4346 = vadd.f32 0.0, %v4345
        %v4347 = vpop.f32.mrf.mxu0
        %v4348 = vadd.f32 0.0, %v4347
        %4349 = vmatmul.bf16.gmra.mxu0 %v4185
        %v4350 = vpop.f32.mrf.mxu0
        %v4351 = vadd.f32 0.0, %v4350
        %v4352 = vpop.f32.mrf.mxu0
        %v4353 = vadd.f32 0.0, %v4352
        %4354 = vmatmul.bf16.gmra.mxu0 %v4186
        %v4355 = vpop.f32.mrf.mxu0
        %v4356 = vadd.f32 0.0, %v4355
        %v4357 = vpop.f32.mrf.mxu0
        %v4358 = vadd.f32 0.0, %v4357
        %4359 = vmatmul.bf16.gmra.mxu0 %v4187
        %v4360 = vpop.f32.mrf.mxu0
        %v4361 = vadd.f32 0.0, %v4360
        %v4362 = vpop.f32.mrf.mxu0
        %v4363 = vadd.f32 0.0, %v4362
        %4364 = vmatmul.bf16.gmra.mxu0 %v4188
        %v4365 = vpop.f32.mrf.mxu0
        %v4366 = vadd.f32 0.0, %v4365
        %v4367 = vpop.f32.mrf.mxu0
        %v4368 = vadd.f32 0.0, %v4367
        %4369 = vmatmul.bf16.gmra.mxu0 %v4189
        %v4370 = vpop.f32.mrf.mxu0
        %v4371 = vadd.f32 0.0, %v4370
        %v4372 = vpop.f32.mrf.mxu0
        %v4373 = vadd.f32 0.0, %v4372
        %4374 = vmatmul.bf16.gmra.mxu0 %v4190
        %v4375 = vpop.f32.mrf.mxu0
        %v4376 = vadd.f32 0.0, %v4375
        %v4377 = vpop.f32.mrf.mxu0
        %v4378 = vadd.f32 0.0, %v4377
        %4379 = vmatmul.bf16.gmra.mxu0 %v4191
        %v4380 = vpop.f32.mrf.mxu0
        %v4381 = vadd.f32 0.0, %v4380
        %v4382 = vpop.f32.mrf.mxu0
        %v4383 = vadd.f32 0.0, %v4382
        %4384 = vmatmul.bf16.gmra.mxu0 %v4192
        %v4385 = vpop.f32.mrf.mxu0
        %v4386 = vadd.f32 0.0, %v4385
        %v4387 = vpop.f32.mrf.mxu0
        %v4388 = vadd.f32 0.0, %v4387
        %4389 = vmatmul.bf16.gmra.mxu0 %v4193
        %v4390 = vpop.f32.mrf.mxu0
        %v4391 = vadd.f32 0.0, %v4390
        %v4392 = vpop.f32.mrf.mxu0
        %v4393 = vadd.f32 0.0, %v4392
        %4394 = vmatmul.bf16.gmra.mxu0 %v4194
        %v4395 = vpop.f32.mrf.mxu0
        %v4396 = vadd.f32 0.0, %v4395
        %v4397 = vpop.f32.mrf.mxu0
        %v4398 = vadd.f32 0.0, %v4397
        %4399 = vmatmul.bf16.gmra.mxu0 %v4195
        %v4400 = vpop.f32.mrf.mxu0
        %v4401 = vadd.f32 0.0, %v4400
        %v4402 = vpop.f32.mrf.mxu0
        %v4403 = vadd.f32 0.0, %v4402
        %4404 = vmatmul.bf16.gmra.mxu0 %v4196
        %v4405 = vpop.f32.mrf.mxu0
        %v4406 = vadd.f32 0.0, %v4405
        %v4407 = vpop.f32.mrf.mxu0
        %v4408 = vadd.f32 0.0, %v4407
        %4409 = vmatmul.bf16.gmra.mxu0 %v4197
        %v4410 = vpop.f32.mrf.mxu0
        %v4411 = vadd.f32 0.0, %v4410
        %v4412 = vpop.f32.mrf.mxu0
        %v4413 = vadd.f32 0.0, %v4412
        %4414 = vmatmul.bf16.gmra.mxu0 %v4198
        %v4415 = vpop.f32.mrf.mxu0
        %v4416 = vadd.f32 0.0, %v4415
        %v4417 = vpop.f32.mrf.mxu0
        %v4418 = vadd.f32 0.0, %v4417
        %4419 = vmatmul.bf16.gmra.mxu0 %v4199
        %v4420 = vpop.f32.mrf.mxu0
        %v4421 = vadd.f32 0.0, %v4420
        %v4422 = vpop.f32.mrf.mxu0
        %v4423 = vadd.f32 0.0, %v4422
        %4424 = vmatmul.bf16.gmra.mxu0 %v4200
        %v4425 = vpop.f32.mrf.mxu0
        %v4426 = vadd.f32 0.0, %v4425
        %v4427 = vpop.f32.mrf.mxu0
        %v4428 = vadd.f32 0.0, %v4427
        %4429 = vmatmul.bf16.gmra.mxu0 %v4201
        %v4430 = vpop.f32.mrf.mxu0
        %v4431 = vadd.f32 0.0, %v4430
        %v4432 = vpop.f32.mrf.mxu0
        %v4433 = vadd.f32 0.0, %v4432
        %4434 = vmatmul.bf16.gmra.mxu0 %v4202
        %v4435 = vpop.f32.mrf.mxu0
        %v4436 = vadd.f32 0.0, %v4435
        %v4437 = vpop.f32.mrf.mxu0
        %v4438 = vadd.f32 0.0, %v4437
        %4439 = vmatmul.bf16.gmra.mxu0 %v4203
        %v4440 = vpop.f32.mrf.mxu0
        %v4441 = vadd.f32 0.0, %v4440
        %v4442 = vpop.f32.mrf.mxu0
        %v4443 = vadd.f32 0.0, %v4442
        %4444 = vmatmul.bf16.gmra.mxu0 %v4204
        %v4445 = vpop.f32.mrf.mxu0
        %v4446 = vadd.f32 0.0, %v4445
        %v4447 = vpop.f32.mrf.mxu0
        %v4448 = vadd.f32 0.0, %v4447
        %4449 = vmatmul.bf16.gmra.mxu0 %v4205
        %v4450 = vpop.f32.mrf.mxu0
        %v4451 = vadd.f32 0.0, %v4450
        %v4452 = vpop.f32.mrf.mxu0
        %v4453 = vadd.f32 0.0, %v4452
        %4454 = vdwg.mxu0
        %v4455 = vld [vmem:[#allocation2] sm:$0xff]
        %v4456 = vld [vmem:[#allocation2 + $0x8] sm:$0xff]
        %v4457 = vld [vmem:[#allocation2 + $0x10] sm:$0xff]
        %v4458 = vld [vmem:[#allocation2 + $0x18] sm:$0xff]
        %v4459 = vld [vmem:[#allocation2 + $0x20] sm:$0xff]
        %v4460 = vld [vmem:[#allocation2 + $0x28] sm:$0xff]
        %v4461 = vld [vmem:[#allocation2 + $0x30] sm:$0xff]
        %v4462 = vld [vmem:[#allocation2 + $0x38] sm:$0xff]
        %v4463 = vld [vmem:[#allocation2 + $0x40] sm:$0xff]
        %v4464 = vld [vmem:[#allocation2 + $0x48] sm:$0xff]
        %v4465 = vld [vmem:[#allocation2 + $0x50] sm:$0xff]
        %v4466 = vld [vmem:[#allocation2 + $0x58] sm:$0xff]
        %v4467 = vld [vmem:[#allocation2 + $0x60] sm:$0xff]
        %v4468 = vld [vmem:[#allocation2 + $0x68] sm:$0xff]
        %v4469 = vld [vmem:[#allocation2 + $0x70] sm:$0xff]
        %v4470 = vld [vmem:[#allocation2 + $0x78] sm:$0xff]
        %v4471 = vld [vmem:[#allocation2 + $0x80] sm:$0xff]
        %v4472 = vld [vmem:[#allocation2 + $0x88] sm:$0xff]
        %v4473 = vld [vmem:[#allocation2 + $0x90] sm:$0xff]
        %v4474 = vld [vmem:[#allocation2 + $0x98] sm:$0xff]
        %v4475 = vld [vmem:[#allocation2 + $0xa0] sm:$0xff]
        %v4476 = vld [vmem:[#allocation2 + $0xa8] sm:$0xff]
        %v4477 = vld [vmem:[#allocation2 + $0xb0] sm:$0xff]
        %v4478 = vld [vmem:[#allocation2 + $0xb8] sm:$0xff]
        %v4479 = vld [vmem:[#allocation2 + $0xc0] sm:$0xff]
        %v4480 = vld [vmem:[#allocation2 + $0xc8] sm:$0xff]
        %v4481 = vld [vmem:[#allocation2 + $0xd0] sm:$0xff]
        %v4482 = vld [vmem:[#allocation2 + $0xd8] sm:$0xff]
        %v4483 = vld [vmem:[#allocation2 + $0xe0] sm:$0xff]
        %v4484 = vld [vmem:[#allocation2 + $0xe8] sm:$0xff]
        %v4485 = vld [vmem:[#allocation2 + $0xf0] sm:$0xff]
        %v4486 = vld [vmem:[#allocation2 + $0xf8] sm:$0xff]
        %v4487 = vld [vmem:[#allocation2 + $0x100] sm:$0xff]
        %v4488 = vld [vmem:[#allocation2 + $0x108] sm:$0xff]
        %v4489 = vld [vmem:[#allocation2 + $0x110] sm:$0xff]
        %v4490 = vld [vmem:[#allocation2 + $0x118] sm:$0xff]
        %v4491 = vld [vmem:[#allocation2 + $0x120] sm:$0xff]
        %v4492 = vld [vmem:[#allocation2 + $0x128] sm:$0xff]
        %v4493 = vld [vmem:[#allocation2 + $0x130] sm:$0xff]
        %v4494 = vld [vmem:[#allocation2 + $0x138] sm:$0xff]
        %v4495 = vld [vmem:[#allocation2 + $0x140] sm:$0xff]
        %v4496 = vld [vmem:[#allocation2 + $0x148] sm:$0xff]
        %v4497 = vld [vmem:[#allocation2 + $0x150] sm:$0xff]
        %v4498 = vld [vmem:[#allocation2 + $0x158] sm:$0xff]
        %v4499 = vld [vmem:[#allocation2 + $0x160] sm:$0xff]
        %v4500 = vld [vmem:[#allocation2 + $0x168] sm:$0xff]
        %v4501 = vld [vmem:[#allocation2 + $0x170] sm:$0xff]
        %v4502 = vld [vmem:[#allocation2 + $0x178] sm:$0xff]
        %v4503 = vld [vmem:[#allocation2 + $0x180] sm:$0xff]
        %v4504 = vld [vmem:[#allocation2 + $0x188] sm:$0xff]
        %v4505 = vld [vmem:[#allocation2 + $0x190] sm:$0xff]
        %v4506 = vld [vmem:[#allocation2 + $0x198] sm:$0xff]
        %v4507 = vld [vmem:[#allocation2 + $0x1a0] sm:$0xff]
        %v4508 = vld [vmem:[#allocation2 + $0x1a8] sm:$0xff]
        %v4509 = vld [vmem:[#allocation2 + $0x1b0] sm:$0xff]
        %v4510 = vld [vmem:[#allocation2 + $0x1b8] sm:$0xff]
        %v4511 = vld [vmem:[#allocation2 + $0x1c0] sm:$0xff]
        %v4512 = vld [vmem:[#allocation2 + $0x1c8] sm:$0xff]
        %v4513 = vld [vmem:[#allocation2 + $0x1d0] sm:$0xff]
        %v4514 = vld [vmem:[#allocation2 + $0x1d8] sm:$0xff]
        %v4515 = vld [vmem:[#allocation2 + $0x1e0] sm:$0xff]
        %v4516 = vld [vmem:[#allocation2 + $0x1e8] sm:$0xff]
        %v4517 = vld [vmem:[#allocation2 + $0x1f0] sm:$0xff]
        %v4518 = vld [vmem:[#allocation2 + $0x1f8] sm:$0xff]
        %v4519 = vadd.f32 %v4455, %v4296
        %v4520 = vadd.f32 %v4456, %v4298
        %v4521 = vadd.f32 %v4457, %v4301
        %v4522 = vadd.f32 %v4458, %v4303
        %v4523 = vadd.f32 %v4459, %v4306
        %v4524 = vadd.f32 %v4460, %v4308
        %v4525 = vadd.f32 %v4461, %v4311
        %v4526 = vadd.f32 %v4462, %v4313
        %v4527 = vadd.f32 %v4463, %v4316
        %v4528 = vadd.f32 %v4464, %v4318
        %v4529 = vadd.f32 %v4465, %v4321
        %v4530 = vadd.f32 %v4466, %v4323
        %v4531 = vadd.f32 %v4467, %v4326
        %v4532 = vadd.f32 %v4468, %v4328
        %v4533 = vadd.f32 %v4469, %v4331
        %v4534 = vadd.f32 %v4470, %v4333
        %v4535 = vadd.f32 %v4471, %v4336
        %v4536 = vadd.f32 %v4472, %v4338
        %v4537 = vadd.f32 %v4473, %v4341
        %v4538 = vadd.f32 %v4474, %v4343
        %v4539 = vadd.f32 %v4475, %v4346
        %v4540 = vadd.f32 %v4476, %v4348
        %v4541 = vadd.f32 %v4477, %v4351
        %v4542 = vadd.f32 %v4478, %v4353
        %v4543 = vadd.f32 %v4479, %v4356
        %v4544 = vadd.f32 %v4480, %v4358
        %v4545 = vadd.f32 %v4481, %v4361
        %v4546 = vadd.f32 %v4482, %v4363
        %v4547 = vadd.f32 %v4483, %v4366
        %v4548 = vadd.f32 %v4484, %v4368
        %v4549 = vadd.f32 %v4485, %v4371
        %v4550 = vadd.f32 %v4486, %v4373
        %v4551 = vadd.f32 %v4487, %v4376
        %v4552 = vadd.f32 %v4488, %v4378
        %v4553 = vadd.f32 %v4489, %v4381
        %v4554 = vadd.f32 %v4490, %v4383
        %v4555 = vadd.f32 %v4491, %v4386
        %v4556 = vadd.f32 %v4492, %v4388
        %v4557 = vadd.f32 %v4493, %v4391
        %v4558 = vadd.f32 %v4494, %v4393
        %v4559 = vadd.f32 %v4495, %v4396
        %v4560 = vadd.f32 %v4496, %v4398
        %v4561 = vadd.f32 %v4497, %v4401
        %v4562 = vadd.f32 %v4498, %v4403
        %v4563 = vadd.f32 %v4499, %v4406
        %v4564 = vadd.f32 %v4500, %v4408
        %v4565 = vadd.f32 %v4501, %v4411
        %v4566 = vadd.f32 %v4502, %v4413
        %v4567 = vadd.f32 %v4503, %v4416
        %v4568 = vadd.f32 %v4504, %v4418
        %v4569 = vadd.f32 %v4505, %v4421
        %v4570 = vadd.f32 %v4506, %v4423
        %v4571 = vadd.f32 %v4507, %v4426
        %v4572 = vadd.f32 %v4508, %v4428
        %v4573 = vadd.f32 %v4509, %v4431
        %v4574 = vadd.f32 %v4510, %v4433
        %v4575 = vadd.f32 %v4511, %v4436
        %v4576 = vadd.f32 %v4512, %v4438
        %v4577 = vadd.f32 %v4513, %v4441
        %v4578 = vadd.f32 %v4514, %v4443
        %v4579 = vadd.f32 %v4515, %v4446
        %v4580 = vadd.f32 %v4516, %v4448
        %v4581 = vadd.f32 %v4517, %v4451
        %v4582 = vadd.f32 %v4518, %v4453
        %v4583 = vld [vmem:[%s4] sm:$0x1]
        %v4585 = vperm.slane %v4583, 0
        %v4587 = vadd.f32 %v4519, %v4585
        %v4588 = vadd.f32 %v4520, %v4585
        %v4589 = vadd.f32 %v4521, %v4585
        %v4590 = vadd.f32 %v4522, %v4585
        %v4591 = vadd.f32 %v4523, %v4585
        %v4592 = vadd.f32 %v4524, %v4585
        %v4593 = vadd.f32 %v4525, %v4585
        %v4594 = vadd.f32 %v4526, %v4585
        %v4595 = vadd.f32 %v4527, %v4585
        %v4596 = vadd.f32 %v4528, %v4585
        %v4597 = vadd.f32 %v4529, %v4585
        %v4598 = vadd.f32 %v4530, %v4585
        %v4599 = vadd.f32 %v4531, %v4585
        %v4600 = vadd.f32 %v4532, %v4585
        %v4601 = vadd.f32 %v4533, %v4585
        %v4602 = vadd.f32 %v4534, %v4585
        %v4603 = vadd.f32 %v4535, %v4585
        %v4604 = vadd.f32 %v4536, %v4585
        %v4605 = vadd.f32 %v4537, %v4585
        %v4606 = vadd.f32 %v4538, %v4585
        %v4607 = vadd.f32 %v4539, %v4585
        %v4608 = vadd.f32 %v4540, %v4585
        %v4609 = vadd.f32 %v4541, %v4585
        %v4610 = vadd.f32 %v4542, %v4585
        %v4611 = vadd.f32 %v4543, %v4585
        %v4612 = vadd.f32 %v4544, %v4585
        %v4613 = vadd.f32 %v4545, %v4585
        %v4614 = vadd.f32 %v4546, %v4585
        %v4615 = vadd.f32 %v4547, %v4585
        %v4616 = vadd.f32 %v4548, %v4585
        %v4617 = vadd.f32 %v4549, %v4585
        %v4618 = vadd.f32 %v4550, %v4585
        %v4619 = vadd.f32 %v4551, %v4585
        %v4620 = vadd.f32 %v4552, %v4585
        %v4621 = vadd.f32 %v4553, %v4585
        %v4622 = vadd.f32 %v4554, %v4585
        %v4623 = vadd.f32 %v4555, %v4585
        %v4624 = vadd.f32 %v4556, %v4585
        %v4625 = vadd.f32 %v4557, %v4585
        %v4626 = vadd.f32 %v4558, %v4585
        %v4627 = vadd.f32 %v4559, %v4585
        %v4628 = vadd.f32 %v4560, %v4585
        %v4629 = vadd.f32 %v4561, %v4585
        %v4630 = vadd.f32 %v4562, %v4585
        %v4631 = vadd.f32 %v4563, %v4585
        %v4632 = vadd.f32 %v4564, %v4585
        %v4633 = vadd.f32 %v4565, %v4585
        %v4634 = vadd.f32 %v4566, %v4585
        %v4635 = vadd.f32 %v4567, %v4585
        %v4636 = vadd.f32 %v4568, %v4585
        %v4637 = vadd.f32 %v4569, %v4585
        %v4638 = vadd.f32 %v4570, %v4585
        %v4639 = vadd.f32 %v4571, %v4585
        %v4640 = vadd.f32 %v4572, %v4585
        %v4641 = vadd.f32 %v4573, %v4585
        %v4642 = vadd.f32 %v4574, %v4585
        %v4643 = vadd.f32 %v4575, %v4585
        %v4644 = vadd.f32 %v4576, %v4585
        %v4645 = vadd.f32 %v4577, %v4585
        %v4646 = vadd.f32 %v4578, %v4585
        %v4647 = vadd.f32 %v4579, %v4585
        %v4648 = vadd.f32 %v4580, %v4585
        %v4649 = vadd.f32 %v4581, %v4585
        %v4650 = vadd.f32 %v4582, %v4585
        %4651 = vst [vmem:[%s301] sm:$0xff] %v4587
        %4652 = vst [vmem:[%s301 + $0x8] sm:$0xff] %v4588
        %4653 = vst [vmem:[%s301 + $0x10] sm:$0xff] %v4589
        %4654 = vst [vmem:[%s301 + $0x18] sm:$0xff] %v4590
        %4655 = vst [vmem:[%s301 + $0x20] sm:$0xff] %v4591
        %4656 = vst [vmem:[%s301 + $0x28] sm:$0xff] %v4592
        %4657 = vst [vmem:[%s301 + $0x30] sm:$0xff] %v4593
        %4658 = vst [vmem:[%s301 + $0x38] sm:$0xff] %v4594
        %4659 = vst [vmem:[%s301 + $0x40] sm:$0xff] %v4595
        %4660 = vst [vmem:[%s301 + $0x48] sm:$0xff] %v4596
        %4661 = vst [vmem:[%s301 + $0x50] sm:$0xff] %v4597
        %4662 = vst [vmem:[%s301 + $0x58] sm:$0xff] %v4598
        %4663 = vst [vmem:[%s301 + $0x60] sm:$0xff] %v4599
        %4664 = vst [vmem:[%s301 + $0x68] sm:$0xff] %v4600
        %4665 = vst [vmem:[%s301 + $0x70] sm:$0xff] %v4601
        %4666 = vst [vmem:[%s301 + $0x78] sm:$0xff] %v4602
        %4667 = vst [vmem:[%s301 + $0x80] sm:$0xff] %v4603
        %4668 = vst [vmem:[%s301 + $0x88] sm:$0xff] %v4604
        %4669 = vst [vmem:[%s301 + $0x90] sm:$0xff] %v4605
        %4670 = vst [vmem:[%s301 + $0x98] sm:$0xff] %v4606
        %4671 = vst [vmem:[%s301 + $0xa0] sm:$0xff] %v4607
        %4672 = vst [vmem:[%s301 + $0xa8] sm:$0xff] %v4608
        %4673 = vst [vmem:[%s301 + $0xb0] sm:$0xff] %v4609
        %4674 = vst [vmem:[%s301 + $0xb8] sm:$0xff] %v4610
        %4675 = vst [vmem:[%s301 + $0xc0] sm:$0xff] %v4611
        %4676 = vst [vmem:[%s301 + $0xc8] sm:$0xff] %v4612
        %4677 = vst [vmem:[%s301 + $0xd0] sm:$0xff] %v4613
        %4678 = vst [vmem:[%s301 + $0xd8] sm:$0xff] %v4614
        %4679 = vst [vmem:[%s301 + $0xe0] sm:$0xff] %v4615
        %4680 = vst [vmem:[%s301 + $0xe8] sm:$0xff] %v4616
        %4681 = vst [vmem:[%s301 + $0xf0] sm:$0xff] %v4617
        %4682 = vst [vmem:[%s301 + $0xf8] sm:$0xff] %v4618
        %4683 = vst [vmem:[%s301 + $0x100] sm:$0xff] %v4619
        %4684 = vst [vmem:[%s301 + $0x108] sm:$0xff] %v4620
        %4685 = vst [vmem:[%s301 + $0x110] sm:$0xff] %v4621
        %4686 = vst [vmem:[%s301 + $0x118] sm:$0xff] %v4622
        %4687 = vst [vmem:[%s301 + $0x120] sm:$0xff] %v4623
        %4688 = vst [vmem:[%s301 + $0x128] sm:$0xff] %v4624
        %4689 = vst [vmem:[%s301 + $0x130] sm:$0xff] %v4625
        %4690 = vst [vmem:[%s301 + $0x138] sm:$0xff] %v4626
        %4691 = vst [vmem:[%s301 + $0x140] sm:$0xff] %v4627
        %4692 = vst [vmem:[%s301 + $0x148] sm:$0xff] %v4628
        %4693 = vst [vmem:[%s301 + $0x150] sm:$0xff] %v4629
        %4694 = vst [vmem:[%s301 + $0x158] sm:$0xff] %v4630
        %4695 = vst [vmem:[%s301 + $0x160] sm:$0xff] %v4631
        %4696 = vst [vmem:[%s301 + $0x168] sm:$0xff] %v4632
        %4697 = vst [vmem:[%s301 + $0x170] sm:$0xff] %v4633
        %4698 = vst [vmem:[%s301 + $0x178] sm:$0xff] %v4634
        %4699 = vst [vmem:[%s301 + $0x180] sm:$0xff] %v4635
        %4700 = vst [vmem:[%s301 + $0x188] sm:$0xff] %v4636
        %4701 = vst [vmem:[%s301 + $0x190] sm:$0xff] %v4637
        %4702 = vst [vmem:[%s301 + $0x198] sm:$0xff] %v4638
        %4703 = vst [vmem:[%s301 + $0x1a0] sm:$0xff] %v4639
        %4704 = vst [vmem:[%s301 + $0x1a8] sm:$0xff] %v4640
        %4705 = vst [vmem:[%s301 + $0x1b0] sm:$0xff] %v4641
        %4706 = vst [vmem:[%s301 + $0x1b8] sm:$0xff] %v4642
        %4707 = vst [vmem:[%s301 + $0x1c0] sm:$0xff] %v4643
        %4708 = vst [vmem:[%s301 + $0x1c8] sm:$0xff] %v4644
        %4709 = vst [vmem:[%s301 + $0x1d0] sm:$0xff] %v4645
        %4710 = vst [vmem:[%s301 + $0x1d8] sm:$0xff] %v4646
        %4711 = vst [vmem:[%s301 + $0x1e0] sm:$0xff] %v4647
        %4712 = vst [vmem:[%s301 + $0x1e8] sm:$0xff] %v4648
        %4713 = vst [vmem:[%s301 + $0x1f0] sm:$0xff] %v4649
        %4714 = vst [vmem:[%s301 + $0x1f8] sm:$0xff] %v4650
      $region48: #{sage_forward.11} parent=39 // pred_fallthru
        _
      %s4715 = smul.u32 64, %s20
      %p4716 = scmp.lt.s32.totalorder %s4715, 127
      %s4717 = scalar_select %p4716, %s4715, 127
      %s4718 = smul.addr %s4717, 8
      %s4719 = scalar_lea.vmem %s5, %s4718
      // Predicated region
      $region49: #{sage_forward.11} parent=39 // pred_check
        %p4720 = pneg %p168
      $region50: #{sage_forward.11} parent=39 // pred_check_branch
        %4722 = sbr.rel (%p4720) target = $region52
      $region51: #{sage_forward.11} parent=39 // pred_region
        %s4723 = smul.u32 64, %s20
      $region52: #{sage_forward.11} parent=39 // pred_fallthru
        _
    $region40: #{sage_forward.11} parent=5 // pred_fallthru
      _
    %p4724 = scmp.le.s32.totalorder 2, %s11
    // Predicated region
    $region53: #{sage_forward.11} parent=5 // pred_check
      %p4725 = pneg %p4724
    $region54: #{sage_forward.11} parent=5 // pred_check_branch
      %4727 = sbr.rel (%p4725) target = $region56
    $region55: #{sage_forward.11} parent=5 // pred_region
      %s4728 = ssub.s32 %s11, 2
      // Predicated region
      $region57: #{sage_forward.11} parent=55 // pred_check
        %p4729 = pneg %p174
      $region58: #{sage_forward.11} parent=55 // pred_check_branch
        %4731 = sbr.rel (%p4729) target = $region60
      $region59: #{sage_forward.11} parent=55 // pred_region
        %s4732 = smul.u32 64, %s22
        %p4733 = scmp.lt.s32.totalorder %s4732, 127
        %s4734 = scalar_select %p4733, %s4732, 127
        %s4735 = smul.addr %s4734, 8
        %s4736 = scalar_lea.vmem %s5, %s4735
      $region60: #{sage_forward.11} parent=55 // pred_fallthru
        _
    $region56: #{sage_forward.11} parent=5 // pred_fallthru
      _
  $region6: #{sage_forward.11} parent=0 // loop_footer
    %s15 = sadd.s32 1, %s11
  $region7: #{sage_forward.11} parent=0 // loop_footer_branch
    %10 = sbr.rel target = $region3
  $region8: #{sage_forward.11} parent=0 // loop_exit
    _

</llo_original>
